<compile_context>
chip_gen: v7x
topology: tpu7x:2x2x1
jax: 0.10.0
libtpu: 0.0.40
codegen_flags: <defaults>
</compile_context>

<pallas_src>
import jax
import jax.numpy as jnp
import numpy as np
from jax.experimental import pallas as pl
from jax.experimental.pallas import tpu as pltpu


def _round_up(v, m):
    return (v + m - 1) // m * m


def _make_conv_kernel(KH, KW, PW, S):
    """out[S, On] = sum_k roll(parity_plane[k] @ w[k], -shift_k) (f32 acc)."""

    def kernel(x_ref, w_ref, o_ref):
        # x_ref: (2, 2, S, C) bf16 parity planes (flattened PHxPW spatial)
        # w_ref: (KH*KW, C, On) bf16
        # o_ref: (S, On) f32
        first = True
        for kh in range(KH):
            for kw in range(KW):
                k = kh * KW + kw
                lhs = x_ref[kh % 2, kw % 2]                       # (S, C) bf16
                prod = jnp.dot(lhs, w_ref[k],
                               preferred_element_type=jnp.float32)  # (S, On) f32
                d = (kh // 2) * PW + (kw // 2)   # flat spatial shift of this tap
                if d:
                    # out[s] needs plane[s + d]; wrapped rows only touch the
                    # junk (cropped) output rows, so a plain roll is exact.
                    prod = pltpu.roll(prod, shift=S - d, axis=0)
                if first:
                    o_ref[...] = prod
                    first = False
                else:
                    o_ref[...] += prod

    return kernel


def conv2d_3x3_s2_p1(x_nchw, w_oihw):
    N, C, H, W = x_nchw.shape
    O, Ci, KH, KW = w_oihw.shape
    assert C == Ci and (KH, KW) == (3, 3)
    stride, pad = 2, 1
    Ho = (H + 2 * pad - KH) // stride + 1
    Wo = (W + 2 * pad - KW) // stride + 1

    # Parity-plane geometry: each plane holds every-other row/col of the
    # padded input; rounded up to sublane multiples so everything is aligned.
    PH = _round_up(-(-(H + 2 * pad) // 2), 8)
    PW = _round_up(-(-(W + 2 * pad) // 2), 8)
    # no-carry conditions for the flat-shift (roll) trick
    assert Ho + (KH - 1) // 2 <= PH and Wo + (KW - 1) // 2 <= PW
    S = N * PH * PW

    # NCHW -> NHWC, zero-pad to (2*PH, 2*PW), split into the 4 stride-2 parity
    # planes (no duplication), flatten spatial, cast to bf16.
    x_nhwc = jnp.transpose(x_nchw, (0, 2, 3, 1))
    xp = jnp.pad(x_nhwc, ((0, 0),
                          (pad, 2 * PH - H - pad),
                          (pad, 2 * PW - W - pad),
                          (0, 0)))
    planes = xp.reshape(N, PH, 2, PW, 2, C).transpose(2, 4, 0, 1, 3, 5)
    planes = planes.reshape(2, 2, S, C).astype(jnp.bfloat16)

    # OIHW -> per-tap (C, O), bf16.
    w_taps = jnp.transpose(w_oihw, (2, 3, 1, 0)).reshape(KH * KW, C, O)
    w_taps = w_taps.astype(jnp.bfloat16)

    # Split output channels across (up to) two cores (v7x has 2 TensorCores).
    n_split = 2 if O % 256 == 0 else 1
    On = O // n_split

    cost = pl.CostEstimate(
        flops=2 * KH * KW * S * C * O,
        transcendentals=0,
        bytes_accessed=planes.size * 2 + w_taps.size * 2 + S * O * 4,
    )

    out_flat = pl.pallas_call(
        _make_conv_kernel(KH, KW, PW, S),
        out_shape=jax.ShapeDtypeStruct((S, O), jnp.float32),
        grid_spec=pltpu.PrefetchScalarGridSpec(
            num_scalar_prefetch=0,
            grid=(n_split,),
            in_specs=[
                pl.BlockSpec((2, 2, S, C), lambda j: (0, 0, 0, 0)),
                pl.BlockSpec((KH * KW, C, On), lambda j: (0, 0, j)),
            ],
            out_specs=pl.BlockSpec((S, On), lambda j: (0, j)),
        ),
        compiler_params=pltpu.CompilerParams(
            dimension_semantics=("parallel",)),
        cost_estimate=cost,
    )(planes, w_taps)

    # (N*PH*PW, O) -> crop junk rows/cols -> NCHW
    out = out_flat.reshape(N, PH, PW, O)[:, :Ho, :Wo, :]
    return jnp.transpose(out, (0, 3, 1, 2))


if __name__ == "__main__":
    key = jax.random.PRNGKey(0)
    kx, kw = jax.random.split(key)

    # Input matching the module's x121: (1, 256, 28, 28)
    x = jax.random.normal(kx, (1, 256, 28, 28), dtype=jnp.float32)

    # Conv2d(256, 256, 3, stride=2, padding=1, bias=False): weight (256, 256, 3, 3)
    fan_in = 256 * 3 * 3
    w = jax.random.normal(kw, (256, 256, 3, 3), dtype=jnp.float32) * (2.0 / fan_in) ** 0.5

    conv = jax.jit(conv2d_3x3_s2_p1)
    y = jax.block_until_ready(conv(x, w))
    assert y.shape == (1, 256, 14, 14), y.shape

    # Sanity check against XLA's conv (same semantics as the PyTorch module).
    y_ref = jax.lax.conv_general_dilated(
        x, w, window_strides=(2, 2), padding=((1, 1), (1, 1)),
        dimension_numbers=("NCHW", "OIHW", "NCHW"),
        precision=jax.lax.Precision.HIGHEST)
    np.testing.assert_allclose(np.asarray(y), np.asarray(y_ref),
                               rtol=5e-2, atol=5e-2)

    print("KERNEL_OK")
</pallas_src>

<mosaic_0001>
module attributes {stable_mosaic.version = 11 : i64} {
  func.func @kernel(%arg0: i32, %arg1: memref<2x2x256x256xbf16, #tpu.memory_space<vmem>>, %arg2: memref<9x256x128xbf16, #tpu.memory_space<vmem>>, %arg3: memref<256x128xf32, #tpu.memory_space<vmem>>) attributes {dimension_semantics = [#tpu.dimension_semantics<parallel>], iteration_bounds = array<i64: 2>, scalar_prefetch = 0 : i64, scratch_operands = 0 : i64, tpu.core_type = #tpu.core_type<tc>, window_params = [{pipeline_mode = #tpu.pipeline_mode<synchronous>, transform_indices = @transform_0, window_bounds = array<i64: 2, 2, 256, 256>}, {transform_indices = @transform_1, window_bounds = array<i64: 9, 256, 128>}, {transform_indices = @transform_2, window_bounds = array<i64: 256, 128>}]} {
    %c0 = arith.constant 0 : index
    %c0_0 = arith.constant 0 : index
    %c0_1 = arith.constant 0 : index
    %c0_2 = arith.constant 0 : index
    %0 = vector.load %arg1[%c0, %c0_0, %c0_1, %c0_2] : memref<2x2x256x256xbf16, #tpu.memory_space<vmem>>, vector<1x1x256x256xbf16>
    %1 = vector.shape_cast %0 : vector<1x1x256x256xbf16> to vector<256x256xbf16>
    %c0_3 = arith.constant 0 : index
    %c0_4 = arith.constant 0 : index
    %c0_5 = arith.constant 0 : index
    %2 = vector.load %arg2[%c0_3, %c0_4, %c0_5] : memref<9x256x128xbf16, #tpu.memory_space<vmem>>, vector<1x256x128xbf16>
    %3 = vector.shape_cast %2 : vector<1x256x128xbf16> to vector<256x128xbf16>
    %cst = arith.constant dense<0.000000e+00> : vector<256x128xf32>
    %4 = tpu.matmul %1, %3, %cst {dimension_numbers = #tpu.dot_dimension_numbers<[1], [0], [0], [1], [0, 0, 1, 1], [], []>} : vector<256x256xbf16>, vector<256x128xbf16>, vector<256x128xf32> -> vector<256x128xf32>
    %c0_6 = arith.constant 0 : index
    %c0_7 = arith.constant 0 : index
    %5 = vector.load %arg3[%c0_6, %c0_7] : memref<256x128xf32, #tpu.memory_space<vmem>>, vector<256x128xf32>
    tpu.vector_store %arg3[%c0_6, %c0_7], %4 {strides = array<i32>} : memref<256x128xf32, #tpu.memory_space<vmem>>, vector<256x128xf32>,
    %c0_8 = arith.constant 0 : index
    %c1 = arith.constant 1 : index
    %c0_9 = arith.constant 0 : index
    %c0_10 = arith.constant 0 : index
    %6 = vector.load %arg1[%c0_8, %c1, %c0_9, %c0_10] : memref<2x2x256x256xbf16, #tpu.memory_space<vmem>>, vector<1x1x256x256xbf16>
    %7 = vector.shape_cast %6 : vector<1x1x256x256xbf16> to vector<256x256xbf16>
    %c1_11 = arith.constant 1 : index
    %c0_12 = arith.constant 0 : index
    %c0_13 = arith.constant 0 : index
    %8 = vector.load %arg2[%c1_11, %c0_12, %c0_13] : memref<9x256x128xbf16, #tpu.memory_space<vmem>>, vector<1x256x128xbf16>
    %9 = vector.shape_cast %8 : vector<1x256x128xbf16> to vector<256x128xbf16>
    %cst_14 = arith.constant dense<0.000000e+00> : vector<256x128xf32>
    %10 = tpu.matmul %7, %9, %cst_14 {dimension_numbers = #tpu.dot_dimension_numbers<[1], [0], [0], [1], [0, 0, 1, 1], [], []>} : vector<256x256xbf16>, vector<256x128xbf16>, vector<256x128xf32> -> vector<256x128xf32>
    %c0_15 = arith.constant 0 : index
    %c0_16 = arith.constant 0 : index
    %11 = vector.load %arg3[%c0_15, %c0_16] : memref<256x128xf32, #tpu.memory_space<vmem>>, vector<256x128xf32>
    %12 = arith.addf %11, %10 : vector<256x128xf32>
    %c0_17 = arith.constant 0 : index
    %c0_18 = arith.constant 0 : index
    %13 = vector.load %arg3[%c0_17, %c0_18] : memref<256x128xf32, #tpu.memory_space<vmem>>, vector<256x128xf32>
    tpu.vector_store %arg3[%c0_17, %c0_18], %12 {strides = array<i32>} : memref<256x128xf32, #tpu.memory_space<vmem>>, vector<256x128xf32>,
    %c0_19 = arith.constant 0 : index
    %c0_20 = arith.constant 0 : index
    %c0_21 = arith.constant 0 : index
    %c0_22 = arith.constant 0 : index
    %14 = vector.load %arg1[%c0_19, %c0_20, %c0_21, %c0_22] : memref<2x2x256x256xbf16, #tpu.memory_space<vmem>>, vector<1x1x256x256xbf16>
    %15 = vector.shape_cast %14 : vector<1x1x256x256xbf16> to vector<256x256xbf16>
    %c2 = arith.constant 2 : index
    %c0_23 = arith.constant 0 : index
    %c0_24 = arith.constant 0 : index
    %16 = vector.load %arg2[%c2, %c0_23, %c0_24] : memref<9x256x128xbf16, #tpu.memory_space<vmem>>, vector<1x256x128xbf16>
    %17 = vector.shape_cast %16 : vector<1x256x128xbf16> to vector<256x128xbf16>
    %cst_25 = arith.constant dense<0.000000e+00> : vector<256x128xf32>
    %18 = tpu.matmul %15, %17, %cst_25 {dimension_numbers = #tpu.dot_dimension_numbers<[1], [0], [0], [1], [0, 0, 1, 1], [], []>} : vector<256x256xbf16>, vector<256x128xbf16>, vector<256x128xf32> -> vector<256x128xf32>
    %c255_i32 = arith.constant 255 : i32
    %19 = tpu.dynamic_rotate %18 by %c255_i32 dim 0 : vector<256x128xf32>, i32 -> vector<256x128xf32>
    %c0_26 = arith.constant 0 : index
    %c0_27 = arith.constant 0 : index
    %20 = vector.load %arg3[%c0_26, %c0_27] : memref<256x128xf32, #tpu.memory_space<vmem>>, vector<256x128xf32>
    %21 = arith.addf %20, %19 : vector<256x128xf32>
    %c0_28 = arith.constant 0 : index
    %c0_29 = arith.constant 0 : index
    %22 = vector.load %arg3[%c0_28, %c0_29] : memref<256x128xf32, #tpu.memory_space<vmem>>, vector<256x128xf32>
    tpu.vector_store %arg3[%c0_28, %c0_29], %21 {strides = array<i32>} : memref<256x128xf32, #tpu.memory_space<vmem>>, vector<256x128xf32>,
    %c1_30 = arith.constant 1 : index
    %c0_31 = arith.constant 0 : index
    %c0_32 = arith.constant 0 : index
    %c0_33 = arith.constant 0 : index
    %23 = vector.load %arg1[%c1_30, %c0_31, %c0_32, %c0_33] : memref<2x2x256x256xbf16, #tpu.memory_space<vmem>>, vector<1x1x256x256xbf16>
    %24 = vector.shape_cast %23 : vector<1x1x256x256xbf16> to vector<256x256xbf16>
    %c3 = arith.constant 3 : index
    %c0_34 = arith.constant 0 : index
    %c0_35 = arith.constant 0 : index
    %25 = vector.load %arg2[%c3, %c0_34, %c0_35] : memref<9x256x128xbf16, #tpu.memory_space<vmem>>, vector<1x256x128xbf16>
    %26 = vector.shape_cast %25 : vector<1x256x128xbf16> to vector<256x128xbf16>
    %cst_36 = arith.constant dense<0.000000e+00> : vector<256x128xf32>
    %27 = tpu.matmul %24, %26, %cst_36 {dimension_numbers = #tpu.dot_dimension_numbers<[1], [0], [0], [1], [0, 0, 1, 1], [], []>} : vector<256x256xbf16>, vector<256x128xbf16>, vector<256x128xf32> -> vector<256x128xf32>
    %c0_37 = arith.constant 0 : index
    %c0_38 = arith.constant 0 : index
    %28 = vector.load %arg3[%c0_37, %c0_38] : memref<256x128xf32, #tpu.memory_space<vmem>>, vector<256x128xf32>
    %29 = arith.addf %28, %27 : vector<256x128xf32>
    %c0_39 = arith.constant 0 : index
    %c0_40 = arith.constant 0 : index
    %30 = vector.load %arg3[%c0_39, %c0_40] : memref<256x128xf32, #tpu.memory_space<vmem>>, vector<256x128xf32>
    tpu.vector_store %arg3[%c0_39, %c0_40], %29 {strides = array<i32>} : memref<256x128xf32, #tpu.memory_space<vmem>>, vector<256x128xf32>,
    %c1_41 = arith.constant 1 : index
    %c1_42 = arith.constant 1 : index
    %c0_43 = arith.constant 0 : index
    %c0_44 = arith.constant 0 : index
    %31 = vector.load %arg1[%c1_41, %c1_42, %c0_43, %c0_44] : memref<2x2x256x256xbf16, #tpu.memory_space<vmem>>, vector<1x1x256x256xbf16>
    %32 = vector.shape_cast %31 : vector<1x1x256x256xbf16> to vector<256x256xbf16>
    %c4 = arith.constant 4 : index
    %c0_45 = arith.constant 0 : index
    %c0_46 = arith.constant 0 : index
    %33 = vector.load %arg2[%c4, %c0_45, %c0_46] : memref<9x256x128xbf16, #tpu.memory_space<vmem>>, vector<1x256x128xbf16>
    %34 = vector.shape_cast %33 : vector<1x256x128xbf16> to vector<256x128xbf16>
    %cst_47 = arith.constant dense<0.000000e+00> : vector<256x128xf32>
    %35 = tpu.matmul %32, %34, %cst_47 {dimension_numbers = #tpu.dot_dimension_numbers<[1], [0], [0], [1], [0, 0, 1, 1], [], []>} : vector<256x256xbf16>, vector<256x128xbf16>, vector<256x128xf32> -> vector<256x128xf32>
    %c0_48 = arith.constant 0 : index
    %c0_49 = arith.constant 0 : index
    %36 = vector.load %arg3[%c0_48, %c0_49] : memref<256x128xf32, #tpu.memory_space<vmem>>, vector<256x128xf32>
    %37 = arith.addf %36, %35 : vector<256x128xf32>
    %c0_50 = arith.constant 0 : index
    %c0_51 = arith.constant 0 : index
    %38 = vector.load %arg3[%c0_50, %c0_51] : memref<256x128xf32, #tpu.memory_space<vmem>>, vector<256x128xf32>
    tpu.vector_store %arg3[%c0_50, %c0_51], %37 {strides = array<i32>} : memref<256x128xf32, #tpu.memory_space<vmem>>, vector<256x128xf32>,
    %c1_52 = arith.constant 1 : index
    %c0_53 = arith.constant 0 : index
    %c0_54 = arith.constant 0 : index
    %c0_55 = arith.constant 0 : index
    %39 = vector.load %arg1[%c1_52, %c0_53, %c0_54, %c0_55] : memref<2x2x256x256xbf16, #tpu.memory_space<vmem>>, vector<1x1x256x256xbf16>
    %40 = vector.shape_cast %39 : vector<1x1x256x256xbf16> to vector<256x256xbf16>
    %c5 = arith.constant 5 : index
    %c0_56 = arith.constant 0 : index
    %c0_57 = arith.constant 0 : index
    %41 = vector.load %arg2[%c5, %c0_56, %c0_57] : memref<9x256x128xbf16, #tpu.memory_space<vmem>>, vector<1x256x128xbf16>
    %42 = vector.shape_cast %41 : vector<1x256x128xbf16> to vector<256x128xbf16>
    %cst_58 = arith.constant dense<0.000000e+00> : vector<256x128xf32>
    %43 = tpu.matmul %40, %42, %cst_58 {dimension_numbers = #tpu.dot_dimension_numbers<[1], [0], [0], [1], [0, 0, 1, 1], [], []>} : vector<256x256xbf16>, vector<256x128xbf16>, vector<256x128xf32> -> vector<256x128xf32>
    %c255_i32_59 = arith.constant 255 : i32
    %44 = tpu.dynamic_rotate %43 by %c255_i32_59 dim 0 : vector<256x128xf32>, i32 -> vector<256x128xf32>
    %c0_60 = arith.constant 0 : index
    %c0_61 = arith.constant 0 : index
    %45 = vector.load %arg3[%c0_60, %c0_61] : memref<256x128xf32, #tpu.memory_space<vmem>>, vector<256x128xf32>
    %46 = arith.addf %45, %44 : vector<256x128xf32>
    %c0_62 = arith.constant 0 : index
    %c0_63 = arith.constant 0 : index
    %47 = vector.load %arg3[%c0_62, %c0_63] : memref<256x128xf32, #tpu.memory_space<vmem>>, vector<256x128xf32>
    tpu.vector_store %arg3[%c0_62, %c0_63], %46 {strides = array<i32>} : memref<256x128xf32, #tpu.memory_space<vmem>>, vector<256x128xf32>,
    %c0_64 = arith.constant 0 : index
    %c0_65 = arith.constant 0 : index
    %c0_66 = arith.constant 0 : index
    %c0_67 = arith.constant 0 : index
    %48 = vector.load %arg1[%c0_64, %c0_65, %c0_66, %c0_67] : memref<2x2x256x256xbf16, #tpu.memory_space<vmem>>, vector<1x1x256x256xbf16>
    %49 = vector.shape_cast %48 : vector<1x1x256x256xbf16> to vector<256x256xbf16>
    %c6 = arith.constant 6 : index
    %c0_68 = arith.constant 0 : index
    %c0_69 = arith.constant 0 : index
    %50 = vector.load %arg2[%c6, %c0_68, %c0_69] : memref<9x256x128xbf16, #tpu.memory_space<vmem>>, vector<1x256x128xbf16>
    %51 = vector.shape_cast %50 : vector<1x256x128xbf16> to vector<256x128xbf16>
    %cst_70 = arith.constant dense<0.000000e+00> : vector<256x128xf32>
    %52 = tpu.matmul %49, %51, %cst_70 {dimension_numbers = #tpu.dot_dimension_numbers<[1], [0], [0], [1], [0, 0, 1, 1], [], []>} : vector<256x256xbf16>, vector<256x128xbf16>, vector<256x128xf32> -> vector<256x128xf32>
    %c240_i32 = arith.constant 240 : i32
    %53 = tpu.dynamic_rotate %52 by %c240_i32 dim 0 : vector<256x128xf32>, i32 -> vector<256x128xf32>
    %c0_71 = arith.constant 0 : index
    %c0_72 = arith.constant 0 : index
    %54 = vector.load %arg3[%c0_71, %c0_72] : memref<256x128xf32, #tpu.memory_space<vmem>>, vector<256x128xf32>
    %55 = arith.addf %54, %53 : vector<256x128xf32>
    %c0_73 = arith.constant 0 : index
    %c0_74 = arith.constant 0 : index
    %56 = vector.load %arg3[%c0_73, %c0_74] : memref<256x128xf32, #tpu.memory_space<vmem>>, vector<256x128xf32>
    tpu.vector_store %arg3[%c0_73, %c0_74], %55 {strides = array<i32>} : memref<256x128xf32, #tpu.memory_space<vmem>>, vector<256x128xf32>,
    %c0_75 = arith.constant 0 : index
    %c1_76 = arith.constant 1 : index
    %c0_77 = arith.constant 0 : index
    %c0_78 = arith.constant 0 : index
    %57 = vector.load %arg1[%c0_75, %c1_76, %c0_77, %c0_78] : memref<2x2x256x256xbf16, #tpu.memory_space<vmem>>, vector<1x1x256x256xbf16>
    %58 = vector.shape_cast %57 : vector<1x1x256x256xbf16> to vector<256x256xbf16>
    %c7 = arith.constant 7 : index
    %c0_79 = arith.constant 0 : index
    %c0_80 = arith.constant 0 : index
    %59 = vector.load %arg2[%c7, %c0_79, %c0_80] : memref<9x256x128xbf16, #tpu.memory_space<vmem>>, vector<1x256x128xbf16>
    %60 = vector.shape_cast %59 : vector<1x256x128xbf16> to vector<256x128xbf16>
    %cst_81 = arith.constant dense<0.000000e+00> : vector<256x128xf32>
    %61 = tpu.matmul %58, %60, %cst_81 {dimension_numbers = #tpu.dot_dimension_numbers<[1], [0], [0], [1], [0, 0, 1, 1], [], []>} : vector<256x256xbf16>, vector<256x128xbf16>, vector<256x128xf32> -> vector<256x128xf32>
    %c240_i32_82 = arith.constant 240 : i32
    %62 = tpu.dynamic_rotate %61 by %c240_i32_82 dim 0 : vector<256x128xf32>, i32 -> vector<256x128xf32>
    %c0_83 = arith.constant 0 : index
    %c0_84 = arith.constant 0 : index
    %63 = vector.load %arg3[%c0_83, %c0_84] : memref<256x128xf32, #tpu.memory_space<vmem>>, vector<256x128xf32>
    %64 = arith.addf %63, %62 : vector<256x128xf32>
    %c0_85 = arith.constant 0 : index
    %c0_86 = arith.constant 0 : index
    %65 = vector.load %arg3[%c0_85, %c0_86] : memref<256x128xf32, #tpu.memory_space<vmem>>, vector<256x128xf32>
    tpu.vector_store %arg3[%c0_85, %c0_86], %64 {strides = array<i32>} : memref<256x128xf32, #tpu.memory_space<vmem>>, vector<256x128xf32>,
    %c0_87 = arith.constant 0 : index
    %c0_88 = arith.constant 0 : index
    %c0_89 = arith.constant 0 : index
    %c0_90 = arith.constant 0 : index
    %66 = vector.load %arg1[%c0_87, %c0_88, %c0_89, %c0_90] : memref<2x2x256x256xbf16, #tpu.memory_space<vmem>>, vector<1x1x256x256xbf16>
    %67 = vector.shape_cast %66 : vector<1x1x256x256xbf16> to vector<256x256xbf16>
    %c8 = arith.constant 8 : index
    %c0_91 = arith.constant 0 : index
    %c0_92 = arith.constant 0 : index
    %68 = vector.load %arg2[%c8, %c0_91, %c0_92] : memref<9x256x128xbf16, #tpu.memory_space<vmem>>, vector<1x256x128xbf16>
    %69 = vector.shape_cast %68 : vector<1x256x128xbf16> to vector<256x128xbf16>
    %cst_93 = arith.constant dense<0.000000e+00> : vector<256x128xf32>
    %70 = tpu.matmul %67, %69, %cst_93 {dimension_numbers = #tpu.dot_dimension_numbers<[1], [0], [0], [1], [0, 0, 1, 1], [], []>} : vector<256x256xbf16>, vector<256x128xbf16>, vector<256x128xf32> -> vector<256x128xf32>
    %c239_i32 = arith.constant 239 : i32
    %71 = tpu.dynamic_rotate %70 by %c239_i32 dim 0 : vector<256x128xf32>, i32 -> vector<256x128xf32>
    %c0_94 = arith.constant 0 : index
    %c0_95 = arith.constant 0 : index
    %72 = vector.load %arg3[%c0_94, %c0_95] : memref<256x128xf32, #tpu.memory_space<vmem>>, vector<256x128xf32>
    %73 = arith.addf %72, %71 : vector<256x128xf32>
    %c0_96 = arith.constant 0 : index
    %c0_97 = arith.constant 0 : index
    %74 = vector.load %arg3[%c0_96, %c0_97] : memref<256x128xf32, #tpu.memory_space<vmem>>, vector<256x128xf32>
    tpu.vector_store %arg3[%c0_96, %c0_97], %73 {strides = array<i32>} : memref<256x128xf32, #tpu.memory_space<vmem>>, vector<256x128xf32>,
    return
  }
  func.func @transform_0(%arg0: i32) -> (i32, i32, i32, i32) {
    %c0_i32 = arith.constant 0 : i32
    %c0_i32_0 = arith.constant 0 : i32
    %c0_i32_1 = arith.constant 0 : i32
    %c0_i32_2 = arith.constant 0 : i32
    %c0_i32_3 = arith.constant 0 : i32
    return %c0_i32, %c0_i32_0, %c0_i32_1, %c0_i32_2 : i32, i32, i32, i32
  }
  func.func @transform_1(%arg0: i32) -> (i32, i32, i32) {
    %c0_i32 = arith.constant 0 : i32
    %c0_i32_0 = arith.constant 0 : i32
    %c0_i32_1 = arith.constant 0 : i32
    return %c0_i32, %c0_i32_0, %arg0 : i32, i32, i32
  }
  func.func @transform_2(%arg0: i32) -> (i32, i32) {
    %c0_i32 = arith.constant 0 : i32
    %c0_i32_0 = arith.constant 0 : i32
    return %c0_i32, %arg0 : i32, i32
  }
}

</mosaic_0001>

<llo_original>
// kernel: conv2d_3x3_s2_p1.1
$region0: #{conv2d_3x3_s2_p1.1}
  #allocation0 [shape = 'u32[]', space=smem, size = 0x4, offset = 0x4, fixed_abs, tag = 'smem constant byte address 0x4 - core index']
  #allocation1 [shape = 'u32[144,128]{1,0:T(1,128)}', space=vmem, size = 0x12000, scoped, tag = 'internal scratch']
  %s0 = inlined_call_operand.vmem [shape: bf16[2,2,256,256], index: 0, kind: input, shape index: {}]
  %s1 = inlined_call_operand.vmem [shape: bf16[9,256,256], index: 1, kind: input, shape index: {}]
  %s2 = inlined_call_operand.vmem [shape: f32[256,256], index: 2, kind: output, shape index: {}]
  %s3 = sld [smem:[#allocation0]]
  $region116: #{conv2d_3x3_s2_p1.1} parent=0
    _
  %s5 = ssub.s32 1, %s3
  %s6 = scalar_select 0, %s5, %s3
  $region1: #{conv2d_3x3_s2_p1.1} parent=0
    #allocation2 [shape = 'u8[1179648]{0}', space=vmem, size = 0x120000, scoped, tag = 'input window, operand 1']
    #allocation3 [shape = 'u8[262144]{0}', space=vmem, size = 0x40000, scoped, tag = 'output window, operand 0']
    loop: start=0, step=1, limit=4
    $region2: #{conv2d_3x3_s2_p1.1} parent=1 // loop_pre_header
      _
    $region3: #{conv2d_3x3_s2_p1.1} parent=1 // loop_header
      %s8 = sphi 0, %s12
      %p9 = scmp.ge.s32.totalorder %s8, 4
      %s16 = sphi 0, %s16
      %s18 = sphi 0, %s16
      %s19 = sphi 0, %s18
      %s33 = sphi 0, %s19
      %s39 = sphi 0, %s41
      %s42 = sphi 0, %s39
      %s43 = sphi 0, %s42
      %s59 = sphi 0, %s43
      %s65 = sphi 0, %s67
      %s68 = sphi 0, %s65
      %s69 = sphi 0, %s68
      %s85 = sphi 0, %s69
    $region4: #{conv2d_3x3_s2_p1.1} parent=1 // loop_header_branch
      %11 = sbr.rel (%p9) target = $region8
    $region5: #{conv2d_3x3_s2_p1.1} parent=1 // loop_body
      %s13 = ssub.s32 %s8, 1
      %s14 = ssub.s32 %s8, 2
      %s15 = sadd.s32 %s8, 1
      %s17 = sadd.s32 %s16, 1
      %p20 = scmp.eq.s32.totalorder %s8, 1
      %p21 = scmp.ne.s32.totalorder %s16, %s18
      %p22 = scmp.eq.s32.totalorder %s8, 0
      %p23 = por %p21, %p22
      %p24 = scmp.ne.s32.totalorder %s16, %s18
      %p25 = scmp.eq.s32.totalorder %s13, 1
      %p26 = por %p24, %p25
      %p27 = scmp.ne.s32.totalorder %s18, %s19
      %p28 = scmp.eq.s32.totalorder %s13, 0
      %p29 = por %p27, %p28
      %p30 = scmp.ne.s32.totalorder %s18, %s19
      %p31 = scmp.eq.s32.totalorder %s14, 1
      %p32 = por %p30, %p31
      %p34 = scmp.ne.s32.totalorder %s19, %s33
      %p35 = scmp.eq.s32.totalorder %s14, 0
      %p36 = por %p34, %p35
      %s37 = ssub.s32 %s8, %s15
      %p38 = scmp.eq.s32.totalorder %s37, 0
      %s40 = sadd.s32 %s39, 1
      %s41 = scalar_select %p38, %s39, %s40
      %p44 = pneg %p38
      %p45 = scmp.eq.s32.totalorder %s8, 1
      %p46 = por %p44, %p45
      %p47 = scmp.ne.s32.totalorder %s39, %s42
      %p48 = scmp.eq.s32.totalorder %s8, 0
      %p49 = por %p47, %p48
      %p50 = scmp.ne.s32.totalorder %s39, %s42
      %p51 = scmp.eq.s32.totalorder %s13, 1
      %p52 = por %p50, %p51
      %p53 = scmp.ne.s32.totalorder %s42, %s43
      %p54 = scmp.eq.s32.totalorder %s13, 0
      %p55 = por %p53, %p54
      %p56 = scmp.ne.s32.totalorder %s42, %s43
      %p57 = scmp.eq.s32.totalorder %s14, 1
      %p58 = por %p56, %p57
      %p60 = scmp.ne.s32.totalorder %s43, %s59
      %p61 = scmp.eq.s32.totalorder %s14, 0
      %p62 = por %p60, %p61
      %s63 = ssub.s32 %s8, %s15
      %p64 = scmp.eq.s32.totalorder %s63, 0
      %s66 = sadd.s32 %s65, 1
      %s67 = scalar_select %p64, %s65, %s66
      %p70 = pneg %p64
      %p71 = scmp.eq.s32.totalorder %s8, 1
      %p72 = por %p70, %p71
      %p73 = scmp.ne.s32.totalorder %s65, %s68
      %p74 = scmp.eq.s32.totalorder %s8, 0
      %p75 = por %p73, %p74
      %p76 = scmp.ne.s32.totalorder %s65, %s68
      %p77 = scmp.eq.s32.totalorder %s13, 1
      %p78 = por %p76, %p77
      %p79 = scmp.ne.s32.totalorder %s68, %s69
      %p80 = scmp.eq.s32.totalorder %s13, 0
      %p81 = por %p79, %p80
      %p82 = scmp.ne.s32.totalorder %s68, %s69
      %p83 = scmp.eq.s32.totalorder %s14, 1
      %p84 = por %p82, %p83
      %p86 = scmp.ne.s32.totalorder %s69, %s85
      %p87 = scmp.eq.s32.totalorder %s14, 0
      %p88 = por %p86, %p87
      %p89 = scmp.le.s32.totalorder 1, %s8
      %p90 = scmp.lt.s32.totalorder %s8, 3
      %p91 = pnand %p89, %p90
      %p92 = pneg %p91
      // Predicated region
      $region9: #{conv2d_3x3_s2_p1.1} parent=5 // pred_check
        _
      $region10: #{conv2d_3x3_s2_p1.1} parent=5 // pred_check_branch
        %94 = sbr.rel (%p91) target = $region12
      $region11: #{conv2d_3x3_s2_p1.1} parent=5 // pred_region
        %s95 = ssub.s32 %s8, 1
        // Predicated region
        $region13: #{conv2d_3x3_s2_p1.1} parent=11 // pred_check
          %p96 = pneg %p29
        $region14: #{conv2d_3x3_s2_p1.1} parent=11 // pred_check_branch
          %98 = sbr.rel (%p96) target = $region16
        $region15: #{conv2d_3x3_s2_p1.1} parent=11 // pred_region
          _
        $region16: #{conv2d_3x3_s2_p1.1} parent=11 // pred_fallthru
          _
      $region12: #{conv2d_3x3_s2_p1.1} parent=5 // pred_fallthru
        _
      %p99 = scmp.lt.s32.totalorder %s8, 2
      // Predicated region
      $region17: #{conv2d_3x3_s2_p1.1} parent=5 // pred_check
        %p100 = pneg %p99
      $region18: #{conv2d_3x3_s2_p1.1} parent=5 // pred_check_branch
        %102 = sbr.rel (%p100) target = $region20
      $region19: #{conv2d_3x3_s2_p1.1} parent=5 // pred_region
        // Predicated region
        $region21: #{conv2d_3x3_s2_p1.1} parent=19 // pred_check
          %p103 = pneg %p49
        $region22: #{conv2d_3x3_s2_p1.1} parent=19 // pred_check_branch
          %105 = sbr.rel (%p103) target = $region24
        $region23: #{conv2d_3x3_s2_p1.1} parent=19 // pred_region
          %s106 = sand.u32 %s39, 1
          %s107 = sand.u32 %s39, 1
          %s108 = smul.addr %s107, 1152
          %s109 = scalar_lea.vmem [#allocation2], %s108
          %s110 = smul.addr %s8, 4
          %s111 = scalar_lea.vmem %s1, %s110
          // Predicated region
          $region25: #{conv2d_3x3_s2_p1.1} parent=23 // pred_check
            _
          $region26: #{conv2d_3x3_s2_p1.1} parent=23 // pred_check_branch
            %113 = sbr.rel (0) target = $region28
          $region27: #{conv2d_3x3_s2_p1.1} parent=23 // pred_region
            // Predicated region
            $region29: #{conv2d_3x3_s2_p1.1} parent=27 // pred_check
              _
            $region30: #{conv2d_3x3_s2_p1.1} parent=27 // pred_check_branch
              %115 = sbr.rel target = $region32
            $region31: #{conv2d_3x3_s2_p1.1} parent=27 // pred_region
              // Predicated region
              $region44: #{conv2d_3x3_s2_p1.1} parent=31 // pred_check
                _
              $region45: #{conv2d_3x3_s2_p1.1} parent=31 // pred_check_branch
                %704 = sbr.rel (0) target = $region47
              $region46: #{conv2d_3x3_s2_p1.1} parent=31 // pred_region
                loop: start=0, step=1, limit=1
                $region48: #{conv2d_3x3_s2_p1.1} parent=46 // loop_pre_header
                  _
                $region49: #{conv2d_3x3_s2_p1.1} parent=46 // loop_header
                  %s706 = sphi 0, %s710
                  %p707 = scmp.ge.s32.totalorder %s706, 1
                  %s711 = sphi %s111, %s111
                  %s712 = sphi %s109, %s109
                $region50: #{conv2d_3x3_s2_p1.1} parent=46 // loop_header_branch
                  %709 = sbr.rel (%p707) target = $region54
                $region51: #{conv2d_3x3_s2_p1.1} parent=46 // loop_body
                  _
                $region52: #{conv2d_3x3_s2_p1.1} parent=46 // loop_footer
                  %s710 = sadd.s32 1, %s706
                $region53: #{conv2d_3x3_s2_p1.1} parent=46 // loop_footer_branch
                  %705 = sbr.rel target = $region49
                $region54: #{conv2d_3x3_s2_p1.1} parent=46 // loop_exit
                  _
                loop: start=0, step=1, limit=1
                $region55: #{conv2d_3x3_s2_p1.1} parent=46 // loop_pre_header
                  _
                $region56: #{conv2d_3x3_s2_p1.1} parent=46 // loop_header
                  %s715 = sphi 0, %s719
                  %p716 = scmp.ge.s32.totalorder %s715, 1
                  %s720 = sphi %s111, %s111
                  %s721 = sphi %s109, %s109
                $region57: #{conv2d_3x3_s2_p1.1} parent=46 // loop_header_branch
                  %718 = sbr.rel (%p716) target = $region61
                $region58: #{conv2d_3x3_s2_p1.1} parent=46 // loop_body
                  %v722 = vld [vmem:[%s720] sm:$0xf]
                  %723 = vst [vmem:[%s721] sm:$0xf] %v722
                  %v724 = vld [vmem:[%s720 + $0x8] sm:$0xf]
                  %725 = vst [vmem:[%s721 + $0x4] sm:$0xf] %v724
                  %v726 = vld [vmem:[%s720 + $0x10] sm:$0xf]
                  %727 = vst [vmem:[%s721 + $0x8] sm:$0xf] %v726
                  %v728 = vld [vmem:[%s720 + $0x18] sm:$0xf]
                  %729 = vst [vmem:[%s721 + $0xc] sm:$0xf] %v728
                  %v730 = vld [vmem:[%s720 + $0x20] sm:$0xf]
                  %731 = vst [vmem:[%s721 + $0x10] sm:$0xf] %v730
                  %v732 = vld [vmem:[%s720 + $0x28] sm:$0xf]
                  %733 = vst [vmem:[%s721 + $0x14] sm:$0xf] %v732
                  %v734 = vld [vmem:[%s720 + $0x30] sm:$0xf]
                  %735 = vst [vmem:[%s721 + $0x18] sm:$0xf] %v734
                  %v736 = vld [vmem:[%s720 + $0x38] sm:$0xf]
                  %737 = vst [vmem:[%s721 + $0x1c] sm:$0xf] %v736
                  %v738 = vld [vmem:[%s720 + $0x40] sm:$0xf]
                  %739 = vst [vmem:[%s721 + $0x20] sm:$0xf] %v738
                  %v740 = vld [vmem:[%s720 + $0x48] sm:$0xf]
                  %741 = vst [vmem:[%s721 + $0x24] sm:$0xf] %v740
                  %v742 = vld [vmem:[%s720 + $0x50] sm:$0xf]
                  %743 = vst [vmem:[%s721 + $0x28] sm:$0xf] %v742
                  %v744 = vld [vmem:[%s720 + $0x58] sm:$0xf]
                  %745 = vst [vmem:[%s721 + $0x2c] sm:$0xf] %v744
                  %v746 = vld [vmem:[%s720 + $0x60] sm:$0xf]
                  %747 = vst [vmem:[%s721 + $0x30] sm:$0xf] %v746
                  %v748 = vld [vmem:[%s720 + $0x68] sm:$0xf]
                  %749 = vst [vmem:[%s721 + $0x34] sm:$0xf] %v748
                  %v750 = vld [vmem:[%s720 + $0x70] sm:$0xf]
                  %751 = vst [vmem:[%s721 + $0x38] sm:$0xf] %v750
                  %v752 = vld [vmem:[%s720 + $0x78] sm:$0xf]
                  %753 = vst [vmem:[%s721 + $0x3c] sm:$0xf] %v752
                  %v754 = vld [vmem:[%s720 + $0x80] sm:$0xf]
                  %755 = vst [vmem:[%s721 + $0x40] sm:$0xf] %v754
                  %v756 = vld [vmem:[%s720 + $0x88] sm:$0xf]
                  %757 = vst [vmem:[%s721 + $0x44] sm:$0xf] %v756
                  %v758 = vld [vmem:[%s720 + $0x90] sm:$0xf]
                  %759 = vst [vmem:[%s721 + $0x48] sm:$0xf] %v758
                  %v760 = vld [vmem:[%s720 + $0x98] sm:$0xf]
                  %761 = vst [vmem:[%s721 + $0x4c] sm:$0xf] %v760
                  %v762 = vld [vmem:[%s720 + $0xa0] sm:$0xf]
                  %763 = vst [vmem:[%s721 + $0x50] sm:$0xf] %v762
                  %v764 = vld [vmem:[%s720 + $0xa8] sm:$0xf]
                  %765 = vst [vmem:[%s721 + $0x54] sm:$0xf] %v764
                  %v766 = vld [vmem:[%s720 + $0xb0] sm:$0xf]
                  %767 = vst [vmem:[%s721 + $0x58] sm:$0xf] %v766
                  %v768 = vld [vmem:[%s720 + $0xb8] sm:$0xf]
                  %769 = vst [vmem:[%s721 + $0x5c] sm:$0xf] %v768
                  %v770 = vld [vmem:[%s720 + $0xc0] sm:$0xf]
                  %771 = vst [vmem:[%s721 + $0x60] sm:$0xf] %v770
                  %v772 = vld [vmem:[%s720 + $0xc8] sm:$0xf]
                  %773 = vst [vmem:[%s721 + $0x64] sm:$0xf] %v772
                  %v774 = vld [vmem:[%s720 + $0xd0] sm:$0xf]
                  %775 = vst [vmem:[%s721 + $0x68] sm:$0xf] %v774
                  %v776 = vld [vmem:[%s720 + $0xd8] sm:$0xf]
                  %777 = vst [vmem:[%s721 + $0x6c] sm:$0xf] %v776
                  %v778 = vld [vmem:[%s720 + $0xe0] sm:$0xf]
                  %779 = vst [vmem:[%s721 + $0x70] sm:$0xf] %v778
                  %v780 = vld [vmem:[%s720 + $0xe8] sm:$0xf]
                  %781 = vst [vmem:[%s721 + $0x74] sm:$0xf] %v780
                  %v782 = vld [vmem:[%s720 + $0xf0] sm:$0xf]
                  %783 = vst [vmem:[%s721 + $0x78] sm:$0xf] %v782
                  %v784 = vld [vmem:[%s720 + $0xf8] sm:$0xf]
                  %785 = vst [vmem:[%s721 + $0x7c] sm:$0xf] %v784
                  %v786 = vld [vmem:[%s720 + $0x100] sm:$0xf]
                  %787 = vst [vmem:[%s721 + $0x80] sm:$0xf] %v786
                  %v788 = vld [vmem:[%s720 + $0x108] sm:$0xf]
                  %789 = vst [vmem:[%s721 + $0x84] sm:$0xf] %v788
                  %v790 = vld [vmem:[%s720 + $0x110] sm:$0xf]
                  %791 = vst [vmem:[%s721 + $0x88] sm:$0xf] %v790
                  %v792 = vld [vmem:[%s720 + $0x118] sm:$0xf]
                  %793 = vst [vmem:[%s721 + $0x8c] sm:$0xf] %v792
                  %v794 = vld [vmem:[%s720 + $0x120] sm:$0xf]
                  %795 = vst [vmem:[%s721 + $0x90] sm:$0xf] %v794
                  %v796 = vld [vmem:[%s720 + $0x128] sm:$0xf]
                  %797 = vst [vmem:[%s721 + $0x94] sm:$0xf] %v796
                  %v798 = vld [vmem:[%s720 + $0x130] sm:$0xf]
                  %799 = vst [vmem:[%s721 + $0x98] sm:$0xf] %v798
                  %v800 = vld [vmem:[%s720 + $0x138] sm:$0xf]
                  %801 = vst [vmem:[%s721 + $0x9c] sm:$0xf] %v800
                  %v802 = vld [vmem:[%s720 + $0x140] sm:$0xf]
                  %803 = vst [vmem:[%s721 + $0xa0] sm:$0xf] %v802
                  %v804 = vld [vmem:[%s720 + $0x148] sm:$0xf]
                  %805 = vst [vmem:[%s721 + $0xa4] sm:$0xf] %v804
                  %v806 = vld [vmem:[%s720 + $0x150] sm:$0xf]
                  %807 = vst [vmem:[%s721 + $0xa8] sm:$0xf] %v806
                  %v808 = vld [vmem:[%s720 + $0x158] sm:$0xf]
                  %809 = vst [vmem:[%s721 + $0xac] sm:$0xf] %v808
                  %v810 = vld [vmem:[%s720 + $0x160] sm:$0xf]
                  %811 = vst [vmem:[%s721 + $0xb0] sm:$0xf] %v810
                  %v812 = vld [vmem:[%s720 + $0x168] sm:$0xf]
                  %813 = vst [vmem:[%s721 + $0xb4] sm:$0xf] %v812
                  %v814 = vld [vmem:[%s720 + $0x170] sm:$0xf]
                  %815 = vst [vmem:[%s721 + $0xb8] sm:$0xf] %v814
                  %v816 = vld [vmem:[%s720 + $0x178] sm:$0xf]
                  %817 = vst [vmem:[%s721 + $0xbc] sm:$0xf] %v816
                  %v818 = vld [vmem:[%s720 + $0x180] sm:$0xf]
                  %819 = vst [vmem:[%s721 + $0xc0] sm:$0xf] %v818
                  %v820 = vld [vmem:[%s720 + $0x188] sm:$0xf]
                  %821 = vst [vmem:[%s721 + $0xc4] sm:$0xf] %v820
                  %v822 = vld [vmem:[%s720 + $0x190] sm:$0xf]
                  %823 = vst [vmem:[%s721 + $0xc8] sm:$0xf] %v822
                  %v824 = vld [vmem:[%s720 + $0x198] sm:$0xf]
                  %825 = vst [vmem:[%s721 + $0xcc] sm:$0xf] %v824
                  %v826 = vld [vmem:[%s720 + $0x1a0] sm:$0xf]
                  %827 = vst [vmem:[%s721 + $0xd0] sm:$0xf] %v826
                  %v828 = vld [vmem:[%s720 + $0x1a8] sm:$0xf]
                  %829 = vst [vmem:[%s721 + $0xd4] sm:$0xf] %v828
                  %v830 = vld [vmem:[%s720 + $0x1b0] sm:$0xf]
                  %831 = vst [vmem:[%s721 + $0xd8] sm:$0xf] %v830
                  %v832 = vld [vmem:[%s720 + $0x1b8] sm:$0xf]
                  %833 = vst [vmem:[%s721 + $0xdc] sm:$0xf] %v832
                  %v834 = vld [vmem:[%s720 + $0x1c0] sm:$0xf]
                  %835 = vst [vmem:[%s721 + $0xe0] sm:$0xf] %v834
                  %v836 = vld [vmem:[%s720 + $0x1c8] sm:$0xf]
                  %837 = vst [vmem:[%s721 + $0xe4] sm:$0xf] %v836
                  %v838 = vld [vmem:[%s720 + $0x1d0] sm:$0xf]
                  %839 = vst [vmem:[%s721 + $0xe8] sm:$0xf] %v838
                  %v840 = vld [vmem:[%s720 + $0x1d8] sm:$0xf]
                  %841 = vst [vmem:[%s721 + $0xec] sm:$0xf] %v840
                  %v842 = vld [vmem:[%s720 + $0x1e0] sm:$0xf]
                  %843 = vst [vmem:[%s721 + $0xf0] sm:$0xf] %v842
                  %v844 = vld [vmem:[%s720 + $0x1e8] sm:$0xf]
                  %845 = vst [vmem:[%s721 + $0xf4] sm:$0xf] %v844
                  %v846 = vld [vmem:[%s720 + $0x1f0] sm:$0xf]
                  %847 = vst [vmem:[%s721 + $0xf8] sm:$0xf] %v846
                  %v848 = vld [vmem:[%s720 + $0x1f8] sm:$0xf]
                  %849 = vst [vmem:[%s721 + $0xfc] sm:$0xf] %v848
                  %v850 = vld [vmem:[%s720 + $0x200] sm:$0xf]
                  %851 = vst [vmem:[%s721 + $0x100] sm:$0xf] %v850
                  %v852 = vld [vmem:[%s720 + $0x208] sm:$0xf]
                  %853 = vst [vmem:[%s721 + $0x104] sm:$0xf] %v852
                  %v854 = vld [vmem:[%s720 + $0x210] sm:$0xf]
                  %855 = vst [vmem:[%s721 + $0x108] sm:$0xf] %v854
                  %v856 = vld [vmem:[%s720 + $0x218] sm:$0xf]
                  %857 = vst [vmem:[%s721 + $0x10c] sm:$0xf] %v856
                  %v858 = vld [vmem:[%s720 + $0x220] sm:$0xf]
                  %859 = vst [vmem:[%s721 + $0x110] sm:$0xf] %v858
                  %v860 = vld [vmem:[%s720 + $0x228] sm:$0xf]
                  %861 = vst [vmem:[%s721 + $0x114] sm:$0xf] %v860
                  %v862 = vld [vmem:[%s720 + $0x230] sm:$0xf]
                  %863 = vst [vmem:[%s721 + $0x118] sm:$0xf] %v862
                  %v864 = vld [vmem:[%s720 + $0x238] sm:$0xf]
                  %865 = vst [vmem:[%s721 + $0x11c] sm:$0xf] %v864
                  %v866 = vld [vmem:[%s720 + $0x240] sm:$0xf]
                  %867 = vst [vmem:[%s721 + $0x120] sm:$0xf] %v866
                  %v868 = vld [vmem:[%s720 + $0x248] sm:$0xf]
                  %869 = vst [vmem:[%s721 + $0x124] sm:$0xf] %v868
                  %v870 = vld [vmem:[%s720 + $0x250] sm:$0xf]
                  %871 = vst [vmem:[%s721 + $0x128] sm:$0xf] %v870
                  %v872 = vld [vmem:[%s720 + $0x258] sm:$0xf]
                  %873 = vst [vmem:[%s721 + $0x12c] sm:$0xf] %v872
                  %v874 = vld [vmem:[%s720 + $0x260] sm:$0xf]
                  %875 = vst [vmem:[%s721 + $0x130] sm:$0xf] %v874
                  %v876 = vld [vmem:[%s720 + $0x268] sm:$0xf]
                  %877 = vst [vmem:[%s721 + $0x134] sm:$0xf] %v876
                  %v878 = vld [vmem:[%s720 + $0x270] sm:$0xf]
                  %879 = vst [vmem:[%s721 + $0x138] sm:$0xf] %v878
                  %v880 = vld [vmem:[%s720 + $0x278] sm:$0xf]
                  %881 = vst [vmem:[%s721 + $0x13c] sm:$0xf] %v880
                  %v882 = vld [vmem:[%s720 + $0x280] sm:$0xf]
                  %883 = vst [vmem:[%s721 + $0x140] sm:$0xf] %v882
                  %v884 = vld [vmem:[%s720 + $0x288] sm:$0xf]
                  %885 = vst [vmem:[%s721 + $0x144] sm:$0xf] %v884
                  %v886 = vld [vmem:[%s720 + $0x290] sm:$0xf]
                  %887 = vst [vmem:[%s721 + $0x148] sm:$0xf] %v886
                  %v888 = vld [vmem:[%s720 + $0x298] sm:$0xf]
                  %889 = vst [vmem:[%s721 + $0x14c] sm:$0xf] %v888
                  %v890 = vld [vmem:[%s720 + $0x2a0] sm:$0xf]
                  %891 = vst [vmem:[%s721 + $0x150] sm:$0xf] %v890
                  %v892 = vld [vmem:[%s720 + $0x2a8] sm:$0xf]
                  %893 = vst [vmem:[%s721 + $0x154] sm:$0xf] %v892
                  %v894 = vld [vmem:[%s720 + $0x2b0] sm:$0xf]
                  %895 = vst [vmem:[%s721 + $0x158] sm:$0xf] %v894
                  %v896 = vld [vmem:[%s720 + $0x2b8] sm:$0xf]
                  %897 = vst [vmem:[%s721 + $0x15c] sm:$0xf] %v896
                  %v898 = vld [vmem:[%s720 + $0x2c0] sm:$0xf]
                  %899 = vst [vmem:[%s721 + $0x160] sm:$0xf] %v898
                  %v900 = vld [vmem:[%s720 + $0x2c8] sm:$0xf]
                  %901 = vst [vmem:[%s721 + $0x164] sm:$0xf] %v900
                  %v902 = vld [vmem:[%s720 + $0x2d0] sm:$0xf]
                  %903 = vst [vmem:[%s721 + $0x168] sm:$0xf] %v902
                  %v904 = vld [vmem:[%s720 + $0x2d8] sm:$0xf]
                  %905 = vst [vmem:[%s721 + $0x16c] sm:$0xf] %v904
                  %v906 = vld [vmem:[%s720 + $0x2e0] sm:$0xf]
                  %907 = vst [vmem:[%s721 + $0x170] sm:$0xf] %v906
                  %v908 = vld [vmem:[%s720 + $0x2e8] sm:$0xf]
                  %909 = vst [vmem:[%s721 + $0x174] sm:$0xf] %v908
                  %v910 = vld [vmem:[%s720 + $0x2f0] sm:$0xf]
                  %911 = vst [vmem:[%s721 + $0x178] sm:$0xf] %v910
                  %v912 = vld [vmem:[%s720 + $0x2f8] sm:$0xf]
                  %913 = vst [vmem:[%s721 + $0x17c] sm:$0xf] %v912
                  %v914 = vld [vmem:[%s720 + $0x300] sm:$0xf]
                  %915 = vst [vmem:[%s721 + $0x180] sm:$0xf] %v914
                  %v916 = vld [vmem:[%s720 + $0x308] sm:$0xf]
                  %917 = vst [vmem:[%s721 + $0x184] sm:$0xf] %v916
                  %v918 = vld [vmem:[%s720 + $0x310] sm:$0xf]
                  %919 = vst [vmem:[%s721 + $0x188] sm:$0xf] %v918
                  %v920 = vld [vmem:[%s720 + $0x318] sm:$0xf]
                  %921 = vst [vmem:[%s721 + $0x18c] sm:$0xf] %v920
                  %v922 = vld [vmem:[%s720 + $0x320] sm:$0xf]
                  %923 = vst [vmem:[%s721 + $0x190] sm:$0xf] %v922
                  %v924 = vld [vmem:[%s720 + $0x328] sm:$0xf]
                  %925 = vst [vmem:[%s721 + $0x194] sm:$0xf] %v924
                  %v926 = vld [vmem:[%s720 + $0x330] sm:$0xf]
                  %927 = vst [vmem:[%s721 + $0x198] sm:$0xf] %v926
                  %v928 = vld [vmem:[%s720 + $0x338] sm:$0xf]
                  %929 = vst [vmem:[%s721 + $0x19c] sm:$0xf] %v928
                  %v930 = vld [vmem:[%s720 + $0x340] sm:$0xf]
                  %931 = vst [vmem:[%s721 + $0x1a0] sm:$0xf] %v930
                  %v932 = vld [vmem:[%s720 + $0x348] sm:$0xf]
                  %933 = vst [vmem:[%s721 + $0x1a4] sm:$0xf] %v932
                  %v934 = vld [vmem:[%s720 + $0x350] sm:$0xf]
                  %935 = vst [vmem:[%s721 + $0x1a8] sm:$0xf] %v934
                  %v936 = vld [vmem:[%s720 + $0x358] sm:$0xf]
                  %937 = vst [vmem:[%s721 + $0x1ac] sm:$0xf] %v936
                  %v938 = vld [vmem:[%s720 + $0x360] sm:$0xf]
                  %939 = vst [vmem:[%s721 + $0x1b0] sm:$0xf] %v938
                  %v940 = vld [vmem:[%s720 + $0x368] sm:$0xf]
                  %941 = vst [vmem:[%s721 + $0x1b4] sm:$0xf] %v940
                  %v942 = vld [vmem:[%s720 + $0x370] sm:$0xf]
                  %943 = vst [vmem:[%s721 + $0x1b8] sm:$0xf] %v942
                  %v944 = vld [vmem:[%s720 + $0x378] sm:$0xf]
                  %945 = vst [vmem:[%s721 + $0x1bc] sm:$0xf] %v944
                  %v946 = vld [vmem:[%s720 + $0x380] sm:$0xf]
                  %947 = vst [vmem:[%s721 + $0x1c0] sm:$0xf] %v946
                  %v948 = vld [vmem:[%s720 + $0x388] sm:$0xf]
                  %949 = vst [vmem:[%s721 + $0x1c4] sm:$0xf] %v948
                  %v950 = vld [vmem:[%s720 + $0x390] sm:$0xf]
                  %951 = vst [vmem:[%s721 + $0x1c8] sm:$0xf] %v950
                  %v952 = vld [vmem:[%s720 + $0x398] sm:$0xf]
                  %953 = vst [vmem:[%s721 + $0x1cc] sm:$0xf] %v952
                  %v954 = vld [vmem:[%s720 + $0x3a0] sm:$0xf]
                  %955 = vst [vmem:[%s721 + $0x1d0] sm:$0xf] %v954
                  %v956 = vld [vmem:[%s720 + $0x3a8] sm:$0xf]
                  %957 = vst [vmem:[%s721 + $0x1d4] sm:$0xf] %v956
                  %v958 = vld [vmem:[%s720 + $0x3b0] sm:$0xf]
                  %959 = vst [vmem:[%s721 + $0x1d8] sm:$0xf] %v958
                  %v960 = vld [vmem:[%s720 + $0x3b8] sm:$0xf]
                  %961 = vst [vmem:[%s721 + $0x1dc] sm:$0xf] %v960
                  %v962 = vld [vmem:[%s720 + $0x3c0] sm:$0xf]
                  %963 = vst [vmem:[%s721 + $0x1e0] sm:$0xf] %v962
                  %v964 = vld [vmem:[%s720 + $0x3c8] sm:$0xf]
                  %965 = vst [vmem:[%s721 + $0x1e4] sm:$0xf] %v964
                  %v966 = vld [vmem:[%s720 + $0x3d0] sm:$0xf]
                  %967 = vst [vmem:[%s721 + $0x1e8] sm:$0xf] %v966
                  %v968 = vld [vmem:[%s720 + $0x3d8] sm:$0xf]
                  %969 = vst [vmem:[%s721 + $0x1ec] sm:$0xf] %v968
                  %v970 = vld [vmem:[%s720 + $0x3e0] sm:$0xf]
                  %971 = vst [vmem:[%s721 + $0x1f0] sm:$0xf] %v970
                  %v972 = vld [vmem:[%s720 + $0x3e8] sm:$0xf]
                  %973 = vst [vmem:[%s721 + $0x1f4] sm:$0xf] %v972
                  %v974 = vld [vmem:[%s720 + $0x3f0] sm:$0xf]
                  %975 = vst [vmem:[%s721 + $0x1f8] sm:$0xf] %v974
                  %v976 = vld [vmem:[%s720 + $0x3f8] sm:$0xf]
                  %977 = vst [vmem:[%s721 + $0x1fc] sm:$0xf] %v976
                  %v978 = vld [vmem:[%s720 + $0x400] sm:$0xf]
                  %979 = vst [vmem:[%s721 + $0x200] sm:$0xf] %v978
                  %v980 = vld [vmem:[%s720 + $0x408] sm:$0xf]
                  %981 = vst [vmem:[%s721 + $0x204] sm:$0xf] %v980
                  %v982 = vld [vmem:[%s720 + $0x410] sm:$0xf]
                  %983 = vst [vmem:[%s721 + $0x208] sm:$0xf] %v982
                  %v984 = vld [vmem:[%s720 + $0x418] sm:$0xf]
                  %985 = vst [vmem:[%s721 + $0x20c] sm:$0xf] %v984
                  %v986 = vld [vmem:[%s720 + $0x420] sm:$0xf]
                  %987 = vst [vmem:[%s721 + $0x210] sm:$0xf] %v986
                  %v988 = vld [vmem:[%s720 + $0x428] sm:$0xf]
                  %989 = vst [vmem:[%s721 + $0x214] sm:$0xf] %v988
                  %v990 = vld [vmem:[%s720 + $0x430] sm:$0xf]
                  %991 = vst [vmem:[%s721 + $0x218] sm:$0xf] %v990
                  %v992 = vld [vmem:[%s720 + $0x438] sm:$0xf]
                  %993 = vst [vmem:[%s721 + $0x21c] sm:$0xf] %v992
                  %v994 = vld [vmem:[%s720 + $0x440] sm:$0xf]
                  %995 = vst [vmem:[%s721 + $0x220] sm:$0xf] %v994
                  %v996 = vld [vmem:[%s720 + $0x448] sm:$0xf]
                  %997 = vst [vmem:[%s721 + $0x224] sm:$0xf] %v996
                  %v998 = vld [vmem:[%s720 + $0x450] sm:$0xf]
                  %999 = vst [vmem:[%s721 + $0x228] sm:$0xf] %v998
                  %v1000 = vld [vmem:[%s720 + $0x458] sm:$0xf]
                  %1001 = vst [vmem:[%s721 + $0x22c] sm:$0xf] %v1000
                  %v1002 = vld [vmem:[%s720 + $0x460] sm:$0xf]
                  %1003 = vst [vmem:[%s721 + $0x230] sm:$0xf] %v1002
                  %v1004 = vld [vmem:[%s720 + $0x468] sm:$0xf]
                  %1005 = vst [vmem:[%s721 + $0x234] sm:$0xf] %v1004
                  %v1006 = vld [vmem:[%s720 + $0x470] sm:$0xf]
                  %1007 = vst [vmem:[%s721 + $0x238] sm:$0xf] %v1006
                  %v1008 = vld [vmem:[%s720 + $0x478] sm:$0xf]
                  %1009 = vst [vmem:[%s721 + $0x23c] sm:$0xf] %v1008
                  %v1010 = vld [vmem:[%s720 + $0x480] sm:$0xf]
                  %1011 = vst [vmem:[%s721 + $0x240] sm:$0xf] %v1010
                  %v1012 = vld [vmem:[%s720 + $0x488] sm:$0xf]
                  %1013 = vst [vmem:[%s721 + $0x244] sm:$0xf] %v1012
                  %v1014 = vld [vmem:[%s720 + $0x490] sm:$0xf]
                  %1015 = vst [vmem:[%s721 + $0x248] sm:$0xf] %v1014
                  %v1016 = vld [vmem:[%s720 + $0x498] sm:$0xf]
                  %1017 = vst [vmem:[%s721 + $0x24c] sm:$0xf] %v1016
                  %v1018 = vld [vmem:[%s720 + $0x4a0] sm:$0xf]
                  %1019 = vst [vmem:[%s721 + $0x250] sm:$0xf] %v1018
                  %v1020 = vld [vmem:[%s720 + $0x4a8] sm:$0xf]
                  %1021 = vst [vmem:[%s721 + $0x254] sm:$0xf] %v1020
                  %v1022 = vld [vmem:[%s720 + $0x4b0] sm:$0xf]
                  %1023 = vst [vmem:[%s721 + $0x258] sm:$0xf] %v1022
                  %v1024 = vld [vmem:[%s720 + $0x4b8] sm:$0xf]
                  %1025 = vst [vmem:[%s721 + $0x25c] sm:$0xf] %v1024
                  %v1026 = vld [vmem:[%s720 + $0x4c0] sm:$0xf]
                  %1027 = vst [vmem:[%s721 + $0x260] sm:$0xf] %v1026
                  %v1028 = vld [vmem:[%s720 + $0x4c8] sm:$0xf]
                  %1029 = vst [vmem:[%s721 + $0x264] sm:$0xf] %v1028
                  %v1030 = vld [vmem:[%s720 + $0x4d0] sm:$0xf]
                  %1031 = vst [vmem:[%s721 + $0x268] sm:$0xf] %v1030
                  %v1032 = vld [vmem:[%s720 + $0x4d8] sm:$0xf]
                  %1033 = vst [vmem:[%s721 + $0x26c] sm:$0xf] %v1032
                  %v1034 = vld [vmem:[%s720 + $0x4e0] sm:$0xf]
                  %1035 = vst [vmem:[%s721 + $0x270] sm:$0xf] %v1034
                  %v1036 = vld [vmem:[%s720 + $0x4e8] sm:$0xf]
                  %1037 = vst [vmem:[%s721 + $0x274] sm:$0xf] %v1036
                  %v1038 = vld [vmem:[%s720 + $0x4f0] sm:$0xf]
                  %1039 = vst [vmem:[%s721 + $0x278] sm:$0xf] %v1038
                  %v1040 = vld [vmem:[%s720 + $0x4f8] sm:$0xf]
                  %1041 = vst [vmem:[%s721 + $0x27c] sm:$0xf] %v1040
                  %v1042 = vld [vmem:[%s720 + $0x500] sm:$0xf]
                  %1043 = vst [vmem:[%s721 + $0x280] sm:$0xf] %v1042
                  %v1044 = vld [vmem:[%s720 + $0x508] sm:$0xf]
                  %1045 = vst [vmem:[%s721 + $0x284] sm:$0xf] %v1044
                  %v1046 = vld [vmem:[%s720 + $0x510] sm:$0xf]
                  %1047 = vst [vmem:[%s721 + $0x288] sm:$0xf] %v1046
                  %v1048 = vld [vmem:[%s720 + $0x518] sm:$0xf]
                  %1049 = vst [vmem:[%s721 + $0x28c] sm:$0xf] %v1048
                  %v1050 = vld [vmem:[%s720 + $0x520] sm:$0xf]
                  %1051 = vst [vmem:[%s721 + $0x290] sm:$0xf] %v1050
                  %v1052 = vld [vmem:[%s720 + $0x528] sm:$0xf]
                  %1053 = vst [vmem:[%s721 + $0x294] sm:$0xf] %v1052
                  %v1054 = vld [vmem:[%s720 + $0x530] sm:$0xf]
                  %1055 = vst [vmem:[%s721 + $0x298] sm:$0xf] %v1054
                  %v1056 = vld [vmem:[%s720 + $0x538] sm:$0xf]
                  %1057 = vst [vmem:[%s721 + $0x29c] sm:$0xf] %v1056
                  %v1058 = vld [vmem:[%s720 + $0x540] sm:$0xf]
                  %1059 = vst [vmem:[%s721 + $0x2a0] sm:$0xf] %v1058
                  %v1060 = vld [vmem:[%s720 + $0x548] sm:$0xf]
                  %1061 = vst [vmem:[%s721 + $0x2a4] sm:$0xf] %v1060
                  %v1062 = vld [vmem:[%s720 + $0x550] sm:$0xf]
                  %1063 = vst [vmem:[%s721 + $0x2a8] sm:$0xf] %v1062
                  %v1064 = vld [vmem:[%s720 + $0x558] sm:$0xf]
                  %1065 = vst [vmem:[%s721 + $0x2ac] sm:$0xf] %v1064
                  %v1066 = vld [vmem:[%s720 + $0x560] sm:$0xf]
                  %1067 = vst [vmem:[%s721 + $0x2b0] sm:$0xf] %v1066
                  %v1068 = vld [vmem:[%s720 + $0x568] sm:$0xf]
                  %1069 = vst [vmem:[%s721 + $0x2b4] sm:$0xf] %v1068
                  %v1070 = vld [vmem:[%s720 + $0x570] sm:$0xf]
                  %1071 = vst [vmem:[%s721 + $0x2b8] sm:$0xf] %v1070
                  %v1072 = vld [vmem:[%s720 + $0x578] sm:$0xf]
                  %1073 = vst [vmem:[%s721 + $0x2bc] sm:$0xf] %v1072
                  %v1074 = vld [vmem:[%s720 + $0x580] sm:$0xf]
                  %1075 = vst [vmem:[%s721 + $0x2c0] sm:$0xf] %v1074
                  %v1076 = vld [vmem:[%s720 + $0x588] sm:$0xf]
                  %1077 = vst [vmem:[%s721 + $0x2c4] sm:$0xf] %v1076
                  %v1078 = vld [vmem:[%s720 + $0x590] sm:$0xf]
                  %1079 = vst [vmem:[%s721 + $0x2c8] sm:$0xf] %v1078
                  %v1080 = vld [vmem:[%s720 + $0x598] sm:$0xf]
                  %1081 = vst [vmem:[%s721 + $0x2cc] sm:$0xf] %v1080
                  %v1082 = vld [vmem:[%s720 + $0x5a0] sm:$0xf]
                  %1083 = vst [vmem:[%s721 + $0x2d0] sm:$0xf] %v1082
                  %v1084 = vld [vmem:[%s720 + $0x5a8] sm:$0xf]
                  %1085 = vst [vmem:[%s721 + $0x2d4] sm:$0xf] %v1084
                  %v1086 = vld [vmem:[%s720 + $0x5b0] sm:$0xf]
                  %1087 = vst [vmem:[%s721 + $0x2d8] sm:$0xf] %v1086
                  %v1088 = vld [vmem:[%s720 + $0x5b8] sm:$0xf]
                  %1089 = vst [vmem:[%s721 + $0x2dc] sm:$0xf] %v1088
                  %v1090 = vld [vmem:[%s720 + $0x5c0] sm:$0xf]
                  %1091 = vst [vmem:[%s721 + $0x2e0] sm:$0xf] %v1090
                  %v1092 = vld [vmem:[%s720 + $0x5c8] sm:$0xf]
                  %1093 = vst [vmem:[%s721 + $0x2e4] sm:$0xf] %v1092
                  %v1094 = vld [vmem:[%s720 + $0x5d0] sm:$0xf]
                  %1095 = vst [vmem:[%s721 + $0x2e8] sm:$0xf] %v1094
                  %v1096 = vld [vmem:[%s720 + $0x5d8] sm:$0xf]
                  %1097 = vst [vmem:[%s721 + $0x2ec] sm:$0xf] %v1096
                  %v1098 = vld [vmem:[%s720 + $0x5e0] sm:$0xf]
                  %1099 = vst [vmem:[%s721 + $0x2f0] sm:$0xf] %v1098
                  %v1100 = vld [vmem:[%s720 + $0x5e8] sm:$0xf]
                  %1101 = vst [vmem:[%s721 + $0x2f4] sm:$0xf] %v1100
                  %v1102 = vld [vmem:[%s720 + $0x5f0] sm:$0xf]
                  %1103 = vst [vmem:[%s721 + $0x2f8] sm:$0xf] %v1102
                  %v1104 = vld [vmem:[%s720 + $0x5f8] sm:$0xf]
                  %1105 = vst [vmem:[%s721 + $0x2fc] sm:$0xf] %v1104
                  %v1106 = vld [vmem:[%s720 + $0x600] sm:$0xf]
                  %1107 = vst [vmem:[%s721 + $0x300] sm:$0xf] %v1106
                  %v1108 = vld [vmem:[%s720 + $0x608] sm:$0xf]
                  %1109 = vst [vmem:[%s721 + $0x304] sm:$0xf] %v1108
                  %v1110 = vld [vmem:[%s720 + $0x610] sm:$0xf]
                  %1111 = vst [vmem:[%s721 + $0x308] sm:$0xf] %v1110
                  %v1112 = vld [vmem:[%s720 + $0x618] sm:$0xf]
                  %1113 = vst [vmem:[%s721 + $0x30c] sm:$0xf] %v1112
                  %v1114 = vld [vmem:[%s720 + $0x620] sm:$0xf]
                  %1115 = vst [vmem:[%s721 + $0x310] sm:$0xf] %v1114
                  %v1116 = vld [vmem:[%s720 + $0x628] sm:$0xf]
                  %1117 = vst [vmem:[%s721 + $0x314] sm:$0xf] %v1116
                  %v1118 = vld [vmem:[%s720 + $0x630] sm:$0xf]
                  %1119 = vst [vmem:[%s721 + $0x318] sm:$0xf] %v1118
                  %v1120 = vld [vmem:[%s720 + $0x638] sm:$0xf]
                  %1121 = vst [vmem:[%s721 + $0x31c] sm:$0xf] %v1120
                  %v1122 = vld [vmem:[%s720 + $0x640] sm:$0xf]
                  %1123 = vst [vmem:[%s721 + $0x320] sm:$0xf] %v1122
                  %v1124 = vld [vmem:[%s720 + $0x648] sm:$0xf]
                  %1125 = vst [vmem:[%s721 + $0x324] sm:$0xf] %v1124
                  %v1126 = vld [vmem:[%s720 + $0x650] sm:$0xf]
                  %1127 = vst [vmem:[%s721 + $0x328] sm:$0xf] %v1126
                  %v1128 = vld [vmem:[%s720 + $0x658] sm:$0xf]
                  %1129 = vst [vmem:[%s721 + $0x32c] sm:$0xf] %v1128
                  %v1130 = vld [vmem:[%s720 + $0x660] sm:$0xf]
                  %1131 = vst [vmem:[%s721 + $0x330] sm:$0xf] %v1130
                  %v1132 = vld [vmem:[%s720 + $0x668] sm:$0xf]
                  %1133 = vst [vmem:[%s721 + $0x334] sm:$0xf] %v1132
                  %v1134 = vld [vmem:[%s720 + $0x670] sm:$0xf]
                  %1135 = vst [vmem:[%s721 + $0x338] sm:$0xf] %v1134
                  %v1136 = vld [vmem:[%s720 + $0x678] sm:$0xf]
                  %1137 = vst [vmem:[%s721 + $0x33c] sm:$0xf] %v1136
                  %v1138 = vld [vmem:[%s720 + $0x680] sm:$0xf]
                  %1139 = vst [vmem:[%s721 + $0x340] sm:$0xf] %v1138
                  %v1140 = vld [vmem:[%s720 + $0x688] sm:$0xf]
                  %1141 = vst [vmem:[%s721 + $0x344] sm:$0xf] %v1140
                  %v1142 = vld [vmem:[%s720 + $0x690] sm:$0xf]
                  %1143 = vst [vmem:[%s721 + $0x348] sm:$0xf] %v1142
                  %v1144 = vld [vmem:[%s720 + $0x698] sm:$0xf]
                  %1145 = vst [vmem:[%s721 + $0x34c] sm:$0xf] %v1144
                  %v1146 = vld [vmem:[%s720 + $0x6a0] sm:$0xf]
                  %1147 = vst [vmem:[%s721 + $0x350] sm:$0xf] %v1146
                  %v1148 = vld [vmem:[%s720 + $0x6a8] sm:$0xf]
                  %1149 = vst [vmem:[%s721 + $0x354] sm:$0xf] %v1148
                  %v1150 = vld [vmem:[%s720 + $0x6b0] sm:$0xf]
                  %1151 = vst [vmem:[%s721 + $0x358] sm:$0xf] %v1150
                  %v1152 = vld [vmem:[%s720 + $0x6b8] sm:$0xf]
                  %1153 = vst [vmem:[%s721 + $0x35c] sm:$0xf] %v1152
                  %v1154 = vld [vmem:[%s720 + $0x6c0] sm:$0xf]
                  %1155 = vst [vmem:[%s721 + $0x360] sm:$0xf] %v1154
                  %v1156 = vld [vmem:[%s720 + $0x6c8] sm:$0xf]
                  %1157 = vst [vmem:[%s721 + $0x364] sm:$0xf] %v1156
                  %v1158 = vld [vmem:[%s720 + $0x6d0] sm:$0xf]
                  %1159 = vst [vmem:[%s721 + $0x368] sm:$0xf] %v1158
                  %v1160 = vld [vmem:[%s720 + $0x6d8] sm:$0xf]
                  %1161 = vst [vmem:[%s721 + $0x36c] sm:$0xf] %v1160
                  %v1162 = vld [vmem:[%s720 + $0x6e0] sm:$0xf]
                  %1163 = vst [vmem:[%s721 + $0x370] sm:$0xf] %v1162
                  %v1164 = vld [vmem:[%s720 + $0x6e8] sm:$0xf]
                  %1165 = vst [vmem:[%s721 + $0x374] sm:$0xf] %v1164
                  %v1166 = vld [vmem:[%s720 + $0x6f0] sm:$0xf]
                  %1167 = vst [vmem:[%s721 + $0x378] sm:$0xf] %v1166
                  %v1168 = vld [vmem:[%s720 + $0x6f8] sm:$0xf]
                  %1169 = vst [vmem:[%s721 + $0x37c] sm:$0xf] %v1168
                  %v1170 = vld [vmem:[%s720 + $0x700] sm:$0xf]
                  %1171 = vst [vmem:[%s721 + $0x380] sm:$0xf] %v1170
                  %v1172 = vld [vmem:[%s720 + $0x708] sm:$0xf]
                  %1173 = vst [vmem:[%s721 + $0x384] sm:$0xf] %v1172
                  %v1174 = vld [vmem:[%s720 + $0x710] sm:$0xf]
                  %1175 = vst [vmem:[%s721 + $0x388] sm:$0xf] %v1174
                  %v1176 = vld [vmem:[%s720 + $0x718] sm:$0xf]
                  %1177 = vst [vmem:[%s721 + $0x38c] sm:$0xf] %v1176
                  %v1178 = vld [vmem:[%s720 + $0x720] sm:$0xf]
                  %1179 = vst [vmem:[%s721 + $0x390] sm:$0xf] %v1178
                  %v1180 = vld [vmem:[%s720 + $0x728] sm:$0xf]
                  %1181 = vst [vmem:[%s721 + $0x394] sm:$0xf] %v1180
                  %v1182 = vld [vmem:[%s720 + $0x730] sm:$0xf]
                  %1183 = vst [vmem:[%s721 + $0x398] sm:$0xf] %v1182
                  %v1184 = vld [vmem:[%s720 + $0x738] sm:$0xf]
                  %1185 = vst [vmem:[%s721 + $0x39c] sm:$0xf] %v1184
                  %v1186 = vld [vmem:[%s720 + $0x740] sm:$0xf]
                  %1187 = vst [vmem:[%s721 + $0x3a0] sm:$0xf] %v1186
                  %v1188 = vld [vmem:[%s720 + $0x748] sm:$0xf]
                  %1189 = vst [vmem:[%s721 + $0x3a4] sm:$0xf] %v1188
                  %v1190 = vld [vmem:[%s720 + $0x750] sm:$0xf]
                  %1191 = vst [vmem:[%s721 + $0x3a8] sm:$0xf] %v1190
                  %v1192 = vld [vmem:[%s720 + $0x758] sm:$0xf]
                  %1193 = vst [vmem:[%s721 + $0x3ac] sm:$0xf] %v1192
                  %v1194 = vld [vmem:[%s720 + $0x760] sm:$0xf]
                  %1195 = vst [vmem:[%s721 + $0x3b0] sm:$0xf] %v1194
                  %v1196 = vld [vmem:[%s720 + $0x768] sm:$0xf]
                  %1197 = vst [vmem:[%s721 + $0x3b4] sm:$0xf] %v1196
                  %v1198 = vld [vmem:[%s720 + $0x770] sm:$0xf]
                  %1199 = vst [vmem:[%s721 + $0x3b8] sm:$0xf] %v1198
                  %v1200 = vld [vmem:[%s720 + $0x778] sm:$0xf]
                  %1201 = vst [vmem:[%s721 + $0x3bc] sm:$0xf] %v1200
                  %v1202 = vld [vmem:[%s720 + $0x780] sm:$0xf]
                  %1203 = vst [vmem:[%s721 + $0x3c0] sm:$0xf] %v1202
                  %v1204 = vld [vmem:[%s720 + $0x788] sm:$0xf]
                  %1205 = vst [vmem:[%s721 + $0x3c4] sm:$0xf] %v1204
                  %v1206 = vld [vmem:[%s720 + $0x790] sm:$0xf]
                  %1207 = vst [vmem:[%s721 + $0x3c8] sm:$0xf] %v1206
                  %v1208 = vld [vmem:[%s720 + $0x798] sm:$0xf]
                  %1209 = vst [vmem:[%s721 + $0x3cc] sm:$0xf] %v1208
                  %v1210 = vld [vmem:[%s720 + $0x7a0] sm:$0xf]
                  %1211 = vst [vmem:[%s721 + $0x3d0] sm:$0xf] %v1210
                  %v1212 = vld [vmem:[%s720 + $0x7a8] sm:$0xf]
                  %1213 = vst [vmem:[%s721 + $0x3d4] sm:$0xf] %v1212
                  %v1214 = vld [vmem:[%s720 + $0x7b0] sm:$0xf]
                  %1215 = vst [vmem:[%s721 + $0x3d8] sm:$0xf] %v1214
                  %v1216 = vld [vmem:[%s720 + $0x7b8] sm:$0xf]
                  %1217 = vst [vmem:[%s721 + $0x3dc] sm:$0xf] %v1216
                  %v1218 = vld [vmem:[%s720 + $0x7c0] sm:$0xf]
                  %1219 = vst [vmem:[%s721 + $0x3e0] sm:$0xf] %v1218
                  %v1220 = vld [vmem:[%s720 + $0x7c8] sm:$0xf]
                  %1221 = vst [vmem:[%s721 + $0x3e4] sm:$0xf] %v1220
                  %v1222 = vld [vmem:[%s720 + $0x7d0] sm:$0xf]
                  %1223 = vst [vmem:[%s721 + $0x3e8] sm:$0xf] %v1222
                  %v1224 = vld [vmem:[%s720 + $0x7d8] sm:$0xf]
                  %1225 = vst [vmem:[%s721 + $0x3ec] sm:$0xf] %v1224
                  %v1226 = vld [vmem:[%s720 + $0x7e0] sm:$0xf]
                  %1227 = vst [vmem:[%s721 + $0x3f0] sm:$0xf] %v1226
                  %v1228 = vld [vmem:[%s720 + $0x7e8] sm:$0xf]
                  %1229 = vst [vmem:[%s721 + $0x3f4] sm:$0xf] %v1228
                  %v1230 = vld [vmem:[%s720 + $0x7f0] sm:$0xf]
                  %1231 = vst [vmem:[%s721 + $0x3f8] sm:$0xf] %v1230
                  %v1232 = vld [vmem:[%s720 + $0x7f8] sm:$0xf]
                  %1233 = vst [vmem:[%s721 + $0x3fc] sm:$0xf] %v1232
                  %v1234 = vld [vmem:[%s720 + $0x800] sm:$0xf]
                  %1235 = vst [vmem:[%s721 + $0x400] sm:$0xf] %v1234
                  %v1236 = vld [vmem:[%s720 + $0x808] sm:$0xf]
                  %1237 = vst [vmem:[%s721 + $0x404] sm:$0xf] %v1236
                  %v1238 = vld [vmem:[%s720 + $0x810] sm:$0xf]
                  %1239 = vst [vmem:[%s721 + $0x408] sm:$0xf] %v1238
                  %v1240 = vld [vmem:[%s720 + $0x818] sm:$0xf]
                  %1241 = vst [vmem:[%s721 + $0x40c] sm:$0xf] %v1240
                  %v1242 = vld [vmem:[%s720 + $0x820] sm:$0xf]
                  %1243 = vst [vmem:[%s721 + $0x410] sm:$0xf] %v1242
                  %v1244 = vld [vmem:[%s720 + $0x828] sm:$0xf]
                  %1245 = vst [vmem:[%s721 + $0x414] sm:$0xf] %v1244
                  %v1246 = vld [vmem:[%s720 + $0x830] sm:$0xf]
                  %1247 = vst [vmem:[%s721 + $0x418] sm:$0xf] %v1246
                  %v1248 = vld [vmem:[%s720 + $0x838] sm:$0xf]
                  %1249 = vst [vmem:[%s721 + $0x41c] sm:$0xf] %v1248
                  %v1250 = vld [vmem:[%s720 + $0x840] sm:$0xf]
                  %1251 = vst [vmem:[%s721 + $0x420] sm:$0xf] %v1250
                  %v1252 = vld [vmem:[%s720 + $0x848] sm:$0xf]
                  %1253 = vst [vmem:[%s721 + $0x424] sm:$0xf] %v1252
                  %v1254 = vld [vmem:[%s720 + $0x850] sm:$0xf]
                  %1255 = vst [vmem:[%s721 + $0x428] sm:$0xf] %v1254
                  %v1256 = vld [vmem:[%s720 + $0x858] sm:$0xf]
                  %1257 = vst [vmem:[%s721 + $0x42c] sm:$0xf] %v1256
                  %v1258 = vld [vmem:[%s720 + $0x860] sm:$0xf]
                  %1259 = vst [vmem:[%s721 + $0x430] sm:$0xf] %v1258
                  %v1260 = vld [vmem:[%s720 + $0x868] sm:$0xf]
                  %1261 = vst [vmem:[%s721 + $0x434] sm:$0xf] %v1260
                  %v1262 = vld [vmem:[%s720 + $0x870] sm:$0xf]
                  %1263 = vst [vmem:[%s721 + $0x438] sm:$0xf] %v1262
                  %v1264 = vld [vmem:[%s720 + $0x878] sm:$0xf]
                  %1265 = vst [vmem:[%s721 + $0x43c] sm:$0xf] %v1264
                  %v1266 = vld [vmem:[%s720 + $0x880] sm:$0xf]
                  %1267 = vst [vmem:[%s721 + $0x440] sm:$0xf] %v1266
                  %v1268 = vld [vmem:[%s720 + $0x888] sm:$0xf]
                  %1269 = vst [vmem:[%s721 + $0x444] sm:$0xf] %v1268
                  %v1270 = vld [vmem:[%s720 + $0x890] sm:$0xf]
                  %1271 = vst [vmem:[%s721 + $0x448] sm:$0xf] %v1270
                  %v1272 = vld [vmem:[%s720 + $0x898] sm:$0xf]
                  %1273 = vst [vmem:[%s721 + $0x44c] sm:$0xf] %v1272
                  %v1274 = vld [vmem:[%s720 + $0x8a0] sm:$0xf]
                  %1275 = vst [vmem:[%s721 + $0x450] sm:$0xf] %v1274
                  %v1276 = vld [vmem:[%s720 + $0x8a8] sm:$0xf]
                  %1277 = vst [vmem:[%s721 + $0x454] sm:$0xf] %v1276
                  %v1278 = vld [vmem:[%s720 + $0x8b0] sm:$0xf]
                  %1279 = vst [vmem:[%s721 + $0x458] sm:$0xf] %v1278
                  %v1280 = vld [vmem:[%s720 + $0x8b8] sm:$0xf]
                  %1281 = vst [vmem:[%s721 + $0x45c] sm:$0xf] %v1280
                  %v1282 = vld [vmem:[%s720 + $0x8c0] sm:$0xf]
                  %1283 = vst [vmem:[%s721 + $0x460] sm:$0xf] %v1282
                  %v1284 = vld [vmem:[%s720 + $0x8c8] sm:$0xf]
                  %1285 = vst [vmem:[%s721 + $0x464] sm:$0xf] %v1284
                  %v1286 = vld [vmem:[%s720 + $0x8d0] sm:$0xf]
                  %1287 = vst [vmem:[%s721 + $0x468] sm:$0xf] %v1286
                  %v1288 = vld [vmem:[%s720 + $0x8d8] sm:$0xf]
                  %1289 = vst [vmem:[%s721 + $0x46c] sm:$0xf] %v1288
                  %v1290 = vld [vmem:[%s720 + $0x8e0] sm:$0xf]
                  %1291 = vst [vmem:[%s721 + $0x470] sm:$0xf] %v1290
                  %v1292 = vld [vmem:[%s720 + $0x8e8] sm:$0xf]
                  %1293 = vst [vmem:[%s721 + $0x474] sm:$0xf] %v1292
                  %v1294 = vld [vmem:[%s720 + $0x8f0] sm:$0xf]
                  %1295 = vst [vmem:[%s721 + $0x478] sm:$0xf] %v1294
                  %v1296 = vld [vmem:[%s720 + $0x8f8] sm:$0xf]
                  %1297 = vst [vmem:[%s721 + $0x47c] sm:$0xf] %v1296
                $region59: #{conv2d_3x3_s2_p1.1} parent=46 // loop_footer
                  %s719 = sadd.s32 1, %s715
                $region60: #{conv2d_3x3_s2_p1.1} parent=46 // loop_footer_branch
                  %714 = sbr.rel target = $region56
                $region61: #{conv2d_3x3_s2_p1.1} parent=46 // loop_exit
                  _
              $region47: #{conv2d_3x3_s2_p1.1} parent=31 // pred_fallthru
                _
            $region32: #{conv2d_3x3_s2_p1.1} parent=27 // pred_fallthru
              _
            // Predicated region
            $region33: #{conv2d_3x3_s2_p1.1} parent=27 // pred_check
              _
            $region34: #{conv2d_3x3_s2_p1.1} parent=27 // pred_check_branch
              %117 = sbr.rel (0) target = $region36
            $region35: #{conv2d_3x3_s2_p1.1} parent=27 // pred_region
              loop: start=0, step=1, limit=1
              $region37: #{conv2d_3x3_s2_p1.1} parent=35 // loop_pre_header
                _
              $region38: #{conv2d_3x3_s2_p1.1} parent=35 // loop_header
                %s120 = sphi 0, %s124
                %p121 = scmp.ge.s32.totalorder %s120, 1
                %s125 = sphi %s111, %s111
                %s126 = sphi %s109, %s109
              $region39: #{conv2d_3x3_s2_p1.1} parent=35 // loop_header_branch
                %123 = sbr.rel (%p121) target = $region43
              $region40: #{conv2d_3x3_s2_p1.1} parent=35 // loop_body
                %v127 = vld [vmem:[%s125] sm:$0xf]
                %128 = vst [vmem:[%s126] sm:$0xf] %v127
                %v129 = vld [vmem:[%s125 + $0x8] sm:$0xf]
                %130 = vst [vmem:[%s126 + $0x4] sm:$0xf] %v129
                %v131 = vld [vmem:[%s125 + $0x10] sm:$0xf]
                %132 = vst [vmem:[%s126 + $0x8] sm:$0xf] %v131
                %v133 = vld [vmem:[%s125 + $0x18] sm:$0xf]
                %134 = vst [vmem:[%s126 + $0xc] sm:$0xf] %v133
                %v135 = vld [vmem:[%s125 + $0x20] sm:$0xf]
                %136 = vst [vmem:[%s126 + $0x10] sm:$0xf] %v135
                %v137 = vld [vmem:[%s125 + $0x28] sm:$0xf]
                %138 = vst [vmem:[%s126 + $0x14] sm:$0xf] %v137
                %v139 = vld [vmem:[%s125 + $0x30] sm:$0xf]
                %140 = vst [vmem:[%s126 + $0x18] sm:$0xf] %v139
                %v141 = vld [vmem:[%s125 + $0x38] sm:$0xf]
                %142 = vst [vmem:[%s126 + $0x1c] sm:$0xf] %v141
                %v143 = vld [vmem:[%s125 + $0x40] sm:$0xf]
                %144 = vst [vmem:[%s126 + $0x20] sm:$0xf] %v143
                %v145 = vld [vmem:[%s125 + $0x48] sm:$0xf]
                %146 = vst [vmem:[%s126 + $0x24] sm:$0xf] %v145
                %v147 = vld [vmem:[%s125 + $0x50] sm:$0xf]
                %148 = vst [vmem:[%s126 + $0x28] sm:$0xf] %v147
                %v149 = vld [vmem:[%s125 + $0x58] sm:$0xf]
                %150 = vst [vmem:[%s126 + $0x2c] sm:$0xf] %v149
                %v151 = vld [vmem:[%s125 + $0x60] sm:$0xf]
                %152 = vst [vmem:[%s126 + $0x30] sm:$0xf] %v151
                %v153 = vld [vmem:[%s125 + $0x68] sm:$0xf]
                %154 = vst [vmem:[%s126 + $0x34] sm:$0xf] %v153
                %v155 = vld [vmem:[%s125 + $0x70] sm:$0xf]
                %156 = vst [vmem:[%s126 + $0x38] sm:$0xf] %v155
                %v157 = vld [vmem:[%s125 + $0x78] sm:$0xf]
                %158 = vst [vmem:[%s126 + $0x3c] sm:$0xf] %v157
                %v159 = vld [vmem:[%s125 + $0x80] sm:$0xf]
                %160 = vst [vmem:[%s126 + $0x40] sm:$0xf] %v159
                %v161 = vld [vmem:[%s125 + $0x88] sm:$0xf]
                %162 = vst [vmem:[%s126 + $0x44] sm:$0xf] %v161
                %v163 = vld [vmem:[%s125 + $0x90] sm:$0xf]
                %164 = vst [vmem:[%s126 + $0x48] sm:$0xf] %v163
                %v165 = vld [vmem:[%s125 + $0x98] sm:$0xf]
                %166 = vst [vmem:[%s126 + $0x4c] sm:$0xf] %v165
                %v167 = vld [vmem:[%s125 + $0xa0] sm:$0xf]
                %168 = vst [vmem:[%s126 + $0x50] sm:$0xf] %v167
                %v169 = vld [vmem:[%s125 + $0xa8] sm:$0xf]
                %170 = vst [vmem:[%s126 + $0x54] sm:$0xf] %v169
                %v171 = vld [vmem:[%s125 + $0xb0] sm:$0xf]
                %172 = vst [vmem:[%s126 + $0x58] sm:$0xf] %v171
                %v173 = vld [vmem:[%s125 + $0xb8] sm:$0xf]
                %174 = vst [vmem:[%s126 + $0x5c] sm:$0xf] %v173
                %v175 = vld [vmem:[%s125 + $0xc0] sm:$0xf]
                %176 = vst [vmem:[%s126 + $0x60] sm:$0xf] %v175
                %v177 = vld [vmem:[%s125 + $0xc8] sm:$0xf]
                %178 = vst [vmem:[%s126 + $0x64] sm:$0xf] %v177
                %v179 = vld [vmem:[%s125 + $0xd0] sm:$0xf]
                %180 = vst [vmem:[%s126 + $0x68] sm:$0xf] %v179
                %v181 = vld [vmem:[%s125 + $0xd8] sm:$0xf]
                %182 = vst [vmem:[%s126 + $0x6c] sm:$0xf] %v181
                %v183 = vld [vmem:[%s125 + $0xe0] sm:$0xf]
                %184 = vst [vmem:[%s126 + $0x70] sm:$0xf] %v183
                %v185 = vld [vmem:[%s125 + $0xe8] sm:$0xf]
                %186 = vst [vmem:[%s126 + $0x74] sm:$0xf] %v185
                %v187 = vld [vmem:[%s125 + $0xf0] sm:$0xf]
                %188 = vst [vmem:[%s126 + $0x78] sm:$0xf] %v187
                %v189 = vld [vmem:[%s125 + $0xf8] sm:$0xf]
                %190 = vst [vmem:[%s126 + $0x7c] sm:$0xf] %v189
                %v191 = vld [vmem:[%s125 + $0x100] sm:$0xf]
                %192 = vst [vmem:[%s126 + $0x80] sm:$0xf] %v191
                %v193 = vld [vmem:[%s125 + $0x108] sm:$0xf]
                %194 = vst [vmem:[%s126 + $0x84] sm:$0xf] %v193
                %v195 = vld [vmem:[%s125 + $0x110] sm:$0xf]
                %196 = vst [vmem:[%s126 + $0x88] sm:$0xf] %v195
                %v197 = vld [vmem:[%s125 + $0x118] sm:$0xf]
                %198 = vst [vmem:[%s126 + $0x8c] sm:$0xf] %v197
                %v199 = vld [vmem:[%s125 + $0x120] sm:$0xf]
                %200 = vst [vmem:[%s126 + $0x90] sm:$0xf] %v199
                %v201 = vld [vmem:[%s125 + $0x128] sm:$0xf]
                %202 = vst [vmem:[%s126 + $0x94] sm:$0xf] %v201
                %v203 = vld [vmem:[%s125 + $0x130] sm:$0xf]
                %204 = vst [vmem:[%s126 + $0x98] sm:$0xf] %v203
                %v205 = vld [vmem:[%s125 + $0x138] sm:$0xf]
                %206 = vst [vmem:[%s126 + $0x9c] sm:$0xf] %v205
                %v207 = vld [vmem:[%s125 + $0x140] sm:$0xf]
                %208 = vst [vmem:[%s126 + $0xa0] sm:$0xf] %v207
                %v209 = vld [vmem:[%s125 + $0x148] sm:$0xf]
                %210 = vst [vmem:[%s126 + $0xa4] sm:$0xf] %v209
                %v211 = vld [vmem:[%s125 + $0x150] sm:$0xf]
                %212 = vst [vmem:[%s126 + $0xa8] sm:$0xf] %v211
                %v213 = vld [vmem:[%s125 + $0x158] sm:$0xf]
                %214 = vst [vmem:[%s126 + $0xac] sm:$0xf] %v213
                %v215 = vld [vmem:[%s125 + $0x160] sm:$0xf]
                %216 = vst [vmem:[%s126 + $0xb0] sm:$0xf] %v215
                %v217 = vld [vmem:[%s125 + $0x168] sm:$0xf]
                %218 = vst [vmem:[%s126 + $0xb4] sm:$0xf] %v217
                %v219 = vld [vmem:[%s125 + $0x170] sm:$0xf]
                %220 = vst [vmem:[%s126 + $0xb8] sm:$0xf] %v219
                %v221 = vld [vmem:[%s125 + $0x178] sm:$0xf]
                %222 = vst [vmem:[%s126 + $0xbc] sm:$0xf] %v221
                %v223 = vld [vmem:[%s125 + $0x180] sm:$0xf]
                %224 = vst [vmem:[%s126 + $0xc0] sm:$0xf] %v223
                %v225 = vld [vmem:[%s125 + $0x188] sm:$0xf]
                %226 = vst [vmem:[%s126 + $0xc4] sm:$0xf] %v225
                %v227 = vld [vmem:[%s125 + $0x190] sm:$0xf]
                %228 = vst [vmem:[%s126 + $0xc8] sm:$0xf] %v227
                %v229 = vld [vmem:[%s125 + $0x198] sm:$0xf]
                %230 = vst [vmem:[%s126 + $0xcc] sm:$0xf] %v229
                %v231 = vld [vmem:[%s125 + $0x1a0] sm:$0xf]
                %232 = vst [vmem:[%s126 + $0xd0] sm:$0xf] %v231
                %v233 = vld [vmem:[%s125 + $0x1a8] sm:$0xf]
                %234 = vst [vmem:[%s126 + $0xd4] sm:$0xf] %v233
                %v235 = vld [vmem:[%s125 + $0x1b0] sm:$0xf]
                %236 = vst [vmem:[%s126 + $0xd8] sm:$0xf] %v235
                %v237 = vld [vmem:[%s125 + $0x1b8] sm:$0xf]
                %238 = vst [vmem:[%s126 + $0xdc] sm:$0xf] %v237
                %v239 = vld [vmem:[%s125 + $0x1c0] sm:$0xf]
                %240 = vst [vmem:[%s126 + $0xe0] sm:$0xf] %v239
                %v241 = vld [vmem:[%s125 + $0x1c8] sm:$0xf]
                %242 = vst [vmem:[%s126 + $0xe4] sm:$0xf] %v241
                %v243 = vld [vmem:[%s125 + $0x1d0] sm:$0xf]
                %244 = vst [vmem:[%s126 + $0xe8] sm:$0xf] %v243
                %v245 = vld [vmem:[%s125 + $0x1d8] sm:$0xf]
                %246 = vst [vmem:[%s126 + $0xec] sm:$0xf] %v245
                %v247 = vld [vmem:[%s125 + $0x1e0] sm:$0xf]
                %248 = vst [vmem:[%s126 + $0xf0] sm:$0xf] %v247
                %v249 = vld [vmem:[%s125 + $0x1e8] sm:$0xf]
                %250 = vst [vmem:[%s126 + $0xf4] sm:$0xf] %v249
                %v251 = vld [vmem:[%s125 + $0x1f0] sm:$0xf]
                %252 = vst [vmem:[%s126 + $0xf8] sm:$0xf] %v251
                %v253 = vld [vmem:[%s125 + $0x1f8] sm:$0xf]
                %254 = vst [vmem:[%s126 + $0xfc] sm:$0xf] %v253
                %v255 = vld [vmem:[%s125 + $0x200] sm:$0xf]
                %256 = vst [vmem:[%s126 + $0x100] sm:$0xf] %v255
                %v257 = vld [vmem:[%s125 + $0x208] sm:$0xf]
                %258 = vst [vmem:[%s126 + $0x104] sm:$0xf] %v257
                %v259 = vld [vmem:[%s125 + $0x210] sm:$0xf]
                %260 = vst [vmem:[%s126 + $0x108] sm:$0xf] %v259
                %v261 = vld [vmem:[%s125 + $0x218] sm:$0xf]
                %262 = vst [vmem:[%s126 + $0x10c] sm:$0xf] %v261
                %v263 = vld [vmem:[%s125 + $0x220] sm:$0xf]
                %264 = vst [vmem:[%s126 + $0x110] sm:$0xf] %v263
                %v265 = vld [vmem:[%s125 + $0x228] sm:$0xf]
                %266 = vst [vmem:[%s126 + $0x114] sm:$0xf] %v265
                %v267 = vld [vmem:[%s125 + $0x230] sm:$0xf]
                %268 = vst [vmem:[%s126 + $0x118] sm:$0xf] %v267
                %v269 = vld [vmem:[%s125 + $0x238] sm:$0xf]
                %270 = vst [vmem:[%s126 + $0x11c] sm:$0xf] %v269
                %v271 = vld [vmem:[%s125 + $0x240] sm:$0xf]
                %272 = vst [vmem:[%s126 + $0x120] sm:$0xf] %v271
                %v273 = vld [vmem:[%s125 + $0x248] sm:$0xf]
                %274 = vst [vmem:[%s126 + $0x124] sm:$0xf] %v273
                %v275 = vld [vmem:[%s125 + $0x250] sm:$0xf]
                %276 = vst [vmem:[%s126 + $0x128] sm:$0xf] %v275
                %v277 = vld [vmem:[%s125 + $0x258] sm:$0xf]
                %278 = vst [vmem:[%s126 + $0x12c] sm:$0xf] %v277
                %v279 = vld [vmem:[%s125 + $0x260] sm:$0xf]
                %280 = vst [vmem:[%s126 + $0x130] sm:$0xf] %v279
                %v281 = vld [vmem:[%s125 + $0x268] sm:$0xf]
                %282 = vst [vmem:[%s126 + $0x134] sm:$0xf] %v281
                %v283 = vld [vmem:[%s125 + $0x270] sm:$0xf]
                %284 = vst [vmem:[%s126 + $0x138] sm:$0xf] %v283
                %v285 = vld [vmem:[%s125 + $0x278] sm:$0xf]
                %286 = vst [vmem:[%s126 + $0x13c] sm:$0xf] %v285
                %v287 = vld [vmem:[%s125 + $0x280] sm:$0xf]
                %288 = vst [vmem:[%s126 + $0x140] sm:$0xf] %v287
                %v289 = vld [vmem:[%s125 + $0x288] sm:$0xf]
                %290 = vst [vmem:[%s126 + $0x144] sm:$0xf] %v289
                %v291 = vld [vmem:[%s125 + $0x290] sm:$0xf]
                %292 = vst [vmem:[%s126 + $0x148] sm:$0xf] %v291
                %v293 = vld [vmem:[%s125 + $0x298] sm:$0xf]
                %294 = vst [vmem:[%s126 + $0x14c] sm:$0xf] %v293
                %v295 = vld [vmem:[%s125 + $0x2a0] sm:$0xf]
                %296 = vst [vmem:[%s126 + $0x150] sm:$0xf] %v295
                %v297 = vld [vmem:[%s125 + $0x2a8] sm:$0xf]
                %298 = vst [vmem:[%s126 + $0x154] sm:$0xf] %v297
                %v299 = vld [vmem:[%s125 + $0x2b0] sm:$0xf]
                %300 = vst [vmem:[%s126 + $0x158] sm:$0xf] %v299
                %v301 = vld [vmem:[%s125 + $0x2b8] sm:$0xf]
                %302 = vst [vmem:[%s126 + $0x15c] sm:$0xf] %v301
                %v303 = vld [vmem:[%s125 + $0x2c0] sm:$0xf]
                %304 = vst [vmem:[%s126 + $0x160] sm:$0xf] %v303
                %v305 = vld [vmem:[%s125 + $0x2c8] sm:$0xf]
                %306 = vst [vmem:[%s126 + $0x164] sm:$0xf] %v305
                %v307 = vld [vmem:[%s125 + $0x2d0] sm:$0xf]
                %308 = vst [vmem:[%s126 + $0x168] sm:$0xf] %v307
                %v309 = vld [vmem:[%s125 + $0x2d8] sm:$0xf]
                %310 = vst [vmem:[%s126 + $0x16c] sm:$0xf] %v309
                %v311 = vld [vmem:[%s125 + $0x2e0] sm:$0xf]
                %312 = vst [vmem:[%s126 + $0x170] sm:$0xf] %v311
                %v313 = vld [vmem:[%s125 + $0x2e8] sm:$0xf]
                %314 = vst [vmem:[%s126 + $0x174] sm:$0xf] %v313
                %v315 = vld [vmem:[%s125 + $0x2f0] sm:$0xf]
                %316 = vst [vmem:[%s126 + $0x178] sm:$0xf] %v315
                %v317 = vld [vmem:[%s125 + $0x2f8] sm:$0xf]
                %318 = vst [vmem:[%s126 + $0x17c] sm:$0xf] %v317
                %v319 = vld [vmem:[%s125 + $0x300] sm:$0xf]
                %320 = vst [vmem:[%s126 + $0x180] sm:$0xf] %v319
                %v321 = vld [vmem:[%s125 + $0x308] sm:$0xf]
                %322 = vst [vmem:[%s126 + $0x184] sm:$0xf] %v321
                %v323 = vld [vmem:[%s125 + $0x310] sm:$0xf]
                %324 = vst [vmem:[%s126 + $0x188] sm:$0xf] %v323
                %v325 = vld [vmem:[%s125 + $0x318] sm:$0xf]
                %326 = vst [vmem:[%s126 + $0x18c] sm:$0xf] %v325
                %v327 = vld [vmem:[%s125 + $0x320] sm:$0xf]
                %328 = vst [vmem:[%s126 + $0x190] sm:$0xf] %v327
                %v329 = vld [vmem:[%s125 + $0x328] sm:$0xf]
                %330 = vst [vmem:[%s126 + $0x194] sm:$0xf] %v329
                %v331 = vld [vmem:[%s125 + $0x330] sm:$0xf]
                %332 = vst [vmem:[%s126 + $0x198] sm:$0xf] %v331
                %v333 = vld [vmem:[%s125 + $0x338] sm:$0xf]
                %334 = vst [vmem:[%s126 + $0x19c] sm:$0xf] %v333
                %v335 = vld [vmem:[%s125 + $0x340] sm:$0xf]
                %336 = vst [vmem:[%s126 + $0x1a0] sm:$0xf] %v335
                %v337 = vld [vmem:[%s125 + $0x348] sm:$0xf]
                %338 = vst [vmem:[%s126 + $0x1a4] sm:$0xf] %v337
                %v339 = vld [vmem:[%s125 + $0x350] sm:$0xf]
                %340 = vst [vmem:[%s126 + $0x1a8] sm:$0xf] %v339
                %v341 = vld [vmem:[%s125 + $0x358] sm:$0xf]
                %342 = vst [vmem:[%s126 + $0x1ac] sm:$0xf] %v341
                %v343 = vld [vmem:[%s125 + $0x360] sm:$0xf]
                %344 = vst [vmem:[%s126 + $0x1b0] sm:$0xf] %v343
                %v345 = vld [vmem:[%s125 + $0x368] sm:$0xf]
                %346 = vst [vmem:[%s126 + $0x1b4] sm:$0xf] %v345
                %v347 = vld [vmem:[%s125 + $0x370] sm:$0xf]
                %348 = vst [vmem:[%s126 + $0x1b8] sm:$0xf] %v347
                %v349 = vld [vmem:[%s125 + $0x378] sm:$0xf]
                %350 = vst [vmem:[%s126 + $0x1bc] sm:$0xf] %v349
                %v351 = vld [vmem:[%s125 + $0x380] sm:$0xf]
                %352 = vst [vmem:[%s126 + $0x1c0] sm:$0xf] %v351
                %v353 = vld [vmem:[%s125 + $0x388] sm:$0xf]
                %354 = vst [vmem:[%s126 + $0x1c4] sm:$0xf] %v353
                %v355 = vld [vmem:[%s125 + $0x390] sm:$0xf]
                %356 = vst [vmem:[%s126 + $0x1c8] sm:$0xf] %v355
                %v357 = vld [vmem:[%s125 + $0x398] sm:$0xf]
                %358 = vst [vmem:[%s126 + $0x1cc] sm:$0xf] %v357
                %v359 = vld [vmem:[%s125 + $0x3a0] sm:$0xf]
                %360 = vst [vmem:[%s126 + $0x1d0] sm:$0xf] %v359
                %v361 = vld [vmem:[%s125 + $0x3a8] sm:$0xf]
                %362 = vst [vmem:[%s126 + $0x1d4] sm:$0xf] %v361
                %v363 = vld [vmem:[%s125 + $0x3b0] sm:$0xf]
                %364 = vst [vmem:[%s126 + $0x1d8] sm:$0xf] %v363
                %v365 = vld [vmem:[%s125 + $0x3b8] sm:$0xf]
                %366 = vst [vmem:[%s126 + $0x1dc] sm:$0xf] %v365
                %v367 = vld [vmem:[%s125 + $0x3c0] sm:$0xf]
                %368 = vst [vmem:[%s126 + $0x1e0] sm:$0xf] %v367
                %v369 = vld [vmem:[%s125 + $0x3c8] sm:$0xf]
                %370 = vst [vmem:[%s126 + $0x1e4] sm:$0xf] %v369
                %v371 = vld [vmem:[%s125 + $0x3d0] sm:$0xf]
                %372 = vst [vmem:[%s126 + $0x1e8] sm:$0xf] %v371
                %v373 = vld [vmem:[%s125 + $0x3d8] sm:$0xf]
                %374 = vst [vmem:[%s126 + $0x1ec] sm:$0xf] %v373
                %v375 = vld [vmem:[%s125 + $0x3e0] sm:$0xf]
                %376 = vst [vmem:[%s126 + $0x1f0] sm:$0xf] %v375
                %v377 = vld [vmem:[%s125 + $0x3e8] sm:$0xf]
                %378 = vst [vmem:[%s126 + $0x1f4] sm:$0xf] %v377
                %v379 = vld [vmem:[%s125 + $0x3f0] sm:$0xf]
                %380 = vst [vmem:[%s126 + $0x1f8] sm:$0xf] %v379
                %v381 = vld [vmem:[%s125 + $0x3f8] sm:$0xf]
                %382 = vst [vmem:[%s126 + $0x1fc] sm:$0xf] %v381
                %v383 = vld [vmem:[%s125 + $0x400] sm:$0xf]
                %384 = vst [vmem:[%s126 + $0x200] sm:$0xf] %v383
                %v385 = vld [vmem:[%s125 + $0x408] sm:$0xf]
                %386 = vst [vmem:[%s126 + $0x204] sm:$0xf] %v385
                %v387 = vld [vmem:[%s125 + $0x410] sm:$0xf]
                %388 = vst [vmem:[%s126 + $0x208] sm:$0xf] %v387
                %v389 = vld [vmem:[%s125 + $0x418] sm:$0xf]
                %390 = vst [vmem:[%s126 + $0x20c] sm:$0xf] %v389
                %v391 = vld [vmem:[%s125 + $0x420] sm:$0xf]
                %392 = vst [vmem:[%s126 + $0x210] sm:$0xf] %v391
                %v393 = vld [vmem:[%s125 + $0x428] sm:$0xf]
                %394 = vst [vmem:[%s126 + $0x214] sm:$0xf] %v393
                %v395 = vld [vmem:[%s125 + $0x430] sm:$0xf]
                %396 = vst [vmem:[%s126 + $0x218] sm:$0xf] %v395
                %v397 = vld [vmem:[%s125 + $0x438] sm:$0xf]
                %398 = vst [vmem:[%s126 + $0x21c] sm:$0xf] %v397
                %v399 = vld [vmem:[%s125 + $0x440] sm:$0xf]
                %400 = vst [vmem:[%s126 + $0x220] sm:$0xf] %v399
                %v401 = vld [vmem:[%s125 + $0x448] sm:$0xf]
                %402 = vst [vmem:[%s126 + $0x224] sm:$0xf] %v401
                %v403 = vld [vmem:[%s125 + $0x450] sm:$0xf]
                %404 = vst [vmem:[%s126 + $0x228] sm:$0xf] %v403
                %v405 = vld [vmem:[%s125 + $0x458] sm:$0xf]
                %406 = vst [vmem:[%s126 + $0x22c] sm:$0xf] %v405
                %v407 = vld [vmem:[%s125 + $0x460] sm:$0xf]
                %408 = vst [vmem:[%s126 + $0x230] sm:$0xf] %v407
                %v409 = vld [vmem:[%s125 + $0x468] sm:$0xf]
                %410 = vst [vmem:[%s126 + $0x234] sm:$0xf] %v409
                %v411 = vld [vmem:[%s125 + $0x470] sm:$0xf]
                %412 = vst [vmem:[%s126 + $0x238] sm:$0xf] %v411
                %v413 = vld [vmem:[%s125 + $0x478] sm:$0xf]
                %414 = vst [vmem:[%s126 + $0x23c] sm:$0xf] %v413
                %v415 = vld [vmem:[%s125 + $0x480] sm:$0xf]
                %416 = vst [vmem:[%s126 + $0x240] sm:$0xf] %v415
                %v417 = vld [vmem:[%s125 + $0x488] sm:$0xf]
                %418 = vst [vmem:[%s126 + $0x244] sm:$0xf] %v417
                %v419 = vld [vmem:[%s125 + $0x490] sm:$0xf]
                %420 = vst [vmem:[%s126 + $0x248] sm:$0xf] %v419
                %v421 = vld [vmem:[%s125 + $0x498] sm:$0xf]
                %422 = vst [vmem:[%s126 + $0x24c] sm:$0xf] %v421
                %v423 = vld [vmem:[%s125 + $0x4a0] sm:$0xf]
                %424 = vst [vmem:[%s126 + $0x250] sm:$0xf] %v423
                %v425 = vld [vmem:[%s125 + $0x4a8] sm:$0xf]
                %426 = vst [vmem:[%s126 + $0x254] sm:$0xf] %v425
                %v427 = vld [vmem:[%s125 + $0x4b0] sm:$0xf]
                %428 = vst [vmem:[%s126 + $0x258] sm:$0xf] %v427
                %v429 = vld [vmem:[%s125 + $0x4b8] sm:$0xf]
                %430 = vst [vmem:[%s126 + $0x25c] sm:$0xf] %v429
                %v431 = vld [vmem:[%s125 + $0x4c0] sm:$0xf]
                %432 = vst [vmem:[%s126 + $0x260] sm:$0xf] %v431
                %v433 = vld [vmem:[%s125 + $0x4c8] sm:$0xf]
                %434 = vst [vmem:[%s126 + $0x264] sm:$0xf] %v433
                %v435 = vld [vmem:[%s125 + $0x4d0] sm:$0xf]
                %436 = vst [vmem:[%s126 + $0x268] sm:$0xf] %v435
                %v437 = vld [vmem:[%s125 + $0x4d8] sm:$0xf]
                %438 = vst [vmem:[%s126 + $0x26c] sm:$0xf] %v437
                %v439 = vld [vmem:[%s125 + $0x4e0] sm:$0xf]
                %440 = vst [vmem:[%s126 + $0x270] sm:$0xf] %v439
                %v441 = vld [vmem:[%s125 + $0x4e8] sm:$0xf]
                %442 = vst [vmem:[%s126 + $0x274] sm:$0xf] %v441
                %v443 = vld [vmem:[%s125 + $0x4f0] sm:$0xf]
                %444 = vst [vmem:[%s126 + $0x278] sm:$0xf] %v443
                %v445 = vld [vmem:[%s125 + $0x4f8] sm:$0xf]
                %446 = vst [vmem:[%s126 + $0x27c] sm:$0xf] %v445
                %v447 = vld [vmem:[%s125 + $0x500] sm:$0xf]
                %448 = vst [vmem:[%s126 + $0x280] sm:$0xf] %v447
                %v449 = vld [vmem:[%s125 + $0x508] sm:$0xf]
                %450 = vst [vmem:[%s126 + $0x284] sm:$0xf] %v449
                %v451 = vld [vmem:[%s125 + $0x510] sm:$0xf]
                %452 = vst [vmem:[%s126 + $0x288] sm:$0xf] %v451
                %v453 = vld [vmem:[%s125 + $0x518] sm:$0xf]
                %454 = vst [vmem:[%s126 + $0x28c] sm:$0xf] %v453
                %v455 = vld [vmem:[%s125 + $0x520] sm:$0xf]
                %456 = vst [vmem:[%s126 + $0x290] sm:$0xf] %v455
                %v457 = vld [vmem:[%s125 + $0x528] sm:$0xf]
                %458 = vst [vmem:[%s126 + $0x294] sm:$0xf] %v457
                %v459 = vld [vmem:[%s125 + $0x530] sm:$0xf]
                %460 = vst [vmem:[%s126 + $0x298] sm:$0xf] %v459
                %v461 = vld [vmem:[%s125 + $0x538] sm:$0xf]
                %462 = vst [vmem:[%s126 + $0x29c] sm:$0xf] %v461
                %v463 = vld [vmem:[%s125 + $0x540] sm:$0xf]
                %464 = vst [vmem:[%s126 + $0x2a0] sm:$0xf] %v463
                %v465 = vld [vmem:[%s125 + $0x548] sm:$0xf]
                %466 = vst [vmem:[%s126 + $0x2a4] sm:$0xf] %v465
                %v467 = vld [vmem:[%s125 + $0x550] sm:$0xf]
                %468 = vst [vmem:[%s126 + $0x2a8] sm:$0xf] %v467
                %v469 = vld [vmem:[%s125 + $0x558] sm:$0xf]
                %470 = vst [vmem:[%s126 + $0x2ac] sm:$0xf] %v469
                %v471 = vld [vmem:[%s125 + $0x560] sm:$0xf]
                %472 = vst [vmem:[%s126 + $0x2b0] sm:$0xf] %v471
                %v473 = vld [vmem:[%s125 + $0x568] sm:$0xf]
                %474 = vst [vmem:[%s126 + $0x2b4] sm:$0xf] %v473
                %v475 = vld [vmem:[%s125 + $0x570] sm:$0xf]
                %476 = vst [vmem:[%s126 + $0x2b8] sm:$0xf] %v475
                %v477 = vld [vmem:[%s125 + $0x578] sm:$0xf]
                %478 = vst [vmem:[%s126 + $0x2bc] sm:$0xf] %v477
                %v479 = vld [vmem:[%s125 + $0x580] sm:$0xf]
                %480 = vst [vmem:[%s126 + $0x2c0] sm:$0xf] %v479
                %v481 = vld [vmem:[%s125 + $0x588] sm:$0xf]
                %482 = vst [vmem:[%s126 + $0x2c4] sm:$0xf] %v481
                %v483 = vld [vmem:[%s125 + $0x590] sm:$0xf]
                %484 = vst [vmem:[%s126 + $0x2c8] sm:$0xf] %v483
                %v485 = vld [vmem:[%s125 + $0x598] sm:$0xf]
                %486 = vst [vmem:[%s126 + $0x2cc] sm:$0xf] %v485
                %v487 = vld [vmem:[%s125 + $0x5a0] sm:$0xf]
                %488 = vst [vmem:[%s126 + $0x2d0] sm:$0xf] %v487
                %v489 = vld [vmem:[%s125 + $0x5a8] sm:$0xf]
                %490 = vst [vmem:[%s126 + $0x2d4] sm:$0xf] %v489
                %v491 = vld [vmem:[%s125 + $0x5b0] sm:$0xf]
                %492 = vst [vmem:[%s126 + $0x2d8] sm:$0xf] %v491
                %v493 = vld [vmem:[%s125 + $0x5b8] sm:$0xf]
                %494 = vst [vmem:[%s126 + $0x2dc] sm:$0xf] %v493
                %v495 = vld [vmem:[%s125 + $0x5c0] sm:$0xf]
                %496 = vst [vmem:[%s126 + $0x2e0] sm:$0xf] %v495
                %v497 = vld [vmem:[%s125 + $0x5c8] sm:$0xf]
                %498 = vst [vmem:[%s126 + $0x2e4] sm:$0xf] %v497
                %v499 = vld [vmem:[%s125 + $0x5d0] sm:$0xf]
                %500 = vst [vmem:[%s126 + $0x2e8] sm:$0xf] %v499
                %v501 = vld [vmem:[%s125 + $0x5d8] sm:$0xf]
                %502 = vst [vmem:[%s126 + $0x2ec] sm:$0xf] %v501
                %v503 = vld [vmem:[%s125 + $0x5e0] sm:$0xf]
                %504 = vst [vmem:[%s126 + $0x2f0] sm:$0xf] %v503
                %v505 = vld [vmem:[%s125 + $0x5e8] sm:$0xf]
                %506 = vst [vmem:[%s126 + $0x2f4] sm:$0xf] %v505
                %v507 = vld [vmem:[%s125 + $0x5f0] sm:$0xf]
                %508 = vst [vmem:[%s126 + $0x2f8] sm:$0xf] %v507
                %v509 = vld [vmem:[%s125 + $0x5f8] sm:$0xf]
                %510 = vst [vmem:[%s126 + $0x2fc] sm:$0xf] %v509
                %v511 = vld [vmem:[%s125 + $0x600] sm:$0xf]
                %512 = vst [vmem:[%s126 + $0x300] sm:$0xf] %v511
                %v513 = vld [vmem:[%s125 + $0x608] sm:$0xf]
                %514 = vst [vmem:[%s126 + $0x304] sm:$0xf] %v513
                %v515 = vld [vmem:[%s125 + $0x610] sm:$0xf]
                %516 = vst [vmem:[%s126 + $0x308] sm:$0xf] %v515
                %v517 = vld [vmem:[%s125 + $0x618] sm:$0xf]
                %518 = vst [vmem:[%s126 + $0x30c] sm:$0xf] %v517
                %v519 = vld [vmem:[%s125 + $0x620] sm:$0xf]
                %520 = vst [vmem:[%s126 + $0x310] sm:$0xf] %v519
                %v521 = vld [vmem:[%s125 + $0x628] sm:$0xf]
                %522 = vst [vmem:[%s126 + $0x314] sm:$0xf] %v521
                %v523 = vld [vmem:[%s125 + $0x630] sm:$0xf]
                %524 = vst [vmem:[%s126 + $0x318] sm:$0xf] %v523
                %v525 = vld [vmem:[%s125 + $0x638] sm:$0xf]
                %526 = vst [vmem:[%s126 + $0x31c] sm:$0xf] %v525
                %v527 = vld [vmem:[%s125 + $0x640] sm:$0xf]
                %528 = vst [vmem:[%s126 + $0x320] sm:$0xf] %v527
                %v529 = vld [vmem:[%s125 + $0x648] sm:$0xf]
                %530 = vst [vmem:[%s126 + $0x324] sm:$0xf] %v529
                %v531 = vld [vmem:[%s125 + $0x650] sm:$0xf]
                %532 = vst [vmem:[%s126 + $0x328] sm:$0xf] %v531
                %v533 = vld [vmem:[%s125 + $0x658] sm:$0xf]
                %534 = vst [vmem:[%s126 + $0x32c] sm:$0xf] %v533
                %v535 = vld [vmem:[%s125 + $0x660] sm:$0xf]
                %536 = vst [vmem:[%s126 + $0x330] sm:$0xf] %v535
                %v537 = vld [vmem:[%s125 + $0x668] sm:$0xf]
                %538 = vst [vmem:[%s126 + $0x334] sm:$0xf] %v537
                %v539 = vld [vmem:[%s125 + $0x670] sm:$0xf]
                %540 = vst [vmem:[%s126 + $0x338] sm:$0xf] %v539
                %v541 = vld [vmem:[%s125 + $0x678] sm:$0xf]
                %542 = vst [vmem:[%s126 + $0x33c] sm:$0xf] %v541
                %v543 = vld [vmem:[%s125 + $0x680] sm:$0xf]
                %544 = vst [vmem:[%s126 + $0x340] sm:$0xf] %v543
                %v545 = vld [vmem:[%s125 + $0x688] sm:$0xf]
                %546 = vst [vmem:[%s126 + $0x344] sm:$0xf] %v545
                %v547 = vld [vmem:[%s125 + $0x690] sm:$0xf]
                %548 = vst [vmem:[%s126 + $0x348] sm:$0xf] %v547
                %v549 = vld [vmem:[%s125 + $0x698] sm:$0xf]
                %550 = vst [vmem:[%s126 + $0x34c] sm:$0xf] %v549
                %v551 = vld [vmem:[%s125 + $0x6a0] sm:$0xf]
                %552 = vst [vmem:[%s126 + $0x350] sm:$0xf] %v551
                %v553 = vld [vmem:[%s125 + $0x6a8] sm:$0xf]
                %554 = vst [vmem:[%s126 + $0x354] sm:$0xf] %v553
                %v555 = vld [vmem:[%s125 + $0x6b0] sm:$0xf]
                %556 = vst [vmem:[%s126 + $0x358] sm:$0xf] %v555
                %v557 = vld [vmem:[%s125 + $0x6b8] sm:$0xf]
                %558 = vst [vmem:[%s126 + $0x35c] sm:$0xf] %v557
                %v559 = vld [vmem:[%s125 + $0x6c0] sm:$0xf]
                %560 = vst [vmem:[%s126 + $0x360] sm:$0xf] %v559
                %v561 = vld [vmem:[%s125 + $0x6c8] sm:$0xf]
                %562 = vst [vmem:[%s126 + $0x364] sm:$0xf] %v561
                %v563 = vld [vmem:[%s125 + $0x6d0] sm:$0xf]
                %564 = vst [vmem:[%s126 + $0x368] sm:$0xf] %v563
                %v565 = vld [vmem:[%s125 + $0x6d8] sm:$0xf]
                %566 = vst [vmem:[%s126 + $0x36c] sm:$0xf] %v565
                %v567 = vld [vmem:[%s125 + $0x6e0] sm:$0xf]
                %568 = vst [vmem:[%s126 + $0x370] sm:$0xf] %v567
                %v569 = vld [vmem:[%s125 + $0x6e8] sm:$0xf]
                %570 = vst [vmem:[%s126 + $0x374] sm:$0xf] %v569
                %v571 = vld [vmem:[%s125 + $0x6f0] sm:$0xf]
                %572 = vst [vmem:[%s126 + $0x378] sm:$0xf] %v571
                %v573 = vld [vmem:[%s125 + $0x6f8] sm:$0xf]
                %574 = vst [vmem:[%s126 + $0x37c] sm:$0xf] %v573
                %v575 = vld [vmem:[%s125 + $0x700] sm:$0xf]
                %576 = vst [vmem:[%s126 + $0x380] sm:$0xf] %v575
                %v577 = vld [vmem:[%s125 + $0x708] sm:$0xf]
                %578 = vst [vmem:[%s126 + $0x384] sm:$0xf] %v577
                %v579 = vld [vmem:[%s125 + $0x710] sm:$0xf]
                %580 = vst [vmem:[%s126 + $0x388] sm:$0xf] %v579
                %v581 = vld [vmem:[%s125 + $0x718] sm:$0xf]
                %582 = vst [vmem:[%s126 + $0x38c] sm:$0xf] %v581
                %v583 = vld [vmem:[%s125 + $0x720] sm:$0xf]
                %584 = vst [vmem:[%s126 + $0x390] sm:$0xf] %v583
                %v585 = vld [vmem:[%s125 + $0x728] sm:$0xf]
                %586 = vst [vmem:[%s126 + $0x394] sm:$0xf] %v585
                %v587 = vld [vmem:[%s125 + $0x730] sm:$0xf]
                %588 = vst [vmem:[%s126 + $0x398] sm:$0xf] %v587
                %v589 = vld [vmem:[%s125 + $0x738] sm:$0xf]
                %590 = vst [vmem:[%s126 + $0x39c] sm:$0xf] %v589
                %v591 = vld [vmem:[%s125 + $0x740] sm:$0xf]
                %592 = vst [vmem:[%s126 + $0x3a0] sm:$0xf] %v591
                %v593 = vld [vmem:[%s125 + $0x748] sm:$0xf]
                %594 = vst [vmem:[%s126 + $0x3a4] sm:$0xf] %v593
                %v595 = vld [vmem:[%s125 + $0x750] sm:$0xf]
                %596 = vst [vmem:[%s126 + $0x3a8] sm:$0xf] %v595
                %v597 = vld [vmem:[%s125 + $0x758] sm:$0xf]
                %598 = vst [vmem:[%s126 + $0x3ac] sm:$0xf] %v597
                %v599 = vld [vmem:[%s125 + $0x760] sm:$0xf]
                %600 = vst [vmem:[%s126 + $0x3b0] sm:$0xf] %v599
                %v601 = vld [vmem:[%s125 + $0x768] sm:$0xf]
                %602 = vst [vmem:[%s126 + $0x3b4] sm:$0xf] %v601
                %v603 = vld [vmem:[%s125 + $0x770] sm:$0xf]
                %604 = vst [vmem:[%s126 + $0x3b8] sm:$0xf] %v603
                %v605 = vld [vmem:[%s125 + $0x778] sm:$0xf]
                %606 = vst [vmem:[%s126 + $0x3bc] sm:$0xf] %v605
                %v607 = vld [vmem:[%s125 + $0x780] sm:$0xf]
                %608 = vst [vmem:[%s126 + $0x3c0] sm:$0xf] %v607
                %v609 = vld [vmem:[%s125 + $0x788] sm:$0xf]
                %610 = vst [vmem:[%s126 + $0x3c4] sm:$0xf] %v609
                %v611 = vld [vmem:[%s125 + $0x790] sm:$0xf]
                %612 = vst [vmem:[%s126 + $0x3c8] sm:$0xf] %v611
                %v613 = vld [vmem:[%s125 + $0x798] sm:$0xf]
                %614 = vst [vmem:[%s126 + $0x3cc] sm:$0xf] %v613
                %v615 = vld [vmem:[%s125 + $0x7a0] sm:$0xf]
                %616 = vst [vmem:[%s126 + $0x3d0] sm:$0xf] %v615
                %v617 = vld [vmem:[%s125 + $0x7a8] sm:$0xf]
                %618 = vst [vmem:[%s126 + $0x3d4] sm:$0xf] %v617
                %v619 = vld [vmem:[%s125 + $0x7b0] sm:$0xf]
                %620 = vst [vmem:[%s126 + $0x3d8] sm:$0xf] %v619
                %v621 = vld [vmem:[%s125 + $0x7b8] sm:$0xf]
                %622 = vst [vmem:[%s126 + $0x3dc] sm:$0xf] %v621
                %v623 = vld [vmem:[%s125 + $0x7c0] sm:$0xf]
                %624 = vst [vmem:[%s126 + $0x3e0] sm:$0xf] %v623
                %v625 = vld [vmem:[%s125 + $0x7c8] sm:$0xf]
                %626 = vst [vmem:[%s126 + $0x3e4] sm:$0xf] %v625
                %v627 = vld [vmem:[%s125 + $0x7d0] sm:$0xf]
                %628 = vst [vmem:[%s126 + $0x3e8] sm:$0xf] %v627
                %v629 = vld [vmem:[%s125 + $0x7d8] sm:$0xf]
                %630 = vst [vmem:[%s126 + $0x3ec] sm:$0xf] %v629
                %v631 = vld [vmem:[%s125 + $0x7e0] sm:$0xf]
                %632 = vst [vmem:[%s126 + $0x3f0] sm:$0xf] %v631
                %v633 = vld [vmem:[%s125 + $0x7e8] sm:$0xf]
                %634 = vst [vmem:[%s126 + $0x3f4] sm:$0xf] %v633
                %v635 = vld [vmem:[%s125 + $0x7f0] sm:$0xf]
                %636 = vst [vmem:[%s126 + $0x3f8] sm:$0xf] %v635
                %v637 = vld [vmem:[%s125 + $0x7f8] sm:$0xf]
                %638 = vst [vmem:[%s126 + $0x3fc] sm:$0xf] %v637
                %v639 = vld [vmem:[%s125 + $0x800] sm:$0xf]
                %640 = vst [vmem:[%s126 + $0x400] sm:$0xf] %v639
                %v641 = vld [vmem:[%s125 + $0x808] sm:$0xf]
                %642 = vst [vmem:[%s126 + $0x404] sm:$0xf] %v641
                %v643 = vld [vmem:[%s125 + $0x810] sm:$0xf]
                %644 = vst [vmem:[%s126 + $0x408] sm:$0xf] %v643
                %v645 = vld [vmem:[%s125 + $0x818] sm:$0xf]
                %646 = vst [vmem:[%s126 + $0x40c] sm:$0xf] %v645
                %v647 = vld [vmem:[%s125 + $0x820] sm:$0xf]
                %648 = vst [vmem:[%s126 + $0x410] sm:$0xf] %v647
                %v649 = vld [vmem:[%s125 + $0x828] sm:$0xf]
                %650 = vst [vmem:[%s126 + $0x414] sm:$0xf] %v649
                %v651 = vld [vmem:[%s125 + $0x830] sm:$0xf]
                %652 = vst [vmem:[%s126 + $0x418] sm:$0xf] %v651
                %v653 = vld [vmem:[%s125 + $0x838] sm:$0xf]
                %654 = vst [vmem:[%s126 + $0x41c] sm:$0xf] %v653
                %v655 = vld [vmem:[%s125 + $0x840] sm:$0xf]
                %656 = vst [vmem:[%s126 + $0x420] sm:$0xf] %v655
                %v657 = vld [vmem:[%s125 + $0x848] sm:$0xf]
                %658 = vst [vmem:[%s126 + $0x424] sm:$0xf] %v657
                %v659 = vld [vmem:[%s125 + $0x850] sm:$0xf]
                %660 = vst [vmem:[%s126 + $0x428] sm:$0xf] %v659
                %v661 = vld [vmem:[%s125 + $0x858] sm:$0xf]
                %662 = vst [vmem:[%s126 + $0x42c] sm:$0xf] %v661
                %v663 = vld [vmem:[%s125 + $0x860] sm:$0xf]
                %664 = vst [vmem:[%s126 + $0x430] sm:$0xf] %v663
                %v665 = vld [vmem:[%s125 + $0x868] sm:$0xf]
                %666 = vst [vmem:[%s126 + $0x434] sm:$0xf] %v665
                %v667 = vld [vmem:[%s125 + $0x870] sm:$0xf]
                %668 = vst [vmem:[%s126 + $0x438] sm:$0xf] %v667
                %v669 = vld [vmem:[%s125 + $0x878] sm:$0xf]
                %670 = vst [vmem:[%s126 + $0x43c] sm:$0xf] %v669
                %v671 = vld [vmem:[%s125 + $0x880] sm:$0xf]
                %672 = vst [vmem:[%s126 + $0x440] sm:$0xf] %v671
                %v673 = vld [vmem:[%s125 + $0x888] sm:$0xf]
                %674 = vst [vmem:[%s126 + $0x444] sm:$0xf] %v673
                %v675 = vld [vmem:[%s125 + $0x890] sm:$0xf]
                %676 = vst [vmem:[%s126 + $0x448] sm:$0xf] %v675
                %v677 = vld [vmem:[%s125 + $0x898] sm:$0xf]
                %678 = vst [vmem:[%s126 + $0x44c] sm:$0xf] %v677
                %v679 = vld [vmem:[%s125 + $0x8a0] sm:$0xf]
                %680 = vst [vmem:[%s126 + $0x450] sm:$0xf] %v679
                %v681 = vld [vmem:[%s125 + $0x8a8] sm:$0xf]
                %682 = vst [vmem:[%s126 + $0x454] sm:$0xf] %v681
                %v683 = vld [vmem:[%s125 + $0x8b0] sm:$0xf]
                %684 = vst [vmem:[%s126 + $0x458] sm:$0xf] %v683
                %v685 = vld [vmem:[%s125 + $0x8b8] sm:$0xf]
                %686 = vst [vmem:[%s126 + $0x45c] sm:$0xf] %v685
                %v687 = vld [vmem:[%s125 + $0x8c0] sm:$0xf]
                %688 = vst [vmem:[%s126 + $0x460] sm:$0xf] %v687
                %v689 = vld [vmem:[%s125 + $0x8c8] sm:$0xf]
                %690 = vst [vmem:[%s126 + $0x464] sm:$0xf] %v689
                %v691 = vld [vmem:[%s125 + $0x8d0] sm:$0xf]
                %692 = vst [vmem:[%s126 + $0x468] sm:$0xf] %v691
                %v693 = vld [vmem:[%s125 + $0x8d8] sm:$0xf]
                %694 = vst [vmem:[%s126 + $0x46c] sm:$0xf] %v693
                %v695 = vld [vmem:[%s125 + $0x8e0] sm:$0xf]
                %696 = vst [vmem:[%s126 + $0x470] sm:$0xf] %v695
                %v697 = vld [vmem:[%s125 + $0x8e8] sm:$0xf]
                %698 = vst [vmem:[%s126 + $0x474] sm:$0xf] %v697
                %v699 = vld [vmem:[%s125 + $0x8f0] sm:$0xf]
                %700 = vst [vmem:[%s126 + $0x478] sm:$0xf] %v699
                %v701 = vld [vmem:[%s125 + $0x8f8] sm:$0xf]
                %702 = vst [vmem:[%s126 + $0x47c] sm:$0xf] %v701
              $region41: #{conv2d_3x3_s2_p1.1} parent=35 // loop_footer
                %s124 = sadd.s32 1, %s120
              $region42: #{conv2d_3x3_s2_p1.1} parent=35 // loop_footer_branch
                %119 = sbr.rel target = $region38
              $region43: #{conv2d_3x3_s2_p1.1} parent=35 // loop_exit
                _
            $region36: #{conv2d_3x3_s2_p1.1} parent=27 // pred_fallthru
              _
          $region28: #{conv2d_3x3_s2_p1.1} parent=23 // pred_fallthru
            _
          %1298 = vnop
        $region24: #{conv2d_3x3_s2_p1.1} parent=19 // pred_fallthru
          _
      $region20: #{conv2d_3x3_s2_p1.1} parent=5 // pred_fallthru
        _
      %p1299 = scmp.le.s32.totalorder 1, %s8
      %p1300 = scmp.lt.s32.totalorder %s8, 3
      %p1301 = pnand %p1299, %p1300
      %p1302 = pneg %p1301
      // Predicated region
      $region62: #{conv2d_3x3_s2_p1.1} parent=5 // pred_check
        _
      $region63: #{conv2d_3x3_s2_p1.1} parent=5 // pred_check_branch
        %1304 = sbr.rel (%p1301) target = $region65
      $region64: #{conv2d_3x3_s2_p1.1} parent=5 // pred_region
        %s1305 = ssub.s32 %s8, 1
        %s1306 = sand.u32 %s42, 1
        %s1307 = sand.u32 %s42, 1
        %s1308 = smul.addr %s1307, 1152
        %s1309 = scalar_lea.vmem [#allocation2], %s1308
        // Predicated region
        $region66: #{conv2d_3x3_s2_p1.1} parent=64 // pred_check
          %p1310 = pneg %p55
        $region67: #{conv2d_3x3_s2_p1.1} parent=64 // pred_check_branch
          %1312 = sbr.rel (%p1310) target = $region69
        $region68: #{conv2d_3x3_s2_p1.1} parent=64 // pred_region
          _
        $region69: #{conv2d_3x3_s2_p1.1} parent=64 // pred_fallthru
          _
        %p1313 = pneg %p29
        %p1314 = pneg %p26
        %s1315 = sand.u32 %s42, 1
        %s1316 = sand.u32 %s42, 1
        %s1317 = smul.addr %s1316, 1152
        %s1318 = scalar_lea.vmem [#allocation2], %s1317
        %p1319 = pneg %p55
        %p1320 = pneg %p52
        %p1321 = pneg %p81
        %p1322 = pneg %p78
        %s1323 = sand.u32 %s68, 1
        %s1324 = sand.u32 %s68, 1
        %s1325 = smul.addr %s1324, 256
        %s1326 = scalar_lea.vmem [#allocation3], %s1325
        %v1328 = vld [vmem:[%s0] sm:$0xff]
        %v1329 = vld [vmem:[%s0 + $0x8] sm:$0xff]
        %v1330 = vld [vmem:[%s0 + $0x10] sm:$0xff]
        %v1331 = vld [vmem:[%s0 + $0x18] sm:$0xff]
        %v1332 = vld [vmem:[%s0 + $0x20] sm:$0xff]
        %v1333 = vld [vmem:[%s0 + $0x28] sm:$0xff]
        %v1334 = vld [vmem:[%s0 + $0x30] sm:$0xff]
        %v1335 = vld [vmem:[%s0 + $0x38] sm:$0xff]
        %v1336 = vld [vmem:[%s0 + $0x40] sm:$0xff]
        %v1337 = vld [vmem:[%s0 + $0x48] sm:$0xff]
        %v1338 = vld [vmem:[%s0 + $0x50] sm:$0xff]
        %v1339 = vld [vmem:[%s0 + $0x58] sm:$0xff]
        %v1340 = vld [vmem:[%s0 + $0x60] sm:$0xff]
        %v1341 = vld [vmem:[%s0 + $0x68] sm:$0xff]
        %v1342 = vld [vmem:[%s0 + $0x70] sm:$0xff]
        %v1343 = vld [vmem:[%s0 + $0x78] sm:$0xff]
        %v1344 = vld [vmem:[%s0 + $0x80] sm:$0xff]
        %v1345 = vld [vmem:[%s0 + $0x88] sm:$0xff]
        %v1346 = vld [vmem:[%s0 + $0x90] sm:$0xff]
        %v1347 = vld [vmem:[%s0 + $0x98] sm:$0xff]
        %v1348 = vld [vmem:[%s0 + $0xa0] sm:$0xff]
        %v1349 = vld [vmem:[%s0 + $0xa8] sm:$0xff]
        %v1350 = vld [vmem:[%s0 + $0xb0] sm:$0xff]
        %v1351 = vld [vmem:[%s0 + $0xb8] sm:$0xff]
        %v1352 = vld [vmem:[%s0 + $0xc0] sm:$0xff]
        %v1353 = vld [vmem:[%s0 + $0xc8] sm:$0xff]
        %v1354 = vld [vmem:[%s0 + $0xd0] sm:$0xff]
        %v1355 = vld [vmem:[%s0 + $0xd8] sm:$0xff]
        %v1356 = vld [vmem:[%s0 + $0xe0] sm:$0xff]
        %v1357 = vld [vmem:[%s0 + $0xe8] sm:$0xff]
        %v1358 = vld [vmem:[%s0 + $0xf0] sm:$0xff]
        %v1359 = vld [vmem:[%s0 + $0xf8] sm:$0xff]
        %v1360 = vld [vmem:[%s1309] sm:$0xf]
        %v1361 = vld [vmem:[%s1309 + $0x4] sm:$0xf]
        %v1362 = vld [vmem:[%s1309 + $0x8] sm:$0xf]
        %v1363 = vld [vmem:[%s1309 + $0xc] sm:$0xf]
        %v1364 = vld [vmem:[%s1309 + $0x10] sm:$0xf]
        %v1365 = vld [vmem:[%s1309 + $0x14] sm:$0xf]
        %v1366 = vld [vmem:[%s1309 + $0x18] sm:$0xf]
        %v1367 = vld [vmem:[%s1309 + $0x1c] sm:$0xf]
        %v1368 = vld [vmem:[%s1309 + $0x20] sm:$0xf]
        %v1369 = vld [vmem:[%s1309 + $0x24] sm:$0xf]
        %v1370 = vld [vmem:[%s1309 + $0x28] sm:$0xf]
        %v1371 = vld [vmem:[%s1309 + $0x2c] sm:$0xf]
        %v1372 = vld [vmem:[%s1309 + $0x30] sm:$0xf]
        %v1373 = vld [vmem:[%s1309 + $0x34] sm:$0xf]
        %v1374 = vld [vmem:[%s1309 + $0x38] sm:$0xf]
        %v1375 = vld [vmem:[%s1309 + $0x3c] sm:$0xf]
        %v1376 = vld [vmem:[%s1309 + $0x40] sm:$0xf]
        %v1377 = vld [vmem:[%s1309 + $0x44] sm:$0xf]
        %v1378 = vld [vmem:[%s1309 + $0x48] sm:$0xf]
        %v1379 = vld [vmem:[%s1309 + $0x4c] sm:$0xf]
        %v1380 = vld [vmem:[%s1309 + $0x50] sm:$0xf]
        %v1381 = vld [vmem:[%s1309 + $0x54] sm:$0xf]
        %v1382 = vld [vmem:[%s1309 + $0x58] sm:$0xf]
        %v1383 = vld [vmem:[%s1309 + $0x5c] sm:$0xf]
        %v1384 = vld [vmem:[%s1309 + $0x60] sm:$0xf]
        %v1385 = vld [vmem:[%s1309 + $0x64] sm:$0xf]
        %v1386 = vld [vmem:[%s1309 + $0x68] sm:$0xf]
        %v1387 = vld [vmem:[%s1309 + $0x6c] sm:$0xf]
        %v1388 = vld [vmem:[%s1309 + $0x70] sm:$0xf]
        %v1389 = vld [vmem:[%s1309 + $0x74] sm:$0xf]
        %v1390 = vld [vmem:[%s1309 + $0x78] sm:$0xf]
        %v1391 = vld [vmem:[%s1309 + $0x7c] sm:$0xf]
        %v1424 = vunpack.c.l.b16 %v1328
        %v1425 = vunpack.c.h.b16 %v1328
        %v1426 = vunpack.c.l.b16 %v1329
        %v1427 = vunpack.c.h.b16 %v1329
        %v1428 = vunpack.c.l.b16 %v1330
        %v1429 = vunpack.c.h.b16 %v1330
        %v1430 = vunpack.c.l.b16 %v1331
        %v1431 = vunpack.c.h.b16 %v1331
        %v1432 = vunpack.c.l.b16 %v1332
        %v1433 = vunpack.c.h.b16 %v1332
        %v1434 = vunpack.c.l.b16 %v1333
        %v1435 = vunpack.c.h.b16 %v1333
        %v1436 = vunpack.c.l.b16 %v1334
        %v1437 = vunpack.c.h.b16 %v1334
        %v1438 = vunpack.c.l.b16 %v1335
        %v1439 = vunpack.c.h.b16 %v1335
        %v1440 = vunpack.c.l.b16 %v1336
        %v1441 = vunpack.c.h.b16 %v1336
        %v1442 = vunpack.c.l.b16 %v1337
        %v1443 = vunpack.c.h.b16 %v1337
        %v1444 = vunpack.c.l.b16 %v1338
        %v1445 = vunpack.c.h.b16 %v1338
        %v1446 = vunpack.c.l.b16 %v1339
        %v1447 = vunpack.c.h.b16 %v1339
        %v1448 = vunpack.c.l.b16 %v1340
        %v1449 = vunpack.c.h.b16 %v1340
        %v1450 = vunpack.c.l.b16 %v1341
        %v1451 = vunpack.c.h.b16 %v1341
        %v1452 = vunpack.c.l.b16 %v1342
        %v1453 = vunpack.c.h.b16 %v1342
        %v1454 = vunpack.c.l.b16 %v1343
        %v1455 = vunpack.c.h.b16 %v1343
        %v1456 = vunpack.c.l.b16 %v1344
        %v1457 = vunpack.c.h.b16 %v1344
        %v1458 = vunpack.c.l.b16 %v1345
        %v1459 = vunpack.c.h.b16 %v1345
        %v1460 = vunpack.c.l.b16 %v1346
        %v1461 = vunpack.c.h.b16 %v1346
        %v1462 = vunpack.c.l.b16 %v1347
        %v1463 = vunpack.c.h.b16 %v1347
        %v1464 = vunpack.c.l.b16 %v1348
        %v1465 = vunpack.c.h.b16 %v1348
        %v1466 = vunpack.c.l.b16 %v1349
        %v1467 = vunpack.c.h.b16 %v1349
        %v1468 = vunpack.c.l.b16 %v1350
        %v1469 = vunpack.c.h.b16 %v1350
        %v1470 = vunpack.c.l.b16 %v1351
        %v1471 = vunpack.c.h.b16 %v1351
        %v1472 = vunpack.c.l.b16 %v1352
        %v1473 = vunpack.c.h.b16 %v1352
        %v1474 = vunpack.c.l.b16 %v1353
        %v1475 = vunpack.c.h.b16 %v1353
        %v1476 = vunpack.c.l.b16 %v1354
        %v1477 = vunpack.c.h.b16 %v1354
        %v1478 = vunpack.c.l.b16 %v1355
        %v1479 = vunpack.c.h.b16 %v1355
        %v1480 = vunpack.c.l.b16 %v1356
        %v1481 = vunpack.c.h.b16 %v1356
        %v1482 = vunpack.c.l.b16 %v1357
        %v1483 = vunpack.c.h.b16 %v1357
        %v1484 = vunpack.c.l.b16 %v1358
        %v1485 = vunpack.c.h.b16 %v1358
        %v1486 = vunpack.c.l.b16 %v1359
        %v1487 = vunpack.c.h.b16 %v1359
        %v1488 = vpack.c.b16 %v1426, %v1424
        %v1489 = vpack.c.b16 %v1427, %v1425
        %v1490 = vpack.c.b16 %v1430, %v1428
        %v1491 = vpack.c.b16 %v1431, %v1429
        %v1492 = vpack.c.b16 %v1434, %v1432
        %v1493 = vpack.c.b16 %v1435, %v1433
        %v1494 = vpack.c.b16 %v1438, %v1436
        %v1495 = vpack.c.b16 %v1439, %v1437
        %v1496 = vpack.c.b16 %v1442, %v1440
        %v1497 = vpack.c.b16 %v1443, %v1441
        %v1498 = vpack.c.b16 %v1446, %v1444
        %v1499 = vpack.c.b16 %v1447, %v1445
        %v1500 = vpack.c.b16 %v1450, %v1448
        %v1501 = vpack.c.b16 %v1451, %v1449
        %v1502 = vpack.c.b16 %v1454, %v1452
        %v1503 = vpack.c.b16 %v1455, %v1453
        %v1504 = vpack.c.b16 %v1458, %v1456
        %v1505 = vpack.c.b16 %v1459, %v1457
        %v1506 = vpack.c.b16 %v1462, %v1460
        %v1507 = vpack.c.b16 %v1463, %v1461
        %v1508 = vpack.c.b16 %v1466, %v1464
        %v1509 = vpack.c.b16 %v1467, %v1465
        %v1510 = vpack.c.b16 %v1470, %v1468
        %v1511 = vpack.c.b16 %v1471, %v1469
        %v1512 = vpack.c.b16 %v1474, %v1472
        %v1513 = vpack.c.b16 %v1475, %v1473
        %v1514 = vpack.c.b16 %v1478, %v1476
        %v1515 = vpack.c.b16 %v1479, %v1477
        %v1516 = vpack.c.b16 %v1482, %v1480
        %v1517 = vpack.c.b16 %v1483, %v1481
        %v1518 = vpack.c.b16 %v1486, %v1484
        %v1519 = vpack.c.b16 %v1487, %v1485
        %v1584 = vunpack.c.l.b16 %v1360
        %v1585 = vunpack.c.l.b16 %v1361
        %v1586 = vunpack.c.l.b16 %v1362
        %v1587 = vunpack.c.l.b16 %v1363
        %v1588 = vunpack.c.l.b16 %v1364
        %v1589 = vunpack.c.l.b16 %v1365
        %v1590 = vunpack.c.l.b16 %v1366
        %v1591 = vunpack.c.l.b16 %v1367
        %v1592 = vunpack.c.l.b16 %v1368
        %v1593 = vunpack.c.l.b16 %v1369
        %v1594 = vunpack.c.l.b16 %v1370
        %v1595 = vunpack.c.l.b16 %v1371
        %v1596 = vunpack.c.l.b16 %v1372
        %v1597 = vunpack.c.l.b16 %v1373
        %v1598 = vunpack.c.l.b16 %v1374
        %v1599 = vunpack.c.l.b16 %v1375
        %v1600 = vunpack.c.l.b16 %v1376
        %v1601 = vunpack.c.l.b16 %v1377
        %v1602 = vunpack.c.l.b16 %v1378
        %v1603 = vunpack.c.l.b16 %v1379
        %v1604 = vunpack.c.l.b16 %v1380
        %v1605 = vunpack.c.l.b16 %v1381
        %v1606 = vunpack.c.l.b16 %v1382
        %v1607 = vunpack.c.l.b16 %v1383
        %v1608 = vunpack.c.l.b16 %v1384
        %v1609 = vunpack.c.l.b16 %v1385
        %v1610 = vunpack.c.l.b16 %v1386
        %v1611 = vunpack.c.l.b16 %v1387
        %v1612 = vunpack.c.l.b16 %v1388
        %v1613 = vunpack.c.l.b16 %v1389
        %v1614 = vunpack.c.l.b16 %v1390
        %v1615 = vunpack.c.l.b16 %v1391
        %v1616 = vpack.c.b16 %v1585, %v1584
        %v1617 = vpack.c.b16 %v1587, %v1586
        %v1618 = vpack.c.b16 %v1589, %v1588
        %v1619 = vpack.c.b16 %v1591, %v1590
        %v1620 = vpack.c.b16 %v1593, %v1592
        %v1621 = vpack.c.b16 %v1595, %v1594
        %v1622 = vpack.c.b16 %v1597, %v1596
        %v1623 = vpack.c.b16 %v1599, %v1598
        %v1624 = vpack.c.b16 %v1601, %v1600
        %v1625 = vpack.c.b16 %v1603, %v1602
        %v1626 = vpack.c.b16 %v1605, %v1604
        %v1627 = vpack.c.b16 %v1607, %v1606
        %v1628 = vpack.c.b16 %v1609, %v1608
        %v1629 = vpack.c.b16 %v1611, %v1610
        %v1630 = vpack.c.b16 %v1613, %v1612
        %v1631 = vpack.c.b16 %v1615, %v1614
        %1648 = vmatprep.subr.bf16.mxu0 0
        %1649 = vmatpush1.bf16.msra.mxu0 %v1616
        %1650 = vmatprep.subr.bf16.mxu0 0
        %1651 = vmatpush1.bf16.msra.mxu0 %v1617
        %1652 = vmatprep.subr.bf16.mxu0 0
        %1653 = vmatpush1.bf16.msra.mxu0 %v1618
        %1654 = vmatprep.subr.bf16.mxu0 0
        %1655 = vmatpush1.bf16.msra.mxu0 %v1619
        %1656 = vmatprep.subr.bf16.mxu0 0
        %1657 = vmatpush1.bf16.msra.mxu0 %v1620
        %1658 = vmatprep.subr.bf16.mxu0 0
        %1659 = vmatpush1.bf16.msra.mxu0 %v1621
        %1660 = vmatprep.subr.bf16.mxu0 0
        %1661 = vmatpush1.bf16.msra.mxu0 %v1622
        %1662 = vmatprep.subr.bf16.mxu0 0
        %1663 = vmatpush1.bf16.msra.mxu0 %v1623
        %1664 = vmatprep.subr.bf16.mxu0 0
        %1665 = vmatpush1.bf16.msra.mxu0 %v1624
        %1666 = vmatprep.subr.bf16.mxu0 0
        %1667 = vmatpush1.bf16.msra.mxu0 %v1625
        %1668 = vmatprep.subr.bf16.mxu0 0
        %1669 = vmatpush1.bf16.msra.mxu0 %v1626
        %1670 = vmatprep.subr.bf16.mxu0 0
        %1671 = vmatpush1.bf16.msra.mxu0 %v1627
        %1672 = vmatprep.subr.bf16.mxu0 0
        %1673 = vmatpush1.bf16.msra.mxu0 %v1628
        %1674 = vmatprep.subr.bf16.mxu0 0
        %1675 = vmatpush1.bf16.msra.mxu0 %v1629
        %1676 = vmatprep.subr.bf16.mxu0 0
        %1677 = vmatpush1.bf16.msra.mxu0 %v1630
        %1678 = vmatprep.subr.bf16.mxu0 0
        %1679 = vmatpush1.bf16.msra.mxu0 %v1631
        %1680 = vmatprep.mubr.bf16.mxu0 %v1489
        %1681 = vmatmul.mubr.bf16.gmra.mrb[0].mxu0 %v1488
        %v1682 = vpop.f32.mrb[0].mxu0
        %v1683 = vadd.f32 0.0, %v1682
        %v1684 = vpop.f32.mrb[0].mxu0
        %v1685 = vpop.f32.mrb[0].mxu0
        %v1686 = vadd.f32 0.0, %v1685
        %v1687 = vpop.f32.mrb[0].mxu0
        %1688 = vmatprep.mubr.bf16.mxu0 %v1491
        %1689 = vmatmul.mubr.bf16.gmra.mrb[0].mxu0 %v1490
        %v1690 = vpop.f32.mrb[0].mxu0
        %v1691 = vadd.f32 0.0, %v1690
        %v1692 = vpop.f32.mrb[0].mxu0
        %v1693 = vpop.f32.mrb[0].mxu0
        %v1694 = vadd.f32 0.0, %v1693
        %v1695 = vpop.f32.mrb[0].mxu0
        %1696 = vmatprep.mubr.bf16.mxu0 %v1493
        %1697 = vmatmul.mubr.bf16.gmra.mrb[0].mxu0 %v1492
        %v1698 = vpop.f32.mrb[0].mxu0
        %v1699 = vadd.f32 0.0, %v1698
        %v1700 = vpop.f32.mrb[0].mxu0
        %v1701 = vpop.f32.mrb[0].mxu0
        %v1702 = vadd.f32 0.0, %v1701
        %v1703 = vpop.f32.mrb[0].mxu0
        %1704 = vmatprep.mubr.bf16.mxu0 %v1495
        %1705 = vmatmul.mubr.bf16.gmra.mrb[0].mxu0 %v1494
        %v1706 = vpop.f32.mrb[0].mxu0
        %v1707 = vadd.f32 0.0, %v1706
        %v1708 = vpop.f32.mrb[0].mxu0
        %v1709 = vpop.f32.mrb[0].mxu0
        %v1710 = vadd.f32 0.0, %v1709
        %v1711 = vpop.f32.mrb[0].mxu0
        %1712 = vmatprep.mubr.bf16.mxu0 %v1497
        %1713 = vmatmul.mubr.bf16.gmra.mrb[0].mxu0 %v1496
        %v1714 = vpop.f32.mrb[0].mxu0
        %v1715 = vadd.f32 0.0, %v1714
        %v1716 = vpop.f32.mrb[0].mxu0
        %v1717 = vpop.f32.mrb[0].mxu0
        %v1718 = vadd.f32 0.0, %v1717
        %v1719 = vpop.f32.mrb[0].mxu0
        %1720 = vmatprep.mubr.bf16.mxu0 %v1499
        %1721 = vmatmul.mubr.bf16.gmra.mrb[0].mxu0 %v1498
        %v1722 = vpop.f32.mrb[0].mxu0
        %v1723 = vadd.f32 0.0, %v1722
        %v1724 = vpop.f32.mrb[0].mxu0
        %v1725 = vpop.f32.mrb[0].mxu0
        %v1726 = vadd.f32 0.0, %v1725
        %v1727 = vpop.f32.mrb[0].mxu0
        %1728 = vmatprep.mubr.bf16.mxu0 %v1501
        %1729 = vmatmul.mubr.bf16.gmra.mrb[0].mxu0 %v1500
        %v1730 = vpop.f32.mrb[0].mxu0
        %v1731 = vadd.f32 0.0, %v1730
        %v1732 = vpop.f32.mrb[0].mxu0
        %v1733 = vpop.f32.mrb[0].mxu0
        %v1734 = vadd.f32 0.0, %v1733
        %v1735 = vpop.f32.mrb[0].mxu0
        %1736 = vmatprep.mubr.bf16.mxu0 %v1503
        %1737 = vmatmul.mubr.bf16.gmra.mrb[0].mxu0 %v1502
        %v1738 = vpop.f32.mrb[0].mxu0
        %v1739 = vadd.f32 0.0, %v1738
        %v1740 = vpop.f32.mrb[0].mxu0
        %v1741 = vpop.f32.mrb[0].mxu0
        %v1742 = vadd.f32 0.0, %v1741
        %v1743 = vpop.f32.mrb[0].mxu0
        %1744 = vmatprep.mubr.bf16.mxu0 %v1505
        %1745 = vmatmul.mubr.bf16.gmra.mrb[0].mxu0 %v1504
        %v1746 = vpop.f32.mrb[0].mxu0
        %v1747 = vadd.f32 0.0, %v1746
        %v1748 = vpop.f32.mrb[0].mxu0
        %v1749 = vpop.f32.mrb[0].mxu0
        %v1750 = vadd.f32 0.0, %v1749
        %v1751 = vpop.f32.mrb[0].mxu0
        %1752 = vmatprep.mubr.bf16.mxu0 %v1507
        %1753 = vmatmul.mubr.bf16.gmra.mrb[0].mxu0 %v1506
        %v1754 = vpop.f32.mrb[0].mxu0
        %v1755 = vadd.f32 0.0, %v1754
        %v1756 = vpop.f32.mrb[0].mxu0
        %v1757 = vpop.f32.mrb[0].mxu0
        %v1758 = vadd.f32 0.0, %v1757
        %v1759 = vpop.f32.mrb[0].mxu0
        %1760 = vmatprep.mubr.bf16.mxu0 %v1509
        %1761 = vmatmul.mubr.bf16.gmra.mrb[0].mxu0 %v1508
        %v1762 = vpop.f32.mrb[0].mxu0
        %v1763 = vadd.f32 0.0, %v1762
        %v1764 = vpop.f32.mrb[0].mxu0
        %v1765 = vpop.f32.mrb[0].mxu0
        %v1766 = vadd.f32 0.0, %v1765
        %v1767 = vpop.f32.mrb[0].mxu0
        %1768 = vmatprep.mubr.bf16.mxu0 %v1511
        %1769 = vmatmul.mubr.bf16.gmra.mrb[0].mxu0 %v1510
        %v1770 = vpop.f32.mrb[0].mxu0
        %v1771 = vadd.f32 0.0, %v1770
        %v1772 = vpop.f32.mrb[0].mxu0
        %v1773 = vpop.f32.mrb[0].mxu0
        %v1774 = vadd.f32 0.0, %v1773
        %v1775 = vpop.f32.mrb[0].mxu0
        %1776 = vmatprep.mubr.bf16.mxu0 %v1513
        %1777 = vmatmul.mubr.bf16.gmra.mrb[0].mxu0 %v1512
        %v1778 = vpop.f32.mrb[0].mxu0
        %v1779 = vadd.f32 0.0, %v1778
        %v1780 = vpop.f32.mrb[0].mxu0
        %v1781 = vpop.f32.mrb[0].mxu0
        %v1782 = vadd.f32 0.0, %v1781
        %v1783 = vpop.f32.mrb[0].mxu0
        %1784 = vmatprep.mubr.bf16.mxu0 %v1515
        %1785 = vmatmul.mubr.bf16.gmra.mrb[0].mxu0 %v1514
        %v1786 = vpop.f32.mrb[0].mxu0
        %v1787 = vadd.f32 0.0, %v1786
        %v1788 = vpop.f32.mrb[0].mxu0
        %v1789 = vpop.f32.mrb[0].mxu0
        %v1790 = vadd.f32 0.0, %v1789
        %v1791 = vpop.f32.mrb[0].mxu0
        %1792 = vmatprep.mubr.bf16.mxu0 %v1517
        %1793 = vmatmul.mubr.bf16.gmra.mrb[0].mxu0 %v1516
        %v1794 = vpop.f32.mrb[0].mxu0
        %v1795 = vadd.f32 0.0, %v1794
        %v1796 = vpop.f32.mrb[0].mxu0
        %v1797 = vpop.f32.mrb[0].mxu0
        %v1798 = vadd.f32 0.0, %v1797
        %v1799 = vpop.f32.mrb[0].mxu0
        %1800 = vmatprep.mubr.bf16.mxu0 %v1519
        %1801 = vmatmul.mubr.bf16.gmra.mrb[0].mxu0 %v1518
        %v1802 = vpop.f32.mrb[0].mxu0
        %v1803 = vadd.f32 0.0, %v1802
        %v1804 = vpop.f32.mrb[0].mxu0
        %v1805 = vpop.f32.mrb[0].mxu0
        %v1806 = vadd.f32 0.0, %v1805
        %v1807 = vpop.f32.mrb[0].mxu0
        %1808 = vdwg.mxu0
        %1809 = vst [vmem:[%s1326] sm:$0xff] %v1683
        %1810 = vst [vmem:[%s1326 + $0x8] sm:$0xff] %v1686
        %1811 = vst [vmem:[%s1326 + $0x10] sm:$0xff] %v1691
        %1812 = vst [vmem:[%s1326 + $0x18] sm:$0xff] %v1694
        %1813 = vst [vmem:[%s1326 + $0x20] sm:$0xff] %v1699
        %1814 = vst [vmem:[%s1326 + $0x28] sm:$0xff] %v1702
        %1815 = vst [vmem:[%s1326 + $0x30] sm:$0xff] %v1707
        %1816 = vst [vmem:[%s1326 + $0x38] sm:$0xff] %v1710
        %1817 = vst [vmem:[%s1326 + $0x40] sm:$0xff] %v1715
        %1818 = vst [vmem:[%s1326 + $0x48] sm:$0xff] %v1718
        %1819 = vst [vmem:[%s1326 + $0x50] sm:$0xff] %v1723
        %1820 = vst [vmem:[%s1326 + $0x58] sm:$0xff] %v1726
        %1821 = vst [vmem:[%s1326 + $0x60] sm:$0xff] %v1731
        %1822 = vst [vmem:[%s1326 + $0x68] sm:$0xff] %v1734
        %1823 = vst [vmem:[%s1326 + $0x70] sm:$0xff] %v1739
        %1824 = vst [vmem:[%s1326 + $0x78] sm:$0xff] %v1742
        %1825 = vst [vmem:[%s1326 + $0x80] sm:$0xff] %v1747
        %1826 = vst [vmem:[%s1326 + $0x88] sm:$0xff] %v1750
        %1827 = vst [vmem:[%s1326 + $0x90] sm:$0xff] %v1755
        %1828 = vst [vmem:[%s1326 + $0x98] sm:$0xff] %v1758
        %1829 = vst [vmem:[%s1326 + $0xa0] sm:$0xff] %v1763
        %1830 = vst [vmem:[%s1326 + $0xa8] sm:$0xff] %v1766
        %1831 = vst [vmem:[%s1326 + $0xb0] sm:$0xff] %v1771
        %1832 = vst [vmem:[%s1326 + $0xb8] sm:$0xff] %v1774
        %1833 = vst [vmem:[%s1326 + $0xc0] sm:$0xff] %v1779
        %1834 = vst [vmem:[%s1326 + $0xc8] sm:$0xff] %v1782
        %1835 = vst [vmem:[%s1326 + $0xd0] sm:$0xff] %v1787
        %1836 = vst [vmem:[%s1326 + $0xd8] sm:$0xff] %v1790
        %1837 = vst [vmem:[%s1326 + $0xe0] sm:$0xff] %v1795
        %1838 = vst [vmem:[%s1326 + $0xe8] sm:$0xff] %v1798
        %1839 = vst [vmem:[%s1326 + $0xf0] sm:$0xff] %v1803
        %1840 = vst [vmem:[%s1326 + $0xf8] sm:$0xff] %v1806
        %s1841 = scalar_lea.vmem %s0, 256
        %v1842 = vld [vmem:[%s1841] sm:$0xff]
        %v1843 = vld [vmem:[%s1841 + $0x8] sm:$0xff]
        %v1844 = vld [vmem:[%s1841 + $0x10] sm:$0xff]
        %v1845 = vld [vmem:[%s1841 + $0x18] sm:$0xff]
        %v1846 = vld [vmem:[%s1841 + $0x20] sm:$0xff]
        %v1847 = vld [vmem:[%s1841 + $0x28] sm:$0xff]
        %v1848 = vld [vmem:[%s1841 + $0x30] sm:$0xff]
        %v1849 = vld [vmem:[%s1841 + $0x38] sm:$0xff]
        %v1850 = vld [vmem:[%s1841 + $0x40] sm:$0xff]
        %v1851 = vld [vmem:[%s1841 + $0x48] sm:$0xff]
        %v1852 = vld [vmem:[%s1841 + $0x50] sm:$0xff]
        %v1853 = vld [vmem:[%s1841 + $0x58] sm:$0xff]
        %v1854 = vld [vmem:[%s1841 + $0x60] sm:$0xff]
        %v1855 = vld [vmem:[%s1841 + $0x68] sm:$0xff]
        %v1856 = vld [vmem:[%s1841 + $0x70] sm:$0xff]
        %v1857 = vld [vmem:[%s1841 + $0x78] sm:$0xff]
        %v1858 = vld [vmem:[%s1841 + $0x80] sm:$0xff]
        %v1859 = vld [vmem:[%s1841 + $0x88] sm:$0xff]
        %v1860 = vld [vmem:[%s1841 + $0x90] sm:$0xff]
        %v1861 = vld [vmem:[%s1841 + $0x98] sm:$0xff]
        %v1862 = vld [vmem:[%s1841 + $0xa0] sm:$0xff]
        %v1863 = vld [vmem:[%s1841 + $0xa8] sm:$0xff]
        %v1864 = vld [vmem:[%s1841 + $0xb0] sm:$0xff]
        %v1865 = vld [vmem:[%s1841 + $0xb8] sm:$0xff]
        %v1866 = vld [vmem:[%s1841 + $0xc0] sm:$0xff]
        %v1867 = vld [vmem:[%s1841 + $0xc8] sm:$0xff]
        %v1868 = vld [vmem:[%s1841 + $0xd0] sm:$0xff]
        %v1869 = vld [vmem:[%s1841 + $0xd8] sm:$0xff]
        %v1870 = vld [vmem:[%s1841 + $0xe0] sm:$0xff]
        %v1871 = vld [vmem:[%s1841 + $0xe8] sm:$0xff]
        %v1872 = vld [vmem:[%s1841 + $0xf0] sm:$0xff]
        %v1873 = vld [vmem:[%s1841 + $0xf8] sm:$0xff]
        %s1874 = scalar_lea.vmem %s1309, 128 [#allocation2]
        %v1875 = vld [vmem:[%s1874] sm:$0xf]
        %v1876 = vld [vmem:[%s1874 + $0x4] sm:$0xf]
        %v1877 = vld [vmem:[%s1874 + $0x8] sm:$0xf]
        %v1878 = vld [vmem:[%s1874 + $0xc] sm:$0xf]
        %v1879 = vld [vmem:[%s1874 + $0x10] sm:$0xf]
        %v1880 = vld [vmem:[%s1874 + $0x14] sm:$0xf]
        %v1881 = vld [vmem:[%s1874 + $0x18] sm:$0xf]
        %v1882 = vld [vmem:[%s1874 + $0x1c] sm:$0xf]
        %v1883 = vld [vmem:[%s1874 + $0x20] sm:$0xf]
        %v1884 = vld [vmem:[%s1874 + $0x24] sm:$0xf]
        %v1885 = vld [vmem:[%s1874 + $0x28] sm:$0xf]
        %v1886 = vld [vmem:[%s1874 + $0x2c] sm:$0xf]
        %v1887 = vld [vmem:[%s1874 + $0x30] sm:$0xf]
        %v1888 = vld [vmem:[%s1874 + $0x34] sm:$0xf]
        %v1889 = vld [vmem:[%s1874 + $0x38] sm:$0xf]
        %v1890 = vld [vmem:[%s1874 + $0x3c] sm:$0xf]
        %v1891 = vld [vmem:[%s1874 + $0x40] sm:$0xf]
        %v1892 = vld [vmem:[%s1874 + $0x44] sm:$0xf]
        %v1893 = vld [vmem:[%s1874 + $0x48] sm:$0xf]
        %v1894 = vld [vmem:[%s1874 + $0x4c] sm:$0xf]
        %v1895 = vld [vmem:[%s1874 + $0x50] sm:$0xf]
        %v1896 = vld [vmem:[%s1874 + $0x54] sm:$0xf]
        %v1897 = vld [vmem:[%s1874 + $0x58] sm:$0xf]
        %v1898 = vld [vmem:[%s1874 + $0x5c] sm:$0xf]
        %v1899 = vld [vmem:[%s1874 + $0x60] sm:$0xf]
        %v1900 = vld [vmem:[%s1874 + $0x64] sm:$0xf]
        %v1901 = vld [vmem:[%s1874 + $0x68] sm:$0xf]
        %v1902 = vld [vmem:[%s1874 + $0x6c] sm:$0xf]
        %v1903 = vld [vmem:[%s1874 + $0x70] sm:$0xf]
        %v1904 = vld [vmem:[%s1874 + $0x74] sm:$0xf]
        %v1905 = vld [vmem:[%s1874 + $0x78] sm:$0xf]
        %v1906 = vld [vmem:[%s1874 + $0x7c] sm:$0xf]
        %v1939 = vunpack.c.l.b16 %v1842
        %v1940 = vunpack.c.h.b16 %v1842
        %v1941 = vunpack.c.l.b16 %v1843
        %v1942 = vunpack.c.h.b16 %v1843
        %v1943 = vunpack.c.l.b16 %v1844
        %v1944 = vunpack.c.h.b16 %v1844
        %v1945 = vunpack.c.l.b16 %v1845
        %v1946 = vunpack.c.h.b16 %v1845
        %v1947 = vunpack.c.l.b16 %v1846
        %v1948 = vunpack.c.h.b16 %v1846
        %v1949 = vunpack.c.l.b16 %v1847
        %v1950 = vunpack.c.h.b16 %v1847
        %v1951 = vunpack.c.l.b16 %v1848
        %v1952 = vunpack.c.h.b16 %v1848
        %v1953 = vunpack.c.l.b16 %v1849
        %v1954 = vunpack.c.h.b16 %v1849
        %v1955 = vunpack.c.l.b16 %v1850
        %v1956 = vunpack.c.h.b16 %v1850
        %v1957 = vunpack.c.l.b16 %v1851
        %v1958 = vunpack.c.h.b16 %v1851
        %v1959 = vunpack.c.l.b16 %v1852
        %v1960 = vunpack.c.h.b16 %v1852
        %v1961 = vunpack.c.l.b16 %v1853
        %v1962 = vunpack.c.h.b16 %v1853
        %v1963 = vunpack.c.l.b16 %v1854
        %v1964 = vunpack.c.h.b16 %v1854
        %v1965 = vunpack.c.l.b16 %v1855
        %v1966 = vunpack.c.h.b16 %v1855
        %v1967 = vunpack.c.l.b16 %v1856
        %v1968 = vunpack.c.h.b16 %v1856
        %v1969 = vunpack.c.l.b16 %v1857
        %v1970 = vunpack.c.h.b16 %v1857
        %v1971 = vunpack.c.l.b16 %v1858
        %v1972 = vunpack.c.h.b16 %v1858
        %v1973 = vunpack.c.l.b16 %v1859
        %v1974 = vunpack.c.h.b16 %v1859
        %v1975 = vunpack.c.l.b16 %v1860
        %v1976 = vunpack.c.h.b16 %v1860
        %v1977 = vunpack.c.l.b16 %v1861
        %v1978 = vunpack.c.h.b16 %v1861
        %v1979 = vunpack.c.l.b16 %v1862
        %v1980 = vunpack.c.h.b16 %v1862
        %v1981 = vunpack.c.l.b16 %v1863
        %v1982 = vunpack.c.h.b16 %v1863
        %v1983 = vunpack.c.l.b16 %v1864
        %v1984 = vunpack.c.h.b16 %v1864
        %v1985 = vunpack.c.l.b16 %v1865
        %v1986 = vunpack.c.h.b16 %v1865
        %v1987 = vunpack.c.l.b16 %v1866
        %v1988 = vunpack.c.h.b16 %v1866
        %v1989 = vunpack.c.l.b16 %v1867
        %v1990 = vunpack.c.h.b16 %v1867
        %v1991 = vunpack.c.l.b16 %v1868
        %v1992 = vunpack.c.h.b16 %v1868
        %v1993 = vunpack.c.l.b16 %v1869
        %v1994 = vunpack.c.h.b16 %v1869
        %v1995 = vunpack.c.l.b16 %v1870
        %v1996 = vunpack.c.h.b16 %v1870
        %v1997 = vunpack.c.l.b16 %v1871
        %v1998 = vunpack.c.h.b16 %v1871
        %v1999 = vunpack.c.l.b16 %v1872
        %v2000 = vunpack.c.h.b16 %v1872
        %v2001 = vunpack.c.l.b16 %v1873
        %v2002 = vunpack.c.h.b16 %v1873
        %v2003 = vpack.c.b16 %v1941, %v1939
        %v2004 = vpack.c.b16 %v1942, %v1940
        %v2005 = vpack.c.b16 %v1945, %v1943
        %v2006 = vpack.c.b16 %v1946, %v1944
        %v2007 = vpack.c.b16 %v1949, %v1947
        %v2008 = vpack.c.b16 %v1950, %v1948
        %v2009 = vpack.c.b16 %v1953, %v1951
        %v2010 = vpack.c.b16 %v1954, %v1952
        %v2011 = vpack.c.b16 %v1957, %v1955
        %v2012 = vpack.c.b16 %v1958, %v1956
        %v2013 = vpack.c.b16 %v1961, %v1959
        %v2014 = vpack.c.b16 %v1962, %v1960
        %v2015 = vpack.c.b16 %v1965, %v1963
        %v2016 = vpack.c.b16 %v1966, %v1964
        %v2017 = vpack.c.b16 %v1969, %v1967
        %v2018 = vpack.c.b16 %v1970, %v1968
        %v2019 = vpack.c.b16 %v1973, %v1971
        %v2020 = vpack.c.b16 %v1974, %v1972
        %v2021 = vpack.c.b16 %v1977, %v1975
        %v2022 = vpack.c.b16 %v1978, %v1976
        %v2023 = vpack.c.b16 %v1981, %v1979
        %v2024 = vpack.c.b16 %v1982, %v1980
        %v2025 = vpack.c.b16 %v1985, %v1983
        %v2026 = vpack.c.b16 %v1986, %v1984
        %v2027 = vpack.c.b16 %v1989, %v1987
        %v2028 = vpack.c.b16 %v1990, %v1988
        %v2029 = vpack.c.b16 %v1993, %v1991
        %v2030 = vpack.c.b16 %v1994, %v1992
        %v2031 = vpack.c.b16 %v1997, %v1995
        %v2032 = vpack.c.b16 %v1998, %v1996
        %v2033 = vpack.c.b16 %v2001, %v1999
        %v2034 = vpack.c.b16 %v2002, %v2000
        %v2099 = vunpack.c.l.b16 %v1875
        %v2100 = vunpack.c.l.b16 %v1876
        %v2101 = vunpack.c.l.b16 %v1877
        %v2102 = vunpack.c.l.b16 %v1878
        %v2103 = vunpack.c.l.b16 %v1879
        %v2104 = vunpack.c.l.b16 %v1880
        %v2105 = vunpack.c.l.b16 %v1881
        %v2106 = vunpack.c.l.b16 %v1882
        %v2107 = vunpack.c.l.b16 %v1883
        %v2108 = vunpack.c.l.b16 %v1884
        %v2109 = vunpack.c.l.b16 %v1885
        %v2110 = vunpack.c.l.b16 %v1886
        %v2111 = vunpack.c.l.b16 %v1887
        %v2112 = vunpack.c.l.b16 %v1888
        %v2113 = vunpack.c.l.b16 %v1889
        %v2114 = vunpack.c.l.b16 %v1890
        %v2115 = vunpack.c.l.b16 %v1891
        %v2116 = vunpack.c.l.b16 %v1892
        %v2117 = vunpack.c.l.b16 %v1893
        %v2118 = vunpack.c.l.b16 %v1894
        %v2119 = vunpack.c.l.b16 %v1895
        %v2120 = vunpack.c.l.b16 %v1896
        %v2121 = vunpack.c.l.b16 %v1897
        %v2122 = vunpack.c.l.b16 %v1898
        %v2123 = vunpack.c.l.b16 %v1899
        %v2124 = vunpack.c.l.b16 %v1900
        %v2125 = vunpack.c.l.b16 %v1901
        %v2126 = vunpack.c.l.b16 %v1902
        %v2127 = vunpack.c.l.b16 %v1903
        %v2128 = vunpack.c.l.b16 %v1904
        %v2129 = vunpack.c.l.b16 %v1905
        %v2130 = vunpack.c.l.b16 %v1906
        %v2131 = vpack.c.b16 %v2100, %v2099
        %v2132 = vpack.c.b16 %v2102, %v2101
        %v2133 = vpack.c.b16 %v2104, %v2103
        %v2134 = vpack.c.b16 %v2106, %v2105
        %v2135 = vpack.c.b16 %v2108, %v2107
        %v2136 = vpack.c.b16 %v2110, %v2109
        %v2137 = vpack.c.b16 %v2112, %v2111
        %v2138 = vpack.c.b16 %v2114, %v2113
        %v2139 = vpack.c.b16 %v2116, %v2115
        %v2140 = vpack.c.b16 %v2118, %v2117
        %v2141 = vpack.c.b16 %v2120, %v2119
        %v2142 = vpack.c.b16 %v2122, %v2121
        %v2143 = vpack.c.b16 %v2124, %v2123
        %v2144 = vpack.c.b16 %v2126, %v2125
        %v2145 = vpack.c.b16 %v2128, %v2127
        %v2146 = vpack.c.b16 %v2130, %v2129
        %2163 = vmatprep.subr.bf16.mxu0 0
        %2164 = vmatpush1.bf16.msra.mxu0 %v2131
        %2165 = vmatprep.subr.bf16.mxu0 0
        %2166 = vmatpush1.bf16.msra.mxu0 %v2132
        %2167 = vmatprep.subr.bf16.mxu0 0
        %2168 = vmatpush1.bf16.msra.mxu0 %v2133
        %2169 = vmatprep.subr.bf16.mxu0 0
        %2170 = vmatpush1.bf16.msra.mxu0 %v2134
        %2171 = vmatprep.subr.bf16.mxu0 0
        %2172 = vmatpush1.bf16.msra.mxu0 %v2135
        %2173 = vmatprep.subr.bf16.mxu0 0
        %2174 = vmatpush1.bf16.msra.mxu0 %v2136
        %2175 = vmatprep.subr.bf16.mxu0 0
        %2176 = vmatpush1.bf16.msra.mxu0 %v2137
        %2177 = vmatprep.subr.bf16.mxu0 0
        %2178 = vmatpush1.bf16.msra.mxu0 %v2138
        %2179 = vmatprep.subr.bf16.mxu0 0
        %2180 = vmatpush1.bf16.msra.mxu0 %v2139
        %2181 = vmatprep.subr.bf16.mxu0 0
        %2182 = vmatpush1.bf16.msra.mxu0 %v2140
        %2183 = vmatprep.subr.bf16.mxu0 0
        %2184 = vmatpush1.bf16.msra.mxu0 %v2141
        %2185 = vmatprep.subr.bf16.mxu0 0
        %2186 = vmatpush1.bf16.msra.mxu0 %v2142
        %2187 = vmatprep.subr.bf16.mxu0 0
        %2188 = vmatpush1.bf16.msra.mxu0 %v2143
        %2189 = vmatprep.subr.bf16.mxu0 0
        %2190 = vmatpush1.bf16.msra.mxu0 %v2144
        %2191 = vmatprep.subr.bf16.mxu0 0
        %2192 = vmatpush1.bf16.msra.mxu0 %v2145
        %2193 = vmatprep.subr.bf16.mxu0 0
        %2194 = vmatpush1.bf16.msra.mxu0 %v2146
        %2195 = vmatprep.mubr.bf16.mxu0 %v2004
        %2196 = vmatmul.mubr.bf16.gmra.mrb[0].mxu0 %v2003
        %v2197 = vpop.f32.mrb[0].mxu0
        %v2198 = vadd.f32 0.0, %v2197
        %v2199 = vpop.f32.mrb[0].mxu0
        %v2200 = vpop.f32.mrb[0].mxu0
        %v2201 = vadd.f32 0.0, %v2200
        %v2202 = vpop.f32.mrb[0].mxu0
        %2203 = vmatprep.mubr.bf16.mxu0 %v2006
        %2204 = vmatmul.mubr.bf16.gmra.mrb[0].mxu0 %v2005
        %v2205 = vpop.f32.mrb[0].mxu0
        %v2206 = vadd.f32 0.0, %v2205
        %v2207 = vpop.f32.mrb[0].mxu0
        %v2208 = vpop.f32.mrb[0].mxu0
        %v2209 = vadd.f32 0.0, %v2208
        %v2210 = vpop.f32.mrb[0].mxu0
        %2211 = vmatprep.mubr.bf16.mxu0 %v2008
        %2212 = vmatmul.mubr.bf16.gmra.mrb[0].mxu0 %v2007
        %v2213 = vpop.f32.mrb[0].mxu0
        %v2214 = vadd.f32 0.0, %v2213
        %v2215 = vpop.f32.mrb[0].mxu0
        %v2216 = vpop.f32.mrb[0].mxu0
        %v2217 = vadd.f32 0.0, %v2216
        %v2218 = vpop.f32.mrb[0].mxu0
        %2219 = vmatprep.mubr.bf16.mxu0 %v2010
        %2220 = vmatmul.mubr.bf16.gmra.mrb[0].mxu0 %v2009
        %v2221 = vpop.f32.mrb[0].mxu0
        %v2222 = vadd.f32 0.0, %v2221
        %v2223 = vpop.f32.mrb[0].mxu0
        %v2224 = vpop.f32.mrb[0].mxu0
        %v2225 = vadd.f32 0.0, %v2224
        %v2226 = vpop.f32.mrb[0].mxu0
        %2227 = vmatprep.mubr.bf16.mxu0 %v2012
        %2228 = vmatmul.mubr.bf16.gmra.mrb[0].mxu0 %v2011
        %v2229 = vpop.f32.mrb[0].mxu0
        %v2230 = vadd.f32 0.0, %v2229
        %v2231 = vpop.f32.mrb[0].mxu0
        %v2232 = vpop.f32.mrb[0].mxu0
        %v2233 = vadd.f32 0.0, %v2232
        %v2234 = vpop.f32.mrb[0].mxu0
        %2235 = vmatprep.mubr.bf16.mxu0 %v2014
        %2236 = vmatmul.mubr.bf16.gmra.mrb[0].mxu0 %v2013
        %v2237 = vpop.f32.mrb[0].mxu0
        %v2238 = vadd.f32 0.0, %v2237
        %v2239 = vpop.f32.mrb[0].mxu0
        %v2240 = vpop.f32.mrb[0].mxu0
        %v2241 = vadd.f32 0.0, %v2240
        %v2242 = vpop.f32.mrb[0].mxu0
        %2243 = vmatprep.mubr.bf16.mxu0 %v2016
        %2244 = vmatmul.mubr.bf16.gmra.mrb[0].mxu0 %v2015
        %v2245 = vpop.f32.mrb[0].mxu0
        %v2246 = vadd.f32 0.0, %v2245
        %v2247 = vpop.f32.mrb[0].mxu0
        %v2248 = vpop.f32.mrb[0].mxu0
        %v2249 = vadd.f32 0.0, %v2248
        %v2250 = vpop.f32.mrb[0].mxu0
        %2251 = vmatprep.mubr.bf16.mxu0 %v2018
        %2252 = vmatmul.mubr.bf16.gmra.mrb[0].mxu0 %v2017
        %v2253 = vpop.f32.mrb[0].mxu0
        %v2254 = vadd.f32 0.0, %v2253
        %v2255 = vpop.f32.mrb[0].mxu0
        %v2256 = vpop.f32.mrb[0].mxu0
        %v2257 = vadd.f32 0.0, %v2256
        %v2258 = vpop.f32.mrb[0].mxu0
        %2259 = vmatprep.mubr.bf16.mxu0 %v2020
        %2260 = vmatmul.mubr.bf16.gmra.mrb[0].mxu0 %v2019
        %v2261 = vpop.f32.mrb[0].mxu0
        %v2262 = vadd.f32 0.0, %v2261
        %v2263 = vpop.f32.mrb[0].mxu0
        %v2264 = vpop.f32.mrb[0].mxu0
        %v2265 = vadd.f32 0.0, %v2264
        %v2266 = vpop.f32.mrb[0].mxu0
        %2267 = vmatprep.mubr.bf16.mxu0 %v2022
        %2268 = vmatmul.mubr.bf16.gmra.mrb[0].mxu0 %v2021
        %v2269 = vpop.f32.mrb[0].mxu0
        %v2270 = vadd.f32 0.0, %v2269
        %v2271 = vpop.f32.mrb[0].mxu0
        %v2272 = vpop.f32.mrb[0].mxu0
        %v2273 = vadd.f32 0.0, %v2272
        %v2274 = vpop.f32.mrb[0].mxu0
        %2275 = vmatprep.mubr.bf16.mxu0 %v2024
        %2276 = vmatmul.mubr.bf16.gmra.mrb[0].mxu0 %v2023
        %v2277 = vpop.f32.mrb[0].mxu0
        %v2278 = vadd.f32 0.0, %v2277
        %v2279 = vpop.f32.mrb[0].mxu0
        %v2280 = vpop.f32.mrb[0].mxu0
        %v2281 = vadd.f32 0.0, %v2280
        %v2282 = vpop.f32.mrb[0].mxu0
        %2283 = vmatprep.mubr.bf16.mxu0 %v2026
        %2284 = vmatmul.mubr.bf16.gmra.mrb[0].mxu0 %v2025
        %v2285 = vpop.f32.mrb[0].mxu0
        %v2286 = vadd.f32 0.0, %v2285
        %v2287 = vpop.f32.mrb[0].mxu0
        %v2288 = vpop.f32.mrb[0].mxu0
        %v2289 = vadd.f32 0.0, %v2288
        %v2290 = vpop.f32.mrb[0].mxu0
        %2291 = vmatprep.mubr.bf16.mxu0 %v2028
        %2292 = vmatmul.mubr.bf16.gmra.mrb[0].mxu0 %v2027
        %v2293 = vpop.f32.mrb[0].mxu0
        %v2294 = vadd.f32 0.0, %v2293
        %v2295 = vpop.f32.mrb[0].mxu0
        %v2296 = vpop.f32.mrb[0].mxu0
        %v2297 = vadd.f32 0.0, %v2296
        %v2298 = vpop.f32.mrb[0].mxu0
        %2299 = vmatprep.mubr.bf16.mxu0 %v2030
        %2300 = vmatmul.mubr.bf16.gmra.mrb[0].mxu0 %v2029
        %v2301 = vpop.f32.mrb[0].mxu0
        %v2302 = vadd.f32 0.0, %v2301
        %v2303 = vpop.f32.mrb[0].mxu0
        %v2304 = vpop.f32.mrb[0].mxu0
        %v2305 = vadd.f32 0.0, %v2304
        %v2306 = vpop.f32.mrb[0].mxu0
        %2307 = vmatprep.mubr.bf16.mxu0 %v2032
        %2308 = vmatmul.mubr.bf16.gmra.mrb[0].mxu0 %v2031
        %v2309 = vpop.f32.mrb[0].mxu0
        %v2310 = vadd.f32 0.0, %v2309
        %v2311 = vpop.f32.mrb[0].mxu0
        %v2312 = vpop.f32.mrb[0].mxu0
        %v2313 = vadd.f32 0.0, %v2312
        %v2314 = vpop.f32.mrb[0].mxu0
        %2315 = vmatprep.mubr.bf16.mxu0 %v2034
        %2316 = vmatmul.mubr.bf16.gmra.mrb[0].mxu0 %v2033
        %v2317 = vpop.f32.mrb[0].mxu0
        %v2318 = vadd.f32 0.0, %v2317
        %v2319 = vpop.f32.mrb[0].mxu0
        %v2320 = vpop.f32.mrb[0].mxu0
        %v2321 = vadd.f32 0.0, %v2320
        %v2322 = vpop.f32.mrb[0].mxu0
        %2323 = vdwg.mxu0
        %v2324 = vld [vmem:[%s1326] sm:$0xff]
        %v2325 = vld [vmem:[%s1326 + $0x8] sm:$0xff]
        %v2326 = vld [vmem:[%s1326 + $0x10] sm:$0xff]
        %v2327 = vld [vmem:[%s1326 + $0x18] sm:$0xff]
        %v2328 = vld [vmem:[%s1326 + $0x20] sm:$0xff]
        %v2329 = vld [vmem:[%s1326 + $0x28] sm:$0xff]
        %v2330 = vld [vmem:[%s1326 + $0x30] sm:$0xff]
        %v2331 = vld [vmem:[%s1326 + $0x38] sm:$0xff]
        %v2332 = vld [vmem:[%s1326 + $0x40] sm:$0xff]
        %v2333 = vld [vmem:[%s1326 + $0x48] sm:$0xff]
        %v2334 = vld [vmem:[%s1326 + $0x50] sm:$0xff]
        %v2335 = vld [vmem:[%s1326 + $0x58] sm:$0xff]
        %v2336 = vld [vmem:[%s1326 + $0x60] sm:$0xff]
        %v2337 = vld [vmem:[%s1326 + $0x68] sm:$0xff]
        %v2338 = vld [vmem:[%s1326 + $0x70] sm:$0xff]
        %v2339 = vld [vmem:[%s1326 + $0x78] sm:$0xff]
        %v2340 = vld [vmem:[%s1326 + $0x80] sm:$0xff]
        %v2341 = vld [vmem:[%s1326 + $0x88] sm:$0xff]
        %v2342 = vld [vmem:[%s1326 + $0x90] sm:$0xff]
        %v2343 = vld [vmem:[%s1326 + $0x98] sm:$0xff]
        %v2344 = vld [vmem:[%s1326 + $0xa0] sm:$0xff]
        %v2345 = vld [vmem:[%s1326 + $0xa8] sm:$0xff]
        %v2346 = vld [vmem:[%s1326 + $0xb0] sm:$0xff]
        %v2347 = vld [vmem:[%s1326 + $0xb8] sm:$0xff]
        %v2348 = vld [vmem:[%s1326 + $0xc0] sm:$0xff]
        %v2349 = vld [vmem:[%s1326 + $0xc8] sm:$0xff]
        %v2350 = vld [vmem:[%s1326 + $0xd0] sm:$0xff]
        %v2351 = vld [vmem:[%s1326 + $0xd8] sm:$0xff]
        %v2352 = vld [vmem:[%s1326 + $0xe0] sm:$0xff]
        %v2353 = vld [vmem:[%s1326 + $0xe8] sm:$0xff]
        %v2354 = vld [vmem:[%s1326 + $0xf0] sm:$0xff]
        %v2355 = vld [vmem:[%s1326 + $0xf8] sm:$0xff]
        %v2356 = vadd.f32 %v2324, %v2198
        %v2357 = vadd.f32 %v2325, %v2201
        %v2358 = vadd.f32 %v2326, %v2206
        %v2359 = vadd.f32 %v2327, %v2209
        %v2360 = vadd.f32 %v2328, %v2214
        %v2361 = vadd.f32 %v2329, %v2217
        %v2362 = vadd.f32 %v2330, %v2222
        %v2363 = vadd.f32 %v2331, %v2225
        %v2364 = vadd.f32 %v2332, %v2230
        %v2365 = vadd.f32 %v2333, %v2233
        %v2366 = vadd.f32 %v2334, %v2238
        %v2367 = vadd.f32 %v2335, %v2241
        %v2368 = vadd.f32 %v2336, %v2246
        %v2369 = vadd.f32 %v2337, %v2249
        %v2370 = vadd.f32 %v2338, %v2254
        %v2371 = vadd.f32 %v2339, %v2257
        %v2372 = vadd.f32 %v2340, %v2262
        %v2373 = vadd.f32 %v2341, %v2265
        %v2374 = vadd.f32 %v2342, %v2270
        %v2375 = vadd.f32 %v2343, %v2273
        %v2376 = vadd.f32 %v2344, %v2278
        %v2377 = vadd.f32 %v2345, %v2281
        %v2378 = vadd.f32 %v2346, %v2286
        %v2379 = vadd.f32 %v2347, %v2289
        %v2380 = vadd.f32 %v2348, %v2294
        %v2381 = vadd.f32 %v2349, %v2297
        %v2382 = vadd.f32 %v2350, %v2302
        %v2383 = vadd.f32 %v2351, %v2305
        %v2384 = vadd.f32 %v2352, %v2310
        %v2385 = vadd.f32 %v2353, %v2313
        %v2386 = vadd.f32 %v2354, %v2318
        %v2387 = vadd.f32 %v2355, %v2321
        %2388 = vst [vmem:[%s1326] sm:$0xff] %v2356
        %2389 = vst [vmem:[%s1326 + $0x8] sm:$0xff] %v2357
        %2390 = vst [vmem:[%s1326 + $0x10] sm:$0xff] %v2358
        %2391 = vst [vmem:[%s1326 + $0x18] sm:$0xff] %v2359
        %2392 = vst [vmem:[%s1326 + $0x20] sm:$0xff] %v2360
        %2393 = vst [vmem:[%s1326 + $0x28] sm:$0xff] %v2361
        %2394 = vst [vmem:[%s1326 + $0x30] sm:$0xff] %v2362
        %2395 = vst [vmem:[%s1326 + $0x38] sm:$0xff] %v2363
        %2396 = vst [vmem:[%s1326 + $0x40] sm:$0xff] %v2364
        %2397 = vst [vmem:[%s1326 + $0x48] sm:$0xff] %v2365
        %2398 = vst [vmem:[%s1326 + $0x50] sm:$0xff] %v2366
        %2399 = vst [vmem:[%s1326 + $0x58] sm:$0xff] %v2367
        %2400 = vst [vmem:[%s1326 + $0x60] sm:$0xff] %v2368
        %2401 = vst [vmem:[%s1326 + $0x68] sm:$0xff] %v2369
        %2402 = vst [vmem:[%s1326 + $0x70] sm:$0xff] %v2370
        %2403 = vst [vmem:[%s1326 + $0x78] sm:$0xff] %v2371
        %2404 = vst [vmem:[%s1326 + $0x80] sm:$0xff] %v2372
        %2405 = vst [vmem:[%s1326 + $0x88] sm:$0xff] %v2373
        %2406 = vst [vmem:[%s1326 + $0x90] sm:$0xff] %v2374
        %2407 = vst [vmem:[%s1326 + $0x98] sm:$0xff] %v2375
        %2408 = vst [vmem:[%s1326 + $0xa0] sm:$0xff] %v2376
        %2409 = vst [vmem:[%s1326 + $0xa8] sm:$0xff] %v2377
        %2410 = vst [vmem:[%s1326 + $0xb0] sm:$0xff] %v2378
        %2411 = vst [vmem:[%s1326 + $0xb8] sm:$0xff] %v2379
        %2412 = vst [vmem:[%s1326 + $0xc0] sm:$0xff] %v2380
        %2413 = vst [vmem:[%s1326 + $0xc8] sm:$0xff] %v2381
        %2414 = vst [vmem:[%s1326 + $0xd0] sm:$0xff] %v2382
        %2415 = vst [vmem:[%s1326 + $0xd8] sm:$0xff] %v2383
        %2416 = vst [vmem:[%s1326 + $0xe0] sm:$0xff] %v2384
        %2417 = vst [vmem:[%s1326 + $0xe8] sm:$0xff] %v2385
        %2418 = vst [vmem:[%s1326 + $0xf0] sm:$0xff] %v2386
        %2419 = vst [vmem:[%s1326 + $0xf8] sm:$0xff] %v2387
        %v2420 = vld [vmem:[%s0] sm:$0xff]
        %v2421 = vld [vmem:[%s0 + $0x8] sm:$0xff]
        %v2422 = vld [vmem:[%s0 + $0x10] sm:$0xff]
        %v2423 = vld [vmem:[%s0 + $0x18] sm:$0xff]
        %v2424 = vld [vmem:[%s0 + $0x20] sm:$0xff]
        %v2425 = vld [vmem:[%s0 + $0x28] sm:$0xff]
        %v2426 = vld [vmem:[%s0 + $0x30] sm:$0xff]
        %v2427 = vld [vmem:[%s0 + $0x38] sm:$0xff]
        %v2428 = vld [vmem:[%s0 + $0x40] sm:$0xff]
        %v2429 = vld [vmem:[%s0 + $0x48] sm:$0xff]
        %v2430 = vld [vmem:[%s0 + $0x50] sm:$0xff]
        %v2431 = vld [vmem:[%s0 + $0x58] sm:$0xff]
        %v2432 = vld [vmem:[%s0 + $0x60] sm:$0xff]
        %v2433 = vld [vmem:[%s0 + $0x68] sm:$0xff]
        %v2434 = vld [vmem:[%s0 + $0x70] sm:$0xff]
        %v2435 = vld [vmem:[%s0 + $0x78] sm:$0xff]
        %v2436 = vld [vmem:[%s0 + $0x80] sm:$0xff]
        %v2437 = vld [vmem:[%s0 + $0x88] sm:$0xff]
        %v2438 = vld [vmem:[%s0 + $0x90] sm:$0xff]
        %v2439 = vld [vmem:[%s0 + $0x98] sm:$0xff]
        %v2440 = vld [vmem:[%s0 + $0xa0] sm:$0xff]
        %v2441 = vld [vmem:[%s0 + $0xa8] sm:$0xff]
        %v2442 = vld [vmem:[%s0 + $0xb0] sm:$0xff]
        %v2443 = vld [vmem:[%s0 + $0xb8] sm:$0xff]
        %v2444 = vld [vmem:[%s0 + $0xc0] sm:$0xff]
        %v2445 = vld [vmem:[%s0 + $0xc8] sm:$0xff]
        %v2446 = vld [vmem:[%s0 + $0xd0] sm:$0xff]
        %v2447 = vld [vmem:[%s0 + $0xd8] sm:$0xff]
        %v2448 = vld [vmem:[%s0 + $0xe0] sm:$0xff]
        %v2449 = vld [vmem:[%s0 + $0xe8] sm:$0xff]
        %v2450 = vld [vmem:[%s0 + $0xf0] sm:$0xff]
        %v2451 = vld [vmem:[%s0 + $0xf8] sm:$0xff]
        %s2452 = scalar_lea.vmem %s1309, 256 [#allocation2]
        %v2453 = vld [vmem:[%s2452] sm:$0xf]
        %v2454 = vld [vmem:[%s2452 + $0x4] sm:$0xf]
        %v2455 = vld [vmem:[%s2452 + $0x8] sm:$0xf]
        %v2456 = vld [vmem:[%s2452 + $0xc] sm:$0xf]
        %v2457 = vld [vmem:[%s2452 + $0x10] sm:$0xf]
        %v2458 = vld [vmem:[%s2452 + $0x14] sm:$0xf]
        %v2459 = vld [vmem:[%s2452 + $0x18] sm:$0xf]
        %v2460 = vld [vmem:[%s2452 + $0x1c] sm:$0xf]
        %v2461 = vld [vmem:[%s2452 + $0x20] sm:$0xf]
        %v2462 = vld [vmem:[%s2452 + $0x24] sm:$0xf]
        %v2463 = vld [vmem:[%s2452 + $0x28] sm:$0xf]
        %v2464 = vld [vmem:[%s2452 + $0x2c] sm:$0xf]
        %v2465 = vld [vmem:[%s2452 + $0x30] sm:$0xf]
        %v2466 = vld [vmem:[%s2452 + $0x34] sm:$0xf]
        %v2467 = vld [vmem:[%s2452 + $0x38] sm:$0xf]
        %v2468 = vld [vmem:[%s2452 + $0x3c] sm:$0xf]
        %v2469 = vld [vmem:[%s2452 + $0x40] sm:$0xf]
        %v2470 = vld [vmem:[%s2452 + $0x44] sm:$0xf]
        %v2471 = vld [vmem:[%s2452 + $0x48] sm:$0xf]
        %v2472 = vld [vmem:[%s2452 + $0x4c] sm:$0xf]
        %v2473 = vld [vmem:[%s2452 + $0x50] sm:$0xf]
        %v2474 = vld [vmem:[%s2452 + $0x54] sm:$0xf]
        %v2475 = vld [vmem:[%s2452 + $0x58] sm:$0xf]
        %v2476 = vld [vmem:[%s2452 + $0x5c] sm:$0xf]
        %v2477 = vld [vmem:[%s2452 + $0x60] sm:$0xf]
        %v2478 = vld [vmem:[%s2452 + $0x64] sm:$0xf]
        %v2479 = vld [vmem:[%s2452 + $0x68] sm:$0xf]
        %v2480 = vld [vmem:[%s2452 + $0x6c] sm:$0xf]
        %v2481 = vld [vmem:[%s2452 + $0x70] sm:$0xf]
        %v2482 = vld [vmem:[%s2452 + $0x74] sm:$0xf]
        %v2483 = vld [vmem:[%s2452 + $0x78] sm:$0xf]
        %v2484 = vld [vmem:[%s2452 + $0x7c] sm:$0xf]
        %v2517 = vunpack.c.l.b16 %v2420
        %v2518 = vunpack.c.h.b16 %v2420
        %v2519 = vunpack.c.l.b16 %v2421
        %v2520 = vunpack.c.h.b16 %v2421
        %v2521 = vunpack.c.l.b16 %v2422
        %v2522 = vunpack.c.h.b16 %v2422
        %v2523 = vunpack.c.l.b16 %v2423
        %v2524 = vunpack.c.h.b16 %v2423
        %v2525 = vunpack.c.l.b16 %v2424
        %v2526 = vunpack.c.h.b16 %v2424
        %v2527 = vunpack.c.l.b16 %v2425
        %v2528 = vunpack.c.h.b16 %v2425
        %v2529 = vunpack.c.l.b16 %v2426
        %v2530 = vunpack.c.h.b16 %v2426
        %v2531 = vunpack.c.l.b16 %v2427
        %v2532 = vunpack.c.h.b16 %v2427
        %v2533 = vunpack.c.l.b16 %v2428
        %v2534 = vunpack.c.h.b16 %v2428
        %v2535 = vunpack.c.l.b16 %v2429
        %v2536 = vunpack.c.h.b16 %v2429
        %v2537 = vunpack.c.l.b16 %v2430
        %v2538 = vunpack.c.h.b16 %v2430
        %v2539 = vunpack.c.l.b16 %v2431
        %v2540 = vunpack.c.h.b16 %v2431
        %v2541 = vunpack.c.l.b16 %v2432
        %v2542 = vunpack.c.h.b16 %v2432
        %v2543 = vunpack.c.l.b16 %v2433
        %v2544 = vunpack.c.h.b16 %v2433
        %v2545 = vunpack.c.l.b16 %v2434
        %v2546 = vunpack.c.h.b16 %v2434
        %v2547 = vunpack.c.l.b16 %v2435
        %v2548 = vunpack.c.h.b16 %v2435
        %v2549 = vunpack.c.l.b16 %v2436
        %v2550 = vunpack.c.h.b16 %v2436
        %v2551 = vunpack.c.l.b16 %v2437
        %v2552 = vunpack.c.h.b16 %v2437
        %v2553 = vunpack.c.l.b16 %v2438
        %v2554 = vunpack.c.h.b16 %v2438
        %v2555 = vunpack.c.l.b16 %v2439
        %v2556 = vunpack.c.h.b16 %v2439
        %v2557 = vunpack.c.l.b16 %v2440
        %v2558 = vunpack.c.h.b16 %v2440
        %v2559 = vunpack.c.l.b16 %v2441
        %v2560 = vunpack.c.h.b16 %v2441
        %v2561 = vunpack.c.l.b16 %v2442
        %v2562 = vunpack.c.h.b16 %v2442
        %v2563 = vunpack.c.l.b16 %v2443
        %v2564 = vunpack.c.h.b16 %v2443
        %v2565 = vunpack.c.l.b16 %v2444
        %v2566 = vunpack.c.h.b16 %v2444
        %v2567 = vunpack.c.l.b16 %v2445
        %v2568 = vunpack.c.h.b16 %v2445
        %v2569 = vunpack.c.l.b16 %v2446
        %v2570 = vunpack.c.h.b16 %v2446
        %v2571 = vunpack.c.l.b16 %v2447
        %v2572 = vunpack.c.h.b16 %v2447
        %v2573 = vunpack.c.l.b16 %v2448
        %v2574 = vunpack.c.h.b16 %v2448
        %v2575 = vunpack.c.l.b16 %v2449
        %v2576 = vunpack.c.h.b16 %v2449
        %v2577 = vunpack.c.l.b16 %v2450
        %v2578 = vunpack.c.h.b16 %v2450
        %v2579 = vunpack.c.l.b16 %v2451
        %v2580 = vunpack.c.h.b16 %v2451
        %v2581 = vpack.c.b16 %v2519, %v2517
        %v2582 = vpack.c.b16 %v2520, %v2518
        %v2583 = vpack.c.b16 %v2523, %v2521
        %v2584 = vpack.c.b16 %v2524, %v2522
        %v2585 = vpack.c.b16 %v2527, %v2525
        %v2586 = vpack.c.b16 %v2528, %v2526
        %v2587 = vpack.c.b16 %v2531, %v2529
        %v2588 = vpack.c.b16 %v2532, %v2530
        %v2589 = vpack.c.b16 %v2535, %v2533
        %v2590 = vpack.c.b16 %v2536, %v2534
        %v2591 = vpack.c.b16 %v2539, %v2537
        %v2592 = vpack.c.b16 %v2540, %v2538
        %v2593 = vpack.c.b16 %v2543, %v2541
        %v2594 = vpack.c.b16 %v2544, %v2542
        %v2595 = vpack.c.b16 %v2547, %v2545
        %v2596 = vpack.c.b16 %v2548, %v2546
        %v2597 = vpack.c.b16 %v2551, %v2549
        %v2598 = vpack.c.b16 %v2552, %v2550
        %v2599 = vpack.c.b16 %v2555, %v2553
        %v2600 = vpack.c.b16 %v2556, %v2554
        %v2601 = vpack.c.b16 %v2559, %v2557
        %v2602 = vpack.c.b16 %v2560, %v2558
        %v2603 = vpack.c.b16 %v2563, %v2561
        %v2604 = vpack.c.b16 %v2564, %v2562
        %v2605 = vpack.c.b16 %v2567, %v2565
        %v2606 = vpack.c.b16 %v2568, %v2566
        %v2607 = vpack.c.b16 %v2571, %v2569
        %v2608 = vpack.c.b16 %v2572, %v2570
        %v2609 = vpack.c.b16 %v2575, %v2573
        %v2610 = vpack.c.b16 %v2576, %v2574
        %v2611 = vpack.c.b16 %v2579, %v2577
        %v2612 = vpack.c.b16 %v2580, %v2578
        %v2677 = vunpack.c.l.b16 %v2453
        %v2678 = vunpack.c.l.b16 %v2454
        %v2679 = vunpack.c.l.b16 %v2455
        %v2680 = vunpack.c.l.b16 %v2456
        %v2681 = vunpack.c.l.b16 %v2457
        %v2682 = vunpack.c.l.b16 %v2458
        %v2683 = vunpack.c.l.b16 %v2459
        %v2684 = vunpack.c.l.b16 %v2460
        %v2685 = vunpack.c.l.b16 %v2461
        %v2686 = vunpack.c.l.b16 %v2462
        %v2687 = vunpack.c.l.b16 %v2463
        %v2688 = vunpack.c.l.b16 %v2464
        %v2689 = vunpack.c.l.b16 %v2465
        %v2690 = vunpack.c.l.b16 %v2466
        %v2691 = vunpack.c.l.b16 %v2467
        %v2692 = vunpack.c.l.b16 %v2468
        %v2693 = vunpack.c.l.b16 %v2469
        %v2694 = vunpack.c.l.b16 %v2470
        %v2695 = vunpack.c.l.b16 %v2471
        %v2696 = vunpack.c.l.b16 %v2472
        %v2697 = vunpack.c.l.b16 %v2473
        %v2698 = vunpack.c.l.b16 %v2474
        %v2699 = vunpack.c.l.b16 %v2475
        %v2700 = vunpack.c.l.b16 %v2476
        %v2701 = vunpack.c.l.b16 %v2477
        %v2702 = vunpack.c.l.b16 %v2478
        %v2703 = vunpack.c.l.b16 %v2479
        %v2704 = vunpack.c.l.b16 %v2480
        %v2705 = vunpack.c.l.b16 %v2481
        %v2706 = vunpack.c.l.b16 %v2482
        %v2707 = vunpack.c.l.b16 %v2483
        %v2708 = vunpack.c.l.b16 %v2484
        %v2709 = vpack.c.b16 %v2678, %v2677
        %v2710 = vpack.c.b16 %v2680, %v2679
        %v2711 = vpack.c.b16 %v2682, %v2681
        %v2712 = vpack.c.b16 %v2684, %v2683
        %v2713 = vpack.c.b16 %v2686, %v2685
        %v2714 = vpack.c.b16 %v2688, %v2687
        %v2715 = vpack.c.b16 %v2690, %v2689
        %v2716 = vpack.c.b16 %v2692, %v2691
        %v2717 = vpack.c.b16 %v2694, %v2693
        %v2718 = vpack.c.b16 %v2696, %v2695
        %v2719 = vpack.c.b16 %v2698, %v2697
        %v2720 = vpack.c.b16 %v2700, %v2699
        %v2721 = vpack.c.b16 %v2702, %v2701
        %v2722 = vpack.c.b16 %v2704, %v2703
        %v2723 = vpack.c.b16 %v2706, %v2705
        %v2724 = vpack.c.b16 %v2708, %v2707
        %2741 = vmatprep.subr.bf16.mxu0 0
        %2742 = vmatpush1.bf16.msra.mxu0 %v2709
        %2743 = vmatprep.subr.bf16.mxu0 0
        %2744 = vmatpush1.bf16.msra.mxu0 %v2710
        %2745 = vmatprep.subr.bf16.mxu0 0
        %2746 = vmatpush1.bf16.msra.mxu0 %v2711
        %2747 = vmatprep.subr.bf16.mxu0 0
        %2748 = vmatpush1.bf16.msra.mxu0 %v2712
        %2749 = vmatprep.subr.bf16.mxu0 0
        %2750 = vmatpush1.bf16.msra.mxu0 %v2713
        %2751 = vmatprep.subr.bf16.mxu0 0
        %2752 = vmatpush1.bf16.msra.mxu0 %v2714
        %2753 = vmatprep.subr.bf16.mxu0 0
        %2754 = vmatpush1.bf16.msra.mxu0 %v2715
        %2755 = vmatprep.subr.bf16.mxu0 0
        %2756 = vmatpush1.bf16.msra.mxu0 %v2716
        %2757 = vmatprep.subr.bf16.mxu0 0
        %2758 = vmatpush1.bf16.msra.mxu0 %v2717
        %2759 = vmatprep.subr.bf16.mxu0 0
        %2760 = vmatpush1.bf16.msra.mxu0 %v2718
        %2761 = vmatprep.subr.bf16.mxu0 0
        %2762 = vmatpush1.bf16.msra.mxu0 %v2719
        %2763 = vmatprep.subr.bf16.mxu0 0
        %2764 = vmatpush1.bf16.msra.mxu0 %v2720
        %2765 = vmatprep.subr.bf16.mxu0 0
        %2766 = vmatpush1.bf16.msra.mxu0 %v2721
        %2767 = vmatprep.subr.bf16.mxu0 0
        %2768 = vmatpush1.bf16.msra.mxu0 %v2722
        %2769 = vmatprep.subr.bf16.mxu0 0
        %2770 = vmatpush1.bf16.msra.mxu0 %v2723
        %2771 = vmatprep.subr.bf16.mxu0 0
        %2772 = vmatpush1.bf16.msra.mxu0 %v2724
        %2773 = vmatprep.mubr.bf16.mxu0 %v2582
        %2774 = vmatmul.mubr.bf16.gmra.mrb[0].mxu0 %v2581
        %v2775 = vpop.f32.mrb[0].mxu0
        %v2776 = vadd.f32 0.0, %v2775
        %v2777 = vpop.f32.mrb[0].mxu0
        %v2778 = vpop.f32.mrb[0].mxu0
        %v2779 = vadd.f32 0.0, %v2778
        %v2780 = vpop.f32.mrb[0].mxu0
        %2781 = vmatprep.mubr.bf16.mxu0 %v2584
        %2782 = vmatmul.mubr.bf16.gmra.mrb[0].mxu0 %v2583
        %v2783 = vpop.f32.mrb[0].mxu0
        %v2784 = vadd.f32 0.0, %v2783
        %v2785 = vpop.f32.mrb[0].mxu0
        %v2786 = vpop.f32.mrb[0].mxu0
        %v2787 = vadd.f32 0.0, %v2786
        %v2788 = vpop.f32.mrb[0].mxu0
        %2789 = vmatprep.mubr.bf16.mxu0 %v2586
        %2790 = vmatmul.mubr.bf16.gmra.mrb[0].mxu0 %v2585
        %v2791 = vpop.f32.mrb[0].mxu0
        %v2792 = vadd.f32 0.0, %v2791
        %v2793 = vpop.f32.mrb[0].mxu0
        %v2794 = vpop.f32.mrb[0].mxu0
        %v2795 = vadd.f32 0.0, %v2794
        %v2796 = vpop.f32.mrb[0].mxu0
        %2797 = vmatprep.mubr.bf16.mxu0 %v2588
        %2798 = vmatmul.mubr.bf16.gmra.mrb[0].mxu0 %v2587
        %v2799 = vpop.f32.mrb[0].mxu0
        %v2800 = vadd.f32 0.0, %v2799
        %v2801 = vpop.f32.mrb[0].mxu0
        %v2802 = vpop.f32.mrb[0].mxu0
        %v2803 = vadd.f32 0.0, %v2802
        %v2804 = vpop.f32.mrb[0].mxu0
        %2805 = vmatprep.mubr.bf16.mxu0 %v2590
        %2806 = vmatmul.mubr.bf16.gmra.mrb[0].mxu0 %v2589
        %v2807 = vpop.f32.mrb[0].mxu0
        %v2808 = vadd.f32 0.0, %v2807
        %v2809 = vpop.f32.mrb[0].mxu0
        %v2810 = vpop.f32.mrb[0].mxu0
        %v2811 = vadd.f32 0.0, %v2810
        %v2812 = vpop.f32.mrb[0].mxu0
        %2813 = vmatprep.mubr.bf16.mxu0 %v2592
        %2814 = vmatmul.mubr.bf16.gmra.mrb[0].mxu0 %v2591
        %v2815 = vpop.f32.mrb[0].mxu0
        %v2816 = vadd.f32 0.0, %v2815
        %v2817 = vpop.f32.mrb[0].mxu0
        %v2818 = vpop.f32.mrb[0].mxu0
        %v2819 = vadd.f32 0.0, %v2818
        %v2820 = vpop.f32.mrb[0].mxu0
        %2821 = vmatprep.mubr.bf16.mxu0 %v2594
        %2822 = vmatmul.mubr.bf16.gmra.mrb[0].mxu0 %v2593
        %v2823 = vpop.f32.mrb[0].mxu0
        %v2824 = vadd.f32 0.0, %v2823
        %v2825 = vpop.f32.mrb[0].mxu0
        %v2826 = vpop.f32.mrb[0].mxu0
        %v2827 = vadd.f32 0.0, %v2826
        %v2828 = vpop.f32.mrb[0].mxu0
        %2829 = vmatprep.mubr.bf16.mxu0 %v2596
        %2830 = vmatmul.mubr.bf16.gmra.mrb[0].mxu0 %v2595
        %v2831 = vpop.f32.mrb[0].mxu0
        %v2832 = vadd.f32 0.0, %v2831
        %v2833 = vpop.f32.mrb[0].mxu0
        %v2834 = vpop.f32.mrb[0].mxu0
        %v2835 = vadd.f32 0.0, %v2834
        %v2836 = vpop.f32.mrb[0].mxu0
        %2837 = vmatprep.mubr.bf16.mxu0 %v2598
        %2838 = vmatmul.mubr.bf16.gmra.mrb[0].mxu0 %v2597
        %v2839 = vpop.f32.mrb[0].mxu0
        %v2840 = vadd.f32 0.0, %v2839
        %v2841 = vpop.f32.mrb[0].mxu0
        %v2842 = vpop.f32.mrb[0].mxu0
        %v2843 = vadd.f32 0.0, %v2842
        %v2844 = vpop.f32.mrb[0].mxu0
        %2845 = vmatprep.mubr.bf16.mxu0 %v2600
        %2846 = vmatmul.mubr.bf16.gmra.mrb[0].mxu0 %v2599
        %v2847 = vpop.f32.mrb[0].mxu0
        %v2848 = vadd.f32 0.0, %v2847
        %v2849 = vpop.f32.mrb[0].mxu0
        %v2850 = vpop.f32.mrb[0].mxu0
        %v2851 = vadd.f32 0.0, %v2850
        %v2852 = vpop.f32.mrb[0].mxu0
        %2853 = vmatprep.mubr.bf16.mxu0 %v2602
        %2854 = vmatmul.mubr.bf16.gmra.mrb[0].mxu0 %v2601
        %v2855 = vpop.f32.mrb[0].mxu0
        %v2856 = vadd.f32 0.0, %v2855
        %v2857 = vpop.f32.mrb[0].mxu0
        %v2858 = vpop.f32.mrb[0].mxu0
        %v2859 = vadd.f32 0.0, %v2858
        %v2860 = vpop.f32.mrb[0].mxu0
        %2861 = vmatprep.mubr.bf16.mxu0 %v2604
        %2862 = vmatmul.mubr.bf16.gmra.mrb[0].mxu0 %v2603
        %v2863 = vpop.f32.mrb[0].mxu0
        %v2864 = vadd.f32 0.0, %v2863
        %v2865 = vpop.f32.mrb[0].mxu0
        %v2866 = vpop.f32.mrb[0].mxu0
        %v2867 = vadd.f32 0.0, %v2866
        %v2868 = vpop.f32.mrb[0].mxu0
        %2869 = vmatprep.mubr.bf16.mxu0 %v2606
        %2870 = vmatmul.mubr.bf16.gmra.mrb[0].mxu0 %v2605
        %v2871 = vpop.f32.mrb[0].mxu0
        %v2872 = vadd.f32 0.0, %v2871
        %v2873 = vpop.f32.mrb[0].mxu0
        %v2874 = vpop.f32.mrb[0].mxu0
        %v2875 = vadd.f32 0.0, %v2874
        %v2876 = vpop.f32.mrb[0].mxu0
        %2877 = vmatprep.mubr.bf16.mxu0 %v2608
        %2878 = vmatmul.mubr.bf16.gmra.mrb[0].mxu0 %v2607
        %v2879 = vpop.f32.mrb[0].mxu0
        %v2880 = vadd.f32 0.0, %v2879
        %v2881 = vpop.f32.mrb[0].mxu0
        %v2882 = vpop.f32.mrb[0].mxu0
        %v2883 = vadd.f32 0.0, %v2882
        %v2884 = vpop.f32.mrb[0].mxu0
        %2885 = vmatprep.mubr.bf16.mxu0 %v2610
        %2886 = vmatmul.mubr.bf16.gmra.mrb[0].mxu0 %v2609
        %v2887 = vpop.f32.mrb[0].mxu0
        %v2888 = vadd.f32 0.0, %v2887
        %v2889 = vpop.f32.mrb[0].mxu0
        %v2890 = vpop.f32.mrb[0].mxu0
        %v2891 = vadd.f32 0.0, %v2890
        %v2892 = vpop.f32.mrb[0].mxu0
        %2893 = vmatprep.mubr.bf16.mxu0 %v2612
        %2894 = vmatmul.mubr.bf16.gmra.mrb[0].mxu0 %v2611
        %v2895 = vpop.f32.mrb[0].mxu0
        %v2896 = vadd.f32 0.0, %v2895
        %v2897 = vpop.f32.mrb[0].mxu0
        %v2898 = vpop.f32.mrb[0].mxu0
        %v2899 = vadd.f32 0.0, %v2898
        %v2900 = vpop.f32.mrb[0].mxu0
        %2901 = vdwg.mxu0
        %v2902 = vrot.slane %v2776, 1
        %v2903 = vrot.slane %v2779, 1
        %v2904 = vrot.slane %v2784, 1
        %v2905 = vrot.slane %v2787, 1
        %v2906 = vrot.slane %v2792, 1
        %v2907 = vrot.slane %v2795, 1
        %v2908 = vrot.slane %v2800, 1
        %v2909 = vrot.slane %v2803, 1
        %v2910 = vrot.slane %v2808, 1
        %v2911 = vrot.slane %v2811, 1
        %v2912 = vrot.slane %v2816, 1
        %v2913 = vrot.slane %v2819, 1
        %v2914 = vrot.slane %v2824, 1
        %v2915 = vrot.slane %v2827, 1
        %v2916 = vrot.slane %v2832, 1
        %v2917 = vrot.slane %v2835, 1
        %v2918 = vrot.slane %v2840, 1
        %v2919 = vrot.slane %v2843, 1
        %v2920 = vrot.slane %v2848, 1
        %v2921 = vrot.slane %v2851, 1
        %v2922 = vrot.slane %v2856, 1
        %v2923 = vrot.slane %v2859, 1
        %v2924 = vrot.slane %v2864, 1
        %v2925 = vrot.slane %v2867, 1
        %v2926 = vrot.slane %v2872, 1
        %v2927 = vrot.slane %v2875, 1
        %v2928 = vrot.slane %v2880, 1
        %v2929 = vrot.slane %v2883, 1
        %v2930 = vrot.slane %v2888, 1
        %v2931 = vrot.slane %v2891, 1
        %v2932 = vrot.slane %v2896, 1
        %v2933 = vrot.slane %v2899, 1
        %v2934 = vlaneseq
        %v2935 = vshrl.u32 %v2934, 7
        %vm2936 = vcmp.lt.s32.totalorder %v2935, 7
        %v2937 = vsel %vm2936, %v2932, %v2933
        %v2938 = vsel %vm2936, %v2931, %v2932
        %v2939 = vsel %vm2936, %v2930, %v2931
        %v2940 = vsel %vm2936, %v2929, %v2930
        %v2941 = vsel %vm2936, %v2928, %v2929
        %v2942 = vsel %vm2936, %v2927, %v2928
        %v2943 = vsel %vm2936, %v2926, %v2927
        %v2944 = vsel %vm2936, %v2925, %v2926
        %v2945 = vsel %vm2936, %v2924, %v2925
        %v2946 = vsel %vm2936, %v2923, %v2924
        %v2947 = vsel %vm2936, %v2922, %v2923
        %v2948 = vsel %vm2936, %v2921, %v2922
        %v2949 = vsel %vm2936, %v2920, %v2921
        %v2950 = vsel %vm2936, %v2919, %v2920
        %v2951 = vsel %vm2936, %v2918, %v2919
        %v2952 = vsel %vm2936, %v2917, %v2918
        %v2953 = vsel %vm2936, %v2916, %v2917
        %v2954 = vsel %vm2936, %v2915, %v2916
        %v2955 = vsel %vm2936, %v2914, %v2915
        %v2956 = vsel %vm2936, %v2913, %v2914
        %v2957 = vsel %vm2936, %v2912, %v2913
        %v2958 = vsel %vm2936, %v2911, %v2912
        %v2959 = vsel %vm2936, %v2910, %v2911
        %v2960 = vsel %vm2936, %v2909, %v2910
        %v2961 = vsel %vm2936, %v2908, %v2909
        %v2962 = vsel %vm2936, %v2907, %v2908
        %v2963 = vsel %vm2936, %v2906, %v2907
        %v2964 = vsel %vm2936, %v2905, %v2906
        %v2965 = vsel %vm2936, %v2904, %v2905
        %v2966 = vsel %vm2936, %v2903, %v2904
        %v2967 = vsel %vm2936, %v2902, %v2903
        %v2968 = vsel %vm2936, %v2933, %v2902
        %v2969 = vld [vmem:[%s1326] sm:$0xff]
        %v2970 = vld [vmem:[%s1326 + $0x8] sm:$0xff]
        %v2971 = vld [vmem:[%s1326 + $0x10] sm:$0xff]
        %v2972 = vld [vmem:[%s1326 + $0x18] sm:$0xff]
        %v2973 = vld [vmem:[%s1326 + $0x20] sm:$0xff]
        %v2974 = vld [vmem:[%s1326 + $0x28] sm:$0xff]
        %v2975 = vld [vmem:[%s1326 + $0x30] sm:$0xff]
        %v2976 = vld [vmem:[%s1326 + $0x38] sm:$0xff]
        %v2977 = vld [vmem:[%s1326 + $0x40] sm:$0xff]
        %v2978 = vld [vmem:[%s1326 + $0x48] sm:$0xff]
        %v2979 = vld [vmem:[%s1326 + $0x50] sm:$0xff]
        %v2980 = vld [vmem:[%s1326 + $0x58] sm:$0xff]
        %v2981 = vld [vmem:[%s1326 + $0x60] sm:$0xff]
        %v2982 = vld [vmem:[%s1326 + $0x68] sm:$0xff]
        %v2983 = vld [vmem:[%s1326 + $0x70] sm:$0xff]
        %v2984 = vld [vmem:[%s1326 + $0x78] sm:$0xff]
        %v2985 = vld [vmem:[%s1326 + $0x80] sm:$0xff]
        %v2986 = vld [vmem:[%s1326 + $0x88] sm:$0xff]
        %v2987 = vld [vmem:[%s1326 + $0x90] sm:$0xff]
        %v2988 = vld [vmem:[%s1326 + $0x98] sm:$0xff]
        %v2989 = vld [vmem:[%s1326 + $0xa0] sm:$0xff]
        %v2990 = vld [vmem:[%s1326 + $0xa8] sm:$0xff]
        %v2991 = vld [vmem:[%s1326 + $0xb0] sm:$0xff]
        %v2992 = vld [vmem:[%s1326 + $0xb8] sm:$0xff]
        %v2993 = vld [vmem:[%s1326 + $0xc0] sm:$0xff]
        %v2994 = vld [vmem:[%s1326 + $0xc8] sm:$0xff]
        %v2995 = vld [vmem:[%s1326 + $0xd0] sm:$0xff]
        %v2996 = vld [vmem:[%s1326 + $0xd8] sm:$0xff]
        %v2997 = vld [vmem:[%s1326 + $0xe0] sm:$0xff]
        %v2998 = vld [vmem:[%s1326 + $0xe8] sm:$0xff]
        %v2999 = vld [vmem:[%s1326 + $0xf0] sm:$0xff]
        %v3000 = vld [vmem:[%s1326 + $0xf8] sm:$0xff]
        %v3001 = vadd.f32 %v2969, %v2967
        %v3002 = vadd.f32 %v2970, %v2966
        %v3003 = vadd.f32 %v2971, %v2965
        %v3004 = vadd.f32 %v2972, %v2964
        %v3005 = vadd.f32 %v2973, %v2963
        %v3006 = vadd.f32 %v2974, %v2962
        %v3007 = vadd.f32 %v2975, %v2961
        %v3008 = vadd.f32 %v2976, %v2960
        %v3009 = vadd.f32 %v2977, %v2959
        %v3010 = vadd.f32 %v2978, %v2958
        %v3011 = vadd.f32 %v2979, %v2957
        %v3012 = vadd.f32 %v2980, %v2956
        %v3013 = vadd.f32 %v2981, %v2955
        %v3014 = vadd.f32 %v2982, %v2954
        %v3015 = vadd.f32 %v2983, %v2953
        %v3016 = vadd.f32 %v2984, %v2952
        %v3017 = vadd.f32 %v2985, %v2951
        %v3018 = vadd.f32 %v2986, %v2950
        %v3019 = vadd.f32 %v2987, %v2949
        %v3020 = vadd.f32 %v2988, %v2948
        %v3021 = vadd.f32 %v2989, %v2947
        %v3022 = vadd.f32 %v2990, %v2946
        %v3023 = vadd.f32 %v2991, %v2945
        %v3024 = vadd.f32 %v2992, %v2944
        %v3025 = vadd.f32 %v2993, %v2943
        %v3026 = vadd.f32 %v2994, %v2942
        %v3027 = vadd.f32 %v2995, %v2941
        %v3028 = vadd.f32 %v2996, %v2940
        %v3029 = vadd.f32 %v2997, %v2939
        %v3030 = vadd.f32 %v2998, %v2938
        %v3031 = vadd.f32 %v2999, %v2937
        %v3032 = vadd.f32 %v3000, %v2968
        %3033 = vst [vmem:[%s1326] sm:$0xff] %v3001
        %3034 = vst [vmem:[%s1326 + $0x8] sm:$0xff] %v3002
        %3035 = vst [vmem:[%s1326 + $0x10] sm:$0xff] %v3003
        %3036 = vst [vmem:[%s1326 + $0x18] sm:$0xff] %v3004
        %3037 = vst [vmem:[%s1326 + $0x20] sm:$0xff] %v3005
        %3038 = vst [vmem:[%s1326 + $0x28] sm:$0xff] %v3006
        %3039 = vst [vmem:[%s1326 + $0x30] sm:$0xff] %v3007
        %3040 = vst [vmem:[%s1326 + $0x38] sm:$0xff] %v3008
        %3041 = vst [vmem:[%s1326 + $0x40] sm:$0xff] %v3009
        %3042 = vst [vmem:[%s1326 + $0x48] sm:$0xff] %v3010
        %3043 = vst [vmem:[%s1326 + $0x50] sm:$0xff] %v3011
        %3044 = vst [vmem:[%s1326 + $0x58] sm:$0xff] %v3012
        %3045 = vst [vmem:[%s1326 + $0x60] sm:$0xff] %v3013
        %3046 = vst [vmem:[%s1326 + $0x68] sm:$0xff] %v3014
        %3047 = vst [vmem:[%s1326 + $0x70] sm:$0xff] %v3015
        %3048 = vst [vmem:[%s1326 + $0x78] sm:$0xff] %v3016
        %3049 = vst [vmem:[%s1326 + $0x80] sm:$0xff] %v3017
        %3050 = vst [vmem:[%s1326 + $0x88] sm:$0xff] %v3018
        %3051 = vst [vmem:[%s1326 + $0x90] sm:$0xff] %v3019
        %3052 = vst [vmem:[%s1326 + $0x98] sm:$0xff] %v3020
        %3053 = vst [vmem:[%s1326 + $0xa0] sm:$0xff] %v3021
        %3054 = vst [vmem:[%s1326 + $0xa8] sm:$0xff] %v3022
        %3055 = vst [vmem:[%s1326 + $0xb0] sm:$0xff] %v3023
        %3056 = vst [vmem:[%s1326 + $0xb8] sm:$0xff] %v3024
        %3057 = vst [vmem:[%s1326 + $0xc0] sm:$0xff] %v3025
        %3058 = vst [vmem:[%s1326 + $0xc8] sm:$0xff] %v3026
        %3059 = vst [vmem:[%s1326 + $0xd0] sm:$0xff] %v3027
        %3060 = vst [vmem:[%s1326 + $0xd8] sm:$0xff] %v3028
        %3061 = vst [vmem:[%s1326 + $0xe0] sm:$0xff] %v3029
        %3062 = vst [vmem:[%s1326 + $0xe8] sm:$0xff] %v3030
        %3063 = vst [vmem:[%s1326 + $0xf0] sm:$0xff] %v3031
        %3064 = vst [vmem:[%s1326 + $0xf8] sm:$0xff] %v3032
        %s3065 = scalar_lea.vmem %s0, 512
        %v3066 = vld [vmem:[%s3065] sm:$0xff]
        %v3067 = vld [vmem:[%s3065 + $0x8] sm:$0xff]
        %v3068 = vld [vmem:[%s3065 + $0x10] sm:$0xff]
        %v3069 = vld [vmem:[%s3065 + $0x18] sm:$0xff]
        %v3070 = vld [vmem:[%s3065 + $0x20] sm:$0xff]
        %v3071 = vld [vmem:[%s3065 + $0x28] sm:$0xff]
        %v3072 = vld [vmem:[%s3065 + $0x30] sm:$0xff]
        %v3073 = vld [vmem:[%s3065 + $0x38] sm:$0xff]
        %v3074 = vld [vmem:[%s3065 + $0x40] sm:$0xff]
        %v3075 = vld [vmem:[%s3065 + $0x48] sm:$0xff]
        %v3076 = vld [vmem:[%s3065 + $0x50] sm:$0xff]
        %v3077 = vld [vmem:[%s3065 + $0x58] sm:$0xff]
        %v3078 = vld [vmem:[%s3065 + $0x60] sm:$0xff]
        %v3079 = vld [vmem:[%s3065 + $0x68] sm:$0xff]
        %v3080 = vld [vmem:[%s3065 + $0x70] sm:$0xff]
        %v3081 = vld [vmem:[%s3065 + $0x78] sm:$0xff]
        %v3082 = vld [vmem:[%s3065 + $0x80] sm:$0xff]
        %v3083 = vld [vmem:[%s3065 + $0x88] sm:$0xff]
        %v3084 = vld [vmem:[%s3065 + $0x90] sm:$0xff]
        %v3085 = vld [vmem:[%s3065 + $0x98] sm:$0xff]
        %v3086 = vld [vmem:[%s3065 + $0xa0] sm:$0xff]
        %v3087 = vld [vmem:[%s3065 + $0xa8] sm:$0xff]
        %v3088 = vld [vmem:[%s3065 + $0xb0] sm:$0xff]
        %v3089 = vld [vmem:[%s3065 + $0xb8] sm:$0xff]
        %v3090 = vld [vmem:[%s3065 + $0xc0] sm:$0xff]
        %v3091 = vld [vmem:[%s3065 + $0xc8] sm:$0xff]
        %v3092 = vld [vmem:[%s3065 + $0xd0] sm:$0xff]
        %v3093 = vld [vmem:[%s3065 + $0xd8] sm:$0xff]
        %v3094 = vld [vmem:[%s3065 + $0xe0] sm:$0xff]
        %v3095 = vld [vmem:[%s3065 + $0xe8] sm:$0xff]
        %v3096 = vld [vmem:[%s3065 + $0xf0] sm:$0xff]
        %v3097 = vld [vmem:[%s3065 + $0xf8] sm:$0xff]
        %s3098 = scalar_lea.vmem %s1309, 384 [#allocation2]
        %v3099 = vld [vmem:[%s3098] sm:$0xf]
        %v3100 = vld [vmem:[%s3098 + $0x4] sm:$0xf]
        %v3101 = vld [vmem:[%s3098 + $0x8] sm:$0xf]
        %v3102 = vld [vmem:[%s3098 + $0xc] sm:$0xf]
        %v3103 = vld [vmem:[%s3098 + $0x10] sm:$0xf]
        %v3104 = vld [vmem:[%s3098 + $0x14] sm:$0xf]
        %v3105 = vld [vmem:[%s3098 + $0x18] sm:$0xf]
        %v3106 = vld [vmem:[%s3098 + $0x1c] sm:$0xf]
        %v3107 = vld [vmem:[%s3098 + $0x20] sm:$0xf]
        %v3108 = vld [vmem:[%s3098 + $0x24] sm:$0xf]
        %v3109 = vld [vmem:[%s3098 + $0x28] sm:$0xf]
        %v3110 = vld [vmem:[%s3098 + $0x2c] sm:$0xf]
        %v3111 = vld [vmem:[%s3098 + $0x30] sm:$0xf]
        %v3112 = vld [vmem:[%s3098 + $0x34] sm:$0xf]
        %v3113 = vld [vmem:[%s3098 + $0x38] sm:$0xf]
        %v3114 = vld [vmem:[%s3098 + $0x3c] sm:$0xf]
        %v3115 = vld [vmem:[%s3098 + $0x40] sm:$0xf]
        %v3116 = vld [vmem:[%s3098 + $0x44] sm:$0xf]
        %v3117 = vld [vmem:[%s3098 + $0x48] sm:$0xf]
        %v3118 = vld [vmem:[%s3098 + $0x4c] sm:$0xf]
        %v3119 = vld [vmem:[%s3098 + $0x50] sm:$0xf]
        %v3120 = vld [vmem:[%s3098 + $0x54] sm:$0xf]
        %v3121 = vld [vmem:[%s3098 + $0x58] sm:$0xf]
        %v3122 = vld [vmem:[%s3098 + $0x5c] sm:$0xf]
        %v3123 = vld [vmem:[%s3098 + $0x60] sm:$0xf]
        %v3124 = vld [vmem:[%s3098 + $0x64] sm:$0xf]
        %v3125 = vld [vmem:[%s3098 + $0x68] sm:$0xf]
        %v3126 = vld [vmem:[%s3098 + $0x6c] sm:$0xf]
        %v3127 = vld [vmem:[%s3098 + $0x70] sm:$0xf]
        %v3128 = vld [vmem:[%s3098 + $0x74] sm:$0xf]
        %v3129 = vld [vmem:[%s3098 + $0x78] sm:$0xf]
        %v3130 = vld [vmem:[%s3098 + $0x7c] sm:$0xf]
        %v3163 = vunpack.c.l.b16 %v3066
        %v3164 = vunpack.c.h.b16 %v3066
        %v3165 = vunpack.c.l.b16 %v3067
        %v3166 = vunpack.c.h.b16 %v3067
        %v3167 = vunpack.c.l.b16 %v3068
        %v3168 = vunpack.c.h.b16 %v3068
        %v3169 = vunpack.c.l.b16 %v3069
        %v3170 = vunpack.c.h.b16 %v3069
        %v3171 = vunpack.c.l.b16 %v3070
        %v3172 = vunpack.c.h.b16 %v3070
        %v3173 = vunpack.c.l.b16 %v3071
        %v3174 = vunpack.c.h.b16 %v3071
        %v3175 = vunpack.c.l.b16 %v3072
        %v3176 = vunpack.c.h.b16 %v3072
        %v3177 = vunpack.c.l.b16 %v3073
        %v3178 = vunpack.c.h.b16 %v3073
        %v3179 = vunpack.c.l.b16 %v3074
        %v3180 = vunpack.c.h.b16 %v3074
        %v3181 = vunpack.c.l.b16 %v3075
        %v3182 = vunpack.c.h.b16 %v3075
        %v3183 = vunpack.c.l.b16 %v3076
        %v3184 = vunpack.c.h.b16 %v3076
        %v3185 = vunpack.c.l.b16 %v3077
        %v3186 = vunpack.c.h.b16 %v3077
        %v3187 = vunpack.c.l.b16 %v3078
        %v3188 = vunpack.c.h.b16 %v3078
        %v3189 = vunpack.c.l.b16 %v3079
        %v3190 = vunpack.c.h.b16 %v3079
        %v3191 = vunpack.c.l.b16 %v3080
        %v3192 = vunpack.c.h.b16 %v3080
        %v3193 = vunpack.c.l.b16 %v3081
        %v3194 = vunpack.c.h.b16 %v3081
        %v3195 = vunpack.c.l.b16 %v3082
        %v3196 = vunpack.c.h.b16 %v3082
        %v3197 = vunpack.c.l.b16 %v3083
        %v3198 = vunpack.c.h.b16 %v3083
        %v3199 = vunpack.c.l.b16 %v3084
        %v3200 = vunpack.c.h.b16 %v3084
        %v3201 = vunpack.c.l.b16 %v3085
        %v3202 = vunpack.c.h.b16 %v3085
        %v3203 = vunpack.c.l.b16 %v3086
        %v3204 = vunpack.c.h.b16 %v3086
        %v3205 = vunpack.c.l.b16 %v3087
        %v3206 = vunpack.c.h.b16 %v3087
        %v3207 = vunpack.c.l.b16 %v3088
        %v3208 = vunpack.c.h.b16 %v3088
        %v3209 = vunpack.c.l.b16 %v3089
        %v3210 = vunpack.c.h.b16 %v3089
        %v3211 = vunpack.c.l.b16 %v3090
        %v3212 = vunpack.c.h.b16 %v3090
        %v3213 = vunpack.c.l.b16 %v3091
        %v3214 = vunpack.c.h.b16 %v3091
        %v3215 = vunpack.c.l.b16 %v3092
        %v3216 = vunpack.c.h.b16 %v3092
        %v3217 = vunpack.c.l.b16 %v3093
        %v3218 = vunpack.c.h.b16 %v3093
        %v3219 = vunpack.c.l.b16 %v3094
        %v3220 = vunpack.c.h.b16 %v3094
        %v3221 = vunpack.c.l.b16 %v3095
        %v3222 = vunpack.c.h.b16 %v3095
        %v3223 = vunpack.c.l.b16 %v3096
        %v3224 = vunpack.c.h.b16 %v3096
        %v3225 = vunpack.c.l.b16 %v3097
        %v3226 = vunpack.c.h.b16 %v3097
        %v3227 = vpack.c.b16 %v3165, %v3163
        %v3228 = vpack.c.b16 %v3166, %v3164
        %v3229 = vpack.c.b16 %v3169, %v3167
        %v3230 = vpack.c.b16 %v3170, %v3168
        %v3231 = vpack.c.b16 %v3173, %v3171
        %v3232 = vpack.c.b16 %v3174, %v3172
        %v3233 = vpack.c.b16 %v3177, %v3175
        %v3234 = vpack.c.b16 %v3178, %v3176
        %v3235 = vpack.c.b16 %v3181, %v3179
        %v3236 = vpack.c.b16 %v3182, %v3180
        %v3237 = vpack.c.b16 %v3185, %v3183
        %v3238 = vpack.c.b16 %v3186, %v3184
        %v3239 = vpack.c.b16 %v3189, %v3187
        %v3240 = vpack.c.b16 %v3190, %v3188
        %v3241 = vpack.c.b16 %v3193, %v3191
        %v3242 = vpack.c.b16 %v3194, %v3192
        %v3243 = vpack.c.b16 %v3197, %v3195
        %v3244 = vpack.c.b16 %v3198, %v3196
        %v3245 = vpack.c.b16 %v3201, %v3199
        %v3246 = vpack.c.b16 %v3202, %v3200
        %v3247 = vpack.c.b16 %v3205, %v3203
        %v3248 = vpack.c.b16 %v3206, %v3204
        %v3249 = vpack.c.b16 %v3209, %v3207
        %v3250 = vpack.c.b16 %v3210, %v3208
        %v3251 = vpack.c.b16 %v3213, %v3211
        %v3252 = vpack.c.b16 %v3214, %v3212
        %v3253 = vpack.c.b16 %v3217, %v3215
        %v3254 = vpack.c.b16 %v3218, %v3216
        %v3255 = vpack.c.b16 %v3221, %v3219
        %v3256 = vpack.c.b16 %v3222, %v3220
        %v3257 = vpack.c.b16 %v3225, %v3223
        %v3258 = vpack.c.b16 %v3226, %v3224
        %v3323 = vunpack.c.l.b16 %v3099
        %v3324 = vunpack.c.l.b16 %v3100
        %v3325 = vunpack.c.l.b16 %v3101
        %v3326 = vunpack.c.l.b16 %v3102
        %v3327 = vunpack.c.l.b16 %v3103
        %v3328 = vunpack.c.l.b16 %v3104
        %v3329 = vunpack.c.l.b16 %v3105
        %v3330 = vunpack.c.l.b16 %v3106
        %v3331 = vunpack.c.l.b16 %v3107
        %v3332 = vunpack.c.l.b16 %v3108
        %v3333 = vunpack.c.l.b16 %v3109
        %v3334 = vunpack.c.l.b16 %v3110
        %v3335 = vunpack.c.l.b16 %v3111
        %v3336 = vunpack.c.l.b16 %v3112
        %v3337 = vunpack.c.l.b16 %v3113
        %v3338 = vunpack.c.l.b16 %v3114
        %v3339 = vunpack.c.l.b16 %v3115
        %v3340 = vunpack.c.l.b16 %v3116
        %v3341 = vunpack.c.l.b16 %v3117
        %v3342 = vunpack.c.l.b16 %v3118
        %v3343 = vunpack.c.l.b16 %v3119
        %v3344 = vunpack.c.l.b16 %v3120
        %v3345 = vunpack.c.l.b16 %v3121
        %v3346 = vunpack.c.l.b16 %v3122
        %v3347 = vunpack.c.l.b16 %v3123
        %v3348 = vunpack.c.l.b16 %v3124
        %v3349 = vunpack.c.l.b16 %v3125
        %v3350 = vunpack.c.l.b16 %v3126
        %v3351 = vunpack.c.l.b16 %v3127
        %v3352 = vunpack.c.l.b16 %v3128
        %v3353 = vunpack.c.l.b16 %v3129
        %v3354 = vunpack.c.l.b16 %v3130
        %v3355 = vpack.c.b16 %v3324, %v3323
        %v3356 = vpack.c.b16 %v3326, %v3325
        %v3357 = vpack.c.b16 %v3328, %v3327
        %v3358 = vpack.c.b16 %v3330, %v3329
        %v3359 = vpack.c.b16 %v3332, %v3331
        %v3360 = vpack.c.b16 %v3334, %v3333
        %v3361 = vpack.c.b16 %v3336, %v3335
        %v3362 = vpack.c.b16 %v3338, %v3337
        %v3363 = vpack.c.b16 %v3340, %v3339
        %v3364 = vpack.c.b16 %v3342, %v3341
        %v3365 = vpack.c.b16 %v3344, %v3343
        %v3366 = vpack.c.b16 %v3346, %v3345
        %v3367 = vpack.c.b16 %v3348, %v3347
        %v3368 = vpack.c.b16 %v3350, %v3349
        %v3369 = vpack.c.b16 %v3352, %v3351
        %v3370 = vpack.c.b16 %v3354, %v3353
        %3387 = vmatprep.subr.bf16.mxu0 0
        %3388 = vmatpush1.bf16.msra.mxu0 %v3355
        %3389 = vmatprep.subr.bf16.mxu0 0
        %3390 = vmatpush1.bf16.msra.mxu0 %v3356
        %3391 = vmatprep.subr.bf16.mxu0 0
        %3392 = vmatpush1.bf16.msra.mxu0 %v3357
        %3393 = vmatprep.subr.bf16.mxu0 0
        %3394 = vmatpush1.bf16.msra.mxu0 %v3358
        %3395 = vmatprep.subr.bf16.mxu0 0
        %3396 = vmatpush1.bf16.msra.mxu0 %v3359
        %3397 = vmatprep.subr.bf16.mxu0 0
        %3398 = vmatpush1.bf16.msra.mxu0 %v3360
        %3399 = vmatprep.subr.bf16.mxu0 0
        %3400 = vmatpush1.bf16.msra.mxu0 %v3361
        %3401 = vmatprep.subr.bf16.mxu0 0
        %3402 = vmatpush1.bf16.msra.mxu0 %v3362
        %3403 = vmatprep.subr.bf16.mxu0 0
        %3404 = vmatpush1.bf16.msra.mxu0 %v3363
        %3405 = vmatprep.subr.bf16.mxu0 0
        %3406 = vmatpush1.bf16.msra.mxu0 %v3364
        %3407 = vmatprep.subr.bf16.mxu0 0
        %3408 = vmatpush1.bf16.msra.mxu0 %v3365
        %3409 = vmatprep.subr.bf16.mxu0 0
        %3410 = vmatpush1.bf16.msra.mxu0 %v3366
        %3411 = vmatprep.subr.bf16.mxu0 0
        %3412 = vmatpush1.bf16.msra.mxu0 %v3367
        %3413 = vmatprep.subr.bf16.mxu0 0
        %3414 = vmatpush1.bf16.msra.mxu0 %v3368
        %3415 = vmatprep.subr.bf16.mxu0 0
        %3416 = vmatpush1.bf16.msra.mxu0 %v3369
        %3417 = vmatprep.subr.bf16.mxu0 0
        %3418 = vmatpush1.bf16.msra.mxu0 %v3370
        %3419 = vmatprep.mubr.bf16.mxu0 %v3228
        %3420 = vmatmul.mubr.bf16.gmra.mrb[0].mxu0 %v3227
        %v3421 = vpop.f32.mrb[0].mxu0
        %v3422 = vadd.f32 0.0, %v3421
        %v3423 = vpop.f32.mrb[0].mxu0
        %v3424 = vpop.f32.mrb[0].mxu0
        %v3425 = vadd.f32 0.0, %v3424
        %v3426 = vpop.f32.mrb[0].mxu0
        %3427 = vmatprep.mubr.bf16.mxu0 %v3230
        %3428 = vmatmul.mubr.bf16.gmra.mrb[0].mxu0 %v3229
        %v3429 = vpop.f32.mrb[0].mxu0
        %v3430 = vadd.f32 0.0, %v3429
        %v3431 = vpop.f32.mrb[0].mxu0
        %v3432 = vpop.f32.mrb[0].mxu0
        %v3433 = vadd.f32 0.0, %v3432
        %v3434 = vpop.f32.mrb[0].mxu0
        %3435 = vmatprep.mubr.bf16.mxu0 %v3232
        %3436 = vmatmul.mubr.bf16.gmra.mrb[0].mxu0 %v3231
        %v3437 = vpop.f32.mrb[0].mxu0
        %v3438 = vadd.f32 0.0, %v3437
        %v3439 = vpop.f32.mrb[0].mxu0
        %v3440 = vpop.f32.mrb[0].mxu0
        %v3441 = vadd.f32 0.0, %v3440
        %v3442 = vpop.f32.mrb[0].mxu0
        %3443 = vmatprep.mubr.bf16.mxu0 %v3234
        %3444 = vmatmul.mubr.bf16.gmra.mrb[0].mxu0 %v3233
        %v3445 = vpop.f32.mrb[0].mxu0
        %v3446 = vadd.f32 0.0, %v3445
        %v3447 = vpop.f32.mrb[0].mxu0
        %v3448 = vpop.f32.mrb[0].mxu0
        %v3449 = vadd.f32 0.0, %v3448
        %v3450 = vpop.f32.mrb[0].mxu0
        %3451 = vmatprep.mubr.bf16.mxu0 %v3236
        %3452 = vmatmul.mubr.bf16.gmra.mrb[0].mxu0 %v3235
        %v3453 = vpop.f32.mrb[0].mxu0
        %v3454 = vadd.f32 0.0, %v3453
        %v3455 = vpop.f32.mrb[0].mxu0
        %v3456 = vpop.f32.mrb[0].mxu0
        %v3457 = vadd.f32 0.0, %v3456
        %v3458 = vpop.f32.mrb[0].mxu0
        %3459 = vmatprep.mubr.bf16.mxu0 %v3238
        %3460 = vmatmul.mubr.bf16.gmra.mrb[0].mxu0 %v3237
        %v3461 = vpop.f32.mrb[0].mxu0
        %v3462 = vadd.f32 0.0, %v3461
        %v3463 = vpop.f32.mrb[0].mxu0
        %v3464 = vpop.f32.mrb[0].mxu0
        %v3465 = vadd.f32 0.0, %v3464
        %v3466 = vpop.f32.mrb[0].mxu0
        %3467 = vmatprep.mubr.bf16.mxu0 %v3240
        %3468 = vmatmul.mubr.bf16.gmra.mrb[0].mxu0 %v3239
        %v3469 = vpop.f32.mrb[0].mxu0
        %v3470 = vadd.f32 0.0, %v3469
        %v3471 = vpop.f32.mrb[0].mxu0
        %v3472 = vpop.f32.mrb[0].mxu0
        %v3473 = vadd.f32 0.0, %v3472
        %v3474 = vpop.f32.mrb[0].mxu0
        %3475 = vmatprep.mubr.bf16.mxu0 %v3242
        %3476 = vmatmul.mubr.bf16.gmra.mrb[0].mxu0 %v3241
        %v3477 = vpop.f32.mrb[0].mxu0
        %v3478 = vadd.f32 0.0, %v3477
        %v3479 = vpop.f32.mrb[0].mxu0
        %v3480 = vpop.f32.mrb[0].mxu0
        %v3481 = vadd.f32 0.0, %v3480
        %v3482 = vpop.f32.mrb[0].mxu0
        %3483 = vmatprep.mubr.bf16.mxu0 %v3244
        %3484 = vmatmul.mubr.bf16.gmra.mrb[0].mxu0 %v3243
        %v3485 = vpop.f32.mrb[0].mxu0
        %v3486 = vadd.f32 0.0, %v3485
        %v3487 = vpop.f32.mrb[0].mxu0
        %v3488 = vpop.f32.mrb[0].mxu0
        %v3489 = vadd.f32 0.0, %v3488
        %v3490 = vpop.f32.mrb[0].mxu0
        %3491 = vmatprep.mubr.bf16.mxu0 %v3246
        %3492 = vmatmul.mubr.bf16.gmra.mrb[0].mxu0 %v3245
        %v3493 = vpop.f32.mrb[0].mxu0
        %v3494 = vadd.f32 0.0, %v3493
        %v3495 = vpop.f32.mrb[0].mxu0
        %v3496 = vpop.f32.mrb[0].mxu0
        %v3497 = vadd.f32 0.0, %v3496
        %v3498 = vpop.f32.mrb[0].mxu0
        %3499 = vmatprep.mubr.bf16.mxu0 %v3248
        %3500 = vmatmul.mubr.bf16.gmra.mrb[0].mxu0 %v3247
        %v3501 = vpop.f32.mrb[0].mxu0
        %v3502 = vadd.f32 0.0, %v3501
        %v3503 = vpop.f32.mrb[0].mxu0
        %v3504 = vpop.f32.mrb[0].mxu0
        %v3505 = vadd.f32 0.0, %v3504
        %v3506 = vpop.f32.mrb[0].mxu0
        %3507 = vmatprep.mubr.bf16.mxu0 %v3250
        %3508 = vmatmul.mubr.bf16.gmra.mrb[0].mxu0 %v3249
        %v3509 = vpop.f32.mrb[0].mxu0
        %v3510 = vadd.f32 0.0, %v3509
        %v3511 = vpop.f32.mrb[0].mxu0
        %v3512 = vpop.f32.mrb[0].mxu0
        %v3513 = vadd.f32 0.0, %v3512
        %v3514 = vpop.f32.mrb[0].mxu0
        %3515 = vmatprep.mubr.bf16.mxu0 %v3252
        %3516 = vmatmul.mubr.bf16.gmra.mrb[0].mxu0 %v3251
        %v3517 = vpop.f32.mrb[0].mxu0
        %v3518 = vadd.f32 0.0, %v3517
        %v3519 = vpop.f32.mrb[0].mxu0
        %v3520 = vpop.f32.mrb[0].mxu0
        %v3521 = vadd.f32 0.0, %v3520
        %v3522 = vpop.f32.mrb[0].mxu0
        %3523 = vmatprep.mubr.bf16.mxu0 %v3254
        %3524 = vmatmul.mubr.bf16.gmra.mrb[0].mxu0 %v3253
        %v3525 = vpop.f32.mrb[0].mxu0
        %v3526 = vadd.f32 0.0, %v3525
        %v3527 = vpop.f32.mrb[0].mxu0
        %v3528 = vpop.f32.mrb[0].mxu0
        %v3529 = vadd.f32 0.0, %v3528
        %v3530 = vpop.f32.mrb[0].mxu0
        %3531 = vmatprep.mubr.bf16.mxu0 %v3256
        %3532 = vmatmul.mubr.bf16.gmra.mrb[0].mxu0 %v3255
        %v3533 = vpop.f32.mrb[0].mxu0
        %v3534 = vadd.f32 0.0, %v3533
        %v3535 = vpop.f32.mrb[0].mxu0
        %v3536 = vpop.f32.mrb[0].mxu0
        %v3537 = vadd.f32 0.0, %v3536
        %v3538 = vpop.f32.mrb[0].mxu0
        %3539 = vmatprep.mubr.bf16.mxu0 %v3258
        %3540 = vmatmul.mubr.bf16.gmra.mrb[0].mxu0 %v3257
        %v3541 = vpop.f32.mrb[0].mxu0
        %v3542 = vadd.f32 0.0, %v3541
        %v3543 = vpop.f32.mrb[0].mxu0
        %v3544 = vpop.f32.mrb[0].mxu0
        %v3545 = vadd.f32 0.0, %v3544
        %v3546 = vpop.f32.mrb[0].mxu0
        %3547 = vdwg.mxu0
        %v3548 = vld [vmem:[%s1326] sm:$0xff]
        %v3549 = vld [vmem:[%s1326 + $0x8] sm:$0xff]
        %v3550 = vld [vmem:[%s1326 + $0x10] sm:$0xff]
        %v3551 = vld [vmem:[%s1326 + $0x18] sm:$0xff]
        %v3552 = vld [vmem:[%s1326 + $0x20] sm:$0xff]
        %v3553 = vld [vmem:[%s1326 + $0x28] sm:$0xff]
        %v3554 = vld [vmem:[%s1326 + $0x30] sm:$0xff]
        %v3555 = vld [vmem:[%s1326 + $0x38] sm:$0xff]
        %v3556 = vld [vmem:[%s1326 + $0x40] sm:$0xff]
        %v3557 = vld [vmem:[%s1326 + $0x48] sm:$0xff]
        %v3558 = vld [vmem:[%s1326 + $0x50] sm:$0xff]
        %v3559 = vld [vmem:[%s1326 + $0x58] sm:$0xff]
        %v3560 = vld [vmem:[%s1326 + $0x60] sm:$0xff]
        %v3561 = vld [vmem:[%s1326 + $0x68] sm:$0xff]
        %v3562 = vld [vmem:[%s1326 + $0x70] sm:$0xff]
        %v3563 = vld [vmem:[%s1326 + $0x78] sm:$0xff]
        %v3564 = vld [vmem:[%s1326 + $0x80] sm:$0xff]
        %v3565 = vld [vmem:[%s1326 + $0x88] sm:$0xff]
        %v3566 = vld [vmem:[%s1326 + $0x90] sm:$0xff]
        %v3567 = vld [vmem:[%s1326 + $0x98] sm:$0xff]
        %v3568 = vld [vmem:[%s1326 + $0xa0] sm:$0xff]
        %v3569 = vld [vmem:[%s1326 + $0xa8] sm:$0xff]
        %v3570 = vld [vmem:[%s1326 + $0xb0] sm:$0xff]
        %v3571 = vld [vmem:[%s1326 + $0xb8] sm:$0xff]
        %v3572 = vld [vmem:[%s1326 + $0xc0] sm:$0xff]
        %v3573 = vld [vmem:[%s1326 + $0xc8] sm:$0xff]
        %v3574 = vld [vmem:[%s1326 + $0xd0] sm:$0xff]
        %v3575 = vld [vmem:[%s1326 + $0xd8] sm:$0xff]
        %v3576 = vld [vmem:[%s1326 + $0xe0] sm:$0xff]
        %v3577 = vld [vmem:[%s1326 + $0xe8] sm:$0xff]
        %v3578 = vld [vmem:[%s1326 + $0xf0] sm:$0xff]
        %v3579 = vld [vmem:[%s1326 + $0xf8] sm:$0xff]
        %v3580 = vadd.f32 %v3548, %v3422
        %v3581 = vadd.f32 %v3549, %v3425
        %v3582 = vadd.f32 %v3550, %v3430
        %v3583 = vadd.f32 %v3551, %v3433
        %v3584 = vadd.f32 %v3552, %v3438
        %v3585 = vadd.f32 %v3553, %v3441
        %v3586 = vadd.f32 %v3554, %v3446
        %v3587 = vadd.f32 %v3555, %v3449
        %v3588 = vadd.f32 %v3556, %v3454
        %v3589 = vadd.f32 %v3557, %v3457
        %v3590 = vadd.f32 %v3558, %v3462
        %v3591 = vadd.f32 %v3559, %v3465
        %v3592 = vadd.f32 %v3560, %v3470
        %v3593 = vadd.f32 %v3561, %v3473
        %v3594 = vadd.f32 %v3562, %v3478
        %v3595 = vadd.f32 %v3563, %v3481
        %v3596 = vadd.f32 %v3564, %v3486
        %v3597 = vadd.f32 %v3565, %v3489
        %v3598 = vadd.f32 %v3566, %v3494
        %v3599 = vadd.f32 %v3567, %v3497
        %v3600 = vadd.f32 %v3568, %v3502
        %v3601 = vadd.f32 %v3569, %v3505
        %v3602 = vadd.f32 %v3570, %v3510
        %v3603 = vadd.f32 %v3571, %v3513
        %v3604 = vadd.f32 %v3572, %v3518
        %v3605 = vadd.f32 %v3573, %v3521
        %v3606 = vadd.f32 %v3574, %v3526
        %v3607 = vadd.f32 %v3575, %v3529
        %v3608 = vadd.f32 %v3576, %v3534
        %v3609 = vadd.f32 %v3577, %v3537
        %v3610 = vadd.f32 %v3578, %v3542
        %v3611 = vadd.f32 %v3579, %v3545
        %3612 = vst [vmem:[%s1326] sm:$0xff] %v3580
        %3613 = vst [vmem:[%s1326 + $0x8] sm:$0xff] %v3581
        %3614 = vst [vmem:[%s1326 + $0x10] sm:$0xff] %v3582
        %3615 = vst [vmem:[%s1326 + $0x18] sm:$0xff] %v3583
        %3616 = vst [vmem:[%s1326 + $0x20] sm:$0xff] %v3584
        %3617 = vst [vmem:[%s1326 + $0x28] sm:$0xff] %v3585
        %3618 = vst [vmem:[%s1326 + $0x30] sm:$0xff] %v3586
        %3619 = vst [vmem:[%s1326 + $0x38] sm:$0xff] %v3587
        %3620 = vst [vmem:[%s1326 + $0x40] sm:$0xff] %v3588
        %3621 = vst [vmem:[%s1326 + $0x48] sm:$0xff] %v3589
        %3622 = vst [vmem:[%s1326 + $0x50] sm:$0xff] %v3590
        %3623 = vst [vmem:[%s1326 + $0x58] sm:$0xff] %v3591
        %3624 = vst [vmem:[%s1326 + $0x60] sm:$0xff] %v3592
        %3625 = vst [vmem:[%s1326 + $0x68] sm:$0xff] %v3593
        %3626 = vst [vmem:[%s1326 + $0x70] sm:$0xff] %v3594
        %3627 = vst [vmem:[%s1326 + $0x78] sm:$0xff] %v3595
        %3628 = vst [vmem:[%s1326 + $0x80] sm:$0xff] %v3596
        %3629 = vst [vmem:[%s1326 + $0x88] sm:$0xff] %v3597
        %3630 = vst [vmem:[%s1326 + $0x90] sm:$0xff] %v3598
        %3631 = vst [vmem:[%s1326 + $0x98] sm:$0xff] %v3599
        %3632 = vst [vmem:[%s1326 + $0xa0] sm:$0xff] %v3600
        %3633 = vst [vmem:[%s1326 + $0xa8] sm:$0xff] %v3601
        %3634 = vst [vmem:[%s1326 + $0xb0] sm:$0xff] %v3602
        %3635 = vst [vmem:[%s1326 + $0xb8] sm:$0xff] %v3603
        %3636 = vst [vmem:[%s1326 + $0xc0] sm:$0xff] %v3604
        %3637 = vst [vmem:[%s1326 + $0xc8] sm:$0xff] %v3605
        %3638 = vst [vmem:[%s1326 + $0xd0] sm:$0xff] %v3606
        %3639 = vst [vmem:[%s1326 + $0xd8] sm:$0xff] %v3607
        %3640 = vst [vmem:[%s1326 + $0xe0] sm:$0xff] %v3608
        %3641 = vst [vmem:[%s1326 + $0xe8] sm:$0xff] %v3609
        %3642 = vst [vmem:[%s1326 + $0xf0] sm:$0xff] %v3610
        %3643 = vst [vmem:[%s1326 + $0xf8] sm:$0xff] %v3611
        %s3644 = scalar_lea.vmem %s0, 768
        %v3645 = vld [vmem:[%s3644] sm:$0xff]
        %v3646 = vld [vmem:[%s3644 + $0x8] sm:$0xff]
        %v3647 = vld [vmem:[%s3644 + $0x10] sm:$0xff]
        %v3648 = vld [vmem:[%s3644 + $0x18] sm:$0xff]
        %v3649 = vld [vmem:[%s3644 + $0x20] sm:$0xff]
        %v3650 = vld [vmem:[%s3644 + $0x28] sm:$0xff]
        %v3651 = vld [vmem:[%s3644 + $0x30] sm:$0xff]
        %v3652 = vld [vmem:[%s3644 + $0x38] sm:$0xff]
        %v3653 = vld [vmem:[%s3644 + $0x40] sm:$0xff]
        %v3654 = vld [vmem:[%s3644 + $0x48] sm:$0xff]
        %v3655 = vld [vmem:[%s3644 + $0x50] sm:$0xff]
        %v3656 = vld [vmem:[%s3644 + $0x58] sm:$0xff]
        %v3657 = vld [vmem:[%s3644 + $0x60] sm:$0xff]
        %v3658 = vld [vmem:[%s3644 + $0x68] sm:$0xff]
        %v3659 = vld [vmem:[%s3644 + $0x70] sm:$0xff]
        %v3660 = vld [vmem:[%s3644 + $0x78] sm:$0xff]
        %v3661 = vld [vmem:[%s3644 + $0x80] sm:$0xff]
        %v3662 = vld [vmem:[%s3644 + $0x88] sm:$0xff]
        %v3663 = vld [vmem:[%s3644 + $0x90] sm:$0xff]
        %v3664 = vld [vmem:[%s3644 + $0x98] sm:$0xff]
        %v3665 = vld [vmem:[%s3644 + $0xa0] sm:$0xff]
        %v3666 = vld [vmem:[%s3644 + $0xa8] sm:$0xff]
        %v3667 = vld [vmem:[%s3644 + $0xb0] sm:$0xff]
        %v3668 = vld [vmem:[%s3644 + $0xb8] sm:$0xff]
        %v3669 = vld [vmem:[%s3644 + $0xc0] sm:$0xff]
        %v3670 = vld [vmem:[%s3644 + $0xc8] sm:$0xff]
        %v3671 = vld [vmem:[%s3644 + $0xd0] sm:$0xff]
        %v3672 = vld [vmem:[%s3644 + $0xd8] sm:$0xff]
        %v3673 = vld [vmem:[%s3644 + $0xe0] sm:$0xff]
        %v3674 = vld [vmem:[%s3644 + $0xe8] sm:$0xff]
        %v3675 = vld [vmem:[%s3644 + $0xf0] sm:$0xff]
        %v3676 = vld [vmem:[%s3644 + $0xf8] sm:$0xff]
        %s3677 = scalar_lea.vmem %s1309, 512 [#allocation2]
        %v3678 = vld [vmem:[%s3677] sm:$0xf]
        %v3679 = vld [vmem:[%s3677 + $0x4] sm:$0xf]
        %v3680 = vld [vmem:[%s3677 + $0x8] sm:$0xf]
        %v3681 = vld [vmem:[%s3677 + $0xc] sm:$0xf]
        %v3682 = vld [vmem:[%s3677 + $0x10] sm:$0xf]
        %v3683 = vld [vmem:[%s3677 + $0x14] sm:$0xf]
        %v3684 = vld [vmem:[%s3677 + $0x18] sm:$0xf]
        %v3685 = vld [vmem:[%s3677 + $0x1c] sm:$0xf]
        %v3686 = vld [vmem:[%s3677 + $0x20] sm:$0xf]
        %v3687 = vld [vmem:[%s3677 + $0x24] sm:$0xf]
        %v3688 = vld [vmem:[%s3677 + $0x28] sm:$0xf]
        %v3689 = vld [vmem:[%s3677 + $0x2c] sm:$0xf]
        %v3690 = vld [vmem:[%s3677 + $0x30] sm:$0xf]
        %v3691 = vld [vmem:[%s3677 + $0x34] sm:$0xf]
        %v3692 = vld [vmem:[%s3677 + $0x38] sm:$0xf]
        %v3693 = vld [vmem:[%s3677 + $0x3c] sm:$0xf]
        %v3694 = vld [vmem:[%s3677 + $0x40] sm:$0xf]
        %v3695 = vld [vmem:[%s3677 + $0x44] sm:$0xf]
        %v3696 = vld [vmem:[%s3677 + $0x48] sm:$0xf]
        %v3697 = vld [vmem:[%s3677 + $0x4c] sm:$0xf]
        %v3698 = vld [vmem:[%s3677 + $0x50] sm:$0xf]
        %v3699 = vld [vmem:[%s3677 + $0x54] sm:$0xf]
        %v3700 = vld [vmem:[%s3677 + $0x58] sm:$0xf]
        %v3701 = vld [vmem:[%s3677 + $0x5c] sm:$0xf]
        %v3702 = vld [vmem:[%s3677 + $0x60] sm:$0xf]
        %v3703 = vld [vmem:[%s3677 + $0x64] sm:$0xf]
        %v3704 = vld [vmem:[%s3677 + $0x68] sm:$0xf]
        %v3705 = vld [vmem:[%s3677 + $0x6c] sm:$0xf]
        %v3706 = vld [vmem:[%s3677 + $0x70] sm:$0xf]
        %v3707 = vld [vmem:[%s3677 + $0x74] sm:$0xf]
        %v3708 = vld [vmem:[%s3677 + $0x78] sm:$0xf]
        %v3709 = vld [vmem:[%s3677 + $0x7c] sm:$0xf]
        %v3742 = vunpack.c.l.b16 %v3645
        %v3743 = vunpack.c.h.b16 %v3645
        %v3744 = vunpack.c.l.b16 %v3646
        %v3745 = vunpack.c.h.b16 %v3646
        %v3746 = vunpack.c.l.b16 %v3647
        %v3747 = vunpack.c.h.b16 %v3647
        %v3748 = vunpack.c.l.b16 %v3648
        %v3749 = vunpack.c.h.b16 %v3648
        %v3750 = vunpack.c.l.b16 %v3649
        %v3751 = vunpack.c.h.b16 %v3649
        %v3752 = vunpack.c.l.b16 %v3650
        %v3753 = vunpack.c.h.b16 %v3650
        %v3754 = vunpack.c.l.b16 %v3651
        %v3755 = vunpack.c.h.b16 %v3651
        %v3756 = vunpack.c.l.b16 %v3652
        %v3757 = vunpack.c.h.b16 %v3652
        %v3758 = vunpack.c.l.b16 %v3653
        %v3759 = vunpack.c.h.b16 %v3653
        %v3760 = vunpack.c.l.b16 %v3654
        %v3761 = vunpack.c.h.b16 %v3654
        %v3762 = vunpack.c.l.b16 %v3655
        %v3763 = vunpack.c.h.b16 %v3655
        %v3764 = vunpack.c.l.b16 %v3656
        %v3765 = vunpack.c.h.b16 %v3656
        %v3766 = vunpack.c.l.b16 %v3657
        %v3767 = vunpack.c.h.b16 %v3657
        %v3768 = vunpack.c.l.b16 %v3658
        %v3769 = vunpack.c.h.b16 %v3658
        %v3770 = vunpack.c.l.b16 %v3659
        %v3771 = vunpack.c.h.b16 %v3659
        %v3772 = vunpack.c.l.b16 %v3660
        %v3773 = vunpack.c.h.b16 %v3660
        %v3774 = vunpack.c.l.b16 %v3661
        %v3775 = vunpack.c.h.b16 %v3661
        %v3776 = vunpack.c.l.b16 %v3662
        %v3777 = vunpack.c.h.b16 %v3662
        %v3778 = vunpack.c.l.b16 %v3663
        %v3779 = vunpack.c.h.b16 %v3663
        %v3780 = vunpack.c.l.b16 %v3664
        %v3781 = vunpack.c.h.b16 %v3664
        %v3782 = vunpack.c.l.b16 %v3665
        %v3783 = vunpack.c.h.b16 %v3665
        %v3784 = vunpack.c.l.b16 %v3666
        %v3785 = vunpack.c.h.b16 %v3666
        %v3786 = vunpack.c.l.b16 %v3667
        %v3787 = vunpack.c.h.b16 %v3667
        %v3788 = vunpack.c.l.b16 %v3668
        %v3789 = vunpack.c.h.b16 %v3668
        %v3790 = vunpack.c.l.b16 %v3669
        %v3791 = vunpack.c.h.b16 %v3669
        %v3792 = vunpack.c.l.b16 %v3670
        %v3793 = vunpack.c.h.b16 %v3670
        %v3794 = vunpack.c.l.b16 %v3671
        %v3795 = vunpack.c.h.b16 %v3671
        %v3796 = vunpack.c.l.b16 %v3672
        %v3797 = vunpack.c.h.b16 %v3672
        %v3798 = vunpack.c.l.b16 %v3673
        %v3799 = vunpack.c.h.b16 %v3673
        %v3800 = vunpack.c.l.b16 %v3674
        %v3801 = vunpack.c.h.b16 %v3674
        %v3802 = vunpack.c.l.b16 %v3675
        %v3803 = vunpack.c.h.b16 %v3675
        %v3804 = vunpack.c.l.b16 %v3676
        %v3805 = vunpack.c.h.b16 %v3676
        %v3806 = vpack.c.b16 %v3744, %v3742
        %v3807 = vpack.c.b16 %v3745, %v3743
        %v3808 = vpack.c.b16 %v3748, %v3746
        %v3809 = vpack.c.b16 %v3749, %v3747
        %v3810 = vpack.c.b16 %v3752, %v3750
        %v3811 = vpack.c.b16 %v3753, %v3751
        %v3812 = vpack.c.b16 %v3756, %v3754
        %v3813 = vpack.c.b16 %v3757, %v3755
        %v3814 = vpack.c.b16 %v3760, %v3758
        %v3815 = vpack.c.b16 %v3761, %v3759
        %v3816 = vpack.c.b16 %v3764, %v3762
        %v3817 = vpack.c.b16 %v3765, %v3763
        %v3818 = vpack.c.b16 %v3768, %v3766
        %v3819 = vpack.c.b16 %v3769, %v3767
        %v3820 = vpack.c.b16 %v3772, %v3770
        %v3821 = vpack.c.b16 %v3773, %v3771
        %v3822 = vpack.c.b16 %v3776, %v3774
        %v3823 = vpack.c.b16 %v3777, %v3775
        %v3824 = vpack.c.b16 %v3780, %v3778
        %v3825 = vpack.c.b16 %v3781, %v3779
        %v3826 = vpack.c.b16 %v3784, %v3782
        %v3827 = vpack.c.b16 %v3785, %v3783
        %v3828 = vpack.c.b16 %v3788, %v3786
        %v3829 = vpack.c.b16 %v3789, %v3787
        %v3830 = vpack.c.b16 %v3792, %v3790
        %v3831 = vpack.c.b16 %v3793, %v3791
        %v3832 = vpack.c.b16 %v3796, %v3794
        %v3833 = vpack.c.b16 %v3797, %v3795
        %v3834 = vpack.c.b16 %v3800, %v3798
        %v3835 = vpack.c.b16 %v3801, %v3799
        %v3836 = vpack.c.b16 %v3804, %v3802
        %v3837 = vpack.c.b16 %v3805, %v3803
        %v3902 = vunpack.c.l.b16 %v3678
        %v3903 = vunpack.c.l.b16 %v3679
        %v3904 = vunpack.c.l.b16 %v3680
        %v3905 = vunpack.c.l.b16 %v3681
        %v3906 = vunpack.c.l.b16 %v3682
        %v3907 = vunpack.c.l.b16 %v3683
        %v3908 = vunpack.c.l.b16 %v3684
        %v3909 = vunpack.c.l.b16 %v3685
        %v3910 = vunpack.c.l.b16 %v3686
        %v3911 = vunpack.c.l.b16 %v3687
        %v3912 = vunpack.c.l.b16 %v3688
        %v3913 = vunpack.c.l.b16 %v3689
        %v3914 = vunpack.c.l.b16 %v3690
        %v3915 = vunpack.c.l.b16 %v3691
        %v3916 = vunpack.c.l.b16 %v3692
        %v3917 = vunpack.c.l.b16 %v3693
        %v3918 = vunpack.c.l.b16 %v3694
        %v3919 = vunpack.c.l.b16 %v3695
        %v3920 = vunpack.c.l.b16 %v3696
        %v3921 = vunpack.c.l.b16 %v3697
        %v3922 = vunpack.c.l.b16 %v3698
        %v3923 = vunpack.c.l.b16 %v3699
        %v3924 = vunpack.c.l.b16 %v3700
        %v3925 = vunpack.c.l.b16 %v3701
        %v3926 = vunpack.c.l.b16 %v3702
        %v3927 = vunpack.c.l.b16 %v3703
        %v3928 = vunpack.c.l.b16 %v3704
        %v3929 = vunpack.c.l.b16 %v3705
        %v3930 = vunpack.c.l.b16 %v3706
        %v3931 = vunpack.c.l.b16 %v3707
        %v3932 = vunpack.c.l.b16 %v3708
        %v3933 = vunpack.c.l.b16 %v3709
        %v3934 = vpack.c.b16 %v3903, %v3902
        %v3935 = vpack.c.b16 %v3905, %v3904
        %v3936 = vpack.c.b16 %v3907, %v3906
        %v3937 = vpack.c.b16 %v3909, %v3908
        %v3938 = vpack.c.b16 %v3911, %v3910
        %v3939 = vpack.c.b16 %v3913, %v3912
        %v3940 = vpack.c.b16 %v3915, %v3914
        %v3941 = vpack.c.b16 %v3917, %v3916
        %v3942 = vpack.c.b16 %v3919, %v3918
        %v3943 = vpack.c.b16 %v3921, %v3920
        %v3944 = vpack.c.b16 %v3923, %v3922
        %v3945 = vpack.c.b16 %v3925, %v3924
        %v3946 = vpack.c.b16 %v3927, %v3926
        %v3947 = vpack.c.b16 %v3929, %v3928
        %v3948 = vpack.c.b16 %v3931, %v3930
        %v3949 = vpack.c.b16 %v3933, %v3932
        %3966 = vmatprep.subr.bf16.mxu0 0
        %3967 = vmatpush1.bf16.msra.mxu0 %v3934
        %3968 = vmatprep.subr.bf16.mxu0 0
        %3969 = vmatpush1.bf16.msra.mxu0 %v3935
        %3970 = vmatprep.subr.bf16.mxu0 0
        %3971 = vmatpush1.bf16.msra.mxu0 %v3936
        %3972 = vmatprep.subr.bf16.mxu0 0
        %3973 = vmatpush1.bf16.msra.mxu0 %v3937
        %3974 = vmatprep.subr.bf16.mxu0 0
        %3975 = vmatpush1.bf16.msra.mxu0 %v3938
        %3976 = vmatprep.subr.bf16.mxu0 0
        %3977 = vmatpush1.bf16.msra.mxu0 %v3939
        %3978 = vmatprep.subr.bf16.mxu0 0
        %3979 = vmatpush1.bf16.msra.mxu0 %v3940
        %3980 = vmatprep.subr.bf16.mxu0 0
        %3981 = vmatpush1.bf16.msra.mxu0 %v3941
        %3982 = vmatprep.subr.bf16.mxu0 0
        %3983 = vmatpush1.bf16.msra.mxu0 %v3942
        %3984 = vmatprep.subr.bf16.mxu0 0
        %3985 = vmatpush1.bf16.msra.mxu0 %v3943
        %3986 = vmatprep.subr.bf16.mxu0 0
        %3987 = vmatpush1.bf16.msra.mxu0 %v3944
        %3988 = vmatprep.subr.bf16.mxu0 0
        %3989 = vmatpush1.bf16.msra.mxu0 %v3945
        %3990 = vmatprep.subr.bf16.mxu0 0
        %3991 = vmatpush1.bf16.msra.mxu0 %v3946
        %3992 = vmatprep.subr.bf16.mxu0 0
        %3993 = vmatpush1.bf16.msra.mxu0 %v3947
        %3994 = vmatprep.subr.bf16.mxu0 0
        %3995 = vmatpush1.bf16.msra.mxu0 %v3948
        %3996 = vmatprep.subr.bf16.mxu0 0
        %3997 = vmatpush1.bf16.msra.mxu0 %v3949
        %3998 = vmatprep.mubr.bf16.mxu0 %v3807
        %3999 = vmatmul.mubr.bf16.gmra.mrb[0].mxu0 %v3806
        %v4000 = vpop.f32.mrb[0].mxu0
        %v4001 = vadd.f32 0.0, %v4000
        %v4002 = vpop.f32.mrb[0].mxu0
        %v4003 = vpop.f32.mrb[0].mxu0
        %v4004 = vadd.f32 0.0, %v4003
        %v4005 = vpop.f32.mrb[0].mxu0
        %4006 = vmatprep.mubr.bf16.mxu0 %v3809
        %4007 = vmatmul.mubr.bf16.gmra.mrb[0].mxu0 %v3808
        %v4008 = vpop.f32.mrb[0].mxu0
        %v4009 = vadd.f32 0.0, %v4008
        %v4010 = vpop.f32.mrb[0].mxu0
        %v4011 = vpop.f32.mrb[0].mxu0
        %v4012 = vadd.f32 0.0, %v4011
        %v4013 = vpop.f32.mrb[0].mxu0
        %4014 = vmatprep.mubr.bf16.mxu0 %v3811
        %4015 = vmatmul.mubr.bf16.gmra.mrb[0].mxu0 %v3810
        %v4016 = vpop.f32.mrb[0].mxu0
        %v4017 = vadd.f32 0.0, %v4016
        %v4018 = vpop.f32.mrb[0].mxu0
        %v4019 = vpop.f32.mrb[0].mxu0
        %v4020 = vadd.f32 0.0, %v4019
        %v4021 = vpop.f32.mrb[0].mxu0
        %4022 = vmatprep.mubr.bf16.mxu0 %v3813
        %4023 = vmatmul.mubr.bf16.gmra.mrb[0].mxu0 %v3812
        %v4024 = vpop.f32.mrb[0].mxu0
        %v4025 = vadd.f32 0.0, %v4024
        %v4026 = vpop.f32.mrb[0].mxu0
        %v4027 = vpop.f32.mrb[0].mxu0
        %v4028 = vadd.f32 0.0, %v4027
        %v4029 = vpop.f32.mrb[0].mxu0
        %4030 = vmatprep.mubr.bf16.mxu0 %v3815
        %4031 = vmatmul.mubr.bf16.gmra.mrb[0].mxu0 %v3814
        %v4032 = vpop.f32.mrb[0].mxu0
        %v4033 = vadd.f32 0.0, %v4032
        %v4034 = vpop.f32.mrb[0].mxu0
        %v4035 = vpop.f32.mrb[0].mxu0
        %v4036 = vadd.f32 0.0, %v4035
        %v4037 = vpop.f32.mrb[0].mxu0
        %4038 = vmatprep.mubr.bf16.mxu0 %v3817
        %4039 = vmatmul.mubr.bf16.gmra.mrb[0].mxu0 %v3816
        %v4040 = vpop.f32.mrb[0].mxu0
        %v4041 = vadd.f32 0.0, %v4040
        %v4042 = vpop.f32.mrb[0].mxu0
        %v4043 = vpop.f32.mrb[0].mxu0
        %v4044 = vadd.f32 0.0, %v4043
        %v4045 = vpop.f32.mrb[0].mxu0
        %4046 = vmatprep.mubr.bf16.mxu0 %v3819
        %4047 = vmatmul.mubr.bf16.gmra.mrb[0].mxu0 %v3818
        %v4048 = vpop.f32.mrb[0].mxu0
        %v4049 = vadd.f32 0.0, %v4048
        %v4050 = vpop.f32.mrb[0].mxu0
        %v4051 = vpop.f32.mrb[0].mxu0
        %v4052 = vadd.f32 0.0, %v4051
        %v4053 = vpop.f32.mrb[0].mxu0
        %4054 = vmatprep.mubr.bf16.mxu0 %v3821
        %4055 = vmatmul.mubr.bf16.gmra.mrb[0].mxu0 %v3820
        %v4056 = vpop.f32.mrb[0].mxu0
        %v4057 = vadd.f32 0.0, %v4056
        %v4058 = vpop.f32.mrb[0].mxu0
        %v4059 = vpop.f32.mrb[0].mxu0
        %v4060 = vadd.f32 0.0, %v4059
        %v4061 = vpop.f32.mrb[0].mxu0
        %4062 = vmatprep.mubr.bf16.mxu0 %v3823
        %4063 = vmatmul.mubr.bf16.gmra.mrb[0].mxu0 %v3822
        %v4064 = vpop.f32.mrb[0].mxu0
        %v4065 = vadd.f32 0.0, %v4064
        %v4066 = vpop.f32.mrb[0].mxu0
        %v4067 = vpop.f32.mrb[0].mxu0
        %v4068 = vadd.f32 0.0, %v4067
        %v4069 = vpop.f32.mrb[0].mxu0
        %4070 = vmatprep.mubr.bf16.mxu0 %v3825
        %4071 = vmatmul.mubr.bf16.gmra.mrb[0].mxu0 %v3824
        %v4072 = vpop.f32.mrb[0].mxu0
        %v4073 = vadd.f32 0.0, %v4072
        %v4074 = vpop.f32.mrb[0].mxu0
        %v4075 = vpop.f32.mrb[0].mxu0
        %v4076 = vadd.f32 0.0, %v4075
        %v4077 = vpop.f32.mrb[0].mxu0
        %4078 = vmatprep.mubr.bf16.mxu0 %v3827
        %4079 = vmatmul.mubr.bf16.gmra.mrb[0].mxu0 %v3826
        %v4080 = vpop.f32.mrb[0].mxu0
        %v4081 = vadd.f32 0.0, %v4080
        %v4082 = vpop.f32.mrb[0].mxu0
        %v4083 = vpop.f32.mrb[0].mxu0
        %v4084 = vadd.f32 0.0, %v4083
        %v4085 = vpop.f32.mrb[0].mxu0
        %4086 = vmatprep.mubr.bf16.mxu0 %v3829
        %4087 = vmatmul.mubr.bf16.gmra.mrb[0].mxu0 %v3828
        %v4088 = vpop.f32.mrb[0].mxu0
        %v4089 = vadd.f32 0.0, %v4088
        %v4090 = vpop.f32.mrb[0].mxu0
        %v4091 = vpop.f32.mrb[0].mxu0
        %v4092 = vadd.f32 0.0, %v4091
        %v4093 = vpop.f32.mrb[0].mxu0
        %4094 = vmatprep.mubr.bf16.mxu0 %v3831
        %4095 = vmatmul.mubr.bf16.gmra.mrb[0].mxu0 %v3830
        %v4096 = vpop.f32.mrb[0].mxu0
        %v4097 = vadd.f32 0.0, %v4096
        %v4098 = vpop.f32.mrb[0].mxu0
        %v4099 = vpop.f32.mrb[0].mxu0
        %v4100 = vadd.f32 0.0, %v4099
        %v4101 = vpop.f32.mrb[0].mxu0
        %4102 = vmatprep.mubr.bf16.mxu0 %v3833
        %4103 = vmatmul.mubr.bf16.gmra.mrb[0].mxu0 %v3832
        %v4104 = vpop.f32.mrb[0].mxu0
        %v4105 = vadd.f32 0.0, %v4104
        %v4106 = vpop.f32.mrb[0].mxu0
        %v4107 = vpop.f32.mrb[0].mxu0
        %v4108 = vadd.f32 0.0, %v4107
        %v4109 = vpop.f32.mrb[0].mxu0
        %4110 = vmatprep.mubr.bf16.mxu0 %v3835
        %4111 = vmatmul.mubr.bf16.gmra.mrb[0].mxu0 %v3834
        %v4112 = vpop.f32.mrb[0].mxu0
        %v4113 = vadd.f32 0.0, %v4112
        %v4114 = vpop.f32.mrb[0].mxu0
        %v4115 = vpop.f32.mrb[0].mxu0
        %v4116 = vadd.f32 0.0, %v4115
        %v4117 = vpop.f32.mrb[0].mxu0
        %4118 = vmatprep.mubr.bf16.mxu0 %v3837
        %4119 = vmatmul.mubr.bf16.gmra.mrb[0].mxu0 %v3836
        %v4120 = vpop.f32.mrb[0].mxu0
        %v4121 = vadd.f32 0.0, %v4120
        %v4122 = vpop.f32.mrb[0].mxu0
        %v4123 = vpop.f32.mrb[0].mxu0
        %v4124 = vadd.f32 0.0, %v4123
        %v4125 = vpop.f32.mrb[0].mxu0
        %4126 = vdwg.mxu0
        %v4127 = vld [vmem:[%s1326] sm:$0xff]
        %v4128 = vld [vmem:[%s1326 + $0x8] sm:$0xff]
        %v4129 = vld [vmem:[%s1326 + $0x10] sm:$0xff]
        %v4130 = vld [vmem:[%s1326 + $0x18] sm:$0xff]
        %v4131 = vld [vmem:[%s1326 + $0x20] sm:$0xff]
        %v4132 = vld [vmem:[%s1326 + $0x28] sm:$0xff]
        %v4133 = vld [vmem:[%s1326 + $0x30] sm:$0xff]
        %v4134 = vld [vmem:[%s1326 + $0x38] sm:$0xff]
        %v4135 = vld [vmem:[%s1326 + $0x40] sm:$0xff]
        %v4136 = vld [vmem:[%s1326 + $0x48] sm:$0xff]
        %v4137 = vld [vmem:[%s1326 + $0x50] sm:$0xff]
        %v4138 = vld [vmem:[%s1326 + $0x58] sm:$0xff]
        %v4139 = vld [vmem:[%s1326 + $0x60] sm:$0xff]
        %v4140 = vld [vmem:[%s1326 + $0x68] sm:$0xff]
        %v4141 = vld [vmem:[%s1326 + $0x70] sm:$0xff]
        %v4142 = vld [vmem:[%s1326 + $0x78] sm:$0xff]
        %v4143 = vld [vmem:[%s1326 + $0x80] sm:$0xff]
        %v4144 = vld [vmem:[%s1326 + $0x88] sm:$0xff]
        %v4145 = vld [vmem:[%s1326 + $0x90] sm:$0xff]
        %v4146 = vld [vmem:[%s1326 + $0x98] sm:$0xff]
        %v4147 = vld [vmem:[%s1326 + $0xa0] sm:$0xff]
        %v4148 = vld [vmem:[%s1326 + $0xa8] sm:$0xff]
        %v4149 = vld [vmem:[%s1326 + $0xb0] sm:$0xff]
        %v4150 = vld [vmem:[%s1326 + $0xb8] sm:$0xff]
        %v4151 = vld [vmem:[%s1326 + $0xc0] sm:$0xff]
        %v4152 = vld [vmem:[%s1326 + $0xc8] sm:$0xff]
        %v4153 = vld [vmem:[%s1326 + $0xd0] sm:$0xff]
        %v4154 = vld [vmem:[%s1326 + $0xd8] sm:$0xff]
        %v4155 = vld [vmem:[%s1326 + $0xe0] sm:$0xff]
        %v4156 = vld [vmem:[%s1326 + $0xe8] sm:$0xff]
        %v4157 = vld [vmem:[%s1326 + $0xf0] sm:$0xff]
        %v4158 = vld [vmem:[%s1326 + $0xf8] sm:$0xff]
        %v4159 = vadd.f32 %v4127, %v4001
        %v4160 = vadd.f32 %v4128, %v4004
        %v4161 = vadd.f32 %v4129, %v4009
        %v4162 = vadd.f32 %v4130, %v4012
        %v4163 = vadd.f32 %v4131, %v4017
        %v4164 = vadd.f32 %v4132, %v4020
        %v4165 = vadd.f32 %v4133, %v4025
        %v4166 = vadd.f32 %v4134, %v4028
        %v4167 = vadd.f32 %v4135, %v4033
        %v4168 = vadd.f32 %v4136, %v4036
        %v4169 = vadd.f32 %v4137, %v4041
        %v4170 = vadd.f32 %v4138, %v4044
        %v4171 = vadd.f32 %v4139, %v4049
        %v4172 = vadd.f32 %v4140, %v4052
        %v4173 = vadd.f32 %v4141, %v4057
        %v4174 = vadd.f32 %v4142, %v4060
        %v4175 = vadd.f32 %v4143, %v4065
        %v4176 = vadd.f32 %v4144, %v4068
        %v4177 = vadd.f32 %v4145, %v4073
        %v4178 = vadd.f32 %v4146, %v4076
        %v4179 = vadd.f32 %v4147, %v4081
        %v4180 = vadd.f32 %v4148, %v4084
        %v4181 = vadd.f32 %v4149, %v4089
        %v4182 = vadd.f32 %v4150, %v4092
        %v4183 = vadd.f32 %v4151, %v4097
        %v4184 = vadd.f32 %v4152, %v4100
        %v4185 = vadd.f32 %v4153, %v4105
        %v4186 = vadd.f32 %v4154, %v4108
        %v4187 = vadd.f32 %v4155, %v4113
        %v4188 = vadd.f32 %v4156, %v4116
        %v4189 = vadd.f32 %v4157, %v4121
        %v4190 = vadd.f32 %v4158, %v4124
        %4191 = vst [vmem:[%s1326] sm:$0xff] %v4159
        %4192 = vst [vmem:[%s1326 + $0x8] sm:$0xff] %v4160
        %4193 = vst [vmem:[%s1326 + $0x10] sm:$0xff] %v4161
        %4194 = vst [vmem:[%s1326 + $0x18] sm:$0xff] %v4162
        %4195 = vst [vmem:[%s1326 + $0x20] sm:$0xff] %v4163
        %4196 = vst [vmem:[%s1326 + $0x28] sm:$0xff] %v4164
        %4197 = vst [vmem:[%s1326 + $0x30] sm:$0xff] %v4165
        %4198 = vst [vmem:[%s1326 + $0x38] sm:$0xff] %v4166
        %4199 = vst [vmem:[%s1326 + $0x40] sm:$0xff] %v4167
        %4200 = vst [vmem:[%s1326 + $0x48] sm:$0xff] %v4168
        %4201 = vst [vmem:[%s1326 + $0x50] sm:$0xff] %v4169
        %4202 = vst [vmem:[%s1326 + $0x58] sm:$0xff] %v4170
        %4203 = vst [vmem:[%s1326 + $0x60] sm:$0xff] %v4171
        %4204 = vst [vmem:[%s1326 + $0x68] sm:$0xff] %v4172
        %4205 = vst [vmem:[%s1326 + $0x70] sm:$0xff] %v4173
        %4206 = vst [vmem:[%s1326 + $0x78] sm:$0xff] %v4174
        %4207 = vst [vmem:[%s1326 + $0x80] sm:$0xff] %v4175
        %4208 = vst [vmem:[%s1326 + $0x88] sm:$0xff] %v4176
        %4209 = vst [vmem:[%s1326 + $0x90] sm:$0xff] %v4177
        %4210 = vst [vmem:[%s1326 + $0x98] sm:$0xff] %v4178
        %4211 = vst [vmem:[%s1326 + $0xa0] sm:$0xff] %v4179
        %4212 = vst [vmem:[%s1326 + $0xa8] sm:$0xff] %v4180
        %4213 = vst [vmem:[%s1326 + $0xb0] sm:$0xff] %v4181
        %4214 = vst [vmem:[%s1326 + $0xb8] sm:$0xff] %v4182
        %4215 = vst [vmem:[%s1326 + $0xc0] sm:$0xff] %v4183
        %4216 = vst [vmem:[%s1326 + $0xc8] sm:$0xff] %v4184
        %4217 = vst [vmem:[%s1326 + $0xd0] sm:$0xff] %v4185
        %4218 = vst [vmem:[%s1326 + $0xd8] sm:$0xff] %v4186
        %4219 = vst [vmem:[%s1326 + $0xe0] sm:$0xff] %v4187
        %4220 = vst [vmem:[%s1326 + $0xe8] sm:$0xff] %v4188
        %4221 = vst [vmem:[%s1326 + $0xf0] sm:$0xff] %v4189
        %4222 = vst [vmem:[%s1326 + $0xf8] sm:$0xff] %v4190
        %v4223 = vld [vmem:[%s3065] sm:$0xff]
        %v4224 = vld [vmem:[%s3065 + $0x8] sm:$0xff]
        %v4225 = vld [vmem:[%s3065 + $0x10] sm:$0xff]
        %v4226 = vld [vmem:[%s3065 + $0x18] sm:$0xff]
        %v4227 = vld [vmem:[%s3065 + $0x20] sm:$0xff]
        %v4228 = vld [vmem:[%s3065 + $0x28] sm:$0xff]
        %v4229 = vld [vmem:[%s3065 + $0x30] sm:$0xff]
        %v4230 = vld [vmem:[%s3065 + $0x38] sm:$0xff]
        %v4231 = vld [vmem:[%s3065 + $0x40] sm:$0xff]
        %v4232 = vld [vmem:[%s3065 + $0x48] sm:$0xff]
        %v4233 = vld [vmem:[%s3065 + $0x50] sm:$0xff]
        %v4234 = vld [vmem:[%s3065 + $0x58] sm:$0xff]
        %v4235 = vld [vmem:[%s3065 + $0x60] sm:$0xff]
        %v4236 = vld [vmem:[%s3065 + $0x68] sm:$0xff]
        %v4237 = vld [vmem:[%s3065 + $0x70] sm:$0xff]
        %v4238 = vld [vmem:[%s3065 + $0x78] sm:$0xff]
        %v4239 = vld [vmem:[%s3065 + $0x80] sm:$0xff]
        %v4240 = vld [vmem:[%s3065 + $0x88] sm:$0xff]
        %v4241 = vld [vmem:[%s3065 + $0x90] sm:$0xff]
        %v4242 = vld [vmem:[%s3065 + $0x98] sm:$0xff]
        %v4243 = vld [vmem:[%s3065 + $0xa0] sm:$0xff]
        %v4244 = vld [vmem:[%s3065 + $0xa8] sm:$0xff]
        %v4245 = vld [vmem:[%s3065 + $0xb0] sm:$0xff]
        %v4246 = vld [vmem:[%s3065 + $0xb8] sm:$0xff]
        %v4247 = vld [vmem:[%s3065 + $0xc0] sm:$0xff]
        %v4248 = vld [vmem:[%s3065 + $0xc8] sm:$0xff]
        %v4249 = vld [vmem:[%s3065 + $0xd0] sm:$0xff]
        %v4250 = vld [vmem:[%s3065 + $0xd8] sm:$0xff]
        %v4251 = vld [vmem:[%s3065 + $0xe0] sm:$0xff]
        %v4252 = vld [vmem:[%s3065 + $0xe8] sm:$0xff]
        %v4253 = vld [vmem:[%s3065 + $0xf0] sm:$0xff]
        %v4254 = vld [vmem:[%s3065 + $0xf8] sm:$0xff]
        %s4255 = scalar_lea.vmem %s1309, 640 [#allocation2]
        %v4256 = vld [vmem:[%s4255] sm:$0xf]
        %v4257 = vld [vmem:[%s4255 + $0x4] sm:$0xf]
        %v4258 = vld [vmem:[%s4255 + $0x8] sm:$0xf]
        %v4259 = vld [vmem:[%s4255 + $0xc] sm:$0xf]
        %v4260 = vld [vmem:[%s4255 + $0x10] sm:$0xf]
        %v4261 = vld [vmem:[%s4255 + $0x14] sm:$0xf]
        %v4262 = vld [vmem:[%s4255 + $0x18] sm:$0xf]
        %v4263 = vld [vmem:[%s4255 + $0x1c] sm:$0xf]
        %v4264 = vld [vmem:[%s4255 + $0x20] sm:$0xf]
        %v4265 = vld [vmem:[%s4255 + $0x24] sm:$0xf]
        %v4266 = vld [vmem:[%s4255 + $0x28] sm:$0xf]
        %v4267 = vld [vmem:[%s4255 + $0x2c] sm:$0xf]
        %v4268 = vld [vmem:[%s4255 + $0x30] sm:$0xf]
        %v4269 = vld [vmem:[%s4255 + $0x34] sm:$0xf]
        %v4270 = vld [vmem:[%s4255 + $0x38] sm:$0xf]
        %v4271 = vld [vmem:[%s4255 + $0x3c] sm:$0xf]
        %v4272 = vld [vmem:[%s4255 + $0x40] sm:$0xf]
        %v4273 = vld [vmem:[%s4255 + $0x44] sm:$0xf]
        %v4274 = vld [vmem:[%s4255 + $0x48] sm:$0xf]
        %v4275 = vld [vmem:[%s4255 + $0x4c] sm:$0xf]
        %v4276 = vld [vmem:[%s4255 + $0x50] sm:$0xf]
        %v4277 = vld [vmem:[%s4255 + $0x54] sm:$0xf]
        %v4278 = vld [vmem:[%s4255 + $0x58] sm:$0xf]
        %v4279 = vld [vmem:[%s4255 + $0x5c] sm:$0xf]
        %v4280 = vld [vmem:[%s4255 + $0x60] sm:$0xf]
        %v4281 = vld [vmem:[%s4255 + $0x64] sm:$0xf]
        %v4282 = vld [vmem:[%s4255 + $0x68] sm:$0xf]
        %v4283 = vld [vmem:[%s4255 + $0x6c] sm:$0xf]
        %v4284 = vld [vmem:[%s4255 + $0x70] sm:$0xf]
        %v4285 = vld [vmem:[%s4255 + $0x74] sm:$0xf]
        %v4286 = vld [vmem:[%s4255 + $0x78] sm:$0xf]
        %v4287 = vld [vmem:[%s4255 + $0x7c] sm:$0xf]
        %v4320 = vunpack.c.l.b16 %v4223
        %v4321 = vunpack.c.h.b16 %v4223
        %v4322 = vunpack.c.l.b16 %v4224
        %v4323 = vunpack.c.h.b16 %v4224
        %v4324 = vunpack.c.l.b16 %v4225
        %v4325 = vunpack.c.h.b16 %v4225
        %v4326 = vunpack.c.l.b16 %v4226
        %v4327 = vunpack.c.h.b16 %v4226
        %v4328 = vunpack.c.l.b16 %v4227
        %v4329 = vunpack.c.h.b16 %v4227
        %v4330 = vunpack.c.l.b16 %v4228
        %v4331 = vunpack.c.h.b16 %v4228
        %v4332 = vunpack.c.l.b16 %v4229
        %v4333 = vunpack.c.h.b16 %v4229
        %v4334 = vunpack.c.l.b16 %v4230
        %v4335 = vunpack.c.h.b16 %v4230
        %v4336 = vunpack.c.l.b16 %v4231
        %v4337 = vunpack.c.h.b16 %v4231
        %v4338 = vunpack.c.l.b16 %v4232
        %v4339 = vunpack.c.h.b16 %v4232
        %v4340 = vunpack.c.l.b16 %v4233
        %v4341 = vunpack.c.h.b16 %v4233
        %v4342 = vunpack.c.l.b16 %v4234
        %v4343 = vunpack.c.h.b16 %v4234
        %v4344 = vunpack.c.l.b16 %v4235
        %v4345 = vunpack.c.h.b16 %v4235
        %v4346 = vunpack.c.l.b16 %v4236
        %v4347 = vunpack.c.h.b16 %v4236
        %v4348 = vunpack.c.l.b16 %v4237
        %v4349 = vunpack.c.h.b16 %v4237
        %v4350 = vunpack.c.l.b16 %v4238
        %v4351 = vunpack.c.h.b16 %v4238
        %v4352 = vunpack.c.l.b16 %v4239
        %v4353 = vunpack.c.h.b16 %v4239
        %v4354 = vunpack.c.l.b16 %v4240
        %v4355 = vunpack.c.h.b16 %v4240
        %v4356 = vunpack.c.l.b16 %v4241
        %v4357 = vunpack.c.h.b16 %v4241
        %v4358 = vunpack.c.l.b16 %v4242
        %v4359 = vunpack.c.h.b16 %v4242
        %v4360 = vunpack.c.l.b16 %v4243
        %v4361 = vunpack.c.h.b16 %v4243
        %v4362 = vunpack.c.l.b16 %v4244
        %v4363 = vunpack.c.h.b16 %v4244
        %v4364 = vunpack.c.l.b16 %v4245
        %v4365 = vunpack.c.h.b16 %v4245
        %v4366 = vunpack.c.l.b16 %v4246
        %v4367 = vunpack.c.h.b16 %v4246
        %v4368 = vunpack.c.l.b16 %v4247
        %v4369 = vunpack.c.h.b16 %v4247
        %v4370 = vunpack.c.l.b16 %v4248
        %v4371 = vunpack.c.h.b16 %v4248
        %v4372 = vunpack.c.l.b16 %v4249
        %v4373 = vunpack.c.h.b16 %v4249
        %v4374 = vunpack.c.l.b16 %v4250
        %v4375 = vunpack.c.h.b16 %v4250
        %v4376 = vunpack.c.l.b16 %v4251
        %v4377 = vunpack.c.h.b16 %v4251
        %v4378 = vunpack.c.l.b16 %v4252
        %v4379 = vunpack.c.h.b16 %v4252
        %v4380 = vunpack.c.l.b16 %v4253
        %v4381 = vunpack.c.h.b16 %v4253
        %v4382 = vunpack.c.l.b16 %v4254
        %v4383 = vunpack.c.h.b16 %v4254
        %v4384 = vpack.c.b16 %v4322, %v4320
        %v4385 = vpack.c.b16 %v4323, %v4321
        %v4386 = vpack.c.b16 %v4326, %v4324
        %v4387 = vpack.c.b16 %v4327, %v4325
        %v4388 = vpack.c.b16 %v4330, %v4328
        %v4389 = vpack.c.b16 %v4331, %v4329
        %v4390 = vpack.c.b16 %v4334, %v4332
        %v4391 = vpack.c.b16 %v4335, %v4333
        %v4392 = vpack.c.b16 %v4338, %v4336
        %v4393 = vpack.c.b16 %v4339, %v4337
        %v4394 = vpack.c.b16 %v4342, %v4340
        %v4395 = vpack.c.b16 %v4343, %v4341
        %v4396 = vpack.c.b16 %v4346, %v4344
        %v4397 = vpack.c.b16 %v4347, %v4345
        %v4398 = vpack.c.b16 %v4350, %v4348
        %v4399 = vpack.c.b16 %v4351, %v4349
        %v4400 = vpack.c.b16 %v4354, %v4352
        %v4401 = vpack.c.b16 %v4355, %v4353
        %v4402 = vpack.c.b16 %v4358, %v4356
        %v4403 = vpack.c.b16 %v4359, %v4357
        %v4404 = vpack.c.b16 %v4362, %v4360
        %v4405 = vpack.c.b16 %v4363, %v4361
        %v4406 = vpack.c.b16 %v4366, %v4364
        %v4407 = vpack.c.b16 %v4367, %v4365
        %v4408 = vpack.c.b16 %v4370, %v4368
        %v4409 = vpack.c.b16 %v4371, %v4369
        %v4410 = vpack.c.b16 %v4374, %v4372
        %v4411 = vpack.c.b16 %v4375, %v4373
        %v4412 = vpack.c.b16 %v4378, %v4376
        %v4413 = vpack.c.b16 %v4379, %v4377
        %v4414 = vpack.c.b16 %v4382, %v4380
        %v4415 = vpack.c.b16 %v4383, %v4381
        %v4480 = vunpack.c.l.b16 %v4256
        %v4481 = vunpack.c.l.b16 %v4257
        %v4482 = vunpack.c.l.b16 %v4258
        %v4483 = vunpack.c.l.b16 %v4259
        %v4484 = vunpack.c.l.b16 %v4260
        %v4485 = vunpack.c.l.b16 %v4261
        %v4486 = vunpack.c.l.b16 %v4262
        %v4487 = vunpack.c.l.b16 %v4263
        %v4488 = vunpack.c.l.b16 %v4264
        %v4489 = vunpack.c.l.b16 %v4265
        %v4490 = vunpack.c.l.b16 %v4266
        %v4491 = vunpack.c.l.b16 %v4267
        %v4492 = vunpack.c.l.b16 %v4268
        %v4493 = vunpack.c.l.b16 %v4269
        %v4494 = vunpack.c.l.b16 %v4270
        %v4495 = vunpack.c.l.b16 %v4271
        %v4496 = vunpack.c.l.b16 %v4272
        %v4497 = vunpack.c.l.b16 %v4273
        %v4498 = vunpack.c.l.b16 %v4274
        %v4499 = vunpack.c.l.b16 %v4275
        %v4500 = vunpack.c.l.b16 %v4276
        %v4501 = vunpack.c.l.b16 %v4277
        %v4502 = vunpack.c.l.b16 %v4278
        %v4503 = vunpack.c.l.b16 %v4279
        %v4504 = vunpack.c.l.b16 %v4280
        %v4505 = vunpack.c.l.b16 %v4281
        %v4506 = vunpack.c.l.b16 %v4282
        %v4507 = vunpack.c.l.b16 %v4283
        %v4508 = vunpack.c.l.b16 %v4284
        %v4509 = vunpack.c.l.b16 %v4285
        %v4510 = vunpack.c.l.b16 %v4286
        %v4511 = vunpack.c.l.b16 %v4287
        %v4512 = vpack.c.b16 %v4481, %v4480
        %v4513 = vpack.c.b16 %v4483, %v4482
        %v4514 = vpack.c.b16 %v4485, %v4484
        %v4515 = vpack.c.b16 %v4487, %v4486
        %v4516 = vpack.c.b16 %v4489, %v4488
        %v4517 = vpack.c.b16 %v4491, %v4490
        %v4518 = vpack.c.b16 %v4493, %v4492
        %v4519 = vpack.c.b16 %v4495, %v4494
        %v4520 = vpack.c.b16 %v4497, %v4496
        %v4521 = vpack.c.b16 %v4499, %v4498
        %v4522 = vpack.c.b16 %v4501, %v4500
        %v4523 = vpack.c.b16 %v4503, %v4502
        %v4524 = vpack.c.b16 %v4505, %v4504
        %v4525 = vpack.c.b16 %v4507, %v4506
        %v4526 = vpack.c.b16 %v4509, %v4508
        %v4527 = vpack.c.b16 %v4511, %v4510
        %4544 = vmatprep.subr.bf16.mxu0 0
        %4545 = vmatpush1.bf16.msra.mxu0 %v4512
        %4546 = vmatprep.subr.bf16.mxu0 0
        %4547 = vmatpush1.bf16.msra.mxu0 %v4513
        %4548 = vmatprep.subr.bf16.mxu0 0
        %4549 = vmatpush1.bf16.msra.mxu0 %v4514
        %4550 = vmatprep.subr.bf16.mxu0 0
        %4551 = vmatpush1.bf16.msra.mxu0 %v4515
        %4552 = vmatprep.subr.bf16.mxu0 0
        %4553 = vmatpush1.bf16.msra.mxu0 %v4516
        %4554 = vmatprep.subr.bf16.mxu0 0
        %4555 = vmatpush1.bf16.msra.mxu0 %v4517
        %4556 = vmatprep.subr.bf16.mxu0 0
        %4557 = vmatpush1.bf16.msra.mxu0 %v4518
        %4558 = vmatprep.subr.bf16.mxu0 0
        %4559 = vmatpush1.bf16.msra.mxu0 %v4519
        %4560 = vmatprep.subr.bf16.mxu0 0
        %4561 = vmatpush1.bf16.msra.mxu0 %v4520
        %4562 = vmatprep.subr.bf16.mxu0 0
        %4563 = vmatpush1.bf16.msra.mxu0 %v4521
        %4564 = vmatprep.subr.bf16.mxu0 0
        %4565 = vmatpush1.bf16.msra.mxu0 %v4522
        %4566 = vmatprep.subr.bf16.mxu0 0
        %4567 = vmatpush1.bf16.msra.mxu0 %v4523
        %4568 = vmatprep.subr.bf16.mxu0 0
        %4569 = vmatpush1.bf16.msra.mxu0 %v4524
        %4570 = vmatprep.subr.bf16.mxu0 0
        %4571 = vmatpush1.bf16.msra.mxu0 %v4525
        %4572 = vmatprep.subr.bf16.mxu0 0
        %4573 = vmatpush1.bf16.msra.mxu0 %v4526
        %4574 = vmatprep.subr.bf16.mxu0 0
        %4575 = vmatpush1.bf16.msra.mxu0 %v4527
        %4576 = vmatprep.mubr.bf16.mxu0 %v4385
        %4577 = vmatmul.mubr.bf16.gmra.mrb[0].mxu0 %v4384
        %v4578 = vpop.f32.mrb[0].mxu0
        %v4579 = vadd.f32 0.0, %v4578
        %v4580 = vpop.f32.mrb[0].mxu0
        %v4581 = vpop.f32.mrb[0].mxu0
        %v4582 = vadd.f32 0.0, %v4581
        %v4583 = vpop.f32.mrb[0].mxu0
        %4584 = vmatprep.mubr.bf16.mxu0 %v4387
        %4585 = vmatmul.mubr.bf16.gmra.mrb[0].mxu0 %v4386
        %v4586 = vpop.f32.mrb[0].mxu0
        %v4587 = vadd.f32 0.0, %v4586
        %v4588 = vpop.f32.mrb[0].mxu0
        %v4589 = vpop.f32.mrb[0].mxu0
        %v4590 = vadd.f32 0.0, %v4589
        %v4591 = vpop.f32.mrb[0].mxu0
        %4592 = vmatprep.mubr.bf16.mxu0 %v4389
        %4593 = vmatmul.mubr.bf16.gmra.mrb[0].mxu0 %v4388
        %v4594 = vpop.f32.mrb[0].mxu0
        %v4595 = vadd.f32 0.0, %v4594
        %v4596 = vpop.f32.mrb[0].mxu0
        %v4597 = vpop.f32.mrb[0].mxu0
        %v4598 = vadd.f32 0.0, %v4597
        %v4599 = vpop.f32.mrb[0].mxu0
        %4600 = vmatprep.mubr.bf16.mxu0 %v4391
        %4601 = vmatmul.mubr.bf16.gmra.mrb[0].mxu0 %v4390
        %v4602 = vpop.f32.mrb[0].mxu0
        %v4603 = vadd.f32 0.0, %v4602
        %v4604 = vpop.f32.mrb[0].mxu0
        %v4605 = vpop.f32.mrb[0].mxu0
        %v4606 = vadd.f32 0.0, %v4605
        %v4607 = vpop.f32.mrb[0].mxu0
        %4608 = vmatprep.mubr.bf16.mxu0 %v4393
        %4609 = vmatmul.mubr.bf16.gmra.mrb[0].mxu0 %v4392
        %v4610 = vpop.f32.mrb[0].mxu0
        %v4611 = vadd.f32 0.0, %v4610
        %v4612 = vpop.f32.mrb[0].mxu0
        %v4613 = vpop.f32.mrb[0].mxu0
        %v4614 = vadd.f32 0.0, %v4613
        %v4615 = vpop.f32.mrb[0].mxu0
        %4616 = vmatprep.mubr.bf16.mxu0 %v4395
        %4617 = vmatmul.mubr.bf16.gmra.mrb[0].mxu0 %v4394
        %v4618 = vpop.f32.mrb[0].mxu0
        %v4619 = vadd.f32 0.0, %v4618
        %v4620 = vpop.f32.mrb[0].mxu0
        %v4621 = vpop.f32.mrb[0].mxu0
        %v4622 = vadd.f32 0.0, %v4621
        %v4623 = vpop.f32.mrb[0].mxu0
        %4624 = vmatprep.mubr.bf16.mxu0 %v4397
        %4625 = vmatmul.mubr.bf16.gmra.mrb[0].mxu0 %v4396
        %v4626 = vpop.f32.mrb[0].mxu0
        %v4627 = vadd.f32 0.0, %v4626
        %v4628 = vpop.f32.mrb[0].mxu0
        %v4629 = vpop.f32.mrb[0].mxu0
        %v4630 = vadd.f32 0.0, %v4629
        %v4631 = vpop.f32.mrb[0].mxu0
        %4632 = vmatprep.mubr.bf16.mxu0 %v4399
        %4633 = vmatmul.mubr.bf16.gmra.mrb[0].mxu0 %v4398
        %v4634 = vpop.f32.mrb[0].mxu0
        %v4635 = vadd.f32 0.0, %v4634
        %v4636 = vpop.f32.mrb[0].mxu0
        %v4637 = vpop.f32.mrb[0].mxu0
        %v4638 = vadd.f32 0.0, %v4637
        %v4639 = vpop.f32.mrb[0].mxu0
        %4640 = vmatprep.mubr.bf16.mxu0 %v4401
        %4641 = vmatmul.mubr.bf16.gmra.mrb[0].mxu0 %v4400
        %v4642 = vpop.f32.mrb[0].mxu0
        %v4643 = vadd.f32 0.0, %v4642
        %v4644 = vpop.f32.mrb[0].mxu0
        %v4645 = vpop.f32.mrb[0].mxu0
        %v4646 = vadd.f32 0.0, %v4645
        %v4647 = vpop.f32.mrb[0].mxu0
        %4648 = vmatprep.mubr.bf16.mxu0 %v4403
        %4649 = vmatmul.mubr.bf16.gmra.mrb[0].mxu0 %v4402
        %v4650 = vpop.f32.mrb[0].mxu0
        %v4651 = vadd.f32 0.0, %v4650
        %v4652 = vpop.f32.mrb[0].mxu0
        %v4653 = vpop.f32.mrb[0].mxu0
        %v4654 = vadd.f32 0.0, %v4653
        %v4655 = vpop.f32.mrb[0].mxu0
        %4656 = vmatprep.mubr.bf16.mxu0 %v4405
        %4657 = vmatmul.mubr.bf16.gmra.mrb[0].mxu0 %v4404
        %v4658 = vpop.f32.mrb[0].mxu0
        %v4659 = vadd.f32 0.0, %v4658
        %v4660 = vpop.f32.mrb[0].mxu0
        %v4661 = vpop.f32.mrb[0].mxu0
        %v4662 = vadd.f32 0.0, %v4661
        %v4663 = vpop.f32.mrb[0].mxu0
        %4664 = vmatprep.mubr.bf16.mxu0 %v4407
        %4665 = vmatmul.mubr.bf16.gmra.mrb[0].mxu0 %v4406
        %v4666 = vpop.f32.mrb[0].mxu0
        %v4667 = vadd.f32 0.0, %v4666
        %v4668 = vpop.f32.mrb[0].mxu0
        %v4669 = vpop.f32.mrb[0].mxu0
        %v4670 = vadd.f32 0.0, %v4669
        %v4671 = vpop.f32.mrb[0].mxu0
        %4672 = vmatprep.mubr.bf16.mxu0 %v4409
        %4673 = vmatmul.mubr.bf16.gmra.mrb[0].mxu0 %v4408
        %v4674 = vpop.f32.mrb[0].mxu0
        %v4675 = vadd.f32 0.0, %v4674
        %v4676 = vpop.f32.mrb[0].mxu0
        %v4677 = vpop.f32.mrb[0].mxu0
        %v4678 = vadd.f32 0.0, %v4677
        %v4679 = vpop.f32.mrb[0].mxu0
        %4680 = vmatprep.mubr.bf16.mxu0 %v4411
        %4681 = vmatmul.mubr.bf16.gmra.mrb[0].mxu0 %v4410
        %v4682 = vpop.f32.mrb[0].mxu0
        %v4683 = vadd.f32 0.0, %v4682
        %v4684 = vpop.f32.mrb[0].mxu0
        %v4685 = vpop.f32.mrb[0].mxu0
        %v4686 = vadd.f32 0.0, %v4685
        %v4687 = vpop.f32.mrb[0].mxu0
        %4688 = vmatprep.mubr.bf16.mxu0 %v4413
        %4689 = vmatmul.mubr.bf16.gmra.mrb[0].mxu0 %v4412
        %v4690 = vpop.f32.mrb[0].mxu0
        %v4691 = vadd.f32 0.0, %v4690
        %v4692 = vpop.f32.mrb[0].mxu0
        %v4693 = vpop.f32.mrb[0].mxu0
        %v4694 = vadd.f32 0.0, %v4693
        %v4695 = vpop.f32.mrb[0].mxu0
        %4696 = vmatprep.mubr.bf16.mxu0 %v4415
        %4697 = vmatmul.mubr.bf16.gmra.mrb[0].mxu0 %v4414
        %v4698 = vpop.f32.mrb[0].mxu0
        %v4699 = vadd.f32 0.0, %v4698
        %v4700 = vpop.f32.mrb[0].mxu0
        %v4701 = vpop.f32.mrb[0].mxu0
        %v4702 = vadd.f32 0.0, %v4701
        %v4703 = vpop.f32.mrb[0].mxu0
        %4704 = vdwg.mxu0
        %v4705 = vrot.slane %v4579, 1
        %v4706 = vrot.slane %v4582, 1
        %v4707 = vrot.slane %v4587, 1
        %v4708 = vrot.slane %v4590, 1
        %v4709 = vrot.slane %v4595, 1
        %v4710 = vrot.slane %v4598, 1
        %v4711 = vrot.slane %v4603, 1
        %v4712 = vrot.slane %v4606, 1
        %v4713 = vrot.slane %v4611, 1
        %v4714 = vrot.slane %v4614, 1
        %v4715 = vrot.slane %v4619, 1
        %v4716 = vrot.slane %v4622, 1
        %v4717 = vrot.slane %v4627, 1
        %v4718 = vrot.slane %v4630, 1
        %v4719 = vrot.slane %v4635, 1
        %v4720 = vrot.slane %v4638, 1
        %v4721 = vrot.slane %v4643, 1
        %v4722 = vrot.slane %v4646, 1
        %v4723 = vrot.slane %v4651, 1
        %v4724 = vrot.slane %v4654, 1
        %v4725 = vrot.slane %v4659, 1
        %v4726 = vrot.slane %v4662, 1
        %v4727 = vrot.slane %v4667, 1
        %v4728 = vrot.slane %v4670, 1
        %v4729 = vrot.slane %v4675, 1
        %v4730 = vrot.slane %v4678, 1
        %v4731 = vrot.slane %v4683, 1
        %v4732 = vrot.slane %v4686, 1
        %v4733 = vrot.slane %v4691, 1
        %v4734 = vrot.slane %v4694, 1
        %v4735 = vrot.slane %v4699, 1
        %v4736 = vrot.slane %v4702, 1
        %v4737 = vsel %vm2936, %v4735, %v4736
        %v4738 = vsel %vm2936, %v4734, %v4735
        %v4739 = vsel %vm2936, %v4733, %v4734
        %v4740 = vsel %vm2936, %v4732, %v4733
        %v4741 = vsel %vm2936, %v4731, %v4732
        %v4742 = vsel %vm2936, %v4730, %v4731
        %v4743 = vsel %vm2936, %v4729, %v4730
        %v4744 = vsel %vm2936, %v4728, %v4729
        %v4745 = vsel %vm2936, %v4727, %v4728
        %v4746 = vsel %vm2936, %v4726, %v4727
        %v4747 = vsel %vm2936, %v4725, %v4726
        %v4748 = vsel %vm2936, %v4724, %v4725
        %v4749 = vsel %vm2936, %v4723, %v4724
        %v4750 = vsel %vm2936, %v4722, %v4723
        %v4751 = vsel %vm2936, %v4721, %v4722
        %v4752 = vsel %vm2936, %v4720, %v4721
        %v4753 = vsel %vm2936, %v4719, %v4720
        %v4754 = vsel %vm2936, %v4718, %v4719
        %v4755 = vsel %vm2936, %v4717, %v4718
        %v4756 = vsel %vm2936, %v4716, %v4717
        %v4757 = vsel %vm2936, %v4715, %v4716
        %v4758 = vsel %vm2936, %v4714, %v4715
        %v4759 = vsel %vm2936, %v4713, %v4714
        %v4760 = vsel %vm2936, %v4712, %v4713
        %v4761 = vsel %vm2936, %v4711, %v4712
        %v4762 = vsel %vm2936, %v4710, %v4711
        %v4763 = vsel %vm2936, %v4709, %v4710
        %v4764 = vsel %vm2936, %v4708, %v4709
        %v4765 = vsel %vm2936, %v4707, %v4708
        %v4766 = vsel %vm2936, %v4706, %v4707
        %v4767 = vsel %vm2936, %v4705, %v4706
        %v4768 = vsel %vm2936, %v4736, %v4705
        %v4769 = vld [vmem:[%s1326] sm:$0xff]
        %v4770 = vld [vmem:[%s1326 + $0x8] sm:$0xff]
        %v4771 = vld [vmem:[%s1326 + $0x10] sm:$0xff]
        %v4772 = vld [vmem:[%s1326 + $0x18] sm:$0xff]
        %v4773 = vld [vmem:[%s1326 + $0x20] sm:$0xff]
        %v4774 = vld [vmem:[%s1326 + $0x28] sm:$0xff]
        %v4775 = vld [vmem:[%s1326 + $0x30] sm:$0xff]
        %v4776 = vld [vmem:[%s1326 + $0x38] sm:$0xff]
        %v4777 = vld [vmem:[%s1326 + $0x40] sm:$0xff]
        %v4778 = vld [vmem:[%s1326 + $0x48] sm:$0xff]
        %v4779 = vld [vmem:[%s1326 + $0x50] sm:$0xff]
        %v4780 = vld [vmem:[%s1326 + $0x58] sm:$0xff]
        %v4781 = vld [vmem:[%s1326 + $0x60] sm:$0xff]
        %v4782 = vld [vmem:[%s1326 + $0x68] sm:$0xff]
        %v4783 = vld [vmem:[%s1326 + $0x70] sm:$0xff]
        %v4784 = vld [vmem:[%s1326 + $0x78] sm:$0xff]
        %v4785 = vld [vmem:[%s1326 + $0x80] sm:$0xff]
        %v4786 = vld [vmem:[%s1326 + $0x88] sm:$0xff]
        %v4787 = vld [vmem:[%s1326 + $0x90] sm:$0xff]
        %v4788 = vld [vmem:[%s1326 + $0x98] sm:$0xff]
        %v4789 = vld [vmem:[%s1326 + $0xa0] sm:$0xff]
        %v4790 = vld [vmem:[%s1326 + $0xa8] sm:$0xff]
        %v4791 = vld [vmem:[%s1326 + $0xb0] sm:$0xff]
        %v4792 = vld [vmem:[%s1326 + $0xb8] sm:$0xff]
        %v4793 = vld [vmem:[%s1326 + $0xc0] sm:$0xff]
        %v4794 = vld [vmem:[%s1326 + $0xc8] sm:$0xff]
        %v4795 = vld [vmem:[%s1326 + $0xd0] sm:$0xff]
        %v4796 = vld [vmem:[%s1326 + $0xd8] sm:$0xff]
        %v4797 = vld [vmem:[%s1326 + $0xe0] sm:$0xff]
        %v4798 = vld [vmem:[%s1326 + $0xe8] sm:$0xff]
        %v4799 = vld [vmem:[%s1326 + $0xf0] sm:$0xff]
        %v4800 = vld [vmem:[%s1326 + $0xf8] sm:$0xff]
        %v4801 = vadd.f32 %v4769, %v4767
        %v4802 = vadd.f32 %v4770, %v4766
        %v4803 = vadd.f32 %v4771, %v4765
        %v4804 = vadd.f32 %v4772, %v4764
        %v4805 = vadd.f32 %v4773, %v4763
        %v4806 = vadd.f32 %v4774, %v4762
        %v4807 = vadd.f32 %v4775, %v4761
        %v4808 = vadd.f32 %v4776, %v4760
        %v4809 = vadd.f32 %v4777, %v4759
        %v4810 = vadd.f32 %v4778, %v4758
        %v4811 = vadd.f32 %v4779, %v4757
        %v4812 = vadd.f32 %v4780, %v4756
        %v4813 = vadd.f32 %v4781, %v4755
        %v4814 = vadd.f32 %v4782, %v4754
        %v4815 = vadd.f32 %v4783, %v4753
        %v4816 = vadd.f32 %v4784, %v4752
        %v4817 = vadd.f32 %v4785, %v4751
        %v4818 = vadd.f32 %v4786, %v4750
        %v4819 = vadd.f32 %v4787, %v4749
        %v4820 = vadd.f32 %v4788, %v4748
        %v4821 = vadd.f32 %v4789, %v4747
        %v4822 = vadd.f32 %v4790, %v4746
        %v4823 = vadd.f32 %v4791, %v4745
        %v4824 = vadd.f32 %v4792, %v4744
        %v4825 = vadd.f32 %v4793, %v4743
        %v4826 = vadd.f32 %v4794, %v4742
        %v4827 = vadd.f32 %v4795, %v4741
        %v4828 = vadd.f32 %v4796, %v4740
        %v4829 = vadd.f32 %v4797, %v4739
        %v4830 = vadd.f32 %v4798, %v4738
        %v4831 = vadd.f32 %v4799, %v4737
        %v4832 = vadd.f32 %v4800, %v4768
        %4833 = vst [vmem:[%s1326] sm:$0xff] %v4801
        %4834 = vst [vmem:[%s1326 + $0x8] sm:$0xff] %v4802
        %4835 = vst [vmem:[%s1326 + $0x10] sm:$0xff] %v4803
        %4836 = vst [vmem:[%s1326 + $0x18] sm:$0xff] %v4804
        %4837 = vst [vmem:[%s1326 + $0x20] sm:$0xff] %v4805
        %4838 = vst [vmem:[%s1326 + $0x28] sm:$0xff] %v4806
        %4839 = vst [vmem:[%s1326 + $0x30] sm:$0xff] %v4807
        %4840 = vst [vmem:[%s1326 + $0x38] sm:$0xff] %v4808
        %4841 = vst [vmem:[%s1326 + $0x40] sm:$0xff] %v4809
        %4842 = vst [vmem:[%s1326 + $0x48] sm:$0xff] %v4810
        %4843 = vst [vmem:[%s1326 + $0x50] sm:$0xff] %v4811
        %4844 = vst [vmem:[%s1326 + $0x58] sm:$0xff] %v4812
        %4845 = vst [vmem:[%s1326 + $0x60] sm:$0xff] %v4813
        %4846 = vst [vmem:[%s1326 + $0x68] sm:$0xff] %v4814
        %4847 = vst [vmem:[%s1326 + $0x70] sm:$0xff] %v4815
        %4848 = vst [vmem:[%s1326 + $0x78] sm:$0xff] %v4816
        %4849 = vst [vmem:[%s1326 + $0x80] sm:$0xff] %v4817
        %4850 = vst [vmem:[%s1326 + $0x88] sm:$0xff] %v4818
        %4851 = vst [vmem:[%s1326 + $0x90] sm:$0xff] %v4819
        %4852 = vst [vmem:[%s1326 + $0x98] sm:$0xff] %v4820
        %4853 = vst [vmem:[%s1326 + $0xa0] sm:$0xff] %v4821
        %4854 = vst [vmem:[%s1326 + $0xa8] sm:$0xff] %v4822
        %4855 = vst [vmem:[%s1326 + $0xb0] sm:$0xff] %v4823
        %4856 = vst [vmem:[%s1326 + $0xb8] sm:$0xff] %v4824
        %4857 = vst [vmem:[%s1326 + $0xc0] sm:$0xff] %v4825
        %4858 = vst [vmem:[%s1326 + $0xc8] sm:$0xff] %v4826
        %4859 = vst [vmem:[%s1326 + $0xd0] sm:$0xff] %v4827
        %4860 = vst [vmem:[%s1326 + $0xd8] sm:$0xff] %v4828
        %4861 = vst [vmem:[%s1326 + $0xe0] sm:$0xff] %v4829
        %4862 = vst [vmem:[%s1326 + $0xe8] sm:$0xff] %v4830
        %4863 = vst [vmem:[%s1326 + $0xf0] sm:$0xff] %v4831
        %4864 = vst [vmem:[%s1326 + $0xf8] sm:$0xff] %v4832
        %v4865 = vld [vmem:[%s0] sm:$0xff]
        %v4866 = vld [vmem:[%s0 + $0x8] sm:$0xff]
        %v4867 = vld [vmem:[%s0 + $0x10] sm:$0xff]
        %v4868 = vld [vmem:[%s0 + $0x18] sm:$0xff]
        %v4869 = vld [vmem:[%s0 + $0x20] sm:$0xff]
        %v4870 = vld [vmem:[%s0 + $0x28] sm:$0xff]
        %v4871 = vld [vmem:[%s0 + $0x30] sm:$0xff]
        %v4872 = vld [vmem:[%s0 + $0x38] sm:$0xff]
        %v4873 = vld [vmem:[%s0 + $0x40] sm:$0xff]
        %v4874 = vld [vmem:[%s0 + $0x48] sm:$0xff]
        %v4875 = vld [vmem:[%s0 + $0x50] sm:$0xff]
        %v4876 = vld [vmem:[%s0 + $0x58] sm:$0xff]
        %v4877 = vld [vmem:[%s0 + $0x60] sm:$0xff]
        %v4878 = vld [vmem:[%s0 + $0x68] sm:$0xff]
        %v4879 = vld [vmem:[%s0 + $0x70] sm:$0xff]
        %v4880 = vld [vmem:[%s0 + $0x78] sm:$0xff]
        %v4881 = vld [vmem:[%s0 + $0x80] sm:$0xff]
        %v4882 = vld [vmem:[%s0 + $0x88] sm:$0xff]
        %v4883 = vld [vmem:[%s0 + $0x90] sm:$0xff]
        %v4884 = vld [vmem:[%s0 + $0x98] sm:$0xff]
        %v4885 = vld [vmem:[%s0 + $0xa0] sm:$0xff]
        %v4886 = vld [vmem:[%s0 + $0xa8] sm:$0xff]
        %v4887 = vld [vmem:[%s0 + $0xb0] sm:$0xff]
        %v4888 = vld [vmem:[%s0 + $0xb8] sm:$0xff]
        %v4889 = vld [vmem:[%s0 + $0xc0] sm:$0xff]
        %v4890 = vld [vmem:[%s0 + $0xc8] sm:$0xff]
        %v4891 = vld [vmem:[%s0 + $0xd0] sm:$0xff]
        %v4892 = vld [vmem:[%s0 + $0xd8] sm:$0xff]
        %v4893 = vld [vmem:[%s0 + $0xe0] sm:$0xff]
        %v4894 = vld [vmem:[%s0 + $0xe8] sm:$0xff]
        %v4895 = vld [vmem:[%s0 + $0xf0] sm:$0xff]
        %v4896 = vld [vmem:[%s0 + $0xf8] sm:$0xff]
        %s4897 = scalar_lea.vmem %s1309, 768 [#allocation2]
        %v4898 = vld [vmem:[%s4897] sm:$0xf]
        %v4899 = vld [vmem:[%s4897 + $0x4] sm:$0xf]
        %v4900 = vld [vmem:[%s4897 + $0x8] sm:$0xf]
        %v4901 = vld [vmem:[%s4897 + $0xc] sm:$0xf]
        %v4902 = vld [vmem:[%s4897 + $0x10] sm:$0xf]
        %v4903 = vld [vmem:[%s4897 + $0x14] sm:$0xf]
        %v4904 = vld [vmem:[%s4897 + $0x18] sm:$0xf]
        %v4905 = vld [vmem:[%s4897 + $0x1c] sm:$0xf]
        %v4906 = vld [vmem:[%s4897 + $0x20] sm:$0xf]
        %v4907 = vld [vmem:[%s4897 + $0x24] sm:$0xf]
        %v4908 = vld [vmem:[%s4897 + $0x28] sm:$0xf]
        %v4909 = vld [vmem:[%s4897 + $0x2c] sm:$0xf]
        %v4910 = vld [vmem:[%s4897 + $0x30] sm:$0xf]
        %v4911 = vld [vmem:[%s4897 + $0x34] sm:$0xf]
        %v4912 = vld [vmem:[%s4897 + $0x38] sm:$0xf]
        %v4913 = vld [vmem:[%s4897 + $0x3c] sm:$0xf]
        %v4914 = vld [vmem:[%s4897 + $0x40] sm:$0xf]
        %v4915 = vld [vmem:[%s4897 + $0x44] sm:$0xf]
        %v4916 = vld [vmem:[%s4897 + $0x48] sm:$0xf]
        %v4917 = vld [vmem:[%s4897 + $0x4c] sm:$0xf]
        %v4918 = vld [vmem:[%s4897 + $0x50] sm:$0xf]
        %v4919 = vld [vmem:[%s4897 + $0x54] sm:$0xf]
        %v4920 = vld [vmem:[%s4897 + $0x58] sm:$0xf]
        %v4921 = vld [vmem:[%s4897 + $0x5c] sm:$0xf]
        %v4922 = vld [vmem:[%s4897 + $0x60] sm:$0xf]
        %v4923 = vld [vmem:[%s4897 + $0x64] sm:$0xf]
        %v4924 = vld [vmem:[%s4897 + $0x68] sm:$0xf]
        %v4925 = vld [vmem:[%s4897 + $0x6c] sm:$0xf]
        %v4926 = vld [vmem:[%s4897 + $0x70] sm:$0xf]
        %v4927 = vld [vmem:[%s4897 + $0x74] sm:$0xf]
        %v4928 = vld [vmem:[%s4897 + $0x78] sm:$0xf]
        %v4929 = vld [vmem:[%s4897 + $0x7c] sm:$0xf]
        %v4962 = vunpack.c.l.b16 %v4865
        %v4963 = vunpack.c.h.b16 %v4865
        %v4964 = vunpack.c.l.b16 %v4866
        %v4965 = vunpack.c.h.b16 %v4866
        %v4966 = vunpack.c.l.b16 %v4867
        %v4967 = vunpack.c.h.b16 %v4867
        %v4968 = vunpack.c.l.b16 %v4868
        %v4969 = vunpack.c.h.b16 %v4868
        %v4970 = vunpack.c.l.b16 %v4869
        %v4971 = vunpack.c.h.b16 %v4869
        %v4972 = vunpack.c.l.b16 %v4870
        %v4973 = vunpack.c.h.b16 %v4870
        %v4974 = vunpack.c.l.b16 %v4871
        %v4975 = vunpack.c.h.b16 %v4871
        %v4976 = vunpack.c.l.b16 %v4872
        %v4977 = vunpack.c.h.b16 %v4872
        %v4978 = vunpack.c.l.b16 %v4873
        %v4979 = vunpack.c.h.b16 %v4873
        %v4980 = vunpack.c.l.b16 %v4874
        %v4981 = vunpack.c.h.b16 %v4874
        %v4982 = vunpack.c.l.b16 %v4875
        %v4983 = vunpack.c.h.b16 %v4875
        %v4984 = vunpack.c.l.b16 %v4876
        %v4985 = vunpack.c.h.b16 %v4876
        %v4986 = vunpack.c.l.b16 %v4877
        %v4987 = vunpack.c.h.b16 %v4877
        %v4988 = vunpack.c.l.b16 %v4878
        %v4989 = vunpack.c.h.b16 %v4878
        %v4990 = vunpack.c.l.b16 %v4879
        %v4991 = vunpack.c.h.b16 %v4879
        %v4992 = vunpack.c.l.b16 %v4880
        %v4993 = vunpack.c.h.b16 %v4880
        %v4994 = vunpack.c.l.b16 %v4881
        %v4995 = vunpack.c.h.b16 %v4881
        %v4996 = vunpack.c.l.b16 %v4882
        %v4997 = vunpack.c.h.b16 %v4882
        %v4998 = vunpack.c.l.b16 %v4883
        %v4999 = vunpack.c.h.b16 %v4883
        %v5000 = vunpack.c.l.b16 %v4884
        %v5001 = vunpack.c.h.b16 %v4884
        %v5002 = vunpack.c.l.b16 %v4885
        %v5003 = vunpack.c.h.b16 %v4885
        %v5004 = vunpack.c.l.b16 %v4886
        %v5005 = vunpack.c.h.b16 %v4886
        %v5006 = vunpack.c.l.b16 %v4887
        %v5007 = vunpack.c.h.b16 %v4887
        %v5008 = vunpack.c.l.b16 %v4888
        %v5009 = vunpack.c.h.b16 %v4888
        %v5010 = vunpack.c.l.b16 %v4889
        %v5011 = vunpack.c.h.b16 %v4889
        %v5012 = vunpack.c.l.b16 %v4890
        %v5013 = vunpack.c.h.b16 %v4890
        %v5014 = vunpack.c.l.b16 %v4891
        %v5015 = vunpack.c.h.b16 %v4891
        %v5016 = vunpack.c.l.b16 %v4892
        %v5017 = vunpack.c.h.b16 %v4892
        %v5018 = vunpack.c.l.b16 %v4893
        %v5019 = vunpack.c.h.b16 %v4893
        %v5020 = vunpack.c.l.b16 %v4894
        %v5021 = vunpack.c.h.b16 %v4894
        %v5022 = vunpack.c.l.b16 %v4895
        %v5023 = vunpack.c.h.b16 %v4895
        %v5024 = vunpack.c.l.b16 %v4896
        %v5025 = vunpack.c.h.b16 %v4896
        %v5026 = vpack.c.b16 %v4964, %v4962
        %v5027 = vpack.c.b16 %v4965, %v4963
        %v5028 = vpack.c.b16 %v4968, %v4966
        %v5029 = vpack.c.b16 %v4969, %v4967
        %v5030 = vpack.c.b16 %v4972, %v4970
        %v5031 = vpack.c.b16 %v4973, %v4971
        %v5032 = vpack.c.b16 %v4976, %v4974
        %v5033 = vpack.c.b16 %v4977, %v4975
        %v5034 = vpack.c.b16 %v4980, %v4978
        %v5035 = vpack.c.b16 %v4981, %v4979
        %v5036 = vpack.c.b16 %v4984, %v4982
        %v5037 = vpack.c.b16 %v4985, %v4983
        %v5038 = vpack.c.b16 %v4988, %v4986
        %v5039 = vpack.c.b16 %v4989, %v4987
        %v5040 = vpack.c.b16 %v4992, %v4990
        %v5041 = vpack.c.b16 %v4993, %v4991
        %v5042 = vpack.c.b16 %v4996, %v4994
        %v5043 = vpack.c.b16 %v4997, %v4995
        %v5044 = vpack.c.b16 %v5000, %v4998
        %v5045 = vpack.c.b16 %v5001, %v4999
        %v5046 = vpack.c.b16 %v5004, %v5002
        %v5047 = vpack.c.b16 %v5005, %v5003
        %v5048 = vpack.c.b16 %v5008, %v5006
        %v5049 = vpack.c.b16 %v5009, %v5007
        %v5050 = vpack.c.b16 %v5012, %v5010
        %v5051 = vpack.c.b16 %v5013, %v5011
        %v5052 = vpack.c.b16 %v5016, %v5014
        %v5053 = vpack.c.b16 %v5017, %v5015
        %v5054 = vpack.c.b16 %v5020, %v5018
        %v5055 = vpack.c.b16 %v5021, %v5019
        %v5056 = vpack.c.b16 %v5024, %v5022
        %v5057 = vpack.c.b16 %v5025, %v5023
        %v5122 = vunpack.c.l.b16 %v4898
        %v5123 = vunpack.c.l.b16 %v4899
        %v5124 = vunpack.c.l.b16 %v4900
        %v5125 = vunpack.c.l.b16 %v4901
        %v5126 = vunpack.c.l.b16 %v4902
        %v5127 = vunpack.c.l.b16 %v4903
        %v5128 = vunpack.c.l.b16 %v4904
        %v5129 = vunpack.c.l.b16 %v4905
        %v5130 = vunpack.c.l.b16 %v4906
        %v5131 = vunpack.c.l.b16 %v4907
        %v5132 = vunpack.c.l.b16 %v4908
        %v5133 = vunpack.c.l.b16 %v4909
        %v5134 = vunpack.c.l.b16 %v4910
        %v5135 = vunpack.c.l.b16 %v4911
        %v5136 = vunpack.c.l.b16 %v4912
        %v5137 = vunpack.c.l.b16 %v4913
        %v5138 = vunpack.c.l.b16 %v4914
        %v5139 = vunpack.c.l.b16 %v4915
        %v5140 = vunpack.c.l.b16 %v4916
        %v5141 = vunpack.c.l.b16 %v4917
        %v5142 = vunpack.c.l.b16 %v4918
        %v5143 = vunpack.c.l.b16 %v4919
        %v5144 = vunpack.c.l.b16 %v4920
        %v5145 = vunpack.c.l.b16 %v4921
        %v5146 = vunpack.c.l.b16 %v4922
        %v5147 = vunpack.c.l.b16 %v4923
        %v5148 = vunpack.c.l.b16 %v4924
        %v5149 = vunpack.c.l.b16 %v4925
        %v5150 = vunpack.c.l.b16 %v4926
        %v5151 = vunpack.c.l.b16 %v4927
        %v5152 = vunpack.c.l.b16 %v4928
        %v5153 = vunpack.c.l.b16 %v4929
        %v5154 = vpack.c.b16 %v5123, %v5122
        %v5155 = vpack.c.b16 %v5125, %v5124
        %v5156 = vpack.c.b16 %v5127, %v5126
        %v5157 = vpack.c.b16 %v5129, %v5128
        %v5158 = vpack.c.b16 %v5131, %v5130
        %v5159 = vpack.c.b16 %v5133, %v5132
        %v5160 = vpack.c.b16 %v5135, %v5134
        %v5161 = vpack.c.b16 %v5137, %v5136
        %v5162 = vpack.c.b16 %v5139, %v5138
        %v5163 = vpack.c.b16 %v5141, %v5140
        %v5164 = vpack.c.b16 %v5143, %v5142
        %v5165 = vpack.c.b16 %v5145, %v5144
        %v5166 = vpack.c.b16 %v5147, %v5146
        %v5167 = vpack.c.b16 %v5149, %v5148
        %v5168 = vpack.c.b16 %v5151, %v5150
        %v5169 = vpack.c.b16 %v5153, %v5152
        %5186 = vmatprep.subr.bf16.mxu0 0
        %5187 = vmatpush1.bf16.msra.mxu0 %v5154
        %5188 = vmatprep.subr.bf16.mxu0 0
        %5189 = vmatpush1.bf16.msra.mxu0 %v5155
        %5190 = vmatprep.subr.bf16.mxu0 0
        %5191 = vmatpush1.bf16.msra.mxu0 %v5156
        %5192 = vmatprep.subr.bf16.mxu0 0
        %5193 = vmatpush1.bf16.msra.mxu0 %v5157
        %5194 = vmatprep.subr.bf16.mxu0 0
        %5195 = vmatpush1.bf16.msra.mxu0 %v5158
        %5196 = vmatprep.subr.bf16.mxu0 0
        %5197 = vmatpush1.bf16.msra.mxu0 %v5159
        %5198 = vmatprep.subr.bf16.mxu0 0
        %5199 = vmatpush1.bf16.msra.mxu0 %v5160
        %5200 = vmatprep.subr.bf16.mxu0 0
        %5201 = vmatpush1.bf16.msra.mxu0 %v5161
        %5202 = vmatprep.subr.bf16.mxu0 0
        %5203 = vmatpush1.bf16.msra.mxu0 %v5162
        %5204 = vmatprep.subr.bf16.mxu0 0
        %5205 = vmatpush1.bf16.msra.mxu0 %v5163
        %5206 = vmatprep.subr.bf16.mxu0 0
        %5207 = vmatpush1.bf16.msra.mxu0 %v5164
        %5208 = vmatprep.subr.bf16.mxu0 0
        %5209 = vmatpush1.bf16.msra.mxu0 %v5165
        %5210 = vmatprep.subr.bf16.mxu0 0
        %5211 = vmatpush1.bf16.msra.mxu0 %v5166
        %5212 = vmatprep.subr.bf16.mxu0 0
        %5213 = vmatpush1.bf16.msra.mxu0 %v5167
        %5214 = vmatprep.subr.bf16.mxu0 0
        %5215 = vmatpush1.bf16.msra.mxu0 %v5168
        %5216 = vmatprep.subr.bf16.mxu0 0
        %5217 = vmatpush1.bf16.msra.mxu0 %v5169
        %5218 = vmatprep.mubr.bf16.mxu0 %v5027
        %5219 = vmatmul.mubr.bf16.gmra.mrb[0].mxu0 %v5026
        %v5220 = vpop.f32.mrb[0].mxu0
        %v5221 = vadd.f32 0.0, %v5220
        %v5222 = vpop.f32.mrb[0].mxu0
        %v5223 = vpop.f32.mrb[0].mxu0
        %v5224 = vadd.f32 0.0, %v5223
        %v5225 = vpop.f32.mrb[0].mxu0
        %5226 = vmatprep.mubr.bf16.mxu0 %v5029
        %5227 = vmatmul.mubr.bf16.gmra.mrb[0].mxu0 %v5028
        %v5228 = vpop.f32.mrb[0].mxu0
        %v5229 = vadd.f32 0.0, %v5228
        %v5230 = vpop.f32.mrb[0].mxu0
        %v5231 = vpop.f32.mrb[0].mxu0
        %v5232 = vadd.f32 0.0, %v5231
        %v5233 = vpop.f32.mrb[0].mxu0
        %5234 = vmatprep.mubr.bf16.mxu0 %v5031
        %5235 = vmatmul.mubr.bf16.gmra.mrb[0].mxu0 %v5030
        %v5236 = vpop.f32.mrb[0].mxu0
        %v5237 = vadd.f32 0.0, %v5236
        %v5238 = vpop.f32.mrb[0].mxu0
        %v5239 = vpop.f32.mrb[0].mxu0
        %v5240 = vadd.f32 0.0, %v5239
        %v5241 = vpop.f32.mrb[0].mxu0
        %5242 = vmatprep.mubr.bf16.mxu0 %v5033
        %5243 = vmatmul.mubr.bf16.gmra.mrb[0].mxu0 %v5032
        %v5244 = vpop.f32.mrb[0].mxu0
        %v5245 = vadd.f32 0.0, %v5244
        %v5246 = vpop.f32.mrb[0].mxu0
        %v5247 = vpop.f32.mrb[0].mxu0
        %v5248 = vadd.f32 0.0, %v5247
        %v5249 = vpop.f32.mrb[0].mxu0
        %5250 = vmatprep.mubr.bf16.mxu0 %v5035
        %5251 = vmatmul.mubr.bf16.gmra.mrb[0].mxu0 %v5034
        %v5252 = vpop.f32.mrb[0].mxu0
        %v5253 = vadd.f32 0.0, %v5252
        %v5254 = vpop.f32.mrb[0].mxu0
        %v5255 = vpop.f32.mrb[0].mxu0
        %v5256 = vadd.f32 0.0, %v5255
        %v5257 = vpop.f32.mrb[0].mxu0
        %5258 = vmatprep.mubr.bf16.mxu0 %v5037
        %5259 = vmatmul.mubr.bf16.gmra.mrb[0].mxu0 %v5036
        %v5260 = vpop.f32.mrb[0].mxu0
        %v5261 = vadd.f32 0.0, %v5260
        %v5262 = vpop.f32.mrb[0].mxu0
        %v5263 = vpop.f32.mrb[0].mxu0
        %v5264 = vadd.f32 0.0, %v5263
        %v5265 = vpop.f32.mrb[0].mxu0
        %5266 = vmatprep.mubr.bf16.mxu0 %v5039
        %5267 = vmatmul.mubr.bf16.gmra.mrb[0].mxu0 %v5038
        %v5268 = vpop.f32.mrb[0].mxu0
        %v5269 = vadd.f32 0.0, %v5268
        %v5270 = vpop.f32.mrb[0].mxu0
        %v5271 = vpop.f32.mrb[0].mxu0
        %v5272 = vadd.f32 0.0, %v5271
        %v5273 = vpop.f32.mrb[0].mxu0
        %5274 = vmatprep.mubr.bf16.mxu0 %v5041
        %5275 = vmatmul.mubr.bf16.gmra.mrb[0].mxu0 %v5040
        %v5276 = vpop.f32.mrb[0].mxu0
        %v5277 = vadd.f32 0.0, %v5276
        %v5278 = vpop.f32.mrb[0].mxu0
        %v5279 = vpop.f32.mrb[0].mxu0
        %v5280 = vadd.f32 0.0, %v5279
        %v5281 = vpop.f32.mrb[0].mxu0
        %5282 = vmatprep.mubr.bf16.mxu0 %v5043
        %5283 = vmatmul.mubr.bf16.gmra.mrb[0].mxu0 %v5042
        %v5284 = vpop.f32.mrb[0].mxu0
        %v5285 = vadd.f32 0.0, %v5284
        %v5286 = vpop.f32.mrb[0].mxu0
        %v5287 = vpop.f32.mrb[0].mxu0
        %v5288 = vadd.f32 0.0, %v5287
        %v5289 = vpop.f32.mrb[0].mxu0
        %5290 = vmatprep.mubr.bf16.mxu0 %v5045
        %5291 = vmatmul.mubr.bf16.gmra.mrb[0].mxu0 %v5044
        %v5292 = vpop.f32.mrb[0].mxu0
        %v5293 = vadd.f32 0.0, %v5292
        %v5294 = vpop.f32.mrb[0].mxu0
        %v5295 = vpop.f32.mrb[0].mxu0
        %v5296 = vadd.f32 0.0, %v5295
        %v5297 = vpop.f32.mrb[0].mxu0
        %5298 = vmatprep.mubr.bf16.mxu0 %v5047
        %5299 = vmatmul.mubr.bf16.gmra.mrb[0].mxu0 %v5046
        %v5300 = vpop.f32.mrb[0].mxu0
        %v5301 = vadd.f32 0.0, %v5300
        %v5302 = vpop.f32.mrb[0].mxu0
        %v5303 = vpop.f32.mrb[0].mxu0
        %v5304 = vadd.f32 0.0, %v5303
        %v5305 = vpop.f32.mrb[0].mxu0
        %5306 = vmatprep.mubr.bf16.mxu0 %v5049
        %5307 = vmatmul.mubr.bf16.gmra.mrb[0].mxu0 %v5048
        %v5308 = vpop.f32.mrb[0].mxu0
        %v5309 = vadd.f32 0.0, %v5308
        %v5310 = vpop.f32.mrb[0].mxu0
        %v5311 = vpop.f32.mrb[0].mxu0
        %v5312 = vadd.f32 0.0, %v5311
        %v5313 = vpop.f32.mrb[0].mxu0
        %5314 = vmatprep.mubr.bf16.mxu0 %v5051
        %5315 = vmatmul.mubr.bf16.gmra.mrb[0].mxu0 %v5050
        %v5316 = vpop.f32.mrb[0].mxu0
        %v5317 = vadd.f32 0.0, %v5316
        %v5318 = vpop.f32.mrb[0].mxu0
        %v5319 = vpop.f32.mrb[0].mxu0
        %v5320 = vadd.f32 0.0, %v5319
        %v5321 = vpop.f32.mrb[0].mxu0
        %5322 = vmatprep.mubr.bf16.mxu0 %v5053
        %5323 = vmatmul.mubr.bf16.gmra.mrb[0].mxu0 %v5052
        %v5324 = vpop.f32.mrb[0].mxu0
        %v5325 = vadd.f32 0.0, %v5324
        %v5326 = vpop.f32.mrb[0].mxu0
        %v5327 = vpop.f32.mrb[0].mxu0
        %v5328 = vadd.f32 0.0, %v5327
        %v5329 = vpop.f32.mrb[0].mxu0
        %5330 = vmatprep.mubr.bf16.mxu0 %v5055
        %5331 = vmatmul.mubr.bf16.gmra.mrb[0].mxu0 %v5054
        %v5332 = vpop.f32.mrb[0].mxu0
        %v5333 = vadd.f32 0.0, %v5332
        %v5334 = vpop.f32.mrb[0].mxu0
        %v5335 = vpop.f32.mrb[0].mxu0
        %v5336 = vadd.f32 0.0, %v5335
        %v5337 = vpop.f32.mrb[0].mxu0
        %5338 = vmatprep.mubr.bf16.mxu0 %v5057
        %5339 = vmatmul.mubr.bf16.gmra.mrb[0].mxu0 %v5056
        %v5340 = vpop.f32.mrb[0].mxu0
        %v5341 = vadd.f32 0.0, %v5340
        %v5342 = vpop.f32.mrb[0].mxu0
        %v5343 = vpop.f32.mrb[0].mxu0
        %v5344 = vadd.f32 0.0, %v5343
        %v5345 = vpop.f32.mrb[0].mxu0
        %5346 = vdwg.mxu0
        %v5347 = vld [vmem:[%s1326] sm:$0xff]
        %v5348 = vld [vmem:[%s1326 + $0x8] sm:$0xff]
        %v5349 = vld [vmem:[%s1326 + $0x10] sm:$0xff]
        %v5350 = vld [vmem:[%s1326 + $0x18] sm:$0xff]
        %v5351 = vld [vmem:[%s1326 + $0x20] sm:$0xff]
        %v5352 = vld [vmem:[%s1326 + $0x28] sm:$0xff]
        %v5353 = vld [vmem:[%s1326 + $0x30] sm:$0xff]
        %v5354 = vld [vmem:[%s1326 + $0x38] sm:$0xff]
        %v5355 = vld [vmem:[%s1326 + $0x40] sm:$0xff]
        %v5356 = vld [vmem:[%s1326 + $0x48] sm:$0xff]
        %v5357 = vld [vmem:[%s1326 + $0x50] sm:$0xff]
        %v5358 = vld [vmem:[%s1326 + $0x58] sm:$0xff]
        %v5359 = vld [vmem:[%s1326 + $0x60] sm:$0xff]
        %v5360 = vld [vmem:[%s1326 + $0x68] sm:$0xff]
        %v5361 = vld [vmem:[%s1326 + $0x70] sm:$0xff]
        %v5362 = vld [vmem:[%s1326 + $0x78] sm:$0xff]
        %v5363 = vld [vmem:[%s1326 + $0x80] sm:$0xff]
        %v5364 = vld [vmem:[%s1326 + $0x88] sm:$0xff]
        %v5365 = vld [vmem:[%s1326 + $0x90] sm:$0xff]
        %v5366 = vld [vmem:[%s1326 + $0x98] sm:$0xff]
        %v5367 = vld [vmem:[%s1326 + $0xa0] sm:$0xff]
        %v5368 = vld [vmem:[%s1326 + $0xa8] sm:$0xff]
        %v5369 = vld [vmem:[%s1326 + $0xb0] sm:$0xff]
        %v5370 = vld [vmem:[%s1326 + $0xb8] sm:$0xff]
        %v5371 = vld [vmem:[%s1326 + $0xc0] sm:$0xff]
        %v5372 = vld [vmem:[%s1326 + $0xc8] sm:$0xff]
        %v5373 = vld [vmem:[%s1326 + $0xd0] sm:$0xff]
        %v5374 = vld [vmem:[%s1326 + $0xd8] sm:$0xff]
        %v5375 = vld [vmem:[%s1326 + $0xe0] sm:$0xff]
        %v5376 = vld [vmem:[%s1326 + $0xe8] sm:$0xff]
        %v5377 = vld [vmem:[%s1326 + $0xf0] sm:$0xff]
        %v5378 = vld [vmem:[%s1326 + $0xf8] sm:$0xff]
        %v5379 = vadd.f32 %v5347, %v5229
        %v5380 = vadd.f32 %v5348, %v5232
        %v5381 = vadd.f32 %v5349, %v5237
        %v5382 = vadd.f32 %v5350, %v5240
        %v5383 = vadd.f32 %v5351, %v5245
        %v5384 = vadd.f32 %v5352, %v5248
        %v5385 = vadd.f32 %v5353, %v5253
        %v5386 = vadd.f32 %v5354, %v5256
        %v5387 = vadd.f32 %v5355, %v5261
        %v5388 = vadd.f32 %v5356, %v5264
        %v5389 = vadd.f32 %v5357, %v5269
        %v5390 = vadd.f32 %v5358, %v5272
        %v5391 = vadd.f32 %v5359, %v5277
        %v5392 = vadd.f32 %v5360, %v5280
        %v5393 = vadd.f32 %v5361, %v5285
        %v5394 = vadd.f32 %v5362, %v5288
        %v5395 = vadd.f32 %v5363, %v5293
        %v5396 = vadd.f32 %v5364, %v5296
        %v5397 = vadd.f32 %v5365, %v5301
        %v5398 = vadd.f32 %v5366, %v5304
        %v5399 = vadd.f32 %v5367, %v5309
        %v5400 = vadd.f32 %v5368, %v5312
        %v5401 = vadd.f32 %v5369, %v5317
        %v5402 = vadd.f32 %v5370, %v5320
        %v5403 = vadd.f32 %v5371, %v5325
        %v5404 = vadd.f32 %v5372, %v5328
        %v5405 = vadd.f32 %v5373, %v5333
        %v5406 = vadd.f32 %v5374, %v5336
        %v5407 = vadd.f32 %v5375, %v5341
        %v5408 = vadd.f32 %v5376, %v5344
        %v5409 = vadd.f32 %v5377, %v5221
        %v5410 = vadd.f32 %v5378, %v5224
        %5411 = vst [vmem:[%s1326] sm:$0xff] %v5379
        %5412 = vst [vmem:[%s1326 + $0x8] sm:$0xff] %v5380
        %5413 = vst [vmem:[%s1326 + $0x10] sm:$0xff] %v5381
        %5414 = vst [vmem:[%s1326 + $0x18] sm:$0xff] %v5382
        %5415 = vst [vmem:[%s1326 + $0x20] sm:$0xff] %v5383
        %5416 = vst [vmem:[%s1326 + $0x28] sm:$0xff] %v5384
        %5417 = vst [vmem:[%s1326 + $0x30] sm:$0xff] %v5385
        %5418 = vst [vmem:[%s1326 + $0x38] sm:$0xff] %v5386
        %5419 = vst [vmem:[%s1326 + $0x40] sm:$0xff] %v5387
        %5420 = vst [vmem:[%s1326 + $0x48] sm:$0xff] %v5388
        %5421 = vst [vmem:[%s1326 + $0x50] sm:$0xff] %v5389
        %5422 = vst [vmem:[%s1326 + $0x58] sm:$0xff] %v5390
        %5423 = vst [vmem:[%s1326 + $0x60] sm:$0xff] %v5391
        %5424 = vst [vmem:[%s1326 + $0x68] sm:$0xff] %v5392
        %5425 = vst [vmem:[%s1326 + $0x70] sm:$0xff] %v5393
        %5426 = vst [vmem:[%s1326 + $0x78] sm:$0xff] %v5394
        %5427 = vst [vmem:[%s1326 + $0x80] sm:$0xff] %v5395
        %5428 = vst [vmem:[%s1326 + $0x88] sm:$0xff] %v5396
        %5429 = vst [vmem:[%s1326 + $0x90] sm:$0xff] %v5397
        %5430 = vst [vmem:[%s1326 + $0x98] sm:$0xff] %v5398
        %5431 = vst [vmem:[%s1326 + $0xa0] sm:$0xff] %v5399
        %5432 = vst [vmem:[%s1326 + $0xa8] sm:$0xff] %v5400
        %5433 = vst [vmem:[%s1326 + $0xb0] sm:$0xff] %v5401
        %5434 = vst [vmem:[%s1326 + $0xb8] sm:$0xff] %v5402
        %5435 = vst [vmem:[%s1326 + $0xc0] sm:$0xff] %v5403
        %5436 = vst [vmem:[%s1326 + $0xc8] sm:$0xff] %v5404
        %5437 = vst [vmem:[%s1326 + $0xd0] sm:$0xff] %v5405
        %5438 = vst [vmem:[%s1326 + $0xd8] sm:$0xff] %v5406
        %5439 = vst [vmem:[%s1326 + $0xe0] sm:$0xff] %v5407
        %5440 = vst [vmem:[%s1326 + $0xe8] sm:$0xff] %v5408
        %5441 = vst [vmem:[%s1326 + $0xf0] sm:$0xff] %v5409
        %5442 = vst [vmem:[%s1326 + $0xf8] sm:$0xff] %v5410
        %v5443 = vld [vmem:[%s1841] sm:$0xff]
        %v5444 = vld [vmem:[%s1841 + $0x8] sm:$0xff]
        %v5445 = vld [vmem:[%s1841 + $0x10] sm:$0xff]
        %v5446 = vld [vmem:[%s1841 + $0x18] sm:$0xff]
        %v5447 = vld [vmem:[%s1841 + $0x20] sm:$0xff]
        %v5448 = vld [vmem:[%s1841 + $0x28] sm:$0xff]
        %v5449 = vld [vmem:[%s1841 + $0x30] sm:$0xff]
        %v5450 = vld [vmem:[%s1841 + $0x38] sm:$0xff]
        %v5451 = vld [vmem:[%s1841 + $0x40] sm:$0xff]
        %v5452 = vld [vmem:[%s1841 + $0x48] sm:$0xff]
        %v5453 = vld [vmem:[%s1841 + $0x50] sm:$0xff]
        %v5454 = vld [vmem:[%s1841 + $0x58] sm:$0xff]
        %v5455 = vld [vmem:[%s1841 + $0x60] sm:$0xff]
        %v5456 = vld [vmem:[%s1841 + $0x68] sm:$0xff]
        %v5457 = vld [vmem:[%s1841 + $0x70] sm:$0xff]
        %v5458 = vld [vmem:[%s1841 + $0x78] sm:$0xff]
        %v5459 = vld [vmem:[%s1841 + $0x80] sm:$0xff]
        %v5460 = vld [vmem:[%s1841 + $0x88] sm:$0xff]
        %v5461 = vld [vmem:[%s1841 + $0x90] sm:$0xff]
        %v5462 = vld [vmem:[%s1841 + $0x98] sm:$0xff]
        %v5463 = vld [vmem:[%s1841 + $0xa0] sm:$0xff]
        %v5464 = vld [vmem:[%s1841 + $0xa8] sm:$0xff]
        %v5465 = vld [vmem:[%s1841 + $0xb0] sm:$0xff]
        %v5466 = vld [vmem:[%s1841 + $0xb8] sm:$0xff]
        %v5467 = vld [vmem:[%s1841 + $0xc0] sm:$0xff]
        %v5468 = vld [vmem:[%s1841 + $0xc8] sm:$0xff]
        %v5469 = vld [vmem:[%s1841 + $0xd0] sm:$0xff]
        %v5470 = vld [vmem:[%s1841 + $0xd8] sm:$0xff]
        %v5471 = vld [vmem:[%s1841 + $0xe0] sm:$0xff]
        %v5472 = vld [vmem:[%s1841 + $0xe8] sm:$0xff]
        %v5473 = vld [vmem:[%s1841 + $0xf0] sm:$0xff]
        %v5474 = vld [vmem:[%s1841 + $0xf8] sm:$0xff]
        %s5475 = scalar_lea.vmem %s1309, 896 [#allocation2]
        %v5476 = vld [vmem:[%s5475] sm:$0xf]
        %v5477 = vld [vmem:[%s5475 + $0x4] sm:$0xf]
        %v5478 = vld [vmem:[%s5475 + $0x8] sm:$0xf]
        %v5479 = vld [vmem:[%s5475 + $0xc] sm:$0xf]
        %v5480 = vld [vmem:[%s5475 + $0x10] sm:$0xf]
        %v5481 = vld [vmem:[%s5475 + $0x14] sm:$0xf]
        %v5482 = vld [vmem:[%s5475 + $0x18] sm:$0xf]
        %v5483 = vld [vmem:[%s5475 + $0x1c] sm:$0xf]
        %v5484 = vld [vmem:[%s5475 + $0x20] sm:$0xf]
        %v5485 = vld [vmem:[%s5475 + $0x24] sm:$0xf]
        %v5486 = vld [vmem:[%s5475 + $0x28] sm:$0xf]
        %v5487 = vld [vmem:[%s5475 + $0x2c] sm:$0xf]
        %v5488 = vld [vmem:[%s5475 + $0x30] sm:$0xf]
        %v5489 = vld [vmem:[%s5475 + $0x34] sm:$0xf]
        %v5490 = vld [vmem:[%s5475 + $0x38] sm:$0xf]
        %v5491 = vld [vmem:[%s5475 + $0x3c] sm:$0xf]
        %v5492 = vld [vmem:[%s5475 + $0x40] sm:$0xf]
        %v5493 = vld [vmem:[%s5475 + $0x44] sm:$0xf]
        %v5494 = vld [vmem:[%s5475 + $0x48] sm:$0xf]
        %v5495 = vld [vmem:[%s5475 + $0x4c] sm:$0xf]
        %v5496 = vld [vmem:[%s5475 + $0x50] sm:$0xf]
        %v5497 = vld [vmem:[%s5475 + $0x54] sm:$0xf]
        %v5498 = vld [vmem:[%s5475 + $0x58] sm:$0xf]
        %v5499 = vld [vmem:[%s5475 + $0x5c] sm:$0xf]
        %v5500 = vld [vmem:[%s5475 + $0x60] sm:$0xf]
        %v5501 = vld [vmem:[%s5475 + $0x64] sm:$0xf]
        %v5502 = vld [vmem:[%s5475 + $0x68] sm:$0xf]
        %v5503 = vld [vmem:[%s5475 + $0x6c] sm:$0xf]
        %v5504 = vld [vmem:[%s5475 + $0x70] sm:$0xf]
        %v5505 = vld [vmem:[%s5475 + $0x74] sm:$0xf]
        %v5506 = vld [vmem:[%s5475 + $0x78] sm:$0xf]
        %v5507 = vld [vmem:[%s5475 + $0x7c] sm:$0xf]
        %v5540 = vunpack.c.l.b16 %v5443
        %v5541 = vunpack.c.h.b16 %v5443
        %v5542 = vunpack.c.l.b16 %v5444
        %v5543 = vunpack.c.h.b16 %v5444
        %v5544 = vunpack.c.l.b16 %v5445
        %v5545 = vunpack.c.h.b16 %v5445
        %v5546 = vunpack.c.l.b16 %v5446
        %v5547 = vunpack.c.h.b16 %v5446
        %v5548 = vunpack.c.l.b16 %v5447
        %v5549 = vunpack.c.h.b16 %v5447
        %v5550 = vunpack.c.l.b16 %v5448
        %v5551 = vunpack.c.h.b16 %v5448
        %v5552 = vunpack.c.l.b16 %v5449
        %v5553 = vunpack.c.h.b16 %v5449
        %v5554 = vunpack.c.l.b16 %v5450
        %v5555 = vunpack.c.h.b16 %v5450
        %v5556 = vunpack.c.l.b16 %v5451
        %v5557 = vunpack.c.h.b16 %v5451
        %v5558 = vunpack.c.l.b16 %v5452
        %v5559 = vunpack.c.h.b16 %v5452
        %v5560 = vunpack.c.l.b16 %v5453
        %v5561 = vunpack.c.h.b16 %v5453
        %v5562 = vunpack.c.l.b16 %v5454
        %v5563 = vunpack.c.h.b16 %v5454
        %v5564 = vunpack.c.l.b16 %v5455
        %v5565 = vunpack.c.h.b16 %v5455
        %v5566 = vunpack.c.l.b16 %v5456
        %v5567 = vunpack.c.h.b16 %v5456
        %v5568 = vunpack.c.l.b16 %v5457
        %v5569 = vunpack.c.h.b16 %v5457
        %v5570 = vunpack.c.l.b16 %v5458
        %v5571 = vunpack.c.h.b16 %v5458
        %v5572 = vunpack.c.l.b16 %v5459
        %v5573 = vunpack.c.h.b16 %v5459
        %v5574 = vunpack.c.l.b16 %v5460
        %v5575 = vunpack.c.h.b16 %v5460
        %v5576 = vunpack.c.l.b16 %v5461
        %v5577 = vunpack.c.h.b16 %v5461
        %v5578 = vunpack.c.l.b16 %v5462
        %v5579 = vunpack.c.h.b16 %v5462
        %v5580 = vunpack.c.l.b16 %v5463
        %v5581 = vunpack.c.h.b16 %v5463
        %v5582 = vunpack.c.l.b16 %v5464
        %v5583 = vunpack.c.h.b16 %v5464
        %v5584 = vunpack.c.l.b16 %v5465
        %v5585 = vunpack.c.h.b16 %v5465
        %v5586 = vunpack.c.l.b16 %v5466
        %v5587 = vunpack.c.h.b16 %v5466
        %v5588 = vunpack.c.l.b16 %v5467
        %v5589 = vunpack.c.h.b16 %v5467
        %v5590 = vunpack.c.l.b16 %v5468
        %v5591 = vunpack.c.h.b16 %v5468
        %v5592 = vunpack.c.l.b16 %v5469
        %v5593 = vunpack.c.h.b16 %v5469
        %v5594 = vunpack.c.l.b16 %v5470
        %v5595 = vunpack.c.h.b16 %v5470
        %v5596 = vunpack.c.l.b16 %v5471
        %v5597 = vunpack.c.h.b16 %v5471
        %v5598 = vunpack.c.l.b16 %v5472
        %v5599 = vunpack.c.h.b16 %v5472
        %v5600 = vunpack.c.l.b16 %v5473
        %v5601 = vunpack.c.h.b16 %v5473
        %v5602 = vunpack.c.l.b16 %v5474
        %v5603 = vunpack.c.h.b16 %v5474
        %v5604 = vpack.c.b16 %v5542, %v5540
        %v5605 = vpack.c.b16 %v5543, %v5541
        %v5606 = vpack.c.b16 %v5546, %v5544
        %v5607 = vpack.c.b16 %v5547, %v5545
        %v5608 = vpack.c.b16 %v5550, %v5548
        %v5609 = vpack.c.b16 %v5551, %v5549
        %v5610 = vpack.c.b16 %v5554, %v5552
        %v5611 = vpack.c.b16 %v5555, %v5553
        %v5612 = vpack.c.b16 %v5558, %v5556
        %v5613 = vpack.c.b16 %v5559, %v5557
        %v5614 = vpack.c.b16 %v5562, %v5560
        %v5615 = vpack.c.b16 %v5563, %v5561
        %v5616 = vpack.c.b16 %v5566, %v5564
        %v5617 = vpack.c.b16 %v5567, %v5565
        %v5618 = vpack.c.b16 %v5570, %v5568
        %v5619 = vpack.c.b16 %v5571, %v5569
        %v5620 = vpack.c.b16 %v5574, %v5572
        %v5621 = vpack.c.b16 %v5575, %v5573
        %v5622 = vpack.c.b16 %v5578, %v5576
        %v5623 = vpack.c.b16 %v5579, %v5577
        %v5624 = vpack.c.b16 %v5582, %v5580
        %v5625 = vpack.c.b16 %v5583, %v5581
        %v5626 = vpack.c.b16 %v5586, %v5584
        %v5627 = vpack.c.b16 %v5587, %v5585
        %v5628 = vpack.c.b16 %v5590, %v5588
        %v5629 = vpack.c.b16 %v5591, %v5589
        %v5630 = vpack.c.b16 %v5594, %v5592
        %v5631 = vpack.c.b16 %v5595, %v5593
        %v5632 = vpack.c.b16 %v5598, %v5596
        %v5633 = vpack.c.b16 %v5599, %v5597
        %v5634 = vpack.c.b16 %v5602, %v5600
        %v5635 = vpack.c.b16 %v5603, %v5601
        %v5700 = vunpack.c.l.b16 %v5476
        %v5701 = vunpack.c.l.b16 %v5477
        %v5702 = vunpack.c.l.b16 %v5478
        %v5703 = vunpack.c.l.b16 %v5479
        %v5704 = vunpack.c.l.b16 %v5480
        %v5705 = vunpack.c.l.b16 %v5481
        %v5706 = vunpack.c.l.b16 %v5482
        %v5707 = vunpack.c.l.b16 %v5483
        %v5708 = vunpack.c.l.b16 %v5484
        %v5709 = vunpack.c.l.b16 %v5485
        %v5710 = vunpack.c.l.b16 %v5486
        %v5711 = vunpack.c.l.b16 %v5487
        %v5712 = vunpack.c.l.b16 %v5488
        %v5713 = vunpack.c.l.b16 %v5489
        %v5714 = vunpack.c.l.b16 %v5490
        %v5715 = vunpack.c.l.b16 %v5491
        %v5716 = vunpack.c.l.b16 %v5492
        %v5717 = vunpack.c.l.b16 %v5493
        %v5718 = vunpack.c.l.b16 %v5494
        %v5719 = vunpack.c.l.b16 %v5495
        %v5720 = vunpack.c.l.b16 %v5496
        %v5721 = vunpack.c.l.b16 %v5497
        %v5722 = vunpack.c.l.b16 %v5498
        %v5723 = vunpack.c.l.b16 %v5499
        %v5724 = vunpack.c.l.b16 %v5500
        %v5725 = vunpack.c.l.b16 %v5501
        %v5726 = vunpack.c.l.b16 %v5502
        %v5727 = vunpack.c.l.b16 %v5503
        %v5728 = vunpack.c.l.b16 %v5504
        %v5729 = vunpack.c.l.b16 %v5505
        %v5730 = vunpack.c.l.b16 %v5506
        %v5731 = vunpack.c.l.b16 %v5507
        %v5732 = vpack.c.b16 %v5701, %v5700
        %v5733 = vpack.c.b16 %v5703, %v5702
        %v5734 = vpack.c.b16 %v5705, %v5704
        %v5735 = vpack.c.b16 %v5707, %v5706
        %v5736 = vpack.c.b16 %v5709, %v5708
        %v5737 = vpack.c.b16 %v5711, %v5710
        %v5738 = vpack.c.b16 %v5713, %v5712
        %v5739 = vpack.c.b16 %v5715, %v5714
        %v5740 = vpack.c.b16 %v5717, %v5716
        %v5741 = vpack.c.b16 %v5719, %v5718
        %v5742 = vpack.c.b16 %v5721, %v5720
        %v5743 = vpack.c.b16 %v5723, %v5722
        %v5744 = vpack.c.b16 %v5725, %v5724
        %v5745 = vpack.c.b16 %v5727, %v5726
        %v5746 = vpack.c.b16 %v5729, %v5728
        %v5747 = vpack.c.b16 %v5731, %v5730
        %5764 = vmatprep.subr.bf16.mxu0 0
        %5765 = vmatpush1.bf16.msra.mxu0 %v5732
        %5766 = vmatprep.subr.bf16.mxu0 0
        %5767 = vmatpush1.bf16.msra.mxu0 %v5733
        %5768 = vmatprep.subr.bf16.mxu0 0
        %5769 = vmatpush1.bf16.msra.mxu0 %v5734
        %5770 = vmatprep.subr.bf16.mxu0 0
        %5771 = vmatpush1.bf16.msra.mxu0 %v5735
        %5772 = vmatprep.subr.bf16.mxu0 0
        %5773 = vmatpush1.bf16.msra.mxu0 %v5736
        %5774 = vmatprep.subr.bf16.mxu0 0
        %5775 = vmatpush1.bf16.msra.mxu0 %v5737
        %5776 = vmatprep.subr.bf16.mxu0 0
        %5777 = vmatpush1.bf16.msra.mxu0 %v5738
        %5778 = vmatprep.subr.bf16.mxu0 0
        %5779 = vmatpush1.bf16.msra.mxu0 %v5739
        %5780 = vmatprep.subr.bf16.mxu0 0
        %5781 = vmatpush1.bf16.msra.mxu0 %v5740
        %5782 = vmatprep.subr.bf16.mxu0 0
        %5783 = vmatpush1.bf16.msra.mxu0 %v5741
        %5784 = vmatprep.subr.bf16.mxu0 0
        %5785 = vmatpush1.bf16.msra.mxu0 %v5742
        %5786 = vmatprep.subr.bf16.mxu0 0
        %5787 = vmatpush1.bf16.msra.mxu0 %v5743
        %5788 = vmatprep.subr.bf16.mxu0 0
        %5789 = vmatpush1.bf16.msra.mxu0 %v5744
        %5790 = vmatprep.subr.bf16.mxu0 0
        %5791 = vmatpush1.bf16.msra.mxu0 %v5745
        %5792 = vmatprep.subr.bf16.mxu0 0
        %5793 = vmatpush1.bf16.msra.mxu0 %v5746
        %5794 = vmatprep.subr.bf16.mxu0 0
        %5795 = vmatpush1.bf16.msra.mxu0 %v5747
        %5796 = vmatprep.mubr.bf16.mxu0 %v5605
        %5797 = vmatmul.mubr.bf16.gmra.mrb[0].mxu0 %v5604
        %v5798 = vpop.f32.mrb[0].mxu0
        %v5799 = vadd.f32 0.0, %v5798
        %v5800 = vpop.f32.mrb[0].mxu0
        %v5801 = vpop.f32.mrb[0].mxu0
        %v5802 = vadd.f32 0.0, %v5801
        %v5803 = vpop.f32.mrb[0].mxu0
        %5804 = vmatprep.mubr.bf16.mxu0 %v5607
        %5805 = vmatmul.mubr.bf16.gmra.mrb[0].mxu0 %v5606
        %v5806 = vpop.f32.mrb[0].mxu0
        %v5807 = vadd.f32 0.0, %v5806
        %v5808 = vpop.f32.mrb[0].mxu0
        %v5809 = vpop.f32.mrb[0].mxu0
        %v5810 = vadd.f32 0.0, %v5809
        %v5811 = vpop.f32.mrb[0].mxu0
        %5812 = vmatprep.mubr.bf16.mxu0 %v5609
        %5813 = vmatmul.mubr.bf16.gmra.mrb[0].mxu0 %v5608
        %v5814 = vpop.f32.mrb[0].mxu0
        %v5815 = vadd.f32 0.0, %v5814
        %v5816 = vpop.f32.mrb[0].mxu0
        %v5817 = vpop.f32.mrb[0].mxu0
        %v5818 = vadd.f32 0.0, %v5817
        %v5819 = vpop.f32.mrb[0].mxu0
        %5820 = vmatprep.mubr.bf16.mxu0 %v5611
        %5821 = vmatmul.mubr.bf16.gmra.mrb[0].mxu0 %v5610
        %v5822 = vpop.f32.mrb[0].mxu0
        %v5823 = vadd.f32 0.0, %v5822
        %v5824 = vpop.f32.mrb[0].mxu0
        %v5825 = vpop.f32.mrb[0].mxu0
        %v5826 = vadd.f32 0.0, %v5825
        %v5827 = vpop.f32.mrb[0].mxu0
        %5828 = vmatprep.mubr.bf16.mxu0 %v5613
        %5829 = vmatmul.mubr.bf16.gmra.mrb[0].mxu0 %v5612
        %v5830 = vpop.f32.mrb[0].mxu0
        %v5831 = vadd.f32 0.0, %v5830
        %v5832 = vpop.f32.mrb[0].mxu0
        %v5833 = vpop.f32.mrb[0].mxu0
        %v5834 = vadd.f32 0.0, %v5833
        %v5835 = vpop.f32.mrb[0].mxu0
        %5836 = vmatprep.mubr.bf16.mxu0 %v5615
        %5837 = vmatmul.mubr.bf16.gmra.mrb[0].mxu0 %v5614
        %v5838 = vpop.f32.mrb[0].mxu0
        %v5839 = vadd.f32 0.0, %v5838
        %v5840 = vpop.f32.mrb[0].mxu0
        %v5841 = vpop.f32.mrb[0].mxu0
        %v5842 = vadd.f32 0.0, %v5841
        %v5843 = vpop.f32.mrb[0].mxu0
        %5844 = vmatprep.mubr.bf16.mxu0 %v5617
        %5845 = vmatmul.mubr.bf16.gmra.mrb[0].mxu0 %v5616
        %v5846 = vpop.f32.mrb[0].mxu0
        %v5847 = vadd.f32 0.0, %v5846
        %v5848 = vpop.f32.mrb[0].mxu0
        %v5849 = vpop.f32.mrb[0].mxu0
        %v5850 = vadd.f32 0.0, %v5849
        %v5851 = vpop.f32.mrb[0].mxu0
        %5852 = vmatprep.mubr.bf16.mxu0 %v5619
        %5853 = vmatmul.mubr.bf16.gmra.mrb[0].mxu0 %v5618
        %v5854 = vpop.f32.mrb[0].mxu0
        %v5855 = vadd.f32 0.0, %v5854
        %v5856 = vpop.f32.mrb[0].mxu0
        %v5857 = vpop.f32.mrb[0].mxu0
        %v5858 = vadd.f32 0.0, %v5857
        %v5859 = vpop.f32.mrb[0].mxu0
        %5860 = vmatprep.mubr.bf16.mxu0 %v5621
        %5861 = vmatmul.mubr.bf16.gmra.mrb[0].mxu0 %v5620
        %v5862 = vpop.f32.mrb[0].mxu0
        %v5863 = vadd.f32 0.0, %v5862
        %v5864 = vpop.f32.mrb[0].mxu0
        %v5865 = vpop.f32.mrb[0].mxu0
        %v5866 = vadd.f32 0.0, %v5865
        %v5867 = vpop.f32.mrb[0].mxu0
        %5868 = vmatprep.mubr.bf16.mxu0 %v5623
        %5869 = vmatmul.mubr.bf16.gmra.mrb[0].mxu0 %v5622
        %v5870 = vpop.f32.mrb[0].mxu0
        %v5871 = vadd.f32 0.0, %v5870
        %v5872 = vpop.f32.mrb[0].mxu0
        %v5873 = vpop.f32.mrb[0].mxu0
        %v5874 = vadd.f32 0.0, %v5873
        %v5875 = vpop.f32.mrb[0].mxu0
        %5876 = vmatprep.mubr.bf16.mxu0 %v5625
        %5877 = vmatmul.mubr.bf16.gmra.mrb[0].mxu0 %v5624
        %v5878 = vpop.f32.mrb[0].mxu0
        %v5879 = vadd.f32 0.0, %v5878
        %v5880 = vpop.f32.mrb[0].mxu0
        %v5881 = vpop.f32.mrb[0].mxu0
        %v5882 = vadd.f32 0.0, %v5881
        %v5883 = vpop.f32.mrb[0].mxu0
        %5884 = vmatprep.mubr.bf16.mxu0 %v5627
        %5885 = vmatmul.mubr.bf16.gmra.mrb[0].mxu0 %v5626
        %v5886 = vpop.f32.mrb[0].mxu0
        %v5887 = vadd.f32 0.0, %v5886
        %v5888 = vpop.f32.mrb[0].mxu0
        %v5889 = vpop.f32.mrb[0].mxu0
        %v5890 = vadd.f32 0.0, %v5889
        %v5891 = vpop.f32.mrb[0].mxu0
        %5892 = vmatprep.mubr.bf16.mxu0 %v5629
        %5893 = vmatmul.mubr.bf16.gmra.mrb[0].mxu0 %v5628
        %v5894 = vpop.f32.mrb[0].mxu0
        %v5895 = vadd.f32 0.0, %v5894
        %v5896 = vpop.f32.mrb[0].mxu0
        %v5897 = vpop.f32.mrb[0].mxu0
        %v5898 = vadd.f32 0.0, %v5897
        %v5899 = vpop.f32.mrb[0].mxu0
        %5900 = vmatprep.mubr.bf16.mxu0 %v5631
        %5901 = vmatmul.mubr.bf16.gmra.mrb[0].mxu0 %v5630
        %v5902 = vpop.f32.mrb[0].mxu0
        %v5903 = vadd.f32 0.0, %v5902
        %v5904 = vpop.f32.mrb[0].mxu0
        %v5905 = vpop.f32.mrb[0].mxu0
        %v5906 = vadd.f32 0.0, %v5905
        %v5907 = vpop.f32.mrb[0].mxu0
        %5908 = vmatprep.mubr.bf16.mxu0 %v5633
        %5909 = vmatmul.mubr.bf16.gmra.mrb[0].mxu0 %v5632
        %v5910 = vpop.f32.mrb[0].mxu0
        %v5911 = vadd.f32 0.0, %v5910
        %v5912 = vpop.f32.mrb[0].mxu0
        %v5913 = vpop.f32.mrb[0].mxu0
        %v5914 = vadd.f32 0.0, %v5913
        %v5915 = vpop.f32.mrb[0].mxu0
        %5916 = vmatprep.mubr.bf16.mxu0 %v5635
        %5917 = vmatmul.mubr.bf16.gmra.mrb[0].mxu0 %v5634
        %v5918 = vpop.f32.mrb[0].mxu0
        %v5919 = vadd.f32 0.0, %v5918
        %v5920 = vpop.f32.mrb[0].mxu0
        %v5921 = vpop.f32.mrb[0].mxu0
        %v5922 = vadd.f32 0.0, %v5921
        %v5923 = vpop.f32.mrb[0].mxu0
        %5924 = vdwg.mxu0
        %v5925 = vld [vmem:[%s1326] sm:$0xff]
        %v5926 = vld [vmem:[%s1326 + $0x8] sm:$0xff]
        %v5927 = vld [vmem:[%s1326 + $0x10] sm:$0xff]
        %v5928 = vld [vmem:[%s1326 + $0x18] sm:$0xff]
        %v5929 = vld [vmem:[%s1326 + $0x20] sm:$0xff]
        %v5930 = vld [vmem:[%s1326 + $0x28] sm:$0xff]
        %v5931 = vld [vmem:[%s1326 + $0x30] sm:$0xff]
        %v5932 = vld [vmem:[%s1326 + $0x38] sm:$0xff]
        %v5933 = vld [vmem:[%s1326 + $0x40] sm:$0xff]
        %v5934 = vld [vmem:[%s1326 + $0x48] sm:$0xff]
        %v5935 = vld [vmem:[%s1326 + $0x50] sm:$0xff]
        %v5936 = vld [vmem:[%s1326 + $0x58] sm:$0xff]
        %v5937 = vld [vmem:[%s1326 + $0x60] sm:$0xff]
        %v5938 = vld [vmem:[%s1326 + $0x68] sm:$0xff]
        %v5939 = vld [vmem:[%s1326 + $0x70] sm:$0xff]
        %v5940 = vld [vmem:[%s1326 + $0x78] sm:$0xff]
        %v5941 = vld [vmem:[%s1326 + $0x80] sm:$0xff]
        %v5942 = vld [vmem:[%s1326 + $0x88] sm:$0xff]
        %v5943 = vld [vmem:[%s1326 + $0x90] sm:$0xff]
        %v5944 = vld [vmem:[%s1326 + $0x98] sm:$0xff]
        %v5945 = vld [vmem:[%s1326 + $0xa0] sm:$0xff]
        %v5946 = vld [vmem:[%s1326 + $0xa8] sm:$0xff]
        %v5947 = vld [vmem:[%s1326 + $0xb0] sm:$0xff]
        %v5948 = vld [vmem:[%s1326 + $0xb8] sm:$0xff]
        %v5949 = vld [vmem:[%s1326 + $0xc0] sm:$0xff]
        %v5950 = vld [vmem:[%s1326 + $0xc8] sm:$0xff]
        %v5951 = vld [vmem:[%s1326 + $0xd0] sm:$0xff]
        %v5952 = vld [vmem:[%s1326 + $0xd8] sm:$0xff]
        %v5953 = vld [vmem:[%s1326 + $0xe0] sm:$0xff]
        %v5954 = vld [vmem:[%s1326 + $0xe8] sm:$0xff]
        %v5955 = vld [vmem:[%s1326 + $0xf0] sm:$0xff]
        %v5956 = vld [vmem:[%s1326 + $0xf8] sm:$0xff]
        %v5957 = vadd.f32 %v5925, %v5807
        %v5958 = vadd.f32 %v5926, %v5810
        %v5959 = vadd.f32 %v5927, %v5815
        %v5960 = vadd.f32 %v5928, %v5818
        %v5961 = vadd.f32 %v5929, %v5823
        %v5962 = vadd.f32 %v5930, %v5826
        %v5963 = vadd.f32 %v5931, %v5831
        %v5964 = vadd.f32 %v5932, %v5834
        %v5965 = vadd.f32 %v5933, %v5839
        %v5966 = vadd.f32 %v5934, %v5842
        %v5967 = vadd.f32 %v5935, %v5847
        %v5968 = vadd.f32 %v5936, %v5850
        %v5969 = vadd.f32 %v5937, %v5855
        %v5970 = vadd.f32 %v5938, %v5858
        %v5971 = vadd.f32 %v5939, %v5863
        %v5972 = vadd.f32 %v5940, %v5866
        %v5973 = vadd.f32 %v5941, %v5871
        %v5974 = vadd.f32 %v5942, %v5874
        %v5975 = vadd.f32 %v5943, %v5879
        %v5976 = vadd.f32 %v5944, %v5882
        %v5977 = vadd.f32 %v5945, %v5887
        %v5978 = vadd.f32 %v5946, %v5890
        %v5979 = vadd.f32 %v5947, %v5895
        %v5980 = vadd.f32 %v5948, %v5898
        %v5981 = vadd.f32 %v5949, %v5903
        %v5982 = vadd.f32 %v5950, %v5906
        %v5983 = vadd.f32 %v5951, %v5911
        %v5984 = vadd.f32 %v5952, %v5914
        %v5985 = vadd.f32 %v5953, %v5919
        %v5986 = vadd.f32 %v5954, %v5922
        %v5987 = vadd.f32 %v5955, %v5799
        %v5988 = vadd.f32 %v5956, %v5802
        %5989 = vst [vmem:[%s1326] sm:$0xff] %v5957
        %5990 = vst [vmem:[%s1326 + $0x8] sm:$0xff] %v5958
        %5991 = vst [vmem:[%s1326 + $0x10] sm:$0xff] %v5959
        %5992 = vst [vmem:[%s1326 + $0x18] sm:$0xff] %v5960
        %5993 = vst [vmem:[%s1326 + $0x20] sm:$0xff] %v5961
        %5994 = vst [vmem:[%s1326 + $0x28] sm:$0xff] %v5962
        %5995 = vst [vmem:[%s1326 + $0x30] sm:$0xff] %v5963
        %5996 = vst [vmem:[%s1326 + $0x38] sm:$0xff] %v5964
        %5997 = vst [vmem:[%s1326 + $0x40] sm:$0xff] %v5965
        %5998 = vst [vmem:[%s1326 + $0x48] sm:$0xff] %v5966
        %5999 = vst [vmem:[%s1326 + $0x50] sm:$0xff] %v5967
        %6000 = vst [vmem:[%s1326 + $0x58] sm:$0xff] %v5968
        %6001 = vst [vmem:[%s1326 + $0x60] sm:$0xff] %v5969
        %6002 = vst [vmem:[%s1326 + $0x68] sm:$0xff] %v5970
        %6003 = vst [vmem:[%s1326 + $0x70] sm:$0xff] %v5971
        %6004 = vst [vmem:[%s1326 + $0x78] sm:$0xff] %v5972
        %6005 = vst [vmem:[%s1326 + $0x80] sm:$0xff] %v5973
        %6006 = vst [vmem:[%s1326 + $0x88] sm:$0xff] %v5974
        %6007 = vst [vmem:[%s1326 + $0x90] sm:$0xff] %v5975
        %6008 = vst [vmem:[%s1326 + $0x98] sm:$0xff] %v5976
        %6009 = vst [vmem:[%s1326 + $0xa0] sm:$0xff] %v5977
        %6010 = vst [vmem:[%s1326 + $0xa8] sm:$0xff] %v5978
        %6011 = vst [vmem:[%s1326 + $0xb0] sm:$0xff] %v5979
        %6012 = vst [vmem:[%s1326 + $0xb8] sm:$0xff] %v5980
        %6013 = vst [vmem:[%s1326 + $0xc0] sm:$0xff] %v5981
        %6014 = vst [vmem:[%s1326 + $0xc8] sm:$0xff] %v5982
        %6015 = vst [vmem:[%s1326 + $0xd0] sm:$0xff] %v5983
        %6016 = vst [vmem:[%s1326 + $0xd8] sm:$0xff] %v5984
        %6017 = vst [vmem:[%s1326 + $0xe0] sm:$0xff] %v5985
        %6018 = vst [vmem:[%s1326 + $0xe8] sm:$0xff] %v5986
        %6019 = vst [vmem:[%s1326 + $0xf0] sm:$0xff] %v5987
        %6020 = vst [vmem:[%s1326 + $0xf8] sm:$0xff] %v5988
        %v6021 = vld [vmem:[%s0] sm:$0xff]
        %v6022 = vld [vmem:[%s0 + $0x8] sm:$0xff]
        %v6023 = vld [vmem:[%s0 + $0x10] sm:$0xff]
        %v6024 = vld [vmem:[%s0 + $0x18] sm:$0xff]
        %v6025 = vld [vmem:[%s0 + $0x20] sm:$0xff]
        %v6026 = vld [vmem:[%s0 + $0x28] sm:$0xff]
        %v6027 = vld [vmem:[%s0 + $0x30] sm:$0xff]
        %v6028 = vld [vmem:[%s0 + $0x38] sm:$0xff]
        %v6029 = vld [vmem:[%s0 + $0x40] sm:$0xff]
        %v6030 = vld [vmem:[%s0 + $0x48] sm:$0xff]
        %v6031 = vld [vmem:[%s0 + $0x50] sm:$0xff]
        %v6032 = vld [vmem:[%s0 + $0x58] sm:$0xff]
        %v6033 = vld [vmem:[%s0 + $0x60] sm:$0xff]
        %v6034 = vld [vmem:[%s0 + $0x68] sm:$0xff]
        %v6035 = vld [vmem:[%s0 + $0x70] sm:$0xff]
        %v6036 = vld [vmem:[%s0 + $0x78] sm:$0xff]
        %v6037 = vld [vmem:[%s0 + $0x80] sm:$0xff]
        %v6038 = vld [vmem:[%s0 + $0x88] sm:$0xff]
        %v6039 = vld [vmem:[%s0 + $0x90] sm:$0xff]
        %v6040 = vld [vmem:[%s0 + $0x98] sm:$0xff]
        %v6041 = vld [vmem:[%s0 + $0xa0] sm:$0xff]
        %v6042 = vld [vmem:[%s0 + $0xa8] sm:$0xff]
        %v6043 = vld [vmem:[%s0 + $0xb0] sm:$0xff]
        %v6044 = vld [vmem:[%s0 + $0xb8] sm:$0xff]
        %v6045 = vld [vmem:[%s0 + $0xc0] sm:$0xff]
        %v6046 = vld [vmem:[%s0 + $0xc8] sm:$0xff]
        %v6047 = vld [vmem:[%s0 + $0xd0] sm:$0xff]
        %v6048 = vld [vmem:[%s0 + $0xd8] sm:$0xff]
        %v6049 = vld [vmem:[%s0 + $0xe0] sm:$0xff]
        %v6050 = vld [vmem:[%s0 + $0xe8] sm:$0xff]
        %v6051 = vld [vmem:[%s0 + $0xf0] sm:$0xff]
        %v6052 = vld [vmem:[%s0 + $0xf8] sm:$0xff]
        %s6053 = scalar_lea.vmem %s1309, 1024 [#allocation2]
        %v6054 = vld [vmem:[%s6053] sm:$0xf]
        %v6055 = vld [vmem:[%s6053 + $0x4] sm:$0xf]
        %v6056 = vld [vmem:[%s6053 + $0x8] sm:$0xf]
        %v6057 = vld [vmem:[%s6053 + $0xc] sm:$0xf]
        %v6058 = vld [vmem:[%s6053 + $0x10] sm:$0xf]
        %v6059 = vld [vmem:[%s6053 + $0x14] sm:$0xf]
        %v6060 = vld [vmem:[%s6053 + $0x18] sm:$0xf]
        %v6061 = vld [vmem:[%s6053 + $0x1c] sm:$0xf]
        %v6062 = vld [vmem:[%s6053 + $0x20] sm:$0xf]
        %v6063 = vld [vmem:[%s6053 + $0x24] sm:$0xf]
        %v6064 = vld [vmem:[%s6053 + $0x28] sm:$0xf]
        %v6065 = vld [vmem:[%s6053 + $0x2c] sm:$0xf]
        %v6066 = vld [vmem:[%s6053 + $0x30] sm:$0xf]
        %v6067 = vld [vmem:[%s6053 + $0x34] sm:$0xf]
        %v6068 = vld [vmem:[%s6053 + $0x38] sm:$0xf]
        %v6069 = vld [vmem:[%s6053 + $0x3c] sm:$0xf]
        %v6070 = vld [vmem:[%s6053 + $0x40] sm:$0xf]
        %v6071 = vld [vmem:[%s6053 + $0x44] sm:$0xf]
        %v6072 = vld [vmem:[%s6053 + $0x48] sm:$0xf]
        %v6073 = vld [vmem:[%s6053 + $0x4c] sm:$0xf]
        %v6074 = vld [vmem:[%s6053 + $0x50] sm:$0xf]
        %v6075 = vld [vmem:[%s6053 + $0x54] sm:$0xf]
        %v6076 = vld [vmem:[%s6053 + $0x58] sm:$0xf]
        %v6077 = vld [vmem:[%s6053 + $0x5c] sm:$0xf]
        %v6078 = vld [vmem:[%s6053 + $0x60] sm:$0xf]
        %v6079 = vld [vmem:[%s6053 + $0x64] sm:$0xf]
        %v6080 = vld [vmem:[%s6053 + $0x68] sm:$0xf]
        %v6081 = vld [vmem:[%s6053 + $0x6c] sm:$0xf]
        %v6082 = vld [vmem:[%s6053 + $0x70] sm:$0xf]
        %v6083 = vld [vmem:[%s6053 + $0x74] sm:$0xf]
        %v6084 = vld [vmem:[%s6053 + $0x78] sm:$0xf]
        %v6085 = vld [vmem:[%s6053 + $0x7c] sm:$0xf]
        %v6118 = vunpack.c.l.b16 %v6021
        %v6119 = vunpack.c.h.b16 %v6021
        %v6120 = vunpack.c.l.b16 %v6022
        %v6121 = vunpack.c.h.b16 %v6022
        %v6122 = vunpack.c.l.b16 %v6023
        %v6123 = vunpack.c.h.b16 %v6023
        %v6124 = vunpack.c.l.b16 %v6024
        %v6125 = vunpack.c.h.b16 %v6024
        %v6126 = vunpack.c.l.b16 %v6025
        %v6127 = vunpack.c.h.b16 %v6025
        %v6128 = vunpack.c.l.b16 %v6026
        %v6129 = vunpack.c.h.b16 %v6026
        %v6130 = vunpack.c.l.b16 %v6027
        %v6131 = vunpack.c.h.b16 %v6027
        %v6132 = vunpack.c.l.b16 %v6028
        %v6133 = vunpack.c.h.b16 %v6028
        %v6134 = vunpack.c.l.b16 %v6029
        %v6135 = vunpack.c.h.b16 %v6029
        %v6136 = vunpack.c.l.b16 %v6030
        %v6137 = vunpack.c.h.b16 %v6030
        %v6138 = vunpack.c.l.b16 %v6031
        %v6139 = vunpack.c.h.b16 %v6031
        %v6140 = vunpack.c.l.b16 %v6032
        %v6141 = vunpack.c.h.b16 %v6032
        %v6142 = vunpack.c.l.b16 %v6033
        %v6143 = vunpack.c.h.b16 %v6033
        %v6144 = vunpack.c.l.b16 %v6034
        %v6145 = vunpack.c.h.b16 %v6034
        %v6146 = vunpack.c.l.b16 %v6035
        %v6147 = vunpack.c.h.b16 %v6035
        %v6148 = vunpack.c.l.b16 %v6036
        %v6149 = vunpack.c.h.b16 %v6036
        %v6150 = vunpack.c.l.b16 %v6037
        %v6151 = vunpack.c.h.b16 %v6037
        %v6152 = vunpack.c.l.b16 %v6038
        %v6153 = vunpack.c.h.b16 %v6038
        %v6154 = vunpack.c.l.b16 %v6039
        %v6155 = vunpack.c.h.b16 %v6039
        %v6156 = vunpack.c.l.b16 %v6040
        %v6157 = vunpack.c.h.b16 %v6040
        %v6158 = vunpack.c.l.b16 %v6041
        %v6159 = vunpack.c.h.b16 %v6041
        %v6160 = vunpack.c.l.b16 %v6042
        %v6161 = vunpack.c.h.b16 %v6042
        %v6162 = vunpack.c.l.b16 %v6043
        %v6163 = vunpack.c.h.b16 %v6043
        %v6164 = vunpack.c.l.b16 %v6044
        %v6165 = vunpack.c.h.b16 %v6044
        %v6166 = vunpack.c.l.b16 %v6045
        %v6167 = vunpack.c.h.b16 %v6045
        %v6168 = vunpack.c.l.b16 %v6046
        %v6169 = vunpack.c.h.b16 %v6046
        %v6170 = vunpack.c.l.b16 %v6047
        %v6171 = vunpack.c.h.b16 %v6047
        %v6172 = vunpack.c.l.b16 %v6048
        %v6173 = vunpack.c.h.b16 %v6048
        %v6174 = vunpack.c.l.b16 %v6049
        %v6175 = vunpack.c.h.b16 %v6049
        %v6176 = vunpack.c.l.b16 %v6050
        %v6177 = vunpack.c.h.b16 %v6050
        %v6178 = vunpack.c.l.b16 %v6051
        %v6179 = vunpack.c.h.b16 %v6051
        %v6180 = vunpack.c.l.b16 %v6052
        %v6181 = vunpack.c.h.b16 %v6052
        %v6182 = vpack.c.b16 %v6120, %v6118
        %v6183 = vpack.c.b16 %v6121, %v6119
        %v6184 = vpack.c.b16 %v6124, %v6122
        %v6185 = vpack.c.b16 %v6125, %v6123
        %v6186 = vpack.c.b16 %v6128, %v6126
        %v6187 = vpack.c.b16 %v6129, %v6127
        %v6188 = vpack.c.b16 %v6132, %v6130
        %v6189 = vpack.c.b16 %v6133, %v6131
        %v6190 = vpack.c.b16 %v6136, %v6134
        %v6191 = vpack.c.b16 %v6137, %v6135
        %v6192 = vpack.c.b16 %v6140, %v6138
        %v6193 = vpack.c.b16 %v6141, %v6139
        %v6194 = vpack.c.b16 %v6144, %v6142
        %v6195 = vpack.c.b16 %v6145, %v6143
        %v6196 = vpack.c.b16 %v6148, %v6146
        %v6197 = vpack.c.b16 %v6149, %v6147
        %v6198 = vpack.c.b16 %v6152, %v6150
        %v6199 = vpack.c.b16 %v6153, %v6151
        %v6200 = vpack.c.b16 %v6156, %v6154
        %v6201 = vpack.c.b16 %v6157, %v6155
        %v6202 = vpack.c.b16 %v6160, %v6158
        %v6203 = vpack.c.b16 %v6161, %v6159
        %v6204 = vpack.c.b16 %v6164, %v6162
        %v6205 = vpack.c.b16 %v6165, %v6163
        %v6206 = vpack.c.b16 %v6168, %v6166
        %v6207 = vpack.c.b16 %v6169, %v6167
        %v6208 = vpack.c.b16 %v6172, %v6170
        %v6209 = vpack.c.b16 %v6173, %v6171
        %v6210 = vpack.c.b16 %v6176, %v6174
        %v6211 = vpack.c.b16 %v6177, %v6175
        %v6212 = vpack.c.b16 %v6180, %v6178
        %v6213 = vpack.c.b16 %v6181, %v6179
        %v6278 = vunpack.c.l.b16 %v6054
        %v6279 = vunpack.c.l.b16 %v6055
        %v6280 = vunpack.c.l.b16 %v6056
        %v6281 = vunpack.c.l.b16 %v6057
        %v6282 = vunpack.c.l.b16 %v6058
        %v6283 = vunpack.c.l.b16 %v6059
        %v6284 = vunpack.c.l.b16 %v6060
        %v6285 = vunpack.c.l.b16 %v6061
        %v6286 = vunpack.c.l.b16 %v6062
        %v6287 = vunpack.c.l.b16 %v6063
        %v6288 = vunpack.c.l.b16 %v6064
        %v6289 = vunpack.c.l.b16 %v6065
        %v6290 = vunpack.c.l.b16 %v6066
        %v6291 = vunpack.c.l.b16 %v6067
        %v6292 = vunpack.c.l.b16 %v6068
        %v6293 = vunpack.c.l.b16 %v6069
        %v6294 = vunpack.c.l.b16 %v6070
        %v6295 = vunpack.c.l.b16 %v6071
        %v6296 = vunpack.c.l.b16 %v6072
        %v6297 = vunpack.c.l.b16 %v6073
        %v6298 = vunpack.c.l.b16 %v6074
        %v6299 = vunpack.c.l.b16 %v6075
        %v6300 = vunpack.c.l.b16 %v6076
        %v6301 = vunpack.c.l.b16 %v6077
        %v6302 = vunpack.c.l.b16 %v6078
        %v6303 = vunpack.c.l.b16 %v6079
        %v6304 = vunpack.c.l.b16 %v6080
        %v6305 = vunpack.c.l.b16 %v6081
        %v6306 = vunpack.c.l.b16 %v6082
        %v6307 = vunpack.c.l.b16 %v6083
        %v6308 = vunpack.c.l.b16 %v6084
        %v6309 = vunpack.c.l.b16 %v6085
        %v6310 = vpack.c.b16 %v6279, %v6278
        %v6311 = vpack.c.b16 %v6281, %v6280
        %v6312 = vpack.c.b16 %v6283, %v6282
        %v6313 = vpack.c.b16 %v6285, %v6284
        %v6314 = vpack.c.b16 %v6287, %v6286
        %v6315 = vpack.c.b16 %v6289, %v6288
        %v6316 = vpack.c.b16 %v6291, %v6290
        %v6317 = vpack.c.b16 %v6293, %v6292
        %v6318 = vpack.c.b16 %v6295, %v6294
        %v6319 = vpack.c.b16 %v6297, %v6296
        %v6320 = vpack.c.b16 %v6299, %v6298
        %v6321 = vpack.c.b16 %v6301, %v6300
        %v6322 = vpack.c.b16 %v6303, %v6302
        %v6323 = vpack.c.b16 %v6305, %v6304
        %v6324 = vpack.c.b16 %v6307, %v6306
        %v6325 = vpack.c.b16 %v6309, %v6308
        %6342 = vmatprep.subr.bf16.mxu0 0
        %6343 = vmatpush1.bf16.msra.mxu0 %v6310
        %6344 = vmatprep.subr.bf16.mxu0 0
        %6345 = vmatpush1.bf16.msra.mxu0 %v6311
        %6346 = vmatprep.subr.bf16.mxu0 0
        %6347 = vmatpush1.bf16.msra.mxu0 %v6312
        %6348 = vmatprep.subr.bf16.mxu0 0
        %6349 = vmatpush1.bf16.msra.mxu0 %v6313
        %6350 = vmatprep.subr.bf16.mxu0 0
        %6351 = vmatpush1.bf16.msra.mxu0 %v6314
        %6352 = vmatprep.subr.bf16.mxu0 0
        %6353 = vmatpush1.bf16.msra.mxu0 %v6315
        %6354 = vmatprep.subr.bf16.mxu0 0
        %6355 = vmatpush1.bf16.msra.mxu0 %v6316
        %6356 = vmatprep.subr.bf16.mxu0 0
        %6357 = vmatpush1.bf16.msra.mxu0 %v6317
        %6358 = vmatprep.subr.bf16.mxu0 0
        %6359 = vmatpush1.bf16.msra.mxu0 %v6318
        %6360 = vmatprep.subr.bf16.mxu0 0
        %6361 = vmatpush1.bf16.msra.mxu0 %v6319
        %6362 = vmatprep.subr.bf16.mxu0 0
        %6363 = vmatpush1.bf16.msra.mxu0 %v6320
        %6364 = vmatprep.subr.bf16.mxu0 0
        %6365 = vmatpush1.bf16.msra.mxu0 %v6321
        %6366 = vmatprep.subr.bf16.mxu0 0
        %6367 = vmatpush1.bf16.msra.mxu0 %v6322
        %6368 = vmatprep.subr.bf16.mxu0 0
        %6369 = vmatpush1.bf16.msra.mxu0 %v6323
        %6370 = vmatprep.subr.bf16.mxu0 0
        %6371 = vmatpush1.bf16.msra.mxu0 %v6324
        %6372 = vmatprep.subr.bf16.mxu0 0
        %6373 = vmatpush1.bf16.msra.mxu0 %v6325
        %6374 = vmatprep.mubr.bf16.mxu0 %v6183
        %6375 = vmatmul.mubr.bf16.gmra.mrb[0].mxu0 %v6182
        %v6376 = vpop.f32.mrb[0].mxu0
        %v6377 = vadd.f32 0.0, %v6376
        %v6378 = vpop.f32.mrb[0].mxu0
        %v6379 = vpop.f32.mrb[0].mxu0
        %v6380 = vadd.f32 0.0, %v6379
        %v6381 = vpop.f32.mrb[0].mxu0
        %6382 = vmatprep.mubr.bf16.mxu0 %v6185
        %6383 = vmatmul.mubr.bf16.gmra.mrb[0].mxu0 %v6184
        %v6384 = vpop.f32.mrb[0].mxu0
        %v6385 = vadd.f32 0.0, %v6384
        %v6386 = vpop.f32.mrb[0].mxu0
        %v6387 = vpop.f32.mrb[0].mxu0
        %v6388 = vadd.f32 0.0, %v6387
        %v6389 = vpop.f32.mrb[0].mxu0
        %6390 = vmatprep.mubr.bf16.mxu0 %v6187
        %6391 = vmatmul.mubr.bf16.gmra.mrb[0].mxu0 %v6186
        %v6392 = vpop.f32.mrb[0].mxu0
        %v6393 = vadd.f32 0.0, %v6392
        %v6394 = vpop.f32.mrb[0].mxu0
        %v6395 = vpop.f32.mrb[0].mxu0
        %v6396 = vadd.f32 0.0, %v6395
        %v6397 = vpop.f32.mrb[0].mxu0
        %6398 = vmatprep.mubr.bf16.mxu0 %v6189
        %6399 = vmatmul.mubr.bf16.gmra.mrb[0].mxu0 %v6188
        %v6400 = vpop.f32.mrb[0].mxu0
        %v6401 = vadd.f32 0.0, %v6400
        %v6402 = vpop.f32.mrb[0].mxu0
        %v6403 = vpop.f32.mrb[0].mxu0
        %v6404 = vadd.f32 0.0, %v6403
        %v6405 = vpop.f32.mrb[0].mxu0
        %6406 = vmatprep.mubr.bf16.mxu0 %v6191
        %6407 = vmatmul.mubr.bf16.gmra.mrb[0].mxu0 %v6190
        %v6408 = vpop.f32.mrb[0].mxu0
        %v6409 = vadd.f32 0.0, %v6408
        %v6410 = vpop.f32.mrb[0].mxu0
        %v6411 = vpop.f32.mrb[0].mxu0
        %v6412 = vadd.f32 0.0, %v6411
        %v6413 = vpop.f32.mrb[0].mxu0
        %6414 = vmatprep.mubr.bf16.mxu0 %v6193
        %6415 = vmatmul.mubr.bf16.gmra.mrb[0].mxu0 %v6192
        %v6416 = vpop.f32.mrb[0].mxu0
        %v6417 = vadd.f32 0.0, %v6416
        %v6418 = vpop.f32.mrb[0].mxu0
        %v6419 = vpop.f32.mrb[0].mxu0
        %v6420 = vadd.f32 0.0, %v6419
        %v6421 = vpop.f32.mrb[0].mxu0
        %6422 = vmatprep.mubr.bf16.mxu0 %v6195
        %6423 = vmatmul.mubr.bf16.gmra.mrb[0].mxu0 %v6194
        %v6424 = vpop.f32.mrb[0].mxu0
        %v6425 = vadd.f32 0.0, %v6424
        %v6426 = vpop.f32.mrb[0].mxu0
        %v6427 = vpop.f32.mrb[0].mxu0
        %v6428 = vadd.f32 0.0, %v6427
        %v6429 = vpop.f32.mrb[0].mxu0
        %6430 = vmatprep.mubr.bf16.mxu0 %v6197
        %6431 = vmatmul.mubr.bf16.gmra.mrb[0].mxu0 %v6196
        %v6432 = vpop.f32.mrb[0].mxu0
        %v6433 = vadd.f32 0.0, %v6432
        %v6434 = vpop.f32.mrb[0].mxu0
        %v6435 = vpop.f32.mrb[0].mxu0
        %v6436 = vadd.f32 0.0, %v6435
        %v6437 = vpop.f32.mrb[0].mxu0
        %6438 = vmatprep.mubr.bf16.mxu0 %v6199
        %6439 = vmatmul.mubr.bf16.gmra.mrb[0].mxu0 %v6198
        %v6440 = vpop.f32.mrb[0].mxu0
        %v6441 = vadd.f32 0.0, %v6440
        %v6442 = vpop.f32.mrb[0].mxu0
        %v6443 = vpop.f32.mrb[0].mxu0
        %v6444 = vadd.f32 0.0, %v6443
        %v6445 = vpop.f32.mrb[0].mxu0
        %6446 = vmatprep.mubr.bf16.mxu0 %v6201
        %6447 = vmatmul.mubr.bf16.gmra.mrb[0].mxu0 %v6200
        %v6448 = vpop.f32.mrb[0].mxu0
        %v6449 = vadd.f32 0.0, %v6448
        %v6450 = vpop.f32.mrb[0].mxu0
        %v6451 = vpop.f32.mrb[0].mxu0
        %v6452 = vadd.f32 0.0, %v6451
        %v6453 = vpop.f32.mrb[0].mxu0
        %6454 = vmatprep.mubr.bf16.mxu0 %v6203
        %6455 = vmatmul.mubr.bf16.gmra.mrb[0].mxu0 %v6202
        %v6456 = vpop.f32.mrb[0].mxu0
        %v6457 = vadd.f32 0.0, %v6456
        %v6458 = vpop.f32.mrb[0].mxu0
        %v6459 = vpop.f32.mrb[0].mxu0
        %v6460 = vadd.f32 0.0, %v6459
        %v6461 = vpop.f32.mrb[0].mxu0
        %6462 = vmatprep.mubr.bf16.mxu0 %v6205
        %6463 = vmatmul.mubr.bf16.gmra.mrb[0].mxu0 %v6204
        %v6464 = vpop.f32.mrb[0].mxu0
        %v6465 = vadd.f32 0.0, %v6464
        %v6466 = vpop.f32.mrb[0].mxu0
        %v6467 = vpop.f32.mrb[0].mxu0
        %v6468 = vadd.f32 0.0, %v6467
        %v6469 = vpop.f32.mrb[0].mxu0
        %6470 = vmatprep.mubr.bf16.mxu0 %v6207
        %6471 = vmatmul.mubr.bf16.gmra.mrb[0].mxu0 %v6206
        %v6472 = vpop.f32.mrb[0].mxu0
        %v6473 = vadd.f32 0.0, %v6472
        %v6474 = vpop.f32.mrb[0].mxu0
        %v6475 = vpop.f32.mrb[0].mxu0
        %v6476 = vadd.f32 0.0, %v6475
        %v6477 = vpop.f32.mrb[0].mxu0
        %6478 = vmatprep.mubr.bf16.mxu0 %v6209
        %6479 = vmatmul.mubr.bf16.gmra.mrb[0].mxu0 %v6208
        %v6480 = vpop.f32.mrb[0].mxu0
        %v6481 = vadd.f32 0.0, %v6480
        %v6482 = vpop.f32.mrb[0].mxu0
        %v6483 = vpop.f32.mrb[0].mxu0
        %v6484 = vadd.f32 0.0, %v6483
        %v6485 = vpop.f32.mrb[0].mxu0
        %6486 = vmatprep.mubr.bf16.mxu0 %v6211
        %6487 = vmatmul.mubr.bf16.gmra.mrb[0].mxu0 %v6210
        %v6488 = vpop.f32.mrb[0].mxu0
        %v6489 = vadd.f32 0.0, %v6488
        %v6490 = vpop.f32.mrb[0].mxu0
        %v6491 = vpop.f32.mrb[0].mxu0
        %v6492 = vadd.f32 0.0, %v6491
        %v6493 = vpop.f32.mrb[0].mxu0
        %6494 = vmatprep.mubr.bf16.mxu0 %v6213
        %6495 = vmatmul.mubr.bf16.gmra.mrb[0].mxu0 %v6212
        %v6496 = vpop.f32.mrb[0].mxu0
        %v6497 = vadd.f32 0.0, %v6496
        %v6498 = vpop.f32.mrb[0].mxu0
        %v6499 = vpop.f32.mrb[0].mxu0
        %v6500 = vadd.f32 0.0, %v6499
        %v6501 = vpop.f32.mrb[0].mxu0
        %6502 = vdwg.mxu0
        %v6503 = vrot.slane %v6377, 1
        %v6504 = vrot.slane %v6380, 1
        %v6505 = vrot.slane %v6385, 1
        %v6506 = vrot.slane %v6388, 1
        %v6507 = vrot.slane %v6393, 1
        %v6508 = vrot.slane %v6396, 1
        %v6509 = vrot.slane %v6401, 1
        %v6510 = vrot.slane %v6404, 1
        %v6511 = vrot.slane %v6409, 1
        %v6512 = vrot.slane %v6412, 1
        %v6513 = vrot.slane %v6417, 1
        %v6514 = vrot.slane %v6420, 1
        %v6515 = vrot.slane %v6425, 1
        %v6516 = vrot.slane %v6428, 1
        %v6517 = vrot.slane %v6433, 1
        %v6518 = vrot.slane %v6436, 1
        %v6519 = vrot.slane %v6441, 1
        %v6520 = vrot.slane %v6444, 1
        %v6521 = vrot.slane %v6449, 1
        %v6522 = vrot.slane %v6452, 1
        %v6523 = vrot.slane %v6457, 1
        %v6524 = vrot.slane %v6460, 1
        %v6525 = vrot.slane %v6465, 1
        %v6526 = vrot.slane %v6468, 1
        %v6527 = vrot.slane %v6473, 1
        %v6528 = vrot.slane %v6476, 1
        %v6529 = vrot.slane %v6481, 1
        %v6530 = vrot.slane %v6484, 1
        %v6531 = vrot.slane %v6489, 1
        %v6532 = vrot.slane %v6492, 1
        %v6533 = vrot.slane %v6497, 1
        %v6534 = vrot.slane %v6500, 1
        %v6535 = vsel %vm2936, %v6533, %v6534
        %v6536 = vsel %vm2936, %v6532, %v6533
        %v6537 = vsel %vm2936, %v6531, %v6532
        %v6538 = vsel %vm2936, %v6530, %v6531
        %v6539 = vsel %vm2936, %v6529, %v6530
        %v6540 = vsel %vm2936, %v6528, %v6529
        %v6541 = vsel %vm2936, %v6527, %v6528
        %v6542 = vsel %vm2936, %v6526, %v6527
        %v6543 = vsel %vm2936, %v6525, %v6526
        %v6544 = vsel %vm2936, %v6524, %v6525
        %v6545 = vsel %vm2936, %v6523, %v6524
        %v6546 = vsel %vm2936, %v6522, %v6523
        %v6547 = vsel %vm2936, %v6521, %v6522
        %v6548 = vsel %vm2936, %v6520, %v6521
        %v6549 = vsel %vm2936, %v6519, %v6520
        %v6550 = vsel %vm2936, %v6518, %v6519
        %v6551 = vsel %vm2936, %v6517, %v6518
        %v6552 = vsel %vm2936, %v6516, %v6517
        %v6553 = vsel %vm2936, %v6515, %v6516
        %v6554 = vsel %vm2936, %v6514, %v6515
        %v6555 = vsel %vm2936, %v6513, %v6514
        %v6556 = vsel %vm2936, %v6512, %v6513
        %v6557 = vsel %vm2936, %v6511, %v6512
        %v6558 = vsel %vm2936, %v6510, %v6511
        %v6559 = vsel %vm2936, %v6509, %v6510
        %v6560 = vsel %vm2936, %v6508, %v6509
        %v6561 = vsel %vm2936, %v6507, %v6508
        %v6562 = vsel %vm2936, %v6506, %v6507
        %v6563 = vsel %vm2936, %v6505, %v6506
        %v6564 = vsel %vm2936, %v6504, %v6505
        %v6565 = vsel %vm2936, %v6503, %v6504
        %v6566 = vsel %vm2936, %v6534, %v6503
        %v6567 = vld [vmem:[%s1326] sm:$0xff]
        %v6568 = vld [vmem:[%s1326 + $0x8] sm:$0xff]
        %v6569 = vld [vmem:[%s1326 + $0x10] sm:$0xff]
        %v6570 = vld [vmem:[%s1326 + $0x18] sm:$0xff]
        %v6571 = vld [vmem:[%s1326 + $0x20] sm:$0xff]
        %v6572 = vld [vmem:[%s1326 + $0x28] sm:$0xff]
        %v6573 = vld [vmem:[%s1326 + $0x30] sm:$0xff]
        %v6574 = vld [vmem:[%s1326 + $0x38] sm:$0xff]
        %v6575 = vld [vmem:[%s1326 + $0x40] sm:$0xff]
        %v6576 = vld [vmem:[%s1326 + $0x48] sm:$0xff]
        %v6577 = vld [vmem:[%s1326 + $0x50] sm:$0xff]
        %v6578 = vld [vmem:[%s1326 + $0x58] sm:$0xff]
        %v6579 = vld [vmem:[%s1326 + $0x60] sm:$0xff]
        %v6580 = vld [vmem:[%s1326 + $0x68] sm:$0xff]
        %v6581 = vld [vmem:[%s1326 + $0x70] sm:$0xff]
        %v6582 = vld [vmem:[%s1326 + $0x78] sm:$0xff]
        %v6583 = vld [vmem:[%s1326 + $0x80] sm:$0xff]
        %v6584 = vld [vmem:[%s1326 + $0x88] sm:$0xff]
        %v6585 = vld [vmem:[%s1326 + $0x90] sm:$0xff]
        %v6586 = vld [vmem:[%s1326 + $0x98] sm:$0xff]
        %v6587 = vld [vmem:[%s1326 + $0xa0] sm:$0xff]
        %v6588 = vld [vmem:[%s1326 + $0xa8] sm:$0xff]
        %v6589 = vld [vmem:[%s1326 + $0xb0] sm:$0xff]
        %v6590 = vld [vmem:[%s1326 + $0xb8] sm:$0xff]
        %v6591 = vld [vmem:[%s1326 + $0xc0] sm:$0xff]
        %v6592 = vld [vmem:[%s1326 + $0xc8] sm:$0xff]
        %v6593 = vld [vmem:[%s1326 + $0xd0] sm:$0xff]
        %v6594 = vld [vmem:[%s1326 + $0xd8] sm:$0xff]
        %v6595 = vld [vmem:[%s1326 + $0xe0] sm:$0xff]
        %v6596 = vld [vmem:[%s1326 + $0xe8] sm:$0xff]
        %v6597 = vld [vmem:[%s1326 + $0xf0] sm:$0xff]
        %v6598 = vld [vmem:[%s1326 + $0xf8] sm:$0xff]
        %v6599 = vadd.f32 %v6567, %v6563
        %v6600 = vadd.f32 %v6568, %v6562
        %v6601 = vadd.f32 %v6569, %v6561
        %v6602 = vadd.f32 %v6570, %v6560
        %v6603 = vadd.f32 %v6571, %v6559
        %v6604 = vadd.f32 %v6572, %v6558
        %v6605 = vadd.f32 %v6573, %v6557
        %v6606 = vadd.f32 %v6574, %v6556
        %v6607 = vadd.f32 %v6575, %v6555
        %v6608 = vadd.f32 %v6576, %v6554
        %v6609 = vadd.f32 %v6577, %v6553
        %v6610 = vadd.f32 %v6578, %v6552
        %v6611 = vadd.f32 %v6579, %v6551
        %v6612 = vadd.f32 %v6580, %v6550
        %v6613 = vadd.f32 %v6581, %v6549
        %v6614 = vadd.f32 %v6582, %v6548
        %v6615 = vadd.f32 %v6583, %v6547
        %v6616 = vadd.f32 %v6584, %v6546
        %v6617 = vadd.f32 %v6585, %v6545
        %v6618 = vadd.f32 %v6586, %v6544
        %v6619 = vadd.f32 %v6587, %v6543
        %v6620 = vadd.f32 %v6588, %v6542
        %v6621 = vadd.f32 %v6589, %v6541
        %v6622 = vadd.f32 %v6590, %v6540
        %v6623 = vadd.f32 %v6591, %v6539
        %v6624 = vadd.f32 %v6592, %v6538
        %v6625 = vadd.f32 %v6593, %v6537
        %v6626 = vadd.f32 %v6594, %v6536
        %v6627 = vadd.f32 %v6595, %v6535
        %v6628 = vadd.f32 %v6596, %v6566
        %v6629 = vadd.f32 %v6597, %v6565
        %v6630 = vadd.f32 %v6598, %v6564
        %6631 = vst [vmem:[%s1326] sm:$0xff] %v6599
        %6632 = vst [vmem:[%s1326 + $0x8] sm:$0xff] %v6600
        %6633 = vst [vmem:[%s1326 + $0x10] sm:$0xff] %v6601
        %6634 = vst [vmem:[%s1326 + $0x18] sm:$0xff] %v6602
        %6635 = vst [vmem:[%s1326 + $0x20] sm:$0xff] %v6603
        %6636 = vst [vmem:[%s1326 + $0x28] sm:$0xff] %v6604
        %6637 = vst [vmem:[%s1326 + $0x30] sm:$0xff] %v6605
        %6638 = vst [vmem:[%s1326 + $0x38] sm:$0xff] %v6606
        %6639 = vst [vmem:[%s1326 + $0x40] sm:$0xff] %v6607
        %6640 = vst [vmem:[%s1326 + $0x48] sm:$0xff] %v6608
        %6641 = vst [vmem:[%s1326 + $0x50] sm:$0xff] %v6609
        %6642 = vst [vmem:[%s1326 + $0x58] sm:$0xff] %v6610
        %6643 = vst [vmem:[%s1326 + $0x60] sm:$0xff] %v6611
        %6644 = vst [vmem:[%s1326 + $0x68] sm:$0xff] %v6612
        %6645 = vst [vmem:[%s1326 + $0x70] sm:$0xff] %v6613
        %6646 = vst [vmem:[%s1326 + $0x78] sm:$0xff] %v6614
        %6647 = vst [vmem:[%s1326 + $0x80] sm:$0xff] %v6615
        %6648 = vst [vmem:[%s1326 + $0x88] sm:$0xff] %v6616
        %6649 = vst [vmem:[%s1326 + $0x90] sm:$0xff] %v6617
        %6650 = vst [vmem:[%s1326 + $0x98] sm:$0xff] %v6618
        %6651 = vst [vmem:[%s1326 + $0xa0] sm:$0xff] %v6619
        %6652 = vst [vmem:[%s1326 + $0xa8] sm:$0xff] %v6620
        %6653 = vst [vmem:[%s1326 + $0xb0] sm:$0xff] %v6621
        %6654 = vst [vmem:[%s1326 + $0xb8] sm:$0xff] %v6622
        %6655 = vst [vmem:[%s1326 + $0xc0] sm:$0xff] %v6623
        %6656 = vst [vmem:[%s1326 + $0xc8] sm:$0xff] %v6624
        %6657 = vst [vmem:[%s1326 + $0xd0] sm:$0xff] %v6625
        %6658 = vst [vmem:[%s1326 + $0xd8] sm:$0xff] %v6626
        %6659 = vst [vmem:[%s1326 + $0xe0] sm:$0xff] %v6627
        %6660 = vst [vmem:[%s1326 + $0xe8] sm:$0xff] %v6628
        %6661 = vst [vmem:[%s1326 + $0xf0] sm:$0xff] %v6629
        %6662 = vst [vmem:[%s1326 + $0xf8] sm:$0xff] %v6630
        %s6663 = sand.u32 %s68, 1
        %s6664 = sand.u32 %s68, 1
        %s6665 = smul.addr %s6664, 256
        %s6666 = scalar_lea.vmem [#allocation3], %s6665
        // Predicated region
        $region70: #{conv2d_3x3_s2_p1.1} parent=64 // pred_check
          %p6667 = pneg %p78
        $region71: #{conv2d_3x3_s2_p1.1} parent=64 // pred_check_branch
          %6669 = sbr.rel (%p6667) target = $region73
        $region72: #{conv2d_3x3_s2_p1.1} parent=64 // pred_region
          %s6670 = smul.addr %s13, 8
          %s6671 = scalar_lea.vmem %s2, %s6670
          // Predicated region
          $region74: #{conv2d_3x3_s2_p1.1} parent=72 // pred_check
            _
          $region75: #{conv2d_3x3_s2_p1.1} parent=72 // pred_check_branch
            %6673 = sbr.rel (0) target = $region77
          $region76: #{conv2d_3x3_s2_p1.1} parent=72 // pred_region
            // Predicated region
            $region78: #{conv2d_3x3_s2_p1.1} parent=76 // pred_check
              _
            $region79: #{conv2d_3x3_s2_p1.1} parent=76 // pred_check_branch
              %6675 = sbr.rel (0) target = $region81
            $region80: #{conv2d_3x3_s2_p1.1} parent=76 // pred_region
              // Predicated region
              $region93: #{conv2d_3x3_s2_p1.1} parent=80 // pred_check
                _
              $region94: #{conv2d_3x3_s2_p1.1} parent=80 // pred_check_branch
                %6752 = sbr.rel (0) target = $region96
              $region95: #{conv2d_3x3_s2_p1.1} parent=80 // pred_region
                loop: start=0, step=1, limit=1
                $region97: #{conv2d_3x3_s2_p1.1} parent=95 // loop_pre_header
                  _
                $region98: #{conv2d_3x3_s2_p1.1} parent=95 // loop_header
                  %s6754 = sphi 0, %s6758
                  %p6755 = scmp.ge.s32.totalorder %s6754, 1
                  %s6759 = sphi %s6666, %s6666
                  %s6760 = sphi %s6671, %s6671
                $region99: #{conv2d_3x3_s2_p1.1} parent=95 // loop_header_branch
                  %6757 = sbr.rel (%p6755) target = $region103
                $region100: #{conv2d_3x3_s2_p1.1} parent=95 // loop_body
                  %v6761 = vld [vmem:[%s6759] sm:$0xff]
                  %6762 = vst [vmem:[%s6760] sm:$0xff] %v6761
                  %v6763 = vld [vmem:[%s6759 + $0x8] sm:$0xff]
                  %6764 = vst [vmem:[%s6760 + $0x10] sm:$0xff] %v6763
                  %v6765 = vld [vmem:[%s6759 + $0x10] sm:$0xff]
                  %6766 = vst [vmem:[%s6760 + $0x20] sm:$0xff] %v6765
                  %v6767 = vld [vmem:[%s6759 + $0x18] sm:$0xff]
                  %6768 = vst [vmem:[%s6760 + $0x30] sm:$0xff] %v6767
                  %v6769 = vld [vmem:[%s6759 + $0x20] sm:$0xff]
                  %6770 = vst [vmem:[%s6760 + $0x40] sm:$0xff] %v6769
                  %v6771 = vld [vmem:[%s6759 + $0x28] sm:$0xff]
                  %6772 = vst [vmem:[%s6760 + $0x50] sm:$0xff] %v6771
                  %v6773 = vld [vmem:[%s6759 + $0x30] sm:$0xff]
                  %6774 = vst [vmem:[%s6760 + $0x60] sm:$0xff] %v6773
                  %v6775 = vld [vmem:[%s6759 + $0x38] sm:$0xff]
                  %6776 = vst [vmem:[%s6760 + $0x70] sm:$0xff] %v6775
                  %v6777 = vld [vmem:[%s6759 + $0x40] sm:$0xff]
                  %6778 = vst [vmem:[%s6760 + $0x80] sm:$0xff] %v6777
                  %v6779 = vld [vmem:[%s6759 + $0x48] sm:$0xff]
                  %6780 = vst [vmem:[%s6760 + $0x90] sm:$0xff] %v6779
                  %v6781 = vld [vmem:[%s6759 + $0x50] sm:$0xff]
                  %6782 = vst [vmem:[%s6760 + $0xa0] sm:$0xff] %v6781
                  %v6783 = vld [vmem:[%s6759 + $0x58] sm:$0xff]
                  %6784 = vst [vmem:[%s6760 + $0xb0] sm:$0xff] %v6783
                  %v6785 = vld [vmem:[%s6759 + $0x60] sm:$0xff]
                  %6786 = vst [vmem:[%s6760 + $0xc0] sm:$0xff] %v6785
                  %v6787 = vld [vmem:[%s6759 + $0x68] sm:$0xff]
                  %6788 = vst [vmem:[%s6760 + $0xd0] sm:$0xff] %v6787
                  %v6789 = vld [vmem:[%s6759 + $0x70] sm:$0xff]
                  %6790 = vst [vmem:[%s6760 + $0xe0] sm:$0xff] %v6789
                  %v6791 = vld [vmem:[%s6759 + $0x78] sm:$0xff]
                  %6792 = vst [vmem:[%s6760 + $0xf0] sm:$0xff] %v6791
                  %v6793 = vld [vmem:[%s6759 + $0x80] sm:$0xff]
                  %6794 = vst [vmem:[%s6760 + $0x100] sm:$0xff] %v6793
                  %v6795 = vld [vmem:[%s6759 + $0x88] sm:$0xff]
                  %6796 = vst [vmem:[%s6760 + $0x110] sm:$0xff] %v6795
                  %v6797 = vld [vmem:[%s6759 + $0x90] sm:$0xff]
                  %6798 = vst [vmem:[%s6760 + $0x120] sm:$0xff] %v6797
                  %v6799 = vld [vmem:[%s6759 + $0x98] sm:$0xff]
                  %6800 = vst [vmem:[%s6760 + $0x130] sm:$0xff] %v6799
                  %v6801 = vld [vmem:[%s6759 + $0xa0] sm:$0xff]
                  %6802 = vst [vmem:[%s6760 + $0x140] sm:$0xff] %v6801
                  %v6803 = vld [vmem:[%s6759 + $0xa8] sm:$0xff]
                  %6804 = vst [vmem:[%s6760 + $0x150] sm:$0xff] %v6803
                  %v6805 = vld [vmem:[%s6759 + $0xb0] sm:$0xff]
                  %6806 = vst [vmem:[%s6760 + $0x160] sm:$0xff] %v6805
                  %v6807 = vld [vmem:[%s6759 + $0xb8] sm:$0xff]
                  %6808 = vst [vmem:[%s6760 + $0x170] sm:$0xff] %v6807
                  %v6809 = vld [vmem:[%s6759 + $0xc0] sm:$0xff]
                  %6810 = vst [vmem:[%s6760 + $0x180] sm:$0xff] %v6809
                  %v6811 = vld [vmem:[%s6759 + $0xc8] sm:$0xff]
                  %6812 = vst [vmem:[%s6760 + $0x190] sm:$0xff] %v6811
                  %v6813 = vld [vmem:[%s6759 + $0xd0] sm:$0xff]
                  %6814 = vst [vmem:[%s6760 + $0x1a0] sm:$0xff] %v6813
                  %v6815 = vld [vmem:[%s6759 + $0xd8] sm:$0xff]
                  %6816 = vst [vmem:[%s6760 + $0x1b0] sm:$0xff] %v6815
                  %v6817 = vld [vmem:[%s6759 + $0xe0] sm:$0xff]
                  %6818 = vst [vmem:[%s6760 + $0x1c0] sm:$0xff] %v6817
                  %v6819 = vld [vmem:[%s6759 + $0xe8] sm:$0xff]
                  %6820 = vst [vmem:[%s6760 + $0x1d0] sm:$0xff] %v6819
                  %v6821 = vld [vmem:[%s6759 + $0xf0] sm:$0xff]
                  %6822 = vst [vmem:[%s6760 + $0x1e0] sm:$0xff] %v6821
                  %v6823 = vld [vmem:[%s6759 + $0xf8] sm:$0xff]
                  %6824 = vst [vmem:[%s6760 + $0x1f0] sm:$0xff] %v6823
                $region101: #{conv2d_3x3_s2_p1.1} parent=95 // loop_footer
                  %s6758 = sadd.s32 1, %s6754
                $region102: #{conv2d_3x3_s2_p1.1} parent=95 // loop_footer_branch
                  %6753 = sbr.rel target = $region98
                $region103: #{conv2d_3x3_s2_p1.1} parent=95 // loop_exit
                  _
              $region96: #{conv2d_3x3_s2_p1.1} parent=80 // pred_fallthru
                _
              // Predicated region
              $region104: #{conv2d_3x3_s2_p1.1} parent=80 // pred_check
                _
              $region105: #{conv2d_3x3_s2_p1.1} parent=80 // pred_check_branch
                %6826 = sbr.rel target = $region107
              $region106: #{conv2d_3x3_s2_p1.1} parent=80 // pred_region
                _
              $region107: #{conv2d_3x3_s2_p1.1} parent=80 // pred_fallthru
                _
            $region81: #{conv2d_3x3_s2_p1.1} parent=76 // pred_fallthru
              _
            // Predicated region
            $region82: #{conv2d_3x3_s2_p1.1} parent=76 // pred_check
              _
            $region83: #{conv2d_3x3_s2_p1.1} parent=76 // pred_check_branch
              %6677 = sbr.rel target = $region85
            $region84: #{conv2d_3x3_s2_p1.1} parent=76 // pred_region
              loop: start=0, step=1, limit=1
              $region86: #{conv2d_3x3_s2_p1.1} parent=84 // loop_pre_header
                _
              $region87: #{conv2d_3x3_s2_p1.1} parent=84 // loop_header
                %s6680 = sphi 0, %s6684
                %p6681 = scmp.ge.s32.totalorder %s6680, 1
                %s6685 = sphi %s6666, %s6666
                %s6686 = sphi %s6671, %s6671
              $region88: #{conv2d_3x3_s2_p1.1} parent=84 // loop_header_branch
                %6683 = sbr.rel (%p6681) target = $region92
              $region89: #{conv2d_3x3_s2_p1.1} parent=84 // loop_body
                %v6687 = vld [vmem:[%s6685] sm:$0xff]
                %6688 = vst [vmem:[%s6686] sm:$0xff] %v6687
                %v6689 = vld [vmem:[%s6685 + $0x8] sm:$0xff]
                %6690 = vst [vmem:[%s6686 + $0x10] sm:$0xff] %v6689
                %v6691 = vld [vmem:[%s6685 + $0x10] sm:$0xff]
                %6692 = vst [vmem:[%s6686 + $0x20] sm:$0xff] %v6691
                %v6693 = vld [vmem:[%s6685 + $0x18] sm:$0xff]
                %6694 = vst [vmem:[%s6686 + $0x30] sm:$0xff] %v6693
                %v6695 = vld [vmem:[%s6685 + $0x20] sm:$0xff]
                %6696 = vst [vmem:[%s6686 + $0x40] sm:$0xff] %v6695
                %v6697 = vld [vmem:[%s6685 + $0x28] sm:$0xff]
                %6698 = vst [vmem:[%s6686 + $0x50] sm:$0xff] %v6697
                %v6699 = vld [vmem:[%s6685 + $0x30] sm:$0xff]
                %6700 = vst [vmem:[%s6686 + $0x60] sm:$0xff] %v6699
                %v6701 = vld [vmem:[%s6685 + $0x38] sm:$0xff]
                %6702 = vst [vmem:[%s6686 + $0x70] sm:$0xff] %v6701
                %v6703 = vld [vmem:[%s6685 + $0x40] sm:$0xff]
                %6704 = vst [vmem:[%s6686 + $0x80] sm:$0xff] %v6703
                %v6705 = vld [vmem:[%s6685 + $0x48] sm:$0xff]
                %6706 = vst [vmem:[%s6686 + $0x90] sm:$0xff] %v6705
                %v6707 = vld [vmem:[%s6685 + $0x50] sm:$0xff]
                %6708 = vst [vmem:[%s6686 + $0xa0] sm:$0xff] %v6707
                %v6709 = vld [vmem:[%s6685 + $0x58] sm:$0xff]
                %6710 = vst [vmem:[%s6686 + $0xb0] sm:$0xff] %v6709
                %v6711 = vld [vmem:[%s6685 + $0x60] sm:$0xff]
                %6712 = vst [vmem:[%s6686 + $0xc0] sm:$0xff] %v6711
                %v6713 = vld [vmem:[%s6685 + $0x68] sm:$0xff]
                %6714 = vst [vmem:[%s6686 + $0xd0] sm:$0xff] %v6713
                %v6715 = vld [vmem:[%s6685 + $0x70] sm:$0xff]
                %6716 = vst [vmem:[%s6686 + $0xe0] sm:$0xff] %v6715
                %v6717 = vld [vmem:[%s6685 + $0x78] sm:$0xff]
                %6718 = vst [vmem:[%s6686 + $0xf0] sm:$0xff] %v6717
                %v6719 = vld [vmem:[%s6685 + $0x80] sm:$0xff]
                %6720 = vst [vmem:[%s6686 + $0x100] sm:$0xff] %v6719
                %v6721 = vld [vmem:[%s6685 + $0x88] sm:$0xff]
                %6722 = vst [vmem:[%s6686 + $0x110] sm:$0xff] %v6721
                %v6723 = vld [vmem:[%s6685 + $0x90] sm:$0xff]
                %6724 = vst [vmem:[%s6686 + $0x120] sm:$0xff] %v6723
                %v6725 = vld [vmem:[%s6685 + $0x98] sm:$0xff]
                %6726 = vst [vmem:[%s6686 + $0x130] sm:$0xff] %v6725
                %v6727 = vld [vmem:[%s6685 + $0xa0] sm:$0xff]
                %6728 = vst [vmem:[%s6686 + $0x140] sm:$0xff] %v6727
                %v6729 = vld [vmem:[%s6685 + $0xa8] sm:$0xff]
                %6730 = vst [vmem:[%s6686 + $0x150] sm:$0xff] %v6729
                %v6731 = vld [vmem:[%s6685 + $0xb0] sm:$0xff]
                %6732 = vst [vmem:[%s6686 + $0x160] sm:$0xff] %v6731
                %v6733 = vld [vmem:[%s6685 + $0xb8] sm:$0xff]
                %6734 = vst [vmem:[%s6686 + $0x170] sm:$0xff] %v6733
                %v6735 = vld [vmem:[%s6685 + $0xc0] sm:$0xff]
                %6736 = vst [vmem:[%s6686 + $0x180] sm:$0xff] %v6735
                %v6737 = vld [vmem:[%s6685 + $0xc8] sm:$0xff]
                %6738 = vst [vmem:[%s6686 + $0x190] sm:$0xff] %v6737
                %v6739 = vld [vmem:[%s6685 + $0xd0] sm:$0xff]
                %6740 = vst [vmem:[%s6686 + $0x1a0] sm:$0xff] %v6739
                %v6741 = vld [vmem:[%s6685 + $0xd8] sm:$0xff]
                %6742 = vst [vmem:[%s6686 + $0x1b0] sm:$0xff] %v6741
                %v6743 = vld [vmem:[%s6685 + $0xe0] sm:$0xff]
                %6744 = vst [vmem:[%s6686 + $0x1c0] sm:$0xff] %v6743
                %v6745 = vld [vmem:[%s6685 + $0xe8] sm:$0xff]
                %6746 = vst [vmem:[%s6686 + $0x1d0] sm:$0xff] %v6745
                %v6747 = vld [vmem:[%s6685 + $0xf0] sm:$0xff]
                %6748 = vst [vmem:[%s6686 + $0x1e0] sm:$0xff] %v6747
                %v6749 = vld [vmem:[%s6685 + $0xf8] sm:$0xff]
                %6750 = vst [vmem:[%s6686 + $0x1f0] sm:$0xff] %v6749
              $region90: #{conv2d_3x3_s2_p1.1} parent=84 // loop_footer
                %s6684 = sadd.s32 1, %s6680
              $region91: #{conv2d_3x3_s2_p1.1} parent=84 // loop_footer_branch
                %6679 = sbr.rel target = $region87
              $region92: #{conv2d_3x3_s2_p1.1} parent=84 // loop_exit
                _
            $region85: #{conv2d_3x3_s2_p1.1} parent=76 // pred_fallthru
              _
          $region77: #{conv2d_3x3_s2_p1.1} parent=72 // pred_fallthru
            _
          %6827 = vnop
        $region73: #{conv2d_3x3_s2_p1.1} parent=64 // pred_fallthru
          _
      $region65: #{conv2d_3x3_s2_p1.1} parent=5 // pred_fallthru
        _
      %p6828 = scmp.le.s32.totalorder 2, %s8
      // Predicated region
      $region108: #{conv2d_3x3_s2_p1.1} parent=5 // pred_check
        %p6829 = pneg %p6828
      $region109: #{conv2d_3x3_s2_p1.1} parent=5 // pred_check_branch
        %6831 = sbr.rel (%p6829) target = $region111
      $region110: #{conv2d_3x3_s2_p1.1} parent=5 // pred_region
        %s6832 = ssub.s32 %s8, 2
        // Predicated region
        $region112: #{conv2d_3x3_s2_p1.1} parent=110 // pred_check
          %p6833 = pneg %p84
        $region113: #{conv2d_3x3_s2_p1.1} parent=110 // pred_check_branch
          %6835 = sbr.rel (%p6833) target = $region115
        $region114: #{conv2d_3x3_s2_p1.1} parent=110 // pred_region
          %s6836 = sand.u32 %s69, 1
          %s6837 = sand.u32 %s69, 1
          %s6838 = smul.addr %s6837, 256
          %s6839 = scalar_lea.vmem [#allocation3], %s6838
        $region115: #{conv2d_3x3_s2_p1.1} parent=110 // pred_fallthru
          _
      $region111: #{conv2d_3x3_s2_p1.1} parent=5 // pred_fallthru
        _
    $region6: #{conv2d_3x3_s2_p1.1} parent=1 // loop_footer
      %s12 = sadd.s32 1, %s8
    $region7: #{conv2d_3x3_s2_p1.1} parent=1 // loop_footer_branch
      %7 = sbr.rel target = $region3
    $region8: #{conv2d_3x3_s2_p1.1} parent=1 // loop_exit
      _

</llo_original>
